<compile_context>
chip_gen: v7x
topology: tpu7x:2x2x1
jax: 0.10.0
libtpu: 0.0.40
codegen_flags: <defaults>
</compile_context>

<pallas_src>
import functools

import numpy as np
import jax
import jax.numpy as jnp
from jax import lax
from jax.experimental import pallas as pl
from jax.experimental.pallas import tpu as pltpu

NB = 8            # samples packed into the lane dimension per grid step
IN_H, IN_W = 256, 2
C3 = 16           # conv3 output channels  (width-pool fold distance in lanes)
C5, H5 = 16, 16   # conv5 output channels / rows (flatten = c*16 + h)


# ------------------------------- fused kernel -------------------------------

def wisig_kernel(x_ref,
                 w1, b1, w2, b2, w3, b3, w4, b4, w5, b5,
                 s1, s2, s3, s4, sel,
                 fw1, fb1, fw2, fb2, fw3, fb3,
                 out_ref):
    f32 = jnp.float32
    mxu = w1.dtype                    # MXU operand dtype (f32 or bf16); accumulation is f32

    def taps(a):
        """(H, L) -> (H, 3L): [a[h-1], a[h], a[h+1]] with zero rows at the 'same' pad."""
        hh, ll = a.shape
        rid = lax.broadcasted_iota(jnp.int32, (hh, ll), 0)
        up = jnp.where(rid == 0, 0.0, pltpu.roll(a, 1, axis=0))           # a[h-1]
        dn = jnp.where(rid == hh - 1, 0.0, pltpu.roll(a, hh - 1, axis=0)) # a[h+1]
        return jnp.concatenate([up, a, dn], axis=1)

    def conv(a, w_ref, b_ref):
        x3 = taps(a).astype(mxu)
        return jnp.dot(x3, w_ref[...], preferred_element_type=f32) + b_ref[...]

    def pool_h(y, s_ref):
        hh = y.shape[0]
        m = jnp.maximum(y, pltpu.roll(y, hh - 1, axis=0))                 # max(y[h], y[h+1])
        return jnp.dot(s_ref[...], m.astype(mxu), preferred_element_type=f32)

    relu = lambda v: jnp.maximum(v, 0.0)

    a = x_ref[0].astype(f32)                                  # (256, NB*2)

    a = pool_h(relu(conv(a, w1, b1)), s1)                     # (128, NB*16)
    a = pool_h(relu(conv(a, w2, b2)), s2)                     # (64,  NB*32)
    a = pool_h(relu(conv(a, w3, b3)), s3)                     # (32,  NB*32)
    # MaxPool2d((2,2)) width half: fold each sample's w=1 lanes onto its w=0 lanes.
    ll = a.shape[1]
    a = jnp.maximum(a, pltpu.roll(a, ll - C3, axis=1))        # valid data in first 16 lanes/sample
    a = pool_h(relu(conv(a, w4, b4)), s4)                     # (16,  NB*32)
    y5 = conv(a, w5, b5)                                      # (16,  NB*16)  (no ReLU)

    # PyTorch NCHW Flatten => flat index = c*16 + h.  Build (NB, 256) batch-major rows.
    y5t = y5.T.astype(mxu)                                    # (NB*16, 16): row n*16+c, lane h
    feat = jnp.concatenate(
        [jnp.dot(sel[c], y5t, preferred_element_type=f32) for c in range(C5)],
        axis=1)                                               # (NB, 256), lane = c*16 + h

    h = relu(jnp.dot(feat.astype(mxu), fw1[...], preferred_element_type=f32) + fb1[...])
    h = relu(jnp.dot(h.astype(mxu), fw2[...], preferred_element_type=f32) + fb2[...])
    # TODO(synk): nn.Dropout(p=0.5) implemented as eval-mode identity; train-mode masking not implemented.
    logits = jnp.dot(h.astype(mxu), fw3[...], preferred_element_type=f32) + fb3[...]
    out_ref[...] = logits.astype(out_ref.dtype)


# --------------------------- host-side weight packing ---------------------------

def _per_tap_mats(w, w_in, w_out):
    """torch conv weight (Cout,Cin,kh,kw) -> (kh, w_in*Cin, w_out*Cout) per-tap matrices."""
    w = np.asarray(w, np.float32)
    cout, cin, kh, kw = w.shape
    m = np.zeros((kh, w_in * cin, w_out * cout), np.float32)
    for dh in range(kh):
        for wo in range(w_out):
            for wi in range(w_in):
                dw = wi - wo                       # 'same' with right/bottom-only extra pad
                if 0 <= dw < kw:
                    m[dh, wi * cin:(wi + 1) * cin, wo * cout:(wo + 1) * cout] = w[:, :, dh, dw].T
    return m


def _pack_conv(w, b, nb, w_in, w_out, mxu_dtype):
    """Block-diagonal (over NB samples) weight with 3 taps stacked along K, plus packed bias."""
    m = _per_tap_mats(w, w_in, w_out)              # (3, G_in, G_out)
    kh, gi, go = m.shape
    wp = np.zeros((kh, nb, gi, nb, go), np.float32)
    for n in range(nb):
        wp[:, n, :, n, :] = m
    wp = wp.reshape(kh * nb * gi, nb * go)
    bp = np.tile(np.tile(np.asarray(b, np.float32), w_out), nb).reshape(1, nb * go)
    return jnp.asarray(wp, mxu_dtype), jnp.asarray(bp, jnp.float32)


def _pool_select(h, mxu_dtype):
    s = np.zeros((h // 2, h), np.float32)
    s[np.arange(h // 2), 2 * np.arange(h // 2)] = 1.0
    return jnp.asarray(s, mxu_dtype)


def _flatten_select(nb, c5, mxu_dtype):
    sel = np.zeros((c5, nb, nb * c5), np.float32)
    for c in range(c5):
        for n in range(nb):
            sel[c, n, n * c5 + c] = 1.0
    return jnp.asarray(sel, mxu_dtype)


def _pad2(a, rows, cols):
    a = np.asarray(a, np.float32)
    out = np.zeros((rows, cols), np.float32)
    out[: a.shape[0], : a.shape[1]] = a
    return out


def prepare_params(p, nb=NB, mxu_dtype=jnp.float32):
    num_classes = p["fw3"].shape[0]
    ncp = ((num_classes + 127) // 128) * 128       # pad classes to a lane-dense multiple of 128

    w1, b1 = _pack_conv(p["cw1"], p["cb1"], nb, 2, 2, mxu_dtype)
    w2, b2 = _pack_conv(p["cw2"], p["cb2"], nb, 2, 2, mxu_dtype)
    w3, b3 = _pack_conv(p["cw3"], p["cb3"], nb, 2, 2, mxu_dtype)
    w4, b4 = _pack_conv(p["cw4"], p["cb4"], nb, 2, 1, mxu_dtype)   # dead width lanes zero-weighted
    w5, b5 = _pack_conv(p["cw5"], p["cb5"], nb, 1, 1, mxu_dtype)

    return dict(
        w1=w1, b1=b1, w2=w2, b2=b2, w3=w3, b3=b3, w4=w4, b4=b4, w5=w5, b5=b5,
        s256=_pool_select(256, mxu_dtype), s128=_pool_select(128, mxu_dtype),
        s64=_pool_select(64, mxu_dtype), s32=_pool_select(32, mxu_dtype),
        sel=_flatten_select(nb, C5, mxu_dtype),
        fw1p=jnp.asarray(_pad2(np.asarray(p["fw1"], np.float32).T, 256, 128), mxu_dtype),
        fb1p=jnp.asarray(_pad2(np.asarray(p["fb1"], np.float32).reshape(1, -1), 1, 128), jnp.float32),
        fw2p=jnp.asarray(_pad2(np.asarray(p["fw2"], np.float32).T, 128, 128), mxu_dtype),
        fb2p=jnp.asarray(_pad2(np.asarray(p["fb2"], np.float32).reshape(1, -1), 1, 128), jnp.float32),
        fw3p=jnp.asarray(_pad2(np.asarray(p["fw3"], np.float32).T, 128, ncp), mxu_dtype),
        fb3p=jnp.asarray(_pad2(np.asarray(p["fb3"], np.float32).reshape(1, -1), 1, ncp), jnp.float32),
    )


# ------------------------------- forward wrapper -------------------------------

def wisig_forward(x, pk, *, nb=NB, num_classes=150):
    n, c, h, w = x.shape
    assert (c, h, w) == (1, IN_H, IN_W)
    t = (n + nb - 1) // nb
    n_pad = t * nb
    xp = jnp.pad(x, ((0, n_pad - n), (0, 0), (0, 0), (0, 0)))
    # (T, 256, NB*2) with lane = sample*2 + width_col
    x_in = jnp.transpose(xp[:, 0].reshape(t, nb, IN_H, IN_W), (0, 2, 1, 3)).reshape(t, IN_H, nb * IN_W)

    consts = [pk["w1"], pk["b1"], pk["w2"], pk["b2"], pk["w3"], pk["b3"],
              pk["w4"], pk["b4"], pk["w5"], pk["b5"],
              pk["s256"], pk["s128"], pk["s64"], pk["s32"], pk["sel"],
              pk["fw1p"], pk["fb1p"], pk["fw2p"], pk["fb2p"], pk["fw3p"], pk["fb3p"]]
    ncp = pk["fw3p"].shape[1]

    in_specs = [pl.BlockSpec((1, IN_H, nb * IN_W), lambda i: (i, 0, 0))]
    for a in consts:
        in_specs.append(pl.BlockSpec(a.shape, lambda i, z=(0,) * a.ndim: z))

    out = pl.pallas_call(
        wisig_kernel,
        out_shape=jax.ShapeDtypeStruct((n_pad, ncp), jnp.float32),
        grid=(t,),
        in_specs=in_specs,
        out_specs=pl.BlockSpec((nb, ncp), lambda i: (i, 0)),
        compiler_params=pltpu.CompilerParams(dimension_semantics=("parallel",)),
    )(x_in, *consts)
    return out[:n, :num_classes]


# ------------------------- params & pure-JAX reference -------------------------

def init_params(key, num_classes=150):
    ks = jax.random.split(key, 16)

    def conv_w(k, cout, cin, kh, kw):
        std = (2.0 / (kh * kw * cin)) ** 0.5
        return std * jax.random.normal(k, (cout, cin, kh, kw), jnp.float32)

    def lin_w(k, dout, din):
        std = (2.0 / din) ** 0.5
        return std * jax.random.normal(k, (dout, din), jnp.float32)

    def bias(k, m):
        return 0.1 * jax.random.normal(k, (m,), jnp.float32)

    return dict(
        cw1=conv_w(ks[0], 8, 1, 3, 2),    cb1=bias(ks[1], 8),
        cw2=conv_w(ks[2], 16, 8, 3, 2),   cb2=bias(ks[3], 16),
        cw3=conv_w(ks[4], 16, 16, 3, 2),  cb3=bias(ks[5], 16),
        cw4=conv_w(ks[6], 32, 16, 3, 1),  cb4=bias(ks[7], 32),
        cw5=conv_w(ks[8], 16, 32, 3, 1),  cb5=bias(ks[9], 16),
        fw1=lin_w(ks[10], 100, 256),      fb1=bias(ks[11], 100),
        fw2=lin_w(ks[12], 80, 100),       fb2=bias(ks[13], 80),
        fw3=lin_w(ks[14], num_classes, 80), fb3=bias(ks[15], num_classes),
    )


def reference_forward(x, p):
    """Pure-JAX (XLA) replica of the PyTorch forward, HIGHEST precision for a tight check."""
    hp = lax.Precision.HIGHEST

    def conv(y, w, b, pad_w):
        out = lax.conv_general_dilated(
            y, w, window_strides=(1, 1), padding=((1, 1), pad_w),
            dimension_numbers=("NCHW", "OIHW", "NCHW"), precision=hp)
        return out + b.reshape(1, -1, 1, 1)

    def maxpool(y, kh, kw):
        return lax.reduce_window(y, -jnp.inf, lax.max,
                                 window_dimensions=(1, 1, kh, kw),
                                 window_strides=(1, 1, kh, kw),
                                 padding="VALID")

    y = maxpool(jax.nn.relu(conv(x, p["cw1"], p["cb1"], (0, 1))), 2, 1)
    y = maxpool(jax.nn.relu(conv(y, p["cw2"], p["cb2"], (0, 1))), 2, 1)
    y = maxpool(jax.nn.relu(conv(y, p["cw3"], p["cb3"], (0, 1))), 2, 2)
    y = maxpool(jax.nn.relu(conv(y, p["cw4"], p["cb4"], (0, 0))), 2, 1)
    y = conv(y, p["cw5"], p["cb5"], (0, 0))
    f = y.reshape(y.shape[0], -1)                  # NCHW flatten -> index c*16 + h
    h = jax.nn.relu(jnp.dot(f, p["fw1"].T, precision=hp) + p["fb1"])
    h = jax.nn.relu(jnp.dot(h, p["fw2"].T, precision=hp) + p["fb2"])
    return jnp.dot(h, p["fw3"].T, precision=hp) + p["fb3"]


# ------------------------------------ main ------------------------------------

if __name__ == "__main__":
    key = jax.random.PRNGKey(0)
    kx, kp = jax.random.split(key)

    num_classes = 150
    n = 12                                         # not a multiple of NB: exercises batch padding
    x = jax.random.normal(kx, (n, 1, IN_H, IN_W), jnp.float32)
    params = init_params(kp, num_classes=num_classes)

    ref = reference_forward(x, params)
    fwd = jax.jit(functools.partial(wisig_forward, nb=NB, num_classes=num_classes))

    # f32 MXU operands: tight check (~100x tighter than before; room for accumulation-order diffs).
    pk_f32 = prepare_params(params, nb=NB, mxu_dtype=jnp.float32)
    out_f32 = jax.block_until_ready(fwd(x, pk_f32))
    assert out_f32.shape == (n, num_classes)
    np.testing.assert_allclose(np.asarray(out_f32), np.asarray(ref), rtol=5e-4, atol=5e-4)

    # bf16 MXU operands (v6e/v7x fast path; f32 accumulation & VPU math): loose check,
    # tolerance sized for bf16 operand rounding through 8 matmul layers.
    pk_bf16 = prepare_params(params, nb=NB, mxu_dtype=jnp.bfloat16)
    out_bf16 = jax.block_until_ready(fwd(x, pk_bf16))
    np.testing.assert_allclose(np.asarray(out_bf16), np.asarray(ref), rtol=5e-2, atol=1e-1)

    print("KERNEL_OK")
</pallas_src>

<mosaic_0001>
module attributes {stable_mosaic.version = 11 : i64} {
  func.func @wisig_kernel(%arg0: i32, %arg1: memref<1x256x16xf32, #tpu.memory_space<vmem>>, %arg2: memref<48x128xf32, #tpu.memory_space<vmem>>, %arg3: memref<1x128xf32, #tpu.memory_space<vmem>>, %arg4: memref<384x256xf32, #tpu.memory_space<vmem>>, %arg5: memref<1x256xf32, #tpu.memory_space<vmem>>, %arg6: memref<768x256xf32, #tpu.memory_space<vmem>>, %arg7: memref<1x256xf32, #tpu.memory_space<vmem>>, %arg8: memref<768x256xf32, #tpu.memory_space<vmem>>, %arg9: memref<1x256xf32, #tpu.memory_space<vmem>>, %arg10: memref<768x128xf32, #tpu.memory_space<vmem>>, %arg11: memref<1x128xf32, #tpu.memory_space<vmem>>, %arg12: memref<128x256xf32, #tpu.memory_space<vmem>>, %arg13: memref<64x128xf32, #tpu.memory_space<vmem>>, %arg14: memref<32x64xf32, #tpu.memory_space<vmem>>, %arg15: memref<16x32xf32, #tpu.memory_space<vmem>>, %arg16: memref<16x8x128xf32, #tpu.memory_space<vmem>>, %arg17: memref<256x128xf32, #tpu.memory_space<vmem>>, %arg18: memref<1x128xf32, #tpu.memory_space<vmem>>, %arg19: memref<128x128xf32, #tpu.memory_space<vmem>>, %arg20: memref<1x128xf32, #tpu.memory_space<vmem>>, %arg21: memref<128x256xf32, #tpu.memory_space<vmem>>, %arg22: memref<1x256xf32, #tpu.memory_space<vmem>>, %arg23: memref<8x256xf32, #tpu.memory_space<vmem>>) attributes {dimension_semantics = [#tpu.dimension_semantics<parallel>], iteration_bounds = array<i64: 2>, scalar_prefetch = 0 : i64, scratch_operands = 0 : i64, tpu.core_type = #tpu.core_type<tc>, window_params = [{transform_indices = @transform_0, window_bounds = array<i64: 1, 256, 16>}, {pipeline_mode = #tpu.pipeline_mode<synchronous>, transform_indices = @transform_1, window_bounds = array<i64: 48, 128>}, {pipeline_mode = #tpu.pipeline_mode<synchronous>, transform_indices = @transform_2, window_bounds = array<i64: 1, 128>}, {pipeline_mode = #tpu.pipeline_mode<synchronous>, transform_indices = @transform_3, window_bounds = array<i64: 384, 256>}, {pipeline_mode = #tpu.pipeline_mode<synchronous>, transform_indices = @transform_4, window_bounds = array<i64: 1, 256>}, {pipeline_mode = #tpu.pipeline_mode<synchronous>, transform_indices = @transform_5, window_bounds = array<i64: 768, 256>}, {pipeline_mode = #tpu.pipeline_mode<synchronous>, transform_indices = @transform_6, window_bounds = array<i64: 1, 256>}, {pipeline_mode = #tpu.pipeline_mode<synchronous>, transform_indices = @transform_7, window_bounds = array<i64: 768, 256>}, {pipeline_mode = #tpu.pipeline_mode<synchronous>, transform_indices = @transform_8, window_bounds = array<i64: 1, 256>}, {pipeline_mode = #tpu.pipeline_mode<synchronous>, transform_indices = @transform_9, window_bounds = array<i64: 768, 128>}, {pipeline_mode = #tpu.pipeline_mode<synchronous>, transform_indices = @transform_10, window_bounds = array<i64: 1, 128>}, {pipeline_mode = #tpu.pipeline_mode<synchronous>, transform_indices = @transform_11, window_bounds = array<i64: 128, 256>}, {pipeline_mode = #tpu.pipeline_mode<synchronous>, transform_indices = @transform_12, window_bounds = array<i64: 64, 128>}, {pipeline_mode = #tpu.pipeline_mode<synchronous>, transform_indices = @transform_13, window_bounds = array<i64: 32, 64>}, {pipeline_mode = #tpu.pipeline_mode<synchronous>, transform_indices = @transform_14, window_bounds = array<i64: 16, 32>}, {pipeline_mode = #tpu.pipeline_mode<synchronous>, transform_indices = @transform_15, window_bounds = array<i64: 16, 8, 128>}, {pipeline_mode = #tpu.pipeline_mode<synchronous>, transform_indices = @transform_16, window_bounds = array<i64: 256, 128>}, {pipeline_mode = #tpu.pipeline_mode<synchronous>, transform_indices = @transform_17, window_bounds = array<i64: 1, 128>}, {pipeline_mode = #tpu.pipeline_mode<synchronous>, transform_indices = @transform_18, window_bounds = array<i64: 128, 128>}, {pipeline_mode = #tpu.pipeline_mode<synchronous>, transform_indices = @transform_19, window_bounds = array<i64: 1, 128>}, {pipeline_mode = #tpu.pipeline_mode<synchronous>, transform_indices = @transform_20, window_bounds = array<i64: 128, 256>}, {pipeline_mode = #tpu.pipeline_mode<synchronous>, transform_indices = @transform_21, window_bounds = array<i64: 1, 256>}, {transform_indices = @transform_22, window_bounds = array<i64: 8, 256>}]} {
    %c0 = arith.constant 0 : index
    %c0_0 = arith.constant 0 : index
    %c0_1 = arith.constant 0 : index
    %0 = vector.load %arg1[%c0, %c0_0, %c0_1] : memref<1x256x16xf32, #tpu.memory_space<vmem>>, vector<1x256x16xf32>
    %1 = vector.shape_cast %0 : vector<1x256x16xf32> to vector<256x16xf32>
    %2 = tpu.iota {dimensions = array<i32: 0>} : vector<256x16xi32>
    %c0_i32 = arith.constant 0 : i32
    %3 = vector.broadcast %c0_i32 : i32 to vector<256x16xi32>
    %4 = arith.cmpi eq, %2, %3 : vector<256x16xi32>
    %c1_i32 = arith.constant 1 : i32
    %5 = tpu.dynamic_rotate %1 by %c1_i32 dim 0 : vector<256x16xf32>, i32 -> vector<256x16xf32>
    %cst = arith.constant 0.000000e+00 : f32
    %6 = vector.broadcast %cst : f32 to vector<256x16xf32>
    %7 = arith.select %4, %6, %5 : vector<256x16xi1>, vector<256x16xf32>
    %c255_i32 = arith.constant 255 : i32
    %8 = vector.broadcast %c255_i32 : i32 to vector<256x16xi32>
    %9 = arith.cmpi eq, %2, %8 : vector<256x16xi32>
    %c255_i32_2 = arith.constant 255 : i32
    %10 = tpu.dynamic_rotate %1 by %c255_i32_2 dim 0 : vector<256x16xf32>, i32 -> vector<256x16xf32>
    %cst_3 = arith.constant 0.000000e+00 : f32
    %11 = vector.broadcast %cst_3 : f32 to vector<256x16xf32>
    %12 = arith.select %9, %11, %10 : vector<256x16xi1>, vector<256x16xf32>
    %13 = tpu.concatenate %7, %1, %12 in 1 : vector<256x16xf32>, vector<256x16xf32>, vector<256x16xf32> -> vector<256x48xf32>
    %c0_4 = arith.constant 0 : index
    %c0_5 = arith.constant 0 : index
    %14 = vector.load %arg2[%c0_4, %c0_5] : memref<48x128xf32, #tpu.memory_space<vmem>>, vector<48x128xf32>
    %cst_6 = arith.constant dense<0.000000e+00> : vector<256x128xf32>
    %15 = tpu.matmul %13, %14, %cst_6 {dimension_numbers = #tpu.dot_dimension_numbers<[1], [0], [0], [1], [0, 0, 1, 1], [], []>} : vector<256x48xf32>, vector<48x128xf32>, vector<256x128xf32> -> vector<256x128xf32>
    %c0_7 = arith.constant 0 : index
    %c0_8 = arith.constant 0 : index
    %16 = vector.load %arg3[%c0_7, %c0_8] : memref<1x128xf32, #tpu.memory_space<vmem>>, vector<1x128xf32>
    %17 = vector.broadcast %16 : vector<1x128xf32> to vector<256x128xf32>
    %18 = arith.addf %15, %17 : vector<256x128xf32>
    %cst_9 = arith.constant 0.000000e+00 : f32
    %19 = vector.broadcast %cst_9 : f32 to vector<256x128xf32>
    %20 = arith.maximumf %18, %19 : vector<256x128xf32>
    %c255_i32_10 = arith.constant 255 : i32
    %21 = tpu.dynamic_rotate %20 by %c255_i32_10 dim 0 : vector<256x128xf32>, i32 -> vector<256x128xf32>
    %22 = arith.maximumf %20, %21 : vector<256x128xf32>
    %c0_11 = arith.constant 0 : index
    %c0_12 = arith.constant 0 : index
    %23 = vector.load %arg12[%c0_11, %c0_12] : memref<128x256xf32, #tpu.memory_space<vmem>>, vector<128x256xf32>
    %cst_13 = arith.constant dense<0.000000e+00> : vector<128x128xf32>
    %24 = tpu.matmul %23, %22, %cst_13 {dimension_numbers = #tpu.dot_dimension_numbers<[1], [0], [0], [1], [0, 0, 1, 1], [], []>} : vector<128x256xf32>, vector<256x128xf32>, vector<128x128xf32> -> vector<128x128xf32>
    %25 = tpu.iota {dimensions = array<i32: 0>} : vector<128x128xi32>
    %c0_i32_14 = arith.constant 0 : i32
    %26 = vector.broadcast %c0_i32_14 : i32 to vector<128x128xi32>
    %27 = arith.cmpi eq, %25, %26 : vector<128x128xi32>
    %c1_i32_15 = arith.constant 1 : i32
    %28 = tpu.dynamic_rotate %24 by %c1_i32_15 dim 0 : vector<128x128xf32>, i32 -> vector<128x128xf32>
    %cst_16 = arith.constant 0.000000e+00 : f32
    %29 = vector.broadcast %cst_16 : f32 to vector<128x128xf32>
    %30 = arith.select %27, %29, %28 : vector<128x128xi1>, vector<128x128xf32>
    %c127_i32 = arith.constant 127 : i32
    %31 = vector.broadcast %c127_i32 : i32 to vector<128x128xi32>
    %32 = arith.cmpi eq, %25, %31 : vector<128x128xi32>
    %c127_i32_17 = arith.constant 127 : i32
    %33 = tpu.dynamic_rotate %24 by %c127_i32_17 dim 0 : vector<128x128xf32>, i32 -> vector<128x128xf32>
    %cst_18 = arith.constant 0.000000e+00 : f32
    %34 = vector.broadcast %cst_18 : f32 to vector<128x128xf32>
    %35 = arith.select %32, %34, %33 : vector<128x128xi1>, vector<128x128xf32>
    %36 = tpu.concatenate %30, %24, %35 in 1 : vector<128x128xf32>, vector<128x128xf32>, vector<128x128xf32> -> vector<128x384xf32>
    %c0_19 = arith.constant 0 : index
    %c0_20 = arith.constant 0 : index
    %37 = vector.load %arg4[%c0_19, %c0_20] : memref<384x256xf32, #tpu.memory_space<vmem>>, vector<384x256xf32>
    %cst_21 = arith.constant dense<0.000000e+00> : vector<128x256xf32>
    %38 = tpu.matmul %36, %37, %cst_21 {dimension_numbers = #tpu.dot_dimension_numbers<[1], [0], [0], [1], [0, 0, 1, 1], [], []>} : vector<128x384xf32>, vector<384x256xf32>, vector<128x256xf32> -> vector<128x256xf32>
    %c0_22 = arith.constant 0 : index
    %c0_23 = arith.constant 0 : index
    %39 = vector.load %arg5[%c0_22, %c0_23] : memref<1x256xf32, #tpu.memory_space<vmem>>, vector<1x256xf32>
    %40 = vector.broadcast %39 : vector<1x256xf32> to vector<128x256xf32>
    %41 = arith.addf %38, %40 : vector<128x256xf32>
    %cst_24 = arith.constant 0.000000e+00 : f32
    %42 = vector.broadcast %cst_24 : f32 to vector<128x256xf32>
    %43 = arith.maximumf %41, %42 : vector<128x256xf32>
    %c127_i32_25 = arith.constant 127 : i32
    %44 = tpu.dynamic_rotate %43 by %c127_i32_25 dim 0 : vector<128x256xf32>, i32 -> vector<128x256xf32>
    %45 = arith.maximumf %43, %44 : vector<128x256xf32>
    %c0_26 = arith.constant 0 : index
    %c0_27 = arith.constant 0 : index
    %46 = vector.load %arg13[%c0_26, %c0_27] : memref<64x128xf32, #tpu.memory_space<vmem>>, vector<64x128xf32>
    %cst_28 = arith.constant dense<0.000000e+00> : vector<64x256xf32>
    %47 = tpu.matmul %46, %45, %cst_28 {dimension_numbers = #tpu.dot_dimension_numbers<[1], [0], [0], [1], [0, 0, 1, 1], [], []>} : vector<64x128xf32>, vector<128x256xf32>, vector<64x256xf32> -> vector<64x256xf32>
    %48 = tpu.iota {dimensions = array<i32: 0>} : vector<64x256xi32>
    %c0_i32_29 = arith.constant 0 : i32
    %49 = vector.broadcast %c0_i32_29 : i32 to vector<64x256xi32>
    %50 = arith.cmpi eq, %48, %49 : vector<64x256xi32>
    %c1_i32_30 = arith.constant 1 : i32
    %51 = tpu.dynamic_rotate %47 by %c1_i32_30 dim 0 : vector<64x256xf32>, i32 -> vector<64x256xf32>
    %cst_31 = arith.constant 0.000000e+00 : f32
    %52 = vector.broadcast %cst_31 : f32 to vector<64x256xf32>
    %53 = arith.select %50, %52, %51 : vector<64x256xi1>, vector<64x256xf32>
    %c63_i32 = arith.constant 63 : i32
    %54 = vector.broadcast %c63_i32 : i32 to vector<64x256xi32>
    %55 = arith.cmpi eq, %48, %54 : vector<64x256xi32>
    %c63_i32_32 = arith.constant 63 : i32
    %56 = tpu.dynamic_rotate %47 by %c63_i32_32 dim 0 : vector<64x256xf32>, i32 -> vector<64x256xf32>
    %cst_33 = arith.constant 0.000000e+00 : f32
    %57 = vector.broadcast %cst_33 : f32 to vector<64x256xf32>
    %58 = arith.select %55, %57, %56 : vector<64x256xi1>, vector<64x256xf32>
    %59 = tpu.concatenate %53, %47, %58 in 1 : vector<64x256xf32>, vector<64x256xf32>, vector<64x256xf32> -> vector<64x768xf32>
    %c0_34 = arith.constant 0 : index
    %c0_35 = arith.constant 0 : index
    %60 = vector.load %arg6[%c0_34, %c0_35] : memref<768x256xf32, #tpu.memory_space<vmem>>, vector<768x256xf32>
    %cst_36 = arith.constant dense<0.000000e+00> : vector<64x256xf32>
    %61 = tpu.matmul %59, %60, %cst_36 {dimension_numbers = #tpu.dot_dimension_numbers<[1], [0], [0], [1], [0, 0, 1, 1], [], []>} : vector<64x768xf32>, vector<768x256xf32>, vector<64x256xf32> -> vector<64x256xf32>
    %c0_37 = arith.constant 0 : index
    %c0_38 = arith.constant 0 : index
    %62 = vector.load %arg7[%c0_37, %c0_38] : memref<1x256xf32, #tpu.memory_space<vmem>>, vector<1x256xf32>
    %63 = vector.broadcast %62 : vector<1x256xf32> to vector<64x256xf32>
    %64 = arith.addf %61, %63 : vector<64x256xf32>
    %cst_39 = arith.constant 0.000000e+00 : f32
    %65 = vector.broadcast %cst_39 : f32 to vector<64x256xf32>
    %66 = arith.maximumf %64, %65 : vector<64x256xf32>
    %c63_i32_40 = arith.constant 63 : i32
    %67 = tpu.dynamic_rotate %66 by %c63_i32_40 dim 0 : vector<64x256xf32>, i32 -> vector<64x256xf32>
    %68 = arith.maximumf %66, %67 : vector<64x256xf32>
    %c0_41 = arith.constant 0 : index
    %c0_42 = arith.constant 0 : index
    %69 = vector.load %arg14[%c0_41, %c0_42] : memref<32x64xf32, #tpu.memory_space<vmem>>, vector<32x64xf32>
    %cst_43 = arith.constant dense<0.000000e+00> : vector<32x256xf32>
    %70 = tpu.matmul %69, %68, %cst_43 {dimension_numbers = #tpu.dot_dimension_numbers<[1], [0], [0], [1], [0, 0, 1, 1], [], []>} : vector<32x64xf32>, vector<64x256xf32>, vector<32x256xf32> -> vector<32x256xf32>
    %c240_i32 = arith.constant 240 : i32
    %71 = tpu.dynamic_rotate %70 by %c240_i32 dim 1 : vector<32x256xf32>, i32 -> vector<32x256xf32>
    %72 = arith.maximumf %70, %71 : vector<32x256xf32>
    %73 = tpu.iota {dimensions = array<i32: 0>} : vector<32x256xi32>
    %c0_i32_44 = arith.constant 0 : i32
    %74 = vector.broadcast %c0_i32_44 : i32 to vector<32x256xi32>
    %75 = arith.cmpi eq, %73, %74 : vector<32x256xi32>
    %c1_i32_45 = arith.constant 1 : i32
    %76 = tpu.dynamic_rotate %72 by %c1_i32_45 dim 0 : vector<32x256xf32>, i32 -> vector<32x256xf32>
    %cst_46 = arith.constant 0.000000e+00 : f32
    %77 = vector.broadcast %cst_46 : f32 to vector<32x256xf32>
    %78 = arith.select %75, %77, %76 : vector<32x256xi1>, vector<32x256xf32>
    %c31_i32 = arith.constant 31 : i32
    %79 = vector.broadcast %c31_i32 : i32 to vector<32x256xi32>
    %80 = arith.cmpi eq, %73, %79 : vector<32x256xi32>
    %c31_i32_47 = arith.constant 31 : i32
    %81 = tpu.dynamic_rotate %72 by %c31_i32_47 dim 0 : vector<32x256xf32>, i32 -> vector<32x256xf32>
    %cst_48 = arith.constant 0.000000e+00 : f32
    %82 = vector.broadcast %cst_48 : f32 to vector<32x256xf32>
    %83 = arith.select %80, %82, %81 : vector<32x256xi1>, vector<32x256xf32>
    %84 = tpu.concatenate %78, %72, %83 in 1 : vector<32x256xf32>, vector<32x256xf32>, vector<32x256xf32> -> vector<32x768xf32>
    %c0_49 = arith.constant 0 : index
    %c0_50 = arith.constant 0 : index
    %85 = vector.load %arg8[%c0_49, %c0_50] : memref<768x256xf32, #tpu.memory_space<vmem>>, vector<768x256xf32>
    %cst_51 = arith.constant dense<0.000000e+00> : vector<32x256xf32>
    %86 = tpu.matmul %84, %85, %cst_51 {dimension_numbers = #tpu.dot_dimension_numbers<[1], [0], [0], [1], [0, 0, 1, 1], [], []>} : vector<32x768xf32>, vector<768x256xf32>, vector<32x256xf32> -> vector<32x256xf32>
    %c0_52 = arith.constant 0 : index
    %c0_53 = arith.constant 0 : index
    %87 = vector.load %arg9[%c0_52, %c0_53] : memref<1x256xf32, #tpu.memory_space<vmem>>, vector<1x256xf32>
    %88 = vector.broadcast %87 : vector<1x256xf32> to vector<32x256xf32>
    %89 = arith.addf %86, %88 : vector<32x256xf32>
    %cst_54 = arith.constant 0.000000e+00 : f32
    %90 = vector.broadcast %cst_54 : f32 to vector<32x256xf32>
    %91 = arith.maximumf %89, %90 : vector<32x256xf32>
    %c31_i32_55 = arith.constant 31 : i32
    %92 = tpu.dynamic_rotate %91 by %c31_i32_55 dim 0 : vector<32x256xf32>, i32 -> vector<32x256xf32>
    %93 = arith.maximumf %91, %92 : vector<32x256xf32>
    %c0_56 = arith.constant 0 : index
    %c0_57 = arith.constant 0 : index
    %94 = vector.load %arg15[%c0_56, %c0_57] : memref<16x32xf32, #tpu.memory_space<vmem>>, vector<16x32xf32>
    %cst_58 = arith.constant dense<0.000000e+00> : vector<16x256xf32>
    %95 = tpu.matmul %94, %93, %cst_58 {dimension_numbers = #tpu.dot_dimension_numbers<[1], [0], [0], [1], [0, 0, 1, 1], [], []>} : vector<16x32xf32>, vector<32x256xf32>, vector<16x256xf32> -> vector<16x256xf32>
    %96 = tpu.iota {dimensions = array<i32: 0>} : vector<16x256xi32>
    %c0_i32_59 = arith.constant 0 : i32
    %97 = vector.broadcast %c0_i32_59 : i32 to vector<16x256xi32>
    %98 = arith.cmpi eq, %96, %97 : vector<16x256xi32>
    %c1_i32_60 = arith.constant 1 : i32
    %99 = tpu.dynamic_rotate %95 by %c1_i32_60 dim 0 : vector<16x256xf32>, i32 -> vector<16x256xf32>
    %cst_61 = arith.constant 0.000000e+00 : f32
    %100 = vector.broadcast %cst_61 : f32 to vector<16x256xf32>
    %101 = arith.select %98, %100, %99 : vector<16x256xi1>, vector<16x256xf32>
    %c15_i32 = arith.constant 15 : i32
    %102 = vector.broadcast %c15_i32 : i32 to vector<16x256xi32>
    %103 = arith.cmpi eq, %96, %102 : vector<16x256xi32>
    %c15_i32_62 = arith.constant 15 : i32
    %104 = tpu.dynamic_rotate %95 by %c15_i32_62 dim 0 : vector<16x256xf32>, i32 -> vector<16x256xf32>
    %cst_63 = arith.constant 0.000000e+00 : f32
    %105 = vector.broadcast %cst_63 : f32 to vector<16x256xf32>
    %106 = arith.select %103, %105, %104 : vector<16x256xi1>, vector<16x256xf32>
    %107 = tpu.concatenate %101, %95, %106 in 1 : vector<16x256xf32>, vector<16x256xf32>, vector<16x256xf32> -> vector<16x768xf32>
    %c0_64 = arith.constant 0 : index
    %c0_65 = arith.constant 0 : index
    %108 = vector.load %arg10[%c0_64, %c0_65] : memref<768x128xf32, #tpu.memory_space<vmem>>, vector<768x128xf32>
    %cst_66 = arith.constant dense<0.000000e+00> : vector<16x128xf32>
    %109 = tpu.matmul %107, %108, %cst_66 {dimension_numbers = #tpu.dot_dimension_numbers<[1], [0], [0], [1], [0, 0, 1, 1], [], []>} : vector<16x768xf32>, vector<768x128xf32>, vector<16x128xf32> -> vector<16x128xf32>
    %c0_67 = arith.constant 0 : index
    %c0_68 = arith.constant 0 : index
    %110 = vector.load %arg11[%c0_67, %c0_68] : memref<1x128xf32, #tpu.memory_space<vmem>>, vector<1x128xf32>
    %111 = vector.broadcast %110 : vector<1x128xf32> to vector<16x128xf32>
    %112 = arith.addf %109, %111 : vector<16x128xf32>
    %113 = tpu.transpose %112, [1, 0] : vector<16x128xf32> -> vector<128x16xf32>
    %c0_69 = arith.constant 0 : index
    %c0_70 = arith.constant 0 : index
    %c0_71 = arith.constant 0 : index
    %114 = vector.load %arg16[%c0_69, %c0_70, %c0_71] : memref<16x8x128xf32, #tpu.memory_space<vmem>>, vector<1x8x128xf32>
    %115 = vector.shape_cast %114 : vector<1x8x128xf32> to vector<8x128xf32>
    %cst_72 = arith.constant dense<0.000000e+00> : vector<8x16xf32>
    %116 = tpu.matmul %115, %113, %cst_72 {dimension_numbers = #tpu.dot_dimension_numbers<[1], [0], [0], [1], [0, 0, 1, 1], [], []>} : vector<8x128xf32>, vector<128x16xf32>, vector<8x16xf32> -> vector<8x16xf32>
    %c1 = arith.constant 1 : index
    %c0_73 = arith.constant 0 : index
    %c0_74 = arith.constant 0 : index
    %117 = vector.load %arg16[%c1, %c0_73, %c0_74] : memref<16x8x128xf32, #tpu.memory_space<vmem>>, vector<1x8x128xf32>
    %118 = vector.shape_cast %117 : vector<1x8x128xf32> to vector<8x128xf32>
    %cst_75 = arith.constant dense<0.000000e+00> : vector<8x16xf32>
    %119 = tpu.matmul %118, %113, %cst_75 {dimension_numbers = #tpu.dot_dimension_numbers<[1], [0], [0], [1], [0, 0, 1, 1], [], []>} : vector<8x128xf32>, vector<128x16xf32>, vector<8x16xf32> -> vector<8x16xf32>
    %c2 = arith.constant 2 : index
    %c0_76 = arith.constant 0 : index
    %c0_77 = arith.constant 0 : index
    %120 = vector.load %arg16[%c2, %c0_76, %c0_77] : memref<16x8x128xf32, #tpu.memory_space<vmem>>, vector<1x8x128xf32>
    %121 = vector.shape_cast %120 : vector<1x8x128xf32> to vector<8x128xf32>
    %cst_78 = arith.constant dense<0.000000e+00> : vector<8x16xf32>
    %122 = tpu.matmul %121, %113, %cst_78 {dimension_numbers = #tpu.dot_dimension_numbers<[1], [0], [0], [1], [0, 0, 1, 1], [], []>} : vector<8x128xf32>, vector<128x16xf32>, vector<8x16xf32> -> vector<8x16xf32>
    %c3 = arith.constant 3 : index
    %c0_79 = arith.constant 0 : index
    %c0_80 = arith.constant 0 : index
    %123 = vector.load %arg16[%c3, %c0_79, %c0_80] : memref<16x8x128xf32, #tpu.memory_space<vmem>>, vector<1x8x128xf32>
    %124 = vector.shape_cast %123 : vector<1x8x128xf32> to vector<8x128xf32>
    %cst_81 = arith.constant dense<0.000000e+00> : vector<8x16xf32>
    %125 = tpu.matmul %124, %113, %cst_81 {dimension_numbers = #tpu.dot_dimension_numbers<[1], [0], [0], [1], [0, 0, 1, 1], [], []>} : vector<8x128xf32>, vector<128x16xf32>, vector<8x16xf32> -> vector<8x16xf32>
    %c4 = arith.constant 4 : index
    %c0_82 = arith.constant 0 : index
    %c0_83 = arith.constant 0 : index
    %126 = vector.load %arg16[%c4, %c0_82, %c0_83] : memref<16x8x128xf32, #tpu.memory_space<vmem>>, vector<1x8x128xf32>
    %127 = vector.shape_cast %126 : vector<1x8x128xf32> to vector<8x128xf32>
    %cst_84 = arith.constant dense<0.000000e+00> : vector<8x16xf32>
    %128 = tpu.matmul %127, %113, %cst_84 {dimension_numbers = #tpu.dot_dimension_numbers<[1], [0], [0], [1], [0, 0, 1, 1], [], []>} : vector<8x128xf32>, vector<128x16xf32>, vector<8x16xf32> -> vector<8x16xf32>
    %c5 = arith.constant 5 : index
    %c0_85 = arith.constant 0 : index
    %c0_86 = arith.constant 0 : index
    %129 = vector.load %arg16[%c5, %c0_85, %c0_86] : memref<16x8x128xf32, #tpu.memory_space<vmem>>, vector<1x8x128xf32>
    %130 = vector.shape_cast %129 : vector<1x8x128xf32> to vector<8x128xf32>
    %cst_87 = arith.constant dense<0.000000e+00> : vector<8x16xf32>
    %131 = tpu.matmul %130, %113, %cst_87 {dimension_numbers = #tpu.dot_dimension_numbers<[1], [0], [0], [1], [0, 0, 1, 1], [], []>} : vector<8x128xf32>, vector<128x16xf32>, vector<8x16xf32> -> vector<8x16xf32>
    %c6 = arith.constant 6 : index
    %c0_88 = arith.constant 0 : index
    %c0_89 = arith.constant 0 : index
    %132 = vector.load %arg16[%c6, %c0_88, %c0_89] : memref<16x8x128xf32, #tpu.memory_space<vmem>>, vector<1x8x128xf32>
    %133 = vector.shape_cast %132 : vector<1x8x128xf32> to vector<8x128xf32>
    %cst_90 = arith.constant dense<0.000000e+00> : vector<8x16xf32>
    %134 = tpu.matmul %133, %113, %cst_90 {dimension_numbers = #tpu.dot_dimension_numbers<[1], [0], [0], [1], [0, 0, 1, 1], [], []>} : vector<8x128xf32>, vector<128x16xf32>, vector<8x16xf32> -> vector<8x16xf32>
    %c7 = arith.constant 7 : index
    %c0_91 = arith.constant 0 : index
    %c0_92 = arith.constant 0 : index
    %135 = vector.load %arg16[%c7, %c0_91, %c0_92] : memref<16x8x128xf32, #tpu.memory_space<vmem>>, vector<1x8x128xf32>
    %136 = vector.shape_cast %135 : vector<1x8x128xf32> to vector<8x128xf32>
    %cst_93 = arith.constant dense<0.000000e+00> : vector<8x16xf32>
    %137 = tpu.matmul %136, %113, %cst_93 {dimension_numbers = #tpu.dot_dimension_numbers<[1], [0], [0], [1], [0, 0, 1, 1], [], []>} : vector<8x128xf32>, vector<128x16xf32>, vector<8x16xf32> -> vector<8x16xf32>
    %c8 = arith.constant 8 : index
    %c0_94 = arith.constant 0 : index
    %c0_95 = arith.constant 0 : index
    %138 = vector.load %arg16[%c8, %c0_94, %c0_95] : memref<16x8x128xf32, #tpu.memory_space<vmem>>, vector<1x8x128xf32>
    %139 = vector.shape_cast %138 : vector<1x8x128xf32> to vector<8x128xf32>
    %cst_96 = arith.constant dense<0.000000e+00> : vector<8x16xf32>
    %140 = tpu.matmul %139, %113, %cst_96 {dimension_numbers = #tpu.dot_dimension_numbers<[1], [0], [0], [1], [0, 0, 1, 1], [], []>} : vector<8x128xf32>, vector<128x16xf32>, vector<8x16xf32> -> vector<8x16xf32>
    %c9 = arith.constant 9 : index
    %c0_97 = arith.constant 0 : index
    %c0_98 = arith.constant 0 : index
    %141 = vector.load %arg16[%c9, %c0_97, %c0_98] : memref<16x8x128xf32, #tpu.memory_space<vmem>>, vector<1x8x128xf32>
    %142 = vector.shape_cast %141 : vector<1x8x128xf32> to vector<8x128xf32>
    %cst_99 = arith.constant dense<0.000000e+00> : vector<8x16xf32>
    %143 = tpu.matmul %142, %113, %cst_99 {dimension_numbers = #tpu.dot_dimension_numbers<[1], [0], [0], [1], [0, 0, 1, 1], [], []>} : vector<8x128xf32>, vector<128x16xf32>, vector<8x16xf32> -> vector<8x16xf32>
    %c10 = arith.constant 10 : index
    %c0_100 = arith.constant 0 : index
    %c0_101 = arith.constant 0 : index
    %144 = vector.load %arg16[%c10, %c0_100, %c0_101] : memref<16x8x128xf32, #tpu.memory_space<vmem>>, vector<1x8x128xf32>
    %145 = vector.shape_cast %144 : vector<1x8x128xf32> to vector<8x128xf32>
    %cst_102 = arith.constant dense<0.000000e+00> : vector<8x16xf32>
    %146 = tpu.matmul %145, %113, %cst_102 {dimension_numbers = #tpu.dot_dimension_numbers<[1], [0], [0], [1], [0, 0, 1, 1], [], []>} : vector<8x128xf32>, vector<128x16xf32>, vector<8x16xf32> -> vector<8x16xf32>
    %c11 = arith.constant 11 : index
    %c0_103 = arith.constant 0 : index
    %c0_104 = arith.constant 0 : index
    %147 = vector.load %arg16[%c11, %c0_103, %c0_104] : memref<16x8x128xf32, #tpu.memory_space<vmem>>, vector<1x8x128xf32>
    %148 = vector.shape_cast %147 : vector<1x8x128xf32> to vector<8x128xf32>
    %cst_105 = arith.constant dense<0.000000e+00> : vector<8x16xf32>
    %149 = tpu.matmul %148, %113, %cst_105 {dimension_numbers = #tpu.dot_dimension_numbers<[1], [0], [0], [1], [0, 0, 1, 1], [], []>} : vector<8x128xf32>, vector<128x16xf32>, vector<8x16xf32> -> vector<8x16xf32>
    %c12 = arith.constant 12 : index
    %c0_106 = arith.constant 0 : index
    %c0_107 = arith.constant 0 : index
    %150 = vector.load %arg16[%c12, %c0_106, %c0_107] : memref<16x8x128xf32, #tpu.memory_space<vmem>>, vector<1x8x128xf32>
    %151 = vector.shape_cast %150 : vector<1x8x128xf32> to vector<8x128xf32>
    %cst_108 = arith.constant dense<0.000000e+00> : vector<8x16xf32>
    %152 = tpu.matmul %151, %113, %cst_108 {dimension_numbers = #tpu.dot_dimension_numbers<[1], [0], [0], [1], [0, 0, 1, 1], [], []>} : vector<8x128xf32>, vector<128x16xf32>, vector<8x16xf32> -> vector<8x16xf32>
    %c13 = arith.constant 13 : index
    %c0_109 = arith.constant 0 : index
    %c0_110 = arith.constant 0 : index
    %153 = vector.load %arg16[%c13, %c0_109, %c0_110] : memref<16x8x128xf32, #tpu.memory_space<vmem>>, vector<1x8x128xf32>
    %154 = vector.shape_cast %153 : vector<1x8x128xf32> to vector<8x128xf32>
    %cst_111 = arith.constant dense<0.000000e+00> : vector<8x16xf32>
    %155 = tpu.matmul %154, %113, %cst_111 {dimension_numbers = #tpu.dot_dimension_numbers<[1], [0], [0], [1], [0, 0, 1, 1], [], []>} : vector<8x128xf32>, vector<128x16xf32>, vector<8x16xf32> -> vector<8x16xf32>
    %c14 = arith.constant 14 : index
    %c0_112 = arith.constant 0 : index
    %c0_113 = arith.constant 0 : index
    %156 = vector.load %arg16[%c14, %c0_112, %c0_113] : memref<16x8x128xf32, #tpu.memory_space<vmem>>, vector<1x8x128xf32>
    %157 = vector.shape_cast %156 : vector<1x8x128xf32> to vector<8x128xf32>
    %cst_114 = arith.constant dense<0.000000e+00> : vector<8x16xf32>
    %158 = tpu.matmul %157, %113, %cst_114 {dimension_numbers = #tpu.dot_dimension_numbers<[1], [0], [0], [1], [0, 0, 1, 1], [], []>} : vector<8x128xf32>, vector<128x16xf32>, vector<8x16xf32> -> vector<8x16xf32>
    %c15 = arith.constant 15 : index
    %c0_115 = arith.constant 0 : index
    %c0_116 = arith.constant 0 : index
    %159 = vector.load %arg16[%c15, %c0_115, %c0_116] : memref<16x8x128xf32, #tpu.memory_space<vmem>>, vector<1x8x128xf32>
    %160 = vector.shape_cast %159 : vector<1x8x128xf32> to vector<8x128xf32>
    %cst_117 = arith.constant dense<0.000000e+00> : vector<8x16xf32>
    %161 = tpu.matmul %160, %113, %cst_117 {dimension_numbers = #tpu.dot_dimension_numbers<[1], [0], [0], [1], [0, 0, 1, 1], [], []>} : vector<8x128xf32>, vector<128x16xf32>, vector<8x16xf32> -> vector<8x16xf32>
    %162 = tpu.concatenate %116, %119, %122, %125, %128, %131, %134, %137, %140, %143, %146, %149, %152, %155, %158, %161 in 1 : vector<8x16xf32>, vector<8x16xf32>, vector<8x16xf32>, vector<8x16xf32>, vector<8x16xf32>, vector<8x16xf32>, vector<8x16xf32>, vector<8x16xf32>, vector<8x16xf32>, vector<8x16xf32>, vector<8x16xf32>, vector<8x16xf32>, vector<8x16xf32>, vector<8x16xf32>, vector<8x16xf32>, vector<8x16xf32> -> vector<8x256xf32>
    %c0_118 = arith.constant 0 : index
    %c0_119 = arith.constant 0 : index
    %163 = vector.load %arg17[%c0_118, %c0_119] : memref<256x128xf32, #tpu.memory_space<vmem>>, vector<256x128xf32>
    %cst_120 = arith.constant dense<0.000000e+00> : vector<8x128xf32>
    %164 = tpu.matmul %162, %163, %cst_120 {dimension_numbers = #tpu.dot_dimension_numbers<[1], [0], [0], [1], [0, 0, 1, 1], [], []>} : vector<8x256xf32>, vector<256x128xf32>, vector<8x128xf32> -> vector<8x128xf32>
    %c0_121 = arith.constant 0 : index
    %c0_122 = arith.constant 0 : index
    %165 = vector.load %arg18[%c0_121, %c0_122] : memref<1x128xf32, #tpu.memory_space<vmem>>, vector<1x128xf32>
    %166 = vector.broadcast %165 : vector<1x128xf32> to vector<8x128xf32>
    %167 = arith.addf %164, %166 : vector<8x128xf32>
    %cst_123 = arith.constant 0.000000e+00 : f32
    %168 = vector.broadcast %cst_123 : f32 to vector<8x128xf32>
    %169 = arith.maximumf %167, %168 : vector<8x128xf32>
    %c0_124 = arith.constant 0 : index
    %c0_125 = arith.constant 0 : index
    %170 = vector.load %arg19[%c0_124, %c0_125] : memref<128x128xf32, #tpu.memory_space<vmem>>, vector<128x128xf32>
    %cst_126 = arith.constant dense<0.000000e+00> : vector<8x128xf32>
    %171 = tpu.matmul %169, %170, %cst_126 {dimension_numbers = #tpu.dot_dimension_numbers<[1], [0], [0], [1], [0, 0, 1, 1], [], []>} : vector<8x128xf32>, vector<128x128xf32>, vector<8x128xf32> -> vector<8x128xf32>
    %c0_127 = arith.constant 0 : index
    %c0_128 = arith.constant 0 : index
    %172 = vector.load %arg20[%c0_127, %c0_128] : memref<1x128xf32, #tpu.memory_space<vmem>>, vector<1x128xf32>
    %173 = vector.broadcast %172 : vector<1x128xf32> to vector<8x128xf32>
    %174 = arith.addf %171, %173 : vector<8x128xf32>
    %cst_129 = arith.constant 0.000000e+00 : f32
    %175 = vector.broadcast %cst_129 : f32 to vector<8x128xf32>
    %176 = arith.maximumf %174, %175 : vector<8x128xf32>
    %c0_130 = arith.constant 0 : index
    %c0_131 = arith.constant 0 : index
    %177 = vector.load %arg21[%c0_130, %c0_131] : memref<128x256xf32, #tpu.memory_space<vmem>>, vector<128x256xf32>
    %cst_132 = arith.constant dense<0.000000e+00> : vector<8x256xf32>
    %178 = tpu.matmul %176, %177, %cst_132 {dimension_numbers = #tpu.dot_dimension_numbers<[1], [0], [0], [1], [0, 0, 1, 1], [], []>} : vector<8x128xf32>, vector<128x256xf32>, vector<8x256xf32> -> vector<8x256xf32>
    %c0_133 = arith.constant 0 : index
    %c0_134 = arith.constant 0 : index
    %179 = vector.load %arg22[%c0_133, %c0_134] : memref<1x256xf32, #tpu.memory_space<vmem>>, vector<1x256xf32>
    %180 = vector.broadcast %179 : vector<1x256xf32> to vector<8x256xf32>
    %181 = arith.addf %178, %180 : vector<8x256xf32>
    %c0_135 = arith.constant 0 : index
    %c0_136 = arith.constant 0 : index
    %182 = vector.load %arg23[%c0_135, %c0_136] : memref<8x256xf32, #tpu.memory_space<vmem>>, vector<8x256xf32>
    tpu.vector_store %arg23[%c0_135, %c0_136], %181 {strides = array<i32>} : memref<8x256xf32, #tpu.memory_space<vmem>>, vector<8x256xf32>,
    return
  }
  func.func @transform_0(%arg0: i32) -> (i32, i32, i32) {
    %c0_i32 = arith.constant 0 : i32
    %c0_i32_0 = arith.constant 0 : i32
    %c0_i32_1 = arith.constant 0 : i32
    return %arg0, %c0_i32, %c0_i32_0 : i32, i32, i32
  }
  func.func @transform_1(%arg0: i32) -> (i32, i32) {
    %c0_i32 = arith.constant 0 : i32
    %c0_i32_0 = arith.constant 0 : i32
    %c0_i32_1 = arith.constant 0 : i32
    return %c0_i32, %c0_i32_0 : i32, i32
  }
  func.func @transform_2(%arg0: i32) -> (i32, i32) {
    %c0_i32 = arith.constant 0 : i32
    %c0_i32_0 = arith.constant 0 : i32
    %c0_i32_1 = arith.constant 0 : i32
    return %c0_i32, %c0_i32_0 : i32, i32
  }
  func.func @transform_3(%arg0: i32) -> (i32, i32) {
    %c0_i32 = arith.constant 0 : i32
    %c0_i32_0 = arith.constant 0 : i32
    %c0_i32_1 = arith.constant 0 : i32
    return %c0_i32, %c0_i32_0 : i32, i32
  }
  func.func @transform_4(%arg0: i32) -> (i32, i32) {
    %c0_i32 = arith.constant 0 : i32
    %c0_i32_0 = arith.constant 0 : i32
    %c0_i32_1 = arith.constant 0 : i32
    return %c0_i32, %c0_i32_0 : i32, i32
  }
  func.func @transform_5(%arg0: i32) -> (i32, i32) {
    %c0_i32 = arith.constant 0 : i32
    %c0_i32_0 = arith.constant 0 : i32
    %c0_i32_1 = arith.constant 0 : i32
    return %c0_i32, %c0_i32_0 : i32, i32
  }
  func.func @transform_6(%arg0: i32) -> (i32, i32) {
    %c0_i32 = arith.constant 0 : i32
    %c0_i32_0 = arith.constant 0 : i32
    %c0_i32_1 = arith.constant 0 : i32
    return %c0_i32, %c0_i32_0 : i32, i32
  }
  func.func @transform_7(%arg0: i32) -> (i32, i32) {
    %c0_i32 = arith.constant 0 : i32
    %c0_i32_0 = arith.constant 0 : i32
    %c0_i32_1 = arith.constant 0 : i32
    return %c0_i32, %c0_i32_0 : i32, i32
  }
  func.func @transform_8(%arg0: i32) -> (i32, i32) {
    %c0_i32 = arith.constant 0 : i32
    %c0_i32_0 = arith.constant 0 : i32
    %c0_i32_1 = arith.constant 0 : i32
    return %c0_i32, %c0_i32_0 : i32, i32
  }
  func.func @transform_9(%arg0: i32) -> (i32, i32) {
    %c0_i32 = arith.constant 0 : i32
    %c0_i32_0 = arith.constant 0 : i32
    %c0_i32_1 = arith.constant 0 : i32
    return %c0_i32, %c0_i32_0 : i32, i32
  }
  func.func @transform_10(%arg0: i32) -> (i32, i32) {
    %c0_i32 = arith.constant 0 : i32
    %c0_i32_0 = arith.constant 0 : i32
    %c0_i32_1 = arith.constant 0 : i32
    return %c0_i32, %c0_i32_0 : i32, i32
  }
  func.func @transform_11(%arg0: i32) -> (i32, i32) {
    %c0_i32 = arith.constant 0 : i32
    %c0_i32_0 = arith.constant 0 : i32
    %c0_i32_1 = arith.constant 0 : i32
    return %c0_i32, %c0_i32_0 : i32, i32
  }
  func.func @transform_12(%arg0: i32) -> (i32, i32) {
    %c0_i32 = arith.constant 0 : i32
    %c0_i32_0 = arith.constant 0 : i32
    %c0_i32_1 = arith.constant 0 : i32
    return %c0_i32, %c0_i32_0 : i32, i32
  }
  func.func @transform_13(%arg0: i32) -> (i32, i32) {
    %c0_i32 = arith.constant 0 : i32
    %c0_i32_0 = arith.constant 0 : i32
    %c0_i32_1 = arith.constant 0 : i32
    return %c0_i32, %c0_i32_0 : i32, i32
  }
  func.func @transform_14(%arg0: i32) -> (i32, i32) {
    %c0_i32 = arith.constant 0 : i32
    %c0_i32_0 = arith.constant 0 : i32
    %c0_i32_1 = arith.constant 0 : i32
    return %c0_i32, %c0_i32_0 : i32, i32
  }
  func.func @transform_15(%arg0: i32) -> (i32, i32, i32) {
    %c0_i32 = arith.constant 0 : i32
    %c0_i32_0 = arith.constant 0 : i32
    %c0_i32_1 = arith.constant 0 : i32
    %c0_i32_2 = arith.constant 0 : i32
    return %c0_i32, %c0_i32_0, %c0_i32_1 : i32, i32, i32
  }
  func.func @transform_16(%arg0: i32) -> (i32, i32) {
    %c0_i32 = arith.constant 0 : i32
    %c0_i32_0 = arith.constant 0 : i32
    %c0_i32_1 = arith.constant 0 : i32
    return %c0_i32, %c0_i32_0 : i32, i32
  }
  func.func @transform_17(%arg0: i32) -> (i32, i32) {
    %c0_i32 = arith.constant 0 : i32
    %c0_i32_0 = arith.constant 0 : i32
    %c0_i32_1 = arith.constant 0 : i32
    return %c0_i32, %c0_i32_0 : i32, i32
  }
  func.func @transform_18(%arg0: i32) -> (i32, i32) {
    %c0_i32 = arith.constant 0 : i32
    %c0_i32_0 = arith.constant 0 : i32
    %c0_i32_1 = arith.constant 0 : i32
    return %c0_i32, %c0_i32_0 : i32, i32
  }
  func.func @transform_19(%arg0: i32) -> (i32, i32) {
    %c0_i32 = arith.constant 0 : i32
    %c0_i32_0 = arith.constant 0 : i32
    %c0_i32_1 = arith.constant 0 : i32
    return %c0_i32, %c0_i32_0 : i32, i32
  }
  func.func @transform_20(%arg0: i32) -> (i32, i32) {
    %c0_i32 = arith.constant 0 : i32
    %c0_i32_0 = arith.constant 0 : i32
    %c0_i32_1 = arith.constant 0 : i32
    return %c0_i32, %c0_i32_0 : i32, i32
  }
  func.func @transform_21(%arg0: i32) -> (i32, i32) {
    %c0_i32 = arith.constant 0 : i32
    %c0_i32_0 = arith.constant 0 : i32
    %c0_i32_1 = arith.constant 0 : i32
    return %c0_i32, %c0_i32_0 : i32, i32
  }
  func.func @transform_22(%arg0: i32) -> (i32, i32) {
    %c0_i32 = arith.constant 0 : i32
    %c0_i32_0 = arith.constant 0 : i32
    return %arg0, %c0_i32 : i32, i32
  }
}

</mosaic_0001>

<llo_original>
// kernel: wisig_forward.1
$region0: #{wisig_forward.1}
  #allocation0 [shape = 'u32[]', space=smem, size = 0x4, offset = 0x4, fixed_abs, tag = 'smem constant byte address 0x4 - core index']
  #allocation1 [shape = 'u32[144,128]{1,0:T(1,128)}', space=vmem, size = 0x12000, scoped, tag = 'internal scratch']
  %s0 = inlined_call_operand.vmem [shape: f32[2,256,16], index: 0, kind: input, shape index: {}]
  %s1 = inlined_call_operand.vmem [shape: f32[48,128], index: 1, kind: input, shape index: {}]
  %s2 = inlined_call_operand.vmem [shape: f32[1,128], index: 2, kind: input, shape index: {}]
  %s3 = inlined_call_operand.vmem [shape: f32[384,256], index: 3, kind: input, shape index: {}]
  %s4 = inlined_call_operand.vmem [shape: f32[1,256], index: 4, kind: input, shape index: {}]
  %s5 = inlined_call_operand.hbm [shape: f32[768,256], index: 5, kind: input, shape index: {}]
  %s6 = inlined_call_operand.vmem [shape: f32[1,256], index: 6, kind: input, shape index: {}]
  %s7 = inlined_call_operand.hbm [shape: f32[768,256], index: 7, kind: input, shape index: {}]
  %s8 = inlined_call_operand.vmem [shape: f32[1,256], index: 8, kind: input, shape index: {}]
  %s9 = inlined_call_operand.hbm [shape: f32[768,128], index: 9, kind: input, shape index: {}]
  %s10 = inlined_call_operand.vmem [shape: f32[1,128], index: 10, kind: input, shape index: {}]
  %s11 = inlined_call_operand.hbm [shape: f32[128,256], index: 11, kind: input, shape index: {}]
  %s12 = inlined_call_operand.vmem [shape: f32[64,128], index: 12, kind: input, shape index: {}]
  %s13 = inlined_call_operand.hbm [shape: f32[32,64], index: 13, kind: input, shape index: {}]
  %s14 = inlined_call_operand.hbm [shape: f32[16,32], index: 14, kind: input, shape index: {}]
  %s15 = inlined_call_operand.hbm [shape: f32[16,8,128], index: 15, kind: input, shape index: {}]
  %s16 = inlined_call_operand.hbm [shape: f32[256,128], index: 16, kind: input, shape index: {}]
  %s17 = inlined_call_operand.vmem [shape: f32[1,128], index: 17, kind: input, shape index: {}]
  %s18 = inlined_call_operand.hbm [shape: f32[128,128], index: 18, kind: input, shape index: {}]
  %s19 = inlined_call_operand.vmem [shape: f32[1,128], index: 19, kind: input, shape index: {}]
  %s20 = inlined_call_operand.hbm [shape: f32[128,256], index: 20, kind: input, shape index: {}]
  %s21 = inlined_call_operand.vmem [shape: f32[1,256], index: 21, kind: input, shape index: {}]
  %s22 = inlined_call_operand.hbm [shape: f32[16,256], index: 22, kind: output, shape index: {}]
  %s23 = sld [smem:[#allocation0]]
  $region161: #{wisig_forward.1} parent=0
    _
  %s25 = ssub.s32 1, %s23
  %s26 = scalar_select 0, %s25, %s23
  $region1: #{wisig_forward.1} parent=0
    #allocation2 [shape = 'u8[786432]{0}', space=vmem, size = 0xc0000, scoped, tag = 'input window, operand 5, single buffered']
    #allocation3 [shape = 's32[2]{0}', space=sflag, size = 0x8, scoped, tag = 'scoped memory for wisig_forward.1']
    #allocation4 [shape = 's32[2]{0}', space=sflag, size = 0x8, scoped, tag = 'scoped memory for wisig_forward.1']
    #allocation5 [shape = 'u8[786432]{0}', space=vmem, size = 0xc0000, scoped, tag = 'input window, operand 7, single buffered']
    #allocation6 [shape = 's32[1]{0}', space=sflag, size = 0x4, scoped, tag = 'scoped memory for wisig_forward.1']
    #allocation7 [shape = 'u8[393216]{0}', space=vmem, size = 0x60000, scoped, tag = 'input window, operand 9, single buffered']
    #allocation8 [shape = 'u8[131072]{0}', space=vmem, size = 0x20000, scoped, tag = 'input window, operand 11, single buffered']
    #allocation9 [shape = 's32[1]{0}', space=sflag, size = 0x4, scoped, tag = 'scoped memory for wisig_forward.1']
    #allocation10 [shape = 'u8[16384]{0}', space=vmem, size = 0x4000, scoped, tag = 'input window, operand 13, single buffered']
    #allocation11 [shape = 'u8[8192]{0}', space=vmem, size = 0x2000, scoped, tag = 'input window, operand 14, single buffered']
    #allocation12 [shape = 's32[1]{0}', space=sflag, size = 0x4, scoped, tag = 'scoped memory for wisig_forward.1']
    #allocation13 [shape = 'u8[65536]{0}', space=vmem, size = 0x10000, scoped, tag = 'input window, operand 15, single buffered']
    #allocation14 [shape = 'u8[131072]{0}', space=vmem, size = 0x20000, scoped, tag = 'input window, operand 16, single buffered']
    #allocation15 [shape = 's32[1]{0}', space=sflag, size = 0x4, scoped, tag = 'scoped memory for wisig_forward.1']
    #allocation16 [shape = 'u8[65536]{0}', space=vmem, size = 0x10000, scoped, tag = 'input window, operand 18, single buffered']
    #allocation17 [shape = 'u8[131072]{0}', space=vmem, size = 0x20000, scoped, tag = 'input window, operand 20, single buffered']
    #allocation18 [shape = 's32[1]{0}', space=sflag, size = 0x4, scoped, tag = 'scoped memory for wisig_forward.1']
    #allocation19 [shape = 'u8[16384]{0}', space=vmem, size = 0x4000, scoped, tag = 'output window, operand 0']
    %27 = vsyncpa [#allocation3], 0
    %28 = vsyncpa [#allocation6], 0
    %29 = vsyncpa [#allocation9], 0
    %30 = vsyncpa [#allocation12], 0
    %31 = vsyncpa [#allocation15], 0
    %32 = vsyncpa [#allocation18], 0
    %33 = vsyncpa [#allocation4], 0
    %s34 = scalar_lea.sflag [#allocation4], 1
    %35 = vsyncpa %s34, 0
    loop: start=0, step=1, limit=4
    $region2: #{wisig_forward.1} parent=1 // loop_pre_header
      _
    $region3: #{wisig_forward.1} parent=1 // loop_header
      %s37 = sphi 0, %s41
      %p38 = scmp.ge.s32.totalorder %s37, 4
      %s47 = sphi 0, %s49
      %s50 = sphi 0, %s47
      %s51 = sphi 0, %s50
      %s67 = sphi 0, %s51
      %s71 = sphi 0, %s71
      %s73 = sphi 0, %s71
      %s74 = sphi 0, %s73
      %s88 = sphi 0, %s74
      %s92 = sphi 0, %s92
      %s94 = sphi 0, %s92
      %s95 = sphi 0, %s94
      %s109 = sphi 0, %s95
      %s113 = sphi 0, %s113
      %s115 = sphi 0, %s113
      %s116 = sphi 0, %s115
      %s130 = sphi 0, %s116
      %s134 = sphi 0, %s134
      %s136 = sphi 0, %s134
      %s137 = sphi 0, %s136
      %s151 = sphi 0, %s137
      %s155 = sphi 0, %s155
      %s157 = sphi 0, %s155
      %s158 = sphi 0, %s157
      %s172 = sphi 0, %s158
      %s176 = sphi 0, %s176
      %s178 = sphi 0, %s176
      %s179 = sphi 0, %s178
      %s193 = sphi 0, %s179
      %s197 = sphi 0, %s197
      %s199 = sphi 0, %s197
      %s200 = sphi 0, %s199
      %s214 = sphi 0, %s200
      %s218 = sphi 0, %s218
      %s220 = sphi 0, %s218
      %s221 = sphi 0, %s220
      %s235 = sphi 0, %s221
      %s239 = sphi 0, %s239
      %s241 = sphi 0, %s239
      %s242 = sphi 0, %s241
      %s256 = sphi 0, %s242
      %s260 = sphi 0, %s260
      %s262 = sphi 0, %s260
      %s263 = sphi 0, %s262
      %s277 = sphi 0, %s263
      %s281 = sphi 0, %s281
      %s283 = sphi 0, %s281
      %s284 = sphi 0, %s283
      %s298 = sphi 0, %s284
      %s302 = sphi 0, %s302
      %s304 = sphi 0, %s302
      %s305 = sphi 0, %s304
      %s319 = sphi 0, %s305
      %s323 = sphi 0, %s323
      %s325 = sphi 0, %s323
      %s326 = sphi 0, %s325
      %s340 = sphi 0, %s326
      %s344 = sphi 0, %s344
      %s346 = sphi 0, %s344
      %s347 = sphi 0, %s346
      %s361 = sphi 0, %s347
      %s365 = sphi 0, %s365
      %s367 = sphi 0, %s365
      %s368 = sphi 0, %s367
      %s382 = sphi 0, %s368
      %s386 = sphi 0, %s386
      %s388 = sphi 0, %s386
      %s389 = sphi 0, %s388
      %s403 = sphi 0, %s389
      %s407 = sphi 0, %s407
      %s409 = sphi 0, %s407
      %s410 = sphi 0, %s409
      %s424 = sphi 0, %s410
      %s428 = sphi 0, %s428
      %s430 = sphi 0, %s428
      %s431 = sphi 0, %s430
      %s445 = sphi 0, %s431
      %s449 = sphi 0, %s449
      %s451 = sphi 0, %s449
      %s452 = sphi 0, %s451
      %s466 = sphi 0, %s452
      %s470 = sphi 0, %s470
      %s472 = sphi 0, %s470
      %s473 = sphi 0, %s472
      %s487 = sphi 0, %s473
      %s491 = sphi 0, %s491
      %s493 = sphi 0, %s491
      %s494 = sphi 0, %s493
      %s508 = sphi 0, %s494
      %s514 = sphi 0, %s516
      %s517 = sphi 0, %s514
      %s518 = sphi 0, %s517
      %s534 = sphi 0, %s518
    $region4: #{wisig_forward.1} parent=1 // loop_header_branch
      %40 = sbr.rel (%p38) target = $region8
    $region5: #{wisig_forward.1} parent=1 // loop_body
      %s42 = ssub.s32 %s37, 1
      %s43 = ssub.s32 %s37, 2
      %s44 = sadd.s32 %s37, 1
      %s45 = ssub.s32 %s37, %s44
      %p46 = scmp.eq.s32.totalorder %s45, 0
      %s48 = sadd.s32 %s47, 1
      %s49 = scalar_select %p46, %s47, %s48
      %p52 = pneg %p46
      %p53 = scmp.eq.s32.totalorder %s37, 1
      %p54 = por %p52, %p53
      %p55 = scmp.ne.s32.totalorder %s47, %s50
      %p56 = scmp.eq.s32.totalorder %s37, 0
      %p57 = por %p55, %p56
      %p58 = scmp.ne.s32.totalorder %s47, %s50
      %p59 = scmp.eq.s32.totalorder %s42, 1
      %p60 = por %p58, %p59
      %p61 = scmp.ne.s32.totalorder %s50, %s51
      %p62 = scmp.eq.s32.totalorder %s42, 0
      %p63 = por %p61, %p62
      %p64 = scmp.ne.s32.totalorder %s50, %s51
      %p65 = scmp.eq.s32.totalorder %s43, 1
      %p66 = por %p64, %p65
      %p68 = scmp.ne.s32.totalorder %s51, %s67
      %p69 = scmp.eq.s32.totalorder %s43, 0
      %p70 = por %p68, %p69
      %s72 = sadd.s32 %s71, 1
      %p75 = scmp.eq.s32.totalorder %s37, 1
      %p76 = scmp.ne.s32.totalorder %s71, %s73
      %p77 = scmp.eq.s32.totalorder %s37, 0
      %p78 = por %p76, %p77
      %p79 = scmp.ne.s32.totalorder %s71, %s73
      %p80 = scmp.eq.s32.totalorder %s42, 1
      %p81 = por %p79, %p80
      %p82 = scmp.ne.s32.totalorder %s73, %s74
      %p83 = scmp.eq.s32.totalorder %s42, 0
      %p84 = por %p82, %p83
      %p85 = scmp.ne.s32.totalorder %s73, %s74
      %p86 = scmp.eq.s32.totalorder %s43, 1
      %p87 = por %p85, %p86
      %p89 = scmp.ne.s32.totalorder %s74, %s88
      %p90 = scmp.eq.s32.totalorder %s43, 0
      %p91 = por %p89, %p90
      %s93 = sadd.s32 %s92, 1
      %p96 = scmp.eq.s32.totalorder %s37, 1
      %p97 = scmp.ne.s32.totalorder %s92, %s94
      %p98 = scmp.eq.s32.totalorder %s37, 0
      %p99 = por %p97, %p98
      %p100 = scmp.ne.s32.totalorder %s92, %s94
      %p101 = scmp.eq.s32.totalorder %s42, 1
      %p102 = por %p100, %p101
      %p103 = scmp.ne.s32.totalorder %s94, %s95
      %p104 = scmp.eq.s32.totalorder %s42, 0
      %p105 = por %p103, %p104
      %p106 = scmp.ne.s32.totalorder %s94, %s95
      %p107 = scmp.eq.s32.totalorder %s43, 1
      %p108 = por %p106, %p107
      %p110 = scmp.ne.s32.totalorder %s95, %s109
      %p111 = scmp.eq.s32.totalorder %s43, 0
      %p112 = por %p110, %p111
      %s114 = sadd.s32 %s113, 1
      %p117 = scmp.eq.s32.totalorder %s37, 1
      %p118 = scmp.ne.s32.totalorder %s113, %s115
      %p119 = scmp.eq.s32.totalorder %s37, 0
      %p120 = por %p118, %p119
      %p121 = scmp.ne.s32.totalorder %s113, %s115
      %p122 = scmp.eq.s32.totalorder %s42, 1
      %p123 = por %p121, %p122
      %p124 = scmp.ne.s32.totalorder %s115, %s116
      %p125 = scmp.eq.s32.totalorder %s42, 0
      %p126 = por %p124, %p125
      %p127 = scmp.ne.s32.totalorder %s115, %s116
      %p128 = scmp.eq.s32.totalorder %s43, 1
      %p129 = por %p127, %p128
      %p131 = scmp.ne.s32.totalorder %s116, %s130
      %p132 = scmp.eq.s32.totalorder %s43, 0
      %p133 = por %p131, %p132
      %s135 = sadd.s32 %s134, 1
      %p138 = scmp.eq.s32.totalorder %s37, 1
      %p139 = scmp.ne.s32.totalorder %s134, %s136
      %p140 = scmp.eq.s32.totalorder %s37, 0
      %p141 = por %p139, %p140
      %p142 = scmp.ne.s32.totalorder %s134, %s136
      %p143 = scmp.eq.s32.totalorder %s42, 1
      %p144 = por %p142, %p143
      %p145 = scmp.ne.s32.totalorder %s136, %s137
      %p146 = scmp.eq.s32.totalorder %s42, 0
      %p147 = por %p145, %p146
      %p148 = scmp.ne.s32.totalorder %s136, %s137
      %p149 = scmp.eq.s32.totalorder %s43, 1
      %p150 = por %p148, %p149
      %p152 = scmp.ne.s32.totalorder %s137, %s151
      %p153 = scmp.eq.s32.totalorder %s43, 0
      %p154 = por %p152, %p153
      %s156 = sadd.s32 %s155, 1
      %p159 = scmp.eq.s32.totalorder %s37, 1
      %p160 = scmp.ne.s32.totalorder %s155, %s157
      %p161 = scmp.eq.s32.totalorder %s37, 0
      %p162 = por %p160, %p161
      %p163 = scmp.ne.s32.totalorder %s155, %s157
      %p164 = scmp.eq.s32.totalorder %s42, 1
      %p165 = por %p163, %p164
      %p166 = scmp.ne.s32.totalorder %s157, %s158
      %p167 = scmp.eq.s32.totalorder %s42, 0
      %p168 = por %p166, %p167
      %p169 = scmp.ne.s32.totalorder %s157, %s158
      %p170 = scmp.eq.s32.totalorder %s43, 1
      %p171 = por %p169, %p170
      %p173 = scmp.ne.s32.totalorder %s158, %s172
      %p174 = scmp.eq.s32.totalorder %s43, 0
      %p175 = por %p173, %p174
      %s177 = sadd.s32 %s176, 1
      %p180 = scmp.eq.s32.totalorder %s37, 1
      %p181 = scmp.ne.s32.totalorder %s176, %s178
      %p182 = scmp.eq.s32.totalorder %s37, 0
      %p183 = por %p181, %p182
      %p184 = scmp.ne.s32.totalorder %s176, %s178
      %p185 = scmp.eq.s32.totalorder %s42, 1
      %p186 = por %p184, %p185
      %p187 = scmp.ne.s32.totalorder %s178, %s179
      %p188 = scmp.eq.s32.totalorder %s42, 0
      %p189 = por %p187, %p188
      %p190 = scmp.ne.s32.totalorder %s178, %s179
      %p191 = scmp.eq.s32.totalorder %s43, 1
      %p192 = por %p190, %p191
      %p194 = scmp.ne.s32.totalorder %s179, %s193
      %p195 = scmp.eq.s32.totalorder %s43, 0
      %p196 = por %p194, %p195
      %s198 = sadd.s32 %s197, 1
      %p201 = scmp.eq.s32.totalorder %s37, 1
      %p202 = scmp.ne.s32.totalorder %s197, %s199
      %p203 = scmp.eq.s32.totalorder %s37, 0
      %p204 = por %p202, %p203
      %p205 = scmp.ne.s32.totalorder %s197, %s199
      %p206 = scmp.eq.s32.totalorder %s42, 1
      %p207 = por %p205, %p206
      %p208 = scmp.ne.s32.totalorder %s199, %s200
      %p209 = scmp.eq.s32.totalorder %s42, 0
      %p210 = por %p208, %p209
      %p211 = scmp.ne.s32.totalorder %s199, %s200
      %p212 = scmp.eq.s32.totalorder %s43, 1
      %p213 = por %p211, %p212
      %p215 = scmp.ne.s32.totalorder %s200, %s214
      %p216 = scmp.eq.s32.totalorder %s43, 0
      %p217 = por %p215, %p216
      %s219 = sadd.s32 %s218, 1
      %p222 = scmp.eq.s32.totalorder %s37, 1
      %p223 = scmp.ne.s32.totalorder %s218, %s220
      %p224 = scmp.eq.s32.totalorder %s37, 0
      %p225 = por %p223, %p224
      %p226 = scmp.ne.s32.totalorder %s218, %s220
      %p227 = scmp.eq.s32.totalorder %s42, 1
      %p228 = por %p226, %p227
      %p229 = scmp.ne.s32.totalorder %s220, %s221
      %p230 = scmp.eq.s32.totalorder %s42, 0
      %p231 = por %p229, %p230
      %p232 = scmp.ne.s32.totalorder %s220, %s221
      %p233 = scmp.eq.s32.totalorder %s43, 1
      %p234 = por %p232, %p233
      %p236 = scmp.ne.s32.totalorder %s221, %s235
      %p237 = scmp.eq.s32.totalorder %s43, 0
      %p238 = por %p236, %p237
      %s240 = sadd.s32 %s239, 1
      %p243 = scmp.eq.s32.totalorder %s37, 1
      %p244 = scmp.ne.s32.totalorder %s239, %s241
      %p245 = scmp.eq.s32.totalorder %s37, 0
      %p246 = por %p244, %p245
      %p247 = scmp.ne.s32.totalorder %s239, %s241
      %p248 = scmp.eq.s32.totalorder %s42, 1
      %p249 = por %p247, %p248
      %p250 = scmp.ne.s32.totalorder %s241, %s242
      %p251 = scmp.eq.s32.totalorder %s42, 0
      %p252 = por %p250, %p251
      %p253 = scmp.ne.s32.totalorder %s241, %s242
      %p254 = scmp.eq.s32.totalorder %s43, 1
      %p255 = por %p253, %p254
      %p257 = scmp.ne.s32.totalorder %s242, %s256
      %p258 = scmp.eq.s32.totalorder %s43, 0
      %p259 = por %p257, %p258
      %s261 = sadd.s32 %s260, 1
      %p264 = scmp.eq.s32.totalorder %s37, 1
      %p265 = scmp.ne.s32.totalorder %s260, %s262
      %p266 = scmp.eq.s32.totalorder %s37, 0
      %p267 = por %p265, %p266
      %p268 = scmp.ne.s32.totalorder %s260, %s262
      %p269 = scmp.eq.s32.totalorder %s42, 1
      %p270 = por %p268, %p269
      %p271 = scmp.ne.s32.totalorder %s262, %s263
      %p272 = scmp.eq.s32.totalorder %s42, 0
      %p273 = por %p271, %p272
      %p274 = scmp.ne.s32.totalorder %s262, %s263
      %p275 = scmp.eq.s32.totalorder %s43, 1
      %p276 = por %p274, %p275
      %p278 = scmp.ne.s32.totalorder %s263, %s277
      %p279 = scmp.eq.s32.totalorder %s43, 0
      %p280 = por %p278, %p279
      %s282 = sadd.s32 %s281, 1
      %p285 = scmp.eq.s32.totalorder %s37, 1
      %p286 = scmp.ne.s32.totalorder %s281, %s283
      %p287 = scmp.eq.s32.totalorder %s37, 0
      %p288 = por %p286, %p287
      %p289 = scmp.ne.s32.totalorder %s281, %s283
      %p290 = scmp.eq.s32.totalorder %s42, 1
      %p291 = por %p289, %p290
      %p292 = scmp.ne.s32.totalorder %s283, %s284
      %p293 = scmp.eq.s32.totalorder %s42, 0
      %p294 = por %p292, %p293
      %p295 = scmp.ne.s32.totalorder %s283, %s284
      %p296 = scmp.eq.s32.totalorder %s43, 1
      %p297 = por %p295, %p296
      %p299 = scmp.ne.s32.totalorder %s284, %s298
      %p300 = scmp.eq.s32.totalorder %s43, 0
      %p301 = por %p299, %p300
      %s303 = sadd.s32 %s302, 1
      %p306 = scmp.eq.s32.totalorder %s37, 1
      %p307 = scmp.ne.s32.totalorder %s302, %s304
      %p308 = scmp.eq.s32.totalorder %s37, 0
      %p309 = por %p307, %p308
      %p310 = scmp.ne.s32.totalorder %s302, %s304
      %p311 = scmp.eq.s32.totalorder %s42, 1
      %p312 = por %p310, %p311
      %p313 = scmp.ne.s32.totalorder %s304, %s305
      %p314 = scmp.eq.s32.totalorder %s42, 0
      %p315 = por %p313, %p314
      %p316 = scmp.ne.s32.totalorder %s304, %s305
      %p317 = scmp.eq.s32.totalorder %s43, 1
      %p318 = por %p316, %p317
      %p320 = scmp.ne.s32.totalorder %s305, %s319
      %p321 = scmp.eq.s32.totalorder %s43, 0
      %p322 = por %p320, %p321
      %s324 = sadd.s32 %s323, 1
      %p327 = scmp.eq.s32.totalorder %s37, 1
      %p328 = scmp.ne.s32.totalorder %s323, %s325
      %p329 = scmp.eq.s32.totalorder %s37, 0
      %p330 = por %p328, %p329
      %p331 = scmp.ne.s32.totalorder %s323, %s325
      %p332 = scmp.eq.s32.totalorder %s42, 1
      %p333 = por %p331, %p332
      %p334 = scmp.ne.s32.totalorder %s325, %s326
      %p335 = scmp.eq.s32.totalorder %s42, 0
      %p336 = por %p334, %p335
      %p337 = scmp.ne.s32.totalorder %s325, %s326
      %p338 = scmp.eq.s32.totalorder %s43, 1
      %p339 = por %p337, %p338
      %p341 = scmp.ne.s32.totalorder %s326, %s340
      %p342 = scmp.eq.s32.totalorder %s43, 0
      %p343 = por %p341, %p342
      %s345 = sadd.s32 %s344, 1
      %p348 = scmp.eq.s32.totalorder %s37, 1
      %p349 = scmp.ne.s32.totalorder %s344, %s346
      %p350 = scmp.eq.s32.totalorder %s37, 0
      %p351 = por %p349, %p350
      %p352 = scmp.ne.s32.totalorder %s344, %s346
      %p353 = scmp.eq.s32.totalorder %s42, 1
      %p354 = por %p352, %p353
      %p355 = scmp.ne.s32.totalorder %s346, %s347
      %p356 = scmp.eq.s32.totalorder %s42, 0
      %p357 = por %p355, %p356
      %p358 = scmp.ne.s32.totalorder %s346, %s347
      %p359 = scmp.eq.s32.totalorder %s43, 1
      %p360 = por %p358, %p359
      %p362 = scmp.ne.s32.totalorder %s347, %s361
      %p363 = scmp.eq.s32.totalorder %s43, 0
      %p364 = por %p362, %p363
      %s366 = sadd.s32 %s365, 1
      %p369 = scmp.eq.s32.totalorder %s37, 1
      %p370 = scmp.ne.s32.totalorder %s365, %s367
      %p371 = scmp.eq.s32.totalorder %s37, 0
      %p372 = por %p370, %p371
      %p373 = scmp.ne.s32.totalorder %s365, %s367
      %p374 = scmp.eq.s32.totalorder %s42, 1
      %p375 = por %p373, %p374
      %p376 = scmp.ne.s32.totalorder %s367, %s368
      %p377 = scmp.eq.s32.totalorder %s42, 0
      %p378 = por %p376, %p377
      %p379 = scmp.ne.s32.totalorder %s367, %s368
      %p380 = scmp.eq.s32.totalorder %s43, 1
      %p381 = por %p379, %p380
      %p383 = scmp.ne.s32.totalorder %s368, %s382
      %p384 = scmp.eq.s32.totalorder %s43, 0
      %p385 = por %p383, %p384
      %s387 = sadd.s32 %s386, 1
      %p390 = scmp.eq.s32.totalorder %s37, 1
      %p391 = scmp.ne.s32.totalorder %s386, %s388
      %p392 = scmp.eq.s32.totalorder %s37, 0
      %p393 = por %p391, %p392
      %p394 = scmp.ne.s32.totalorder %s386, %s388
      %p395 = scmp.eq.s32.totalorder %s42, 1
      %p396 = por %p394, %p395
      %p397 = scmp.ne.s32.totalorder %s388, %s389
      %p398 = scmp.eq.s32.totalorder %s42, 0
      %p399 = por %p397, %p398
      %p400 = scmp.ne.s32.totalorder %s388, %s389
      %p401 = scmp.eq.s32.totalorder %s43, 1
      %p402 = por %p400, %p401
      %p404 = scmp.ne.s32.totalorder %s389, %s403
      %p405 = scmp.eq.s32.totalorder %s43, 0
      %p406 = por %p404, %p405
      %s408 = sadd.s32 %s407, 1
      %p411 = scmp.eq.s32.totalorder %s37, 1
      %p412 = scmp.ne.s32.totalorder %s407, %s409
      %p413 = scmp.eq.s32.totalorder %s37, 0
      %p414 = por %p412, %p413
      %p415 = scmp.ne.s32.totalorder %s407, %s409
      %p416 = scmp.eq.s32.totalorder %s42, 1
      %p417 = por %p415, %p416
      %p418 = scmp.ne.s32.totalorder %s409, %s410
      %p419 = scmp.eq.s32.totalorder %s42, 0
      %p420 = por %p418, %p419
      %p421 = scmp.ne.s32.totalorder %s409, %s410
      %p422 = scmp.eq.s32.totalorder %s43, 1
      %p423 = por %p421, %p422
      %p425 = scmp.ne.s32.totalorder %s410, %s424
      %p426 = scmp.eq.s32.totalorder %s43, 0
      %p427 = por %p425, %p426
      %s429 = sadd.s32 %s428, 1
      %p432 = scmp.eq.s32.totalorder %s37, 1
      %p433 = scmp.ne.s32.totalorder %s428, %s430
      %p434 = scmp.eq.s32.totalorder %s37, 0
      %p435 = por %p433, %p434
      %p436 = scmp.ne.s32.totalorder %s428, %s430
      %p437 = scmp.eq.s32.totalorder %s42, 1
      %p438 = por %p436, %p437
      %p439 = scmp.ne.s32.totalorder %s430, %s431
      %p440 = scmp.eq.s32.totalorder %s42, 0
      %p441 = por %p439, %p440
      %p442 = scmp.ne.s32.totalorder %s430, %s431
      %p443 = scmp.eq.s32.totalorder %s43, 1
      %p444 = por %p442, %p443
      %p446 = scmp.ne.s32.totalorder %s431, %s445
      %p447 = scmp.eq.s32.totalorder %s43, 0
      %p448 = por %p446, %p447
      %s450 = sadd.s32 %s449, 1
      %p453 = scmp.eq.s32.totalorder %s37, 1
      %p454 = scmp.ne.s32.totalorder %s449, %s451
      %p455 = scmp.eq.s32.totalorder %s37, 0
      %p456 = por %p454, %p455
      %p457 = scmp.ne.s32.totalorder %s449, %s451
      %p458 = scmp.eq.s32.totalorder %s42, 1
      %p459 = por %p457, %p458
      %p460 = scmp.ne.s32.totalorder %s451, %s452
      %p461 = scmp.eq.s32.totalorder %s42, 0
      %p462 = por %p460, %p461
      %p463 = scmp.ne.s32.totalorder %s451, %s452
      %p464 = scmp.eq.s32.totalorder %s43, 1
      %p465 = por %p463, %p464
      %p467 = scmp.ne.s32.totalorder %s452, %s466
      %p468 = scmp.eq.s32.totalorder %s43, 0
      %p469 = por %p467, %p468
      %s471 = sadd.s32 %s470, 1
      %p474 = scmp.eq.s32.totalorder %s37, 1
      %p475 = scmp.ne.s32.totalorder %s470, %s472
      %p476 = scmp.eq.s32.totalorder %s37, 0
      %p477 = por %p475, %p476
      %p478 = scmp.ne.s32.totalorder %s470, %s472
      %p479 = scmp.eq.s32.totalorder %s42, 1
      %p480 = por %p478, %p479
      %p481 = scmp.ne.s32.totalorder %s472, %s473
      %p482 = scmp.eq.s32.totalorder %s42, 0
      %p483 = por %p481, %p482
      %p484 = scmp.ne.s32.totalorder %s472, %s473
      %p485 = scmp.eq.s32.totalorder %s43, 1
      %p486 = por %p484, %p485
      %p488 = scmp.ne.s32.totalorder %s473, %s487
      %p489 = scmp.eq.s32.totalorder %s43, 0
      %p490 = por %p488, %p489
      %s492 = sadd.s32 %s491, 1
      %p495 = scmp.eq.s32.totalorder %s37, 1
      %p496 = scmp.ne.s32.totalorder %s491, %s493
      %p497 = scmp.eq.s32.totalorder %s37, 0
      %p498 = por %p496, %p497
      %p499 = scmp.ne.s32.totalorder %s491, %s493
      %p500 = scmp.eq.s32.totalorder %s42, 1
      %p501 = por %p499, %p500
      %p502 = scmp.ne.s32.totalorder %s493, %s494
      %p503 = scmp.eq.s32.totalorder %s42, 0
      %p504 = por %p502, %p503
      %p505 = scmp.ne.s32.totalorder %s493, %s494
      %p506 = scmp.eq.s32.totalorder %s43, 1
      %p507 = por %p505, %p506
      %p509 = scmp.ne.s32.totalorder %s494, %s508
      %p510 = scmp.eq.s32.totalorder %s43, 0
      %p511 = por %p509, %p510
      %s512 = ssub.s32 %s37, %s44
      %p513 = scmp.eq.s32.totalorder %s512, 0
      %s515 = sadd.s32 %s514, 1
      %s516 = scalar_select %p513, %s514, %s515
      %p519 = pneg %p513
      %p520 = scmp.eq.s32.totalorder %s37, 1
      %p521 = por %p519, %p520
      %p522 = scmp.ne.s32.totalorder %s514, %s517
      %p523 = scmp.eq.s32.totalorder %s37, 0
      %p524 = por %p522, %p523
      %p525 = scmp.ne.s32.totalorder %s514, %s517
      %p526 = scmp.eq.s32.totalorder %s42, 1
      %p527 = por %p525, %p526
      %p528 = scmp.ne.s32.totalorder %s517, %s518
      %p529 = scmp.eq.s32.totalorder %s42, 0
      %p530 = por %p528, %p529
      %p531 = scmp.ne.s32.totalorder %s517, %s518
      %p532 = scmp.eq.s32.totalorder %s43, 1
      %p533 = por %p531, %p532
      %p535 = scmp.ne.s32.totalorder %s518, %s534
      %p536 = scmp.eq.s32.totalorder %s43, 0
      %p537 = por %p535, %p536
      %p538 = scmp.le.s32.totalorder 1, %s37
      %p539 = scmp.lt.s32.totalorder %s37, 3
      %p540 = pnand %p538, %p539
      %p541 = pneg %p540
      // Predicated region
      $region9: #{wisig_forward.1} parent=5 // pred_check
        _
      $region10: #{wisig_forward.1} parent=5 // pred_check_branch
        %543 = sbr.rel (%p540) target = $region12
      $region11: #{wisig_forward.1} parent=5 // pred_region
        %s544 = ssub.s32 %s37, 1
        // Predicated region
        $region13: #{wisig_forward.1} parent=11 // pred_check
          %p545 = pneg %p84
        $region14: #{wisig_forward.1} parent=11 // pred_check_branch
          %547 = sbr.rel (%p545) target = $region16
        $region15: #{wisig_forward.1} parent=11 // pred_region
          _
        $region16: #{wisig_forward.1} parent=11 // pred_fallthru
          _
        // Predicated region
        $region17: #{wisig_forward.1} parent=11 // pred_check
          %p548 = pneg %p105
        $region18: #{wisig_forward.1} parent=11 // pred_check_branch
          %550 = sbr.rel (%p548) target = $region20
        $region19: #{wisig_forward.1} parent=11 // pred_region
          _
        $region20: #{wisig_forward.1} parent=11 // pred_fallthru
          _
        // Predicated region
        $region21: #{wisig_forward.1} parent=11 // pred_check
          %p551 = pneg %p126
        $region22: #{wisig_forward.1} parent=11 // pred_check_branch
          %553 = sbr.rel (%p551) target = $region24
        $region23: #{wisig_forward.1} parent=11 // pred_region
          _
        $region24: #{wisig_forward.1} parent=11 // pred_fallthru
          _
        // Predicated region
        $region25: #{wisig_forward.1} parent=11 // pred_check
          %p554 = pneg %p147
        $region26: #{wisig_forward.1} parent=11 // pred_check_branch
          %556 = sbr.rel (%p554) target = $region28
        $region27: #{wisig_forward.1} parent=11 // pred_region
          _
        $region28: #{wisig_forward.1} parent=11 // pred_fallthru
          _
        // Predicated region
        $region29: #{wisig_forward.1} parent=11 // pred_check
          %p557 = pneg %p168
        $region30: #{wisig_forward.1} parent=11 // pred_check_branch
          %559 = sbr.rel (%p557) target = $region32
        $region31: #{wisig_forward.1} parent=11 // pred_region
          %s561 = ssub.s32 24576, 24576
          %562 = vsyncadd [#allocation3], %s561
          %s563 = sshll.u32 [#allocation2], 4
          %s564 = int_to_ptr.vmem [resolvable:$true] %s563
          %569 = dma.hbm_to_vmem [thread:$0]  %s5, 24576, %s564, [#allocation3], 256, 256, 16
        $region32: #{wisig_forward.1} parent=11 // pred_fallthru
          _
        // Predicated region
        $region33: #{wisig_forward.1} parent=11 // pred_check
          %p570 = pneg %p189
        $region34: #{wisig_forward.1} parent=11 // pred_check_branch
          %572 = sbr.rel (%p570) target = $region36
        $region35: #{wisig_forward.1} parent=11 // pred_region
          _
        $region36: #{wisig_forward.1} parent=11 // pred_fallthru
          _
        // Predicated region
        $region37: #{wisig_forward.1} parent=11 // pred_check
          %p573 = pneg %p210
        $region38: #{wisig_forward.1} parent=11 // pred_check_branch
          %575 = sbr.rel (%p573) target = $region40
        $region39: #{wisig_forward.1} parent=11 // pred_region
          %s577 = ssub.s32 24576, 24576
          %578 = vsyncadd [#allocation6], %s577
          %s579 = sshll.u32 [#allocation5], 4
          %s580 = int_to_ptr.vmem [resolvable:$true] %s579
          %585 = dma.hbm_to_vmem [thread:$0]  %s7, 24576, %s580, [#allocation6], 256, 256, 16
        $region40: #{wisig_forward.1} parent=11 // pred_fallthru
          _
        // Predicated region
        $region41: #{wisig_forward.1} parent=11 // pred_check
          %p586 = pneg %p231
        $region42: #{wisig_forward.1} parent=11 // pred_check_branch
          %588 = sbr.rel (%p586) target = $region44
        $region43: #{wisig_forward.1} parent=11 // pred_region
          _
        $region44: #{wisig_forward.1} parent=11 // pred_fallthru
          _
        // Predicated region
        $region45: #{wisig_forward.1} parent=11 // pred_check
          %p589 = pneg %p252
        $region46: #{wisig_forward.1} parent=11 // pred_check_branch
          %591 = sbr.rel (%p589) target = $region48
        $region47: #{wisig_forward.1} parent=11 // pred_region
          %s593 = ssub.s32 12288, 12288
          %594 = vsyncadd [#allocation6], %s593
          %s595 = sshll.u32 [#allocation7], 4
          %s596 = int_to_ptr.vmem [resolvable:$true] %s595
          %601 = dma.hbm_to_vmem [thread:$0]  %s9, 12288, %s596, [#allocation6], 128, 128, 8
        $region48: #{wisig_forward.1} parent=11 // pred_fallthru
          _
        // Predicated region
        $region49: #{wisig_forward.1} parent=11 // pred_check
          %p602 = pneg %p273
        $region50: #{wisig_forward.1} parent=11 // pred_check_branch
          %604 = sbr.rel (%p602) target = $region52
        $region51: #{wisig_forward.1} parent=11 // pred_region
          _
        $region52: #{wisig_forward.1} parent=11 // pred_fallthru
          _
        // Predicated region
        $region53: #{wisig_forward.1} parent=11 // pred_check
          %p605 = pneg %p294
        $region54: #{wisig_forward.1} parent=11 // pred_check_branch
          %607 = sbr.rel (%p605) target = $region56
        $region55: #{wisig_forward.1} parent=11 // pred_region
          %s609 = ssub.s32 4096, 4096
          %610 = vsyncadd [#allocation9], %s609
          %s611 = sshll.u32 [#allocation8], 4
          %s612 = int_to_ptr.vmem [resolvable:$true] %s611
          %617 = dma.hbm_to_vmem [thread:$0]  %s11, 4096, %s612, [#allocation9], 256, 256, 16
        $region56: #{wisig_forward.1} parent=11 // pred_fallthru
          _
        // Predicated region
        $region57: #{wisig_forward.1} parent=11 // pred_check
          %p618 = pneg %p315
        $region58: #{wisig_forward.1} parent=11 // pred_check_branch
          %620 = sbr.rel (%p618) target = $region60
        $region59: #{wisig_forward.1} parent=11 // pred_region
          _
        $region60: #{wisig_forward.1} parent=11 // pred_fallthru
          _
        // Predicated region
        $region61: #{wisig_forward.1} parent=11 // pred_check
          %p621 = pneg %p336
        $region62: #{wisig_forward.1} parent=11 // pred_check_branch
          %623 = sbr.rel (%p621) target = $region64
        $region63: #{wisig_forward.1} parent=11 // pred_region
          %s625 = ssub.s32 512, 512
          %626 = vsyncadd [#allocation9], %s625
          %s627 = sshll.u32 [#allocation10], 4
          %s628 = int_to_ptr.vmem [resolvable:$true] %s627
          %633 = dma.hbm_to_vmem [thread:$0]  %s13, 512, %s628, [#allocation9], 128, 128, 8
        $region64: #{wisig_forward.1} parent=11 // pred_fallthru
          _
        // Predicated region
        $region65: #{wisig_forward.1} parent=11 // pred_check
          %p634 = pneg %p357
        $region66: #{wisig_forward.1} parent=11 // pred_check_branch
          %636 = sbr.rel (%p634) target = $region68
        $region67: #{wisig_forward.1} parent=11 // pred_region
          %s638 = ssub.s32 256, 256
          %639 = vsyncadd [#allocation12], %s638
          %s640 = sshll.u32 [#allocation11], 4
          %s641 = int_to_ptr.vmem [resolvable:$true] %s640
          %646 = dma.hbm_to_vmem [thread:$0]  %s14, 256, %s641, [#allocation12], 128, 128, 8
        $region68: #{wisig_forward.1} parent=11 // pred_fallthru
          _
        // Predicated region
        $region69: #{wisig_forward.1} parent=11 // pred_check
          %p647 = pneg %p378
        $region70: #{wisig_forward.1} parent=11 // pred_check_branch
          %649 = sbr.rel (%p647) target = $region72
        $region71: #{wisig_forward.1} parent=11 // pred_region
          %s651 = ssub.s32 2048, 2048
          %652 = vsyncadd [#allocation12], %s651
          %s653 = sshll.u32 [#allocation13], 4
          %s654 = int_to_ptr.vmem [resolvable:$true] %s653
          %659 = dma.hbm_to_vmem [thread:$0]  %s15, 2048, %s654, [#allocation12], 128, 128, 8
        $region72: #{wisig_forward.1} parent=11 // pred_fallthru
          _
        // Predicated region
        $region73: #{wisig_forward.1} parent=11 // pred_check
          %p660 = pneg %p399
        $region74: #{wisig_forward.1} parent=11 // pred_check_branch
          %662 = sbr.rel (%p660) target = $region76
        $region75: #{wisig_forward.1} parent=11 // pred_region
          %s664 = ssub.s32 4096, 4096
          %665 = vsyncadd [#allocation15], %s664
          %s666 = sshll.u32 [#allocation14], 4
          %s667 = int_to_ptr.vmem [resolvable:$true] %s666
          %672 = dma.hbm_to_vmem [thread:$0]  %s16, 4096, %s667, [#allocation15], 128, 128, 8
        $region76: #{wisig_forward.1} parent=11 // pred_fallthru
          _
        // Predicated region
        $region77: #{wisig_forward.1} parent=11 // pred_check
          %p673 = pneg %p420
        $region78: #{wisig_forward.1} parent=11 // pred_check_branch
          %675 = sbr.rel (%p673) target = $region80
        $region79: #{wisig_forward.1} parent=11 // pred_region
          _
        $region80: #{wisig_forward.1} parent=11 // pred_fallthru
          _
        // Predicated region
        $region81: #{wisig_forward.1} parent=11 // pred_check
          %p676 = pneg %p441
        $region82: #{wisig_forward.1} parent=11 // pred_check_branch
          %678 = sbr.rel (%p676) target = $region84
        $region83: #{wisig_forward.1} parent=11 // pred_region
          %s680 = ssub.s32 2048, 2048
          %681 = vsyncadd [#allocation15], %s680
          %s682 = sshll.u32 [#allocation16], 4
          %s683 = int_to_ptr.vmem [resolvable:$true] %s682
          %688 = dma.hbm_to_vmem [thread:$0]  %s18, 2048, %s683, [#allocation15], 128, 128, 8
        $region84: #{wisig_forward.1} parent=11 // pred_fallthru
          _
        // Predicated region
        $region85: #{wisig_forward.1} parent=11 // pred_check
          %p689 = pneg %p462
        $region86: #{wisig_forward.1} parent=11 // pred_check_branch
          %691 = sbr.rel (%p689) target = $region88
        $region87: #{wisig_forward.1} parent=11 // pred_region
          _
        $region88: #{wisig_forward.1} parent=11 // pred_fallthru
          _
        // Predicated region
        $region89: #{wisig_forward.1} parent=11 // pred_check
          %p692 = pneg %p483
        $region90: #{wisig_forward.1} parent=11 // pred_check_branch
          %694 = sbr.rel (%p692) target = $region92
        $region91: #{wisig_forward.1} parent=11 // pred_region
          %s696 = ssub.s32 4096, 4096
          %697 = vsyncadd [#allocation18], %s696
          %s698 = sshll.u32 [#allocation17], 4
          %s699 = int_to_ptr.vmem [resolvable:$true] %s698
          %704 = dma.hbm_to_vmem [thread:$0]  %s20, 4096, %s699, [#allocation18], 256, 256, 16
        $region92: #{wisig_forward.1} parent=11 // pred_fallthru
          _
        // Predicated region
        $region93: #{wisig_forward.1} parent=11 // pred_check
          %p705 = pneg %p504
        $region94: #{wisig_forward.1} parent=11 // pred_check_branch
          %707 = sbr.rel (%p705) target = $region96
        $region95: #{wisig_forward.1} parent=11 // pred_region
          _
        $region96: #{wisig_forward.1} parent=11 // pred_fallthru
          _
      $region12: #{wisig_forward.1} parent=5 // pred_fallthru
        _
      %p708 = scmp.lt.s32.totalorder %s37, 2
      // Predicated region
      $region97: #{wisig_forward.1} parent=5 // pred_check
        %p709 = pneg %p708
      $region98: #{wisig_forward.1} parent=5 // pred_check_branch
        %711 = sbr.rel (%p709) target = $region100
      $region99: #{wisig_forward.1} parent=5 // pred_region
        // Predicated region
        $region101: #{wisig_forward.1} parent=99 // pred_check
          %p712 = pneg %p57
        $region102: #{wisig_forward.1} parent=99 // pred_check_branch
          %714 = sbr.rel (%p712) target = $region104
        $region103: #{wisig_forward.1} parent=99 // pred_region
          %p715 = scmp.lt.s32.totalorder %s37, 1
          %s716 = scalar_select %p715, %s37, 1
          %s717 = smul.addr %s716, 32
          %s718 = smul.addr %s717, 8
          %s719 = scalar_lea.vmem %s0, %s718
        $region104: #{wisig_forward.1} parent=99 // pred_fallthru
          _
      $region100: #{wisig_forward.1} parent=5 // pred_fallthru
        _
      %p720 = scmp.le.s32.totalorder 1, %s37
      %p721 = scmp.lt.s32.totalorder %s37, 3
      %p722 = pnand %p720, %p721
      %p723 = pneg %p722
      // Predicated region
      $region105: #{wisig_forward.1} parent=5 // pred_check
        _
      $region106: #{wisig_forward.1} parent=5 // pred_check_branch
        %725 = sbr.rel (%p722) target = $region108
      $region107: #{wisig_forward.1} parent=5 // pred_region
        %s726 = ssub.s32 %s37, 1
        // Predicated region
        $region109: #{wisig_forward.1} parent=107 // pred_check
          %p727 = pneg %p168
        $region110: #{wisig_forward.1} parent=107 // pred_check_branch
          %729 = sbr.rel (%p727) target = $region112
        $region111: #{wisig_forward.1} parent=107 // pred_region
          %730 = dma.done [#allocation3], 24576
        $region112: #{wisig_forward.1} parent=107 // pred_fallthru
          _
        // Predicated region
        $region113: #{wisig_forward.1} parent=107 // pred_check
          %p731 = pneg %p210
        $region114: #{wisig_forward.1} parent=107 // pred_check_branch
          %733 = sbr.rel (%p731) target = $region116
        $region115: #{wisig_forward.1} parent=107 // pred_region
          %734 = dma.done [#allocation6], 24576
        $region116: #{wisig_forward.1} parent=107 // pred_fallthru
          _
        // Predicated region
        $region117: #{wisig_forward.1} parent=107 // pred_check
          %p735 = pneg %p252
        $region118: #{wisig_forward.1} parent=107 // pred_check_branch
          %737 = sbr.rel (%p735) target = $region120
        $region119: #{wisig_forward.1} parent=107 // pred_region
          %738 = dma.done [#allocation6], 12288
        $region120: #{wisig_forward.1} parent=107 // pred_fallthru
          _
        // Predicated region
        $region121: #{wisig_forward.1} parent=107 // pred_check
          %p739 = pneg %p294
        $region122: #{wisig_forward.1} parent=107 // pred_check_branch
          %741 = sbr.rel (%p739) target = $region124
        $region123: #{wisig_forward.1} parent=107 // pred_region
          %742 = dma.done [#allocation9], 4096
        $region124: #{wisig_forward.1} parent=107 // pred_fallthru
          _
        // Predicated region
        $region125: #{wisig_forward.1} parent=107 // pred_check
          %p743 = pneg %p336
        $region126: #{wisig_forward.1} parent=107 // pred_check_branch
          %745 = sbr.rel (%p743) target = $region128
        $region127: #{wisig_forward.1} parent=107 // pred_region
          %746 = dma.done [#allocation9], 512
        $region128: #{wisig_forward.1} parent=107 // pred_fallthru
          _
        // Predicated region
        $region129: #{wisig_forward.1} parent=107 // pred_check
          %p747 = pneg %p357
        $region130: #{wisig_forward.1} parent=107 // pred_check_branch
          %749 = sbr.rel (%p747) target = $region132
        $region131: #{wisig_forward.1} parent=107 // pred_region
          %750 = dma.done [#allocation12], 256
        $region132: #{wisig_forward.1} parent=107 // pred_fallthru
          _
        // Predicated region
        $region133: #{wisig_forward.1} parent=107 // pred_check
          %p751 = pneg %p378
        $region134: #{wisig_forward.1} parent=107 // pred_check_branch
          %753 = sbr.rel (%p751) target = $region136
        $region135: #{wisig_forward.1} parent=107 // pred_region
          %754 = dma.done [#allocation12], 2048
        $region136: #{wisig_forward.1} parent=107 // pred_fallthru
          _
        // Predicated region
        $region137: #{wisig_forward.1} parent=107 // pred_check
          %p755 = pneg %p399
        $region138: #{wisig_forward.1} parent=107 // pred_check_branch
          %757 = sbr.rel (%p755) target = $region140
        $region139: #{wisig_forward.1} parent=107 // pred_region
          %758 = dma.done [#allocation15], 4096
        $region140: #{wisig_forward.1} parent=107 // pred_fallthru
          _
        // Predicated region
        $region141: #{wisig_forward.1} parent=107 // pred_check
          %p759 = pneg %p441
        $region142: #{wisig_forward.1} parent=107 // pred_check_branch
          %761 = sbr.rel (%p759) target = $region144
        $region143: #{wisig_forward.1} parent=107 // pred_region
          %762 = dma.done [#allocation15], 2048
        $region144: #{wisig_forward.1} parent=107 // pred_fallthru
          _
        // Predicated region
        $region145: #{wisig_forward.1} parent=107 // pred_check
          %p763 = pneg %p483
        $region146: #{wisig_forward.1} parent=107 // pred_check_branch
          %765 = sbr.rel (%p763) target = $region148
        $region147: #{wisig_forward.1} parent=107 // pred_region
          %766 = dma.done [#allocation18], 4096
        $region148: #{wisig_forward.1} parent=107 // pred_fallthru
          _
        %p767 = scmp.lt.s32.totalorder %s42, 1
        %s768 = scalar_select %p767, %s42, 1
        %s769 = smul.addr %s768, 32
        %s770 = smul.addr %s769, 8
        %s771 = scalar_lea.vmem %s0, %s770
        %p772 = pneg %p63
        %p773 = pneg %p60
        %p774 = pneg %p84
        %p775 = pneg %p81
        %p776 = pneg %p105
        %p777 = pneg %p102
        %p778 = pneg %p126
        %p779 = pneg %p123
        %p780 = pneg %p147
        %p781 = pneg %p144
        %p782 = pneg %p168
        %p783 = pneg %p165
        %p784 = pneg %p189
        %p785 = pneg %p186
        %p786 = pneg %p210
        %p787 = pneg %p207
        %p788 = pneg %p231
        %p789 = pneg %p228
        %p790 = pneg %p252
        %p791 = pneg %p249
        %p792 = pneg %p273
        %p793 = pneg %p270
        %p794 = pneg %p294
        %p795 = pneg %p291
        %p796 = pneg %p315
        %p797 = pneg %p312
        %p798 = pneg %p336
        %p799 = pneg %p333
        %p800 = pneg %p357
        %p801 = pneg %p354
        %p802 = pneg %p378
        %p803 = pneg %p375
        %p804 = pneg %p399
        %p805 = pneg %p396
        %p806 = pneg %p420
        %p807 = pneg %p417
        %p808 = pneg %p441
        %p809 = pneg %p438
        %p810 = pneg %p462
        %p811 = pneg %p459
        %p812 = pneg %p483
        %p813 = pneg %p480
        %p814 = pneg %p504
        %p815 = pneg %p501
        %p816 = pneg %p530
        %p817 = pneg %p527
        %s818 = sand.u32 %s517, 1
        %s819 = scalar_lea.sflag [#allocation4], %s818
        %s820 = sand.u32 %s517, 1
        %s821 = smul.addr %s820, 16
        %s822 = scalar_lea.vmem [#allocation19], %s821
        %p823 = scmp.lt.s32.totalorder %s42, 1
        %s824 = scalar_select %p823, %s42, 1
        %s825 = smul.addr %s824, 32
        %s826 = smul.addr %s825, 8
        %s827 = scalar_lea.vmem %s0, %s826
        %v828 = vld [vmem:[%s827] sm:$0xff]
        %v829 = vld [vmem:[%s827 + $0x8] sm:$0xff]
        %v830 = vld [vmem:[%s827 + $0x10] sm:$0xff]
        %v831 = vld [vmem:[%s827 + $0x18] sm:$0xff]
        %v832 = vld [vmem:[%s827 + $0x20] sm:$0xff]
        %v833 = vld [vmem:[%s827 + $0x28] sm:$0xff]
        %v834 = vld [vmem:[%s827 + $0x30] sm:$0xff]
        %v835 = vld [vmem:[%s827 + $0x38] sm:$0xff]
        %v836 = vld [vmem:[%s827 + $0x40] sm:$0xff]
        %v837 = vld [vmem:[%s827 + $0x48] sm:$0xff]
        %v838 = vld [vmem:[%s827 + $0x50] sm:$0xff]
        %v839 = vld [vmem:[%s827 + $0x58] sm:$0xff]
        %v840 = vld [vmem:[%s827 + $0x60] sm:$0xff]
        %v841 = vld [vmem:[%s827 + $0x68] sm:$0xff]
        %v842 = vld [vmem:[%s827 + $0x70] sm:$0xff]
        %v843 = vld [vmem:[%s827 + $0x78] sm:$0xff]
        %v844 = vld [vmem:[%s827 + $0x80] sm:$0xff]
        %v845 = vld [vmem:[%s827 + $0x88] sm:$0xff]
        %v846 = vld [vmem:[%s827 + $0x90] sm:$0xff]
        %v847 = vld [vmem:[%s827 + $0x98] sm:$0xff]
        %v848 = vld [vmem:[%s827 + $0xa0] sm:$0xff]
        %v849 = vld [vmem:[%s827 + $0xa8] sm:$0xff]
        %v850 = vld [vmem:[%s827 + $0xb0] sm:$0xff]
        %v851 = vld [vmem:[%s827 + $0xb8] sm:$0xff]
        %v852 = vld [vmem:[%s827 + $0xc0] sm:$0xff]
        %v853 = vld [vmem:[%s827 + $0xc8] sm:$0xff]
        %v854 = vld [vmem:[%s827 + $0xd0] sm:$0xff]
        %v855 = vld [vmem:[%s827 + $0xd8] sm:$0xff]
        %v856 = vld [vmem:[%s827 + $0xe0] sm:$0xff]
        %v857 = vld [vmem:[%s827 + $0xe8] sm:$0xff]
        %v858 = vld [vmem:[%s827 + $0xf0] sm:$0xff]
        %v859 = vld [vmem:[%s827 + $0xf8] sm:$0xff]
        %v860 = vlaneseq
        %v861 = vshrl.u32 %v860, 7
        %v862 = vadd.s32 %v861, 8
        %v863 = vadd.s32 %v861, 16
        %v864 = vadd.s32 %v861, 24
        %v865 = vadd.s32 %v861, 32
        %v866 = vadd.s32 %v861, 40
        %v867 = vadd.s32 %v861, 48
        %v868 = vadd.s32 %v861, 56
        %v869 = vadd.s32 %v861, 64
        %v870 = vadd.s32 %v861, 72
        %v871 = vadd.s32 %v861, 80
        %v872 = vadd.s32 %v861, 88
        %v873 = vadd.s32 %v861, 96
        %v874 = vadd.s32 %v861, 104
        %v875 = vadd.s32 %v861, 112
        %v876 = vadd.s32 %v861, 120
        %v877 = vadd.s32 %v861, 128
        %v878 = vadd.s32 %v861, 136
        %v879 = vadd.s32 %v861, 144
        %v880 = vadd.s32 %v861, 152
        %v881 = vadd.s32 %v861, 160
        %v882 = vadd.s32 %v861, 168
        %v883 = vadd.s32 %v861, 176
        %v884 = vadd.s32 %v861, 184
        %v885 = vadd.s32 %v861, 192
        %v886 = vadd.s32 %v861, 200
        %v887 = vadd.s32 %v861, 208
        %v888 = vadd.s32 %v861, 216
        %v889 = vadd.s32 %v861, 224
        %v890 = vadd.s32 %v861, 232
        %v891 = vadd.s32 %v861, 240
        %v892 = vadd.s32 %v861, 248
        %vm893 = vcmp.eq.s32.totalorder %v861, 0
        %vm894 = vcmp.eq.s32.totalorder %v862, 0
        %vm895 = vcmp.eq.s32.totalorder %v863, 0
        %vm896 = vcmp.eq.s32.totalorder %v864, 0
        %vm897 = vcmp.eq.s32.totalorder %v865, 0
        %vm898 = vcmp.eq.s32.totalorder %v866, 0
        %vm899 = vcmp.eq.s32.totalorder %v867, 0
        %vm900 = vcmp.eq.s32.totalorder %v868, 0
        %vm901 = vcmp.eq.s32.totalorder %v869, 0
        %vm902 = vcmp.eq.s32.totalorder %v870, 0
        %vm903 = vcmp.eq.s32.totalorder %v871, 0
        %vm904 = vcmp.eq.s32.totalorder %v872, 0
        %vm905 = vcmp.eq.s32.totalorder %v873, 0
        %vm906 = vcmp.eq.s32.totalorder %v874, 0
        %vm907 = vcmp.eq.s32.totalorder %v875, 0
        %vm908 = vcmp.eq.s32.totalorder %v876, 0
        %vm909 = vcmp.eq.s32.totalorder %v877, 0
        %vm910 = vcmp.eq.s32.totalorder %v878, 0
        %vm911 = vcmp.eq.s32.totalorder %v879, 0
        %vm912 = vcmp.eq.s32.totalorder %v880, 0
        %vm913 = vcmp.eq.s32.totalorder %v881, 0
        %vm914 = vcmp.eq.s32.totalorder %v882, 0
        %vm915 = vcmp.eq.s32.totalorder %v883, 0
        %vm916 = vcmp.eq.s32.totalorder %v884, 0
        %vm917 = vcmp.eq.s32.totalorder %v885, 0
        %vm918 = vcmp.eq.s32.totalorder %v886, 0
        %vm919 = vcmp.eq.s32.totalorder %v887, 0
        %vm920 = vcmp.eq.s32.totalorder %v888, 0
        %vm921 = vcmp.eq.s32.totalorder %v889, 0
        %vm922 = vcmp.eq.s32.totalorder %v890, 0
        %vm923 = vcmp.eq.s32.totalorder %v891, 0
        %vm924 = vcmp.eq.s32.totalorder %v892, 0
        %v925 = vrot.slane %v828, 7
        %v926 = vrot.slane %v829, 7
        %v927 = vrot.slane %v830, 7
        %v928 = vrot.slane %v831, 7
        %v929 = vrot.slane %v832, 7
        %v930 = vrot.slane %v833, 7
        %v931 = vrot.slane %v834, 7
        %v932 = vrot.slane %v835, 7
        %v933 = vrot.slane %v836, 7
        %v934 = vrot.slane %v837, 7
        %v935 = vrot.slane %v838, 7
        %v936 = vrot.slane %v839, 7
        %v937 = vrot.slane %v840, 7
        %v938 = vrot.slane %v841, 7
        %v939 = vrot.slane %v842, 7
        %v940 = vrot.slane %v843, 7
        %v941 = vrot.slane %v844, 7
        %v942 = vrot.slane %v845, 7
        %v943 = vrot.slane %v846, 7
        %v944 = vrot.slane %v847, 7
        %v945 = vrot.slane %v848, 7
        %v946 = vrot.slane %v849, 7
        %v947 = vrot.slane %v850, 7
        %v948 = vrot.slane %v851, 7
        %v949 = vrot.slane %v852, 7
        %v950 = vrot.slane %v853, 7
        %v951 = vrot.slane %v854, 7
        %v952 = vrot.slane %v855, 7
        %v953 = vrot.slane %v856, 7
        %v954 = vrot.slane %v857, 7
        %v955 = vrot.slane %v858, 7
        %v956 = vrot.slane %v859, 7
        %vm957 = vcmp.lt.s32.totalorder %v861, 1
        %v958 = vsel %vm957, %v955, %v956
        %v959 = vsel %vm957, %v954, %v955
        %v960 = vsel %vm957, %v953, %v954
        %v961 = vsel %vm957, %v952, %v953
        %v962 = vsel %vm957, %v951, %v952
        %v963 = vsel %vm957, %v950, %v951
        %v964 = vsel %vm957, %v949, %v950
        %v965 = vsel %vm957, %v948, %v949
        %v966 = vsel %vm957, %v947, %v948
        %v967 = vsel %vm957, %v946, %v947
        %v968 = vsel %vm957, %v945, %v946
        %v969 = vsel %vm957, %v944, %v945
        %v970 = vsel %vm957, %v943, %v944
        %v971 = vsel %vm957, %v942, %v943
        %v972 = vsel %vm957, %v941, %v942
        %v973 = vsel %vm957, %v940, %v941
        %v974 = vsel %vm957, %v939, %v940
        %v975 = vsel %vm957, %v938, %v939
        %v976 = vsel %vm957, %v937, %v938
        %v977 = vsel %vm957, %v936, %v937
        %v978 = vsel %vm957, %v935, %v936
        %v979 = vsel %vm957, %v934, %v935
        %v980 = vsel %vm957, %v933, %v934
        %v981 = vsel %vm957, %v932, %v933
        %v982 = vsel %vm957, %v931, %v932
        %v983 = vsel %vm957, %v930, %v931
        %v984 = vsel %vm957, %v929, %v930
        %v985 = vsel %vm957, %v928, %v929
        %v986 = vsel %vm957, %v927, %v928
        %v987 = vsel %vm957, %v926, %v927
        %v988 = vsel %vm957, %v925, %v926
        %v989 = vsel %vm957, %v956, %v925
        %v990 = vsel %vm893, 0.0, %v989
        %v991 = vsel %vm894, 0.0, %v988
        %v992 = vsel %vm895, 0.0, %v987
        %v993 = vsel %vm896, 0.0, %v986
        %v994 = vsel %vm897, 0.0, %v985
        %v995 = vsel %vm898, 0.0, %v984
        %v996 = vsel %vm899, 0.0, %v983
        %v997 = vsel %vm900, 0.0, %v982
        %v998 = vsel %vm901, 0.0, %v981
        %v999 = vsel %vm902, 0.0, %v980
        %v1000 = vsel %vm903, 0.0, %v979
        %v1001 = vsel %vm904, 0.0, %v978
        %v1002 = vsel %vm905, 0.0, %v977
        %v1003 = vsel %vm906, 0.0, %v976
        %v1004 = vsel %vm907, 0.0, %v975
        %v1005 = vsel %vm908, 0.0, %v974
        %v1006 = vsel %vm909, 0.0, %v973
        %v1007 = vsel %vm910, 0.0, %v972
        %v1008 = vsel %vm911, 0.0, %v971
        %v1009 = vsel %vm912, 0.0, %v970
        %v1010 = vsel %vm913, 0.0, %v969
        %v1011 = vsel %vm914, 0.0, %v968
        %v1012 = vsel %vm915, 0.0, %v967
        %v1013 = vsel %vm916, 0.0, %v966
        %v1014 = vsel %vm917, 0.0, %v965
        %v1015 = vsel %vm918, 0.0, %v964
        %v1016 = vsel %vm919, 0.0, %v963
        %v1017 = vsel %vm920, 0.0, %v962
        %v1018 = vsel %vm921, 0.0, %v961
        %v1019 = vsel %vm922, 0.0, %v960
        %v1020 = vsel %vm923, 0.0, %v959
        %v1021 = vsel %vm924, 0.0, %v958
        %vm1022 = vcmp.eq.s32.totalorder %v861, 255
        %vm1023 = vcmp.eq.s32.totalorder %v862, 255
        %vm1024 = vcmp.eq.s32.totalorder %v863, 255
        %vm1025 = vcmp.eq.s32.totalorder %v864, 255
        %vm1026 = vcmp.eq.s32.totalorder %v865, 255
        %vm1027 = vcmp.eq.s32.totalorder %v866, 255
        %vm1028 = vcmp.eq.s32.totalorder %v867, 255
        %vm1029 = vcmp.eq.s32.totalorder %v868, 255
        %vm1030 = vcmp.eq.s32.totalorder %v869, 255
        %vm1031 = vcmp.eq.s32.totalorder %v870, 255
        %vm1032 = vcmp.eq.s32.totalorder %v871, 255
        %vm1033 = vcmp.eq.s32.totalorder %v872, 255
        %vm1034 = vcmp.eq.s32.totalorder %v873, 255
        %vm1035 = vcmp.eq.s32.totalorder %v874, 255
        %vm1036 = vcmp.eq.s32.totalorder %v875, 255
        %vm1037 = vcmp.eq.s32.totalorder %v876, 255
        %vm1038 = vcmp.eq.s32.totalorder %v877, 255
        %vm1039 = vcmp.eq.s32.totalorder %v878, 255
        %vm1040 = vcmp.eq.s32.totalorder %v879, 255
        %vm1041 = vcmp.eq.s32.totalorder %v880, 255
        %vm1042 = vcmp.eq.s32.totalorder %v881, 255
        %vm1043 = vcmp.eq.s32.totalorder %v882, 255
        %vm1044 = vcmp.eq.s32.totalorder %v883, 255
        %vm1045 = vcmp.eq.s32.totalorder %v884, 255
        %vm1046 = vcmp.eq.s32.totalorder %v885, 255
        %vm1047 = vcmp.eq.s32.totalorder %v886, 255
        %vm1048 = vcmp.eq.s32.totalorder %v887, 255
        %vm1049 = vcmp.eq.s32.totalorder %v888, 255
        %vm1050 = vcmp.eq.s32.totalorder %v889, 255
        %vm1051 = vcmp.eq.s32.totalorder %v890, 255
        %vm1052 = vcmp.eq.s32.totalorder %v891, 255
        %vm1053 = vcmp.eq.s32.totalorder %v892, 255
        %v1054 = vrot.slane %v828, 1
        %v1055 = vrot.slane %v829, 1
        %v1056 = vrot.slane %v830, 1
        %v1057 = vrot.slane %v831, 1
        %v1058 = vrot.slane %v832, 1
        %v1059 = vrot.slane %v833, 1
        %v1060 = vrot.slane %v834, 1
        %v1061 = vrot.slane %v835, 1
        %v1062 = vrot.slane %v836, 1
        %v1063 = vrot.slane %v837, 1
        %v1064 = vrot.slane %v838, 1
        %v1065 = vrot.slane %v839, 1
        %v1066 = vrot.slane %v840, 1
        %v1067 = vrot.slane %v841, 1
        %v1068 = vrot.slane %v842, 1
        %v1069 = vrot.slane %v843, 1
        %v1070 = vrot.slane %v844, 1
        %v1071 = vrot.slane %v845, 1
        %v1072 = vrot.slane %v846, 1
        %v1073 = vrot.slane %v847, 1
        %v1074 = vrot.slane %v848, 1
        %v1075 = vrot.slane %v849, 1
        %v1076 = vrot.slane %v850, 1
        %v1077 = vrot.slane %v851, 1
        %v1078 = vrot.slane %v852, 1
        %v1079 = vrot.slane %v853, 1
        %v1080 = vrot.slane %v854, 1
        %v1081 = vrot.slane %v855, 1
        %v1082 = vrot.slane %v856, 1
        %v1083 = vrot.slane %v857, 1
        %v1084 = vrot.slane %v858, 1
        %v1085 = vrot.slane %v859, 1
        %vm1086 = vcmp.lt.s32.totalorder %v861, 7
        %v1087 = vsel %vm1086, %v1084, %v1085
        %v1088 = vsel %vm1086, %v1083, %v1084
        %v1089 = vsel %vm1086, %v1082, %v1083
        %v1090 = vsel %vm1086, %v1081, %v1082
        %v1091 = vsel %vm1086, %v1080, %v1081
        %v1092 = vsel %vm1086, %v1079, %v1080
        %v1093 = vsel %vm1086, %v1078, %v1079
        %v1094 = vsel %vm1086, %v1077, %v1078
        %v1095 = vsel %vm1086, %v1076, %v1077
        %v1096 = vsel %vm1086, %v1075, %v1076
        %v1097 = vsel %vm1086, %v1074, %v1075
        %v1098 = vsel %vm1086, %v1073, %v1074
        %v1099 = vsel %vm1086, %v1072, %v1073
        %v1100 = vsel %vm1086, %v1071, %v1072
        %v1101 = vsel %vm1086, %v1070, %v1071
        %v1102 = vsel %vm1086, %v1069, %v1070
        %v1103 = vsel %vm1086, %v1068, %v1069
        %v1104 = vsel %vm1086, %v1067, %v1068
        %v1105 = vsel %vm1086, %v1066, %v1067
        %v1106 = vsel %vm1086, %v1065, %v1066
        %v1107 = vsel %vm1086, %v1064, %v1065
        %v1108 = vsel %vm1086, %v1063, %v1064
        %v1109 = vsel %vm1086, %v1062, %v1063
        %v1110 = vsel %vm1086, %v1061, %v1062
        %v1111 = vsel %vm1086, %v1060, %v1061
        %v1112 = vsel %vm1086, %v1059, %v1060
        %v1113 = vsel %vm1086, %v1058, %v1059
        %v1114 = vsel %vm1086, %v1057, %v1058
        %v1115 = vsel %vm1086, %v1056, %v1057
        %v1116 = vsel %vm1086, %v1055, %v1056
        %v1117 = vsel %vm1086, %v1054, %v1055
        %v1118 = vsel %vm1086, %v1085, %v1054
        %v1119 = vsel %vm1022, 0.0, %v1117
        %v1120 = vsel %vm1023, 0.0, %v1116
        %v1121 = vsel %vm1024, 0.0, %v1115
        %v1122 = vsel %vm1025, 0.0, %v1114
        %v1123 = vsel %vm1026, 0.0, %v1113
        %v1124 = vsel %vm1027, 0.0, %v1112
        %v1125 = vsel %vm1028, 0.0, %v1111
        %v1126 = vsel %vm1029, 0.0, %v1110
        %v1127 = vsel %vm1030, 0.0, %v1109
        %v1128 = vsel %vm1031, 0.0, %v1108
        %v1129 = vsel %vm1032, 0.0, %v1107
        %v1130 = vsel %vm1033, 0.0, %v1106
        %v1131 = vsel %vm1034, 0.0, %v1105
        %v1132 = vsel %vm1035, 0.0, %v1104
        %v1133 = vsel %vm1036, 0.0, %v1103
        %v1134 = vsel %vm1037, 0.0, %v1102
        %v1135 = vsel %vm1038, 0.0, %v1101
        %v1136 = vsel %vm1039, 0.0, %v1100
        %v1137 = vsel %vm1040, 0.0, %v1099
        %v1138 = vsel %vm1041, 0.0, %v1098
        %v1139 = vsel %vm1042, 0.0, %v1097
        %v1140 = vsel %vm1043, 0.0, %v1096
        %v1141 = vsel %vm1044, 0.0, %v1095
        %v1142 = vsel %vm1045, 0.0, %v1094
        %v1143 = vsel %vm1046, 0.0, %v1093
        %v1144 = vsel %vm1047, 0.0, %v1092
        %v1145 = vsel %vm1048, 0.0, %v1091
        %v1146 = vsel %vm1049, 0.0, %v1090
        %v1147 = vsel %vm1050, 0.0, %v1089
        %v1148 = vsel %vm1051, 0.0, %v1088
        %v1149 = vsel %vm1052, 0.0, %v1087
        %v1150 = vsel %vm1053, 0.0, %v1118
        %1183 = vrot.lane.b32.xlu0 %v828, 16
        %v1184 = vpop.permute.xlu0 %1183
        %1185 = vrot.lane.b32.xlu0 %v829, 16
        %v1186 = vpop.permute.xlu0 %1185
        %1187 = vrot.lane.b32.xlu0 %v830, 16
        %v1188 = vpop.permute.xlu0 %1187
        %1189 = vrot.lane.b32.xlu0 %v831, 16
        %v1190 = vpop.permute.xlu0 %1189
        %1191 = vrot.lane.b32.xlu0 %v832, 16
        %v1192 = vpop.permute.xlu0 %1191
        %1193 = vrot.lane.b32.xlu0 %v833, 16
        %v1194 = vpop.permute.xlu0 %1193
        %1195 = vrot.lane.b32.xlu0 %v834, 16
        %v1196 = vpop.permute.xlu0 %1195
        %1197 = vrot.lane.b32.xlu0 %v835, 16
        %v1198 = vpop.permute.xlu0 %1197
        %1199 = vrot.lane.b32.xlu0 %v836, 16
        %v1200 = vpop.permute.xlu0 %1199
        %1201 = vrot.lane.b32.xlu0 %v837, 16
        %v1202 = vpop.permute.xlu0 %1201
        %1203 = vrot.lane.b32.xlu0 %v838, 16
        %v1204 = vpop.permute.xlu0 %1203
        %1205 = vrot.lane.b32.xlu0 %v839, 16
        %v1206 = vpop.permute.xlu0 %1205
        %1207 = vrot.lane.b32.xlu0 %v840, 16
        %v1208 = vpop.permute.xlu0 %1207
        %1209 = vrot.lane.b32.xlu0 %v841, 16
        %v1210 = vpop.permute.xlu0 %1209
        %1211 = vrot.lane.b32.xlu0 %v842, 16
        %v1212 = vpop.permute.xlu0 %1211
        %1213 = vrot.lane.b32.xlu0 %v843, 16
        %v1214 = vpop.permute.xlu0 %1213
        %1215 = vrot.lane.b32.xlu0 %v844, 16
        %v1216 = vpop.permute.xlu0 %1215
        %1217 = vrot.lane.b32.xlu0 %v845, 16
        %v1218 = vpop.permute.xlu0 %1217
        %1219 = vrot.lane.b32.xlu0 %v846, 16
        %v1220 = vpop.permute.xlu0 %1219
        %1221 = vrot.lane.b32.xlu0 %v847, 16
        %v1222 = vpop.permute.xlu0 %1221
        %1223 = vrot.lane.b32.xlu0 %v848, 16
        %v1224 = vpop.permute.xlu0 %1223
        %1225 = vrot.lane.b32.xlu0 %v849, 16
        %v1226 = vpop.permute.xlu0 %1225
        %1227 = vrot.lane.b32.xlu0 %v850, 16
        %v1228 = vpop.permute.xlu0 %1227
        %1229 = vrot.lane.b32.xlu0 %v851, 16
        %v1230 = vpop.permute.xlu0 %1229
        %1231 = vrot.lane.b32.xlu0 %v852, 16
        %v1232 = vpop.permute.xlu0 %1231
        %1233 = vrot.lane.b32.xlu0 %v853, 16
        %v1234 = vpop.permute.xlu0 %1233
        %1235 = vrot.lane.b32.xlu0 %v854, 16
        %v1236 = vpop.permute.xlu0 %1235
        %1237 = vrot.lane.b32.xlu0 %v855, 16
        %v1238 = vpop.permute.xlu0 %1237
        %1239 = vrot.lane.b32.xlu0 %v856, 16
        %v1240 = vpop.permute.xlu0 %1239
        %1241 = vrot.lane.b32.xlu0 %v857, 16
        %v1242 = vpop.permute.xlu0 %1241
        %1243 = vrot.lane.b32.xlu0 %v858, 16
        %v1244 = vpop.permute.xlu0 %1243
        %1245 = vrot.lane.b32.xlu0 %v859, 16
        %v1246 = vpop.permute.xlu0 %1245
        %1311 = vrot.lane.b32.xlu0 %v1119, 32
        %v1312 = vpop.permute.xlu0 %1311
        %1313 = vrot.lane.b32.xlu0 %v1120, 32
        %v1314 = vpop.permute.xlu0 %1313
        %1315 = vrot.lane.b32.xlu0 %v1121, 32
        %v1316 = vpop.permute.xlu0 %1315
        %1317 = vrot.lane.b32.xlu0 %v1122, 32
        %v1318 = vpop.permute.xlu0 %1317
        %1319 = vrot.lane.b32.xlu0 %v1123, 32
        %v1320 = vpop.permute.xlu0 %1319
        %1321 = vrot.lane.b32.xlu0 %v1124, 32
        %v1322 = vpop.permute.xlu0 %1321
        %1323 = vrot.lane.b32.xlu0 %v1125, 32
        %v1324 = vpop.permute.xlu0 %1323
        %1325 = vrot.lane.b32.xlu0 %v1126, 32
        %v1326 = vpop.permute.xlu0 %1325
        %1327 = vrot.lane.b32.xlu0 %v1127, 32
        %v1328 = vpop.permute.xlu0 %1327
        %1329 = vrot.lane.b32.xlu0 %v1128, 32
        %v1330 = vpop.permute.xlu0 %1329
        %1331 = vrot.lane.b32.xlu0 %v1129, 32
        %v1332 = vpop.permute.xlu0 %1331
        %1333 = vrot.lane.b32.xlu0 %v1130, 32
        %v1334 = vpop.permute.xlu0 %1333
        %1335 = vrot.lane.b32.xlu0 %v1131, 32
        %v1336 = vpop.permute.xlu0 %1335
        %1337 = vrot.lane.b32.xlu0 %v1132, 32
        %v1338 = vpop.permute.xlu0 %1337
        %1339 = vrot.lane.b32.xlu0 %v1133, 32
        %v1340 = vpop.permute.xlu0 %1339
        %1341 = vrot.lane.b32.xlu0 %v1134, 32
        %v1342 = vpop.permute.xlu0 %1341
        %1343 = vrot.lane.b32.xlu0 %v1135, 32
        %v1344 = vpop.permute.xlu0 %1343
        %1345 = vrot.lane.b32.xlu0 %v1136, 32
        %v1346 = vpop.permute.xlu0 %1345
        %1347 = vrot.lane.b32.xlu0 %v1137, 32
        %v1348 = vpop.permute.xlu0 %1347
        %1349 = vrot.lane.b32.xlu0 %v1138, 32
        %v1350 = vpop.permute.xlu0 %1349
        %1351 = vrot.lane.b32.xlu0 %v1139, 32
        %v1352 = vpop.permute.xlu0 %1351
        %1353 = vrot.lane.b32.xlu0 %v1140, 32
        %v1354 = vpop.permute.xlu0 %1353
        %1355 = vrot.lane.b32.xlu0 %v1141, 32
        %v1356 = vpop.permute.xlu0 %1355
        %1357 = vrot.lane.b32.xlu0 %v1142, 32
        %v1358 = vpop.permute.xlu0 %1357
        %1359 = vrot.lane.b32.xlu0 %v1143, 32
        %v1360 = vpop.permute.xlu0 %1359
        %1361 = vrot.lane.b32.xlu0 %v1144, 32
        %v1362 = vpop.permute.xlu0 %1361
        %1363 = vrot.lane.b32.xlu0 %v1145, 32
        %v1364 = vpop.permute.xlu0 %1363
        %1365 = vrot.lane.b32.xlu0 %v1146, 32
        %v1366 = vpop.permute.xlu0 %1365
        %1367 = vrot.lane.b32.xlu0 %v1147, 32
        %v1368 = vpop.permute.xlu0 %1367
        %1369 = vrot.lane.b32.xlu0 %v1148, 32
        %v1370 = vpop.permute.xlu0 %1369
        %1371 = vrot.lane.b32.xlu0 %v1149, 32
        %v1372 = vpop.permute.xlu0 %1371
        %1373 = vrot.lane.b32.xlu0 %v1150, 32
        %v1374 = vpop.permute.xlu0 %1373
        %vm1407 = vcmask 130048
        %v1408 = vsel %vm1407, %v990, %v1184
        %v1409 = vsel %vm1407, %v991, %v1186
        %v1410 = vsel %vm1407, %v992, %v1188
        %v1411 = vsel %vm1407, %v993, %v1190
        %v1412 = vsel %vm1407, %v994, %v1192
        %v1413 = vsel %vm1407, %v995, %v1194
        %v1414 = vsel %vm1407, %v996, %v1196
        %v1415 = vsel %vm1407, %v997, %v1198
        %v1416 = vsel %vm1407, %v998, %v1200
        %v1417 = vsel %vm1407, %v999, %v1202
        %v1418 = vsel %vm1407, %v1000, %v1204
        %v1419 = vsel %vm1407, %v1001, %v1206
        %v1420 = vsel %vm1407, %v1002, %v1208
        %v1421 = vsel %vm1407, %v1003, %v1210
        %v1422 = vsel %vm1407, %v1004, %v1212
        %v1423 = vsel %vm1407, %v1005, %v1214
        %v1424 = vsel %vm1407, %v1006, %v1216
        %v1425 = vsel %vm1407, %v1007, %v1218
        %v1426 = vsel %vm1407, %v1008, %v1220
        %v1427 = vsel %vm1407, %v1009, %v1222
        %v1428 = vsel %vm1407, %v1010, %v1224
        %v1429 = vsel %vm1407, %v1011, %v1226
        %v1430 = vsel %vm1407, %v1012, %v1228
        %v1431 = vsel %vm1407, %v1013, %v1230
        %v1432 = vsel %vm1407, %v1014, %v1232
        %v1433 = vsel %vm1407, %v1015, %v1234
        %v1434 = vsel %vm1407, %v1016, %v1236
        %v1435 = vsel %vm1407, %v1017, %v1238
        %v1436 = vsel %vm1407, %v1018, %v1240
        %v1437 = vsel %vm1407, %v1019, %v1242
        %v1438 = vsel %vm1407, %v1020, %v1244
        %v1439 = vsel %vm1407, %v1021, %v1246
        %vm1440 = vcmask 261120
        %v1441 = vsel %vm1440, %v1408, %v1312
        %v1442 = vsel %vm1440, %v1409, %v1314
        %v1443 = vsel %vm1440, %v1410, %v1316
        %v1444 = vsel %vm1440, %v1411, %v1318
        %v1445 = vsel %vm1440, %v1412, %v1320
        %v1446 = vsel %vm1440, %v1413, %v1322
        %v1447 = vsel %vm1440, %v1414, %v1324
        %v1448 = vsel %vm1440, %v1415, %v1326
        %v1449 = vsel %vm1440, %v1416, %v1328
        %v1450 = vsel %vm1440, %v1417, %v1330
        %v1451 = vsel %vm1440, %v1418, %v1332
        %v1452 = vsel %vm1440, %v1419, %v1334
        %v1453 = vsel %vm1440, %v1420, %v1336
        %v1454 = vsel %vm1440, %v1421, %v1338
        %v1455 = vsel %vm1440, %v1422, %v1340
        %v1456 = vsel %vm1440, %v1423, %v1342
        %v1457 = vsel %vm1440, %v1424, %v1344
        %v1458 = vsel %vm1440, %v1425, %v1346
        %v1459 = vsel %vm1440, %v1426, %v1348
        %v1460 = vsel %vm1440, %v1427, %v1350
        %v1461 = vsel %vm1440, %v1428, %v1352
        %v1462 = vsel %vm1440, %v1429, %v1354
        %v1463 = vsel %vm1440, %v1430, %v1356
        %v1464 = vsel %vm1440, %v1431, %v1358
        %v1465 = vsel %vm1440, %v1432, %v1360
        %v1466 = vsel %vm1440, %v1433, %v1362
        %v1467 = vsel %vm1440, %v1434, %v1364
        %v1468 = vsel %vm1440, %v1435, %v1366
        %v1469 = vsel %vm1440, %v1436, %v1368
        %v1470 = vsel %vm1440, %v1437, %v1370
        %v1471 = vsel %vm1440, %v1438, %v1372
        %v1472 = vsel %vm1440, %v1439, %v1374
        %v1473 = vld [vmem:[%s1] sm:$0xff]
        %v1474 = vld [vmem:[%s1 + $0x8] sm:$0xff]
        %v1475 = vld [vmem:[%s1 + $0x10] sm:$0xff]
        %v1476 = vld [vmem:[%s1 + $0x18] sm:$0xff]
        %v1477 = vld [vmem:[%s1 + $0x20] sm:$0xff]
        %v1478 = vld [vmem:[%s1 + $0x28] sm:$0xff]
        %v1479 = vld [vmem:[%s2] sm:$0x1]
        %v1481 = vlaneseq
        %v1482 = vshrl.u32 %v1481, 7
        %v1483 = vsub.s32 0, %v1482
        %v1484 = vrot.slane %v1479, %v1483
        %vm1486 = vcmask 392192
        %v1488 = vsel %vm1486, %v1441, 0
        %v1491 = vsel %vm1486, %v1442, 0
        %v1494 = vsel %vm1486, %v1443, 0
        %v1497 = vsel %vm1486, %v1444, 0
        %v1500 = vsel %vm1486, %v1445, 0
        %v1503 = vsel %vm1486, %v1446, 0
        %v1506 = vsel %vm1486, %v1447, 0
        %v1509 = vsel %vm1486, %v1448, 0
        %v1512 = vsel %vm1486, %v1449, 0
        %v1515 = vsel %vm1486, %v1450, 0
        %v1518 = vsel %vm1486, %v1451, 0
        %v1521 = vsel %vm1486, %v1452, 0
        %v1524 = vsel %vm1486, %v1453, 0
        %v1527 = vsel %vm1486, %v1454, 0
        %v1530 = vsel %vm1486, %v1455, 0
        %v1533 = vsel %vm1486, %v1456, 0
        %v1536 = vsel %vm1486, %v1457, 0
        %v1539 = vsel %vm1486, %v1458, 0
        %v1542 = vsel %vm1486, %v1459, 0
        %v1545 = vsel %vm1486, %v1460, 0
        %v1548 = vsel %vm1486, %v1461, 0
        %v1551 = vsel %vm1486, %v1462, 0
        %v1554 = vsel %vm1486, %v1463, 0
        %v1557 = vsel %vm1486, %v1464, 0
        %v1560 = vsel %vm1486, %v1465, 0
        %v1563 = vsel %vm1486, %v1466, 0
        %v1566 = vsel %vm1486, %v1467, 0
        %v1569 = vsel %vm1486, %v1468, 0
        %v1572 = vsel %vm1486, %v1469, 0
        %v1575 = vsel %vm1486, %v1470, 0
        %v1578 = vsel %vm1486, %v1471, 0
        %v1581 = vsel %vm1486, %v1472, 0
        %1583 = vmatprep.subr.mxu0 0.0
        %1584 = vmatpush1.msra.mxu0 %v1473
        %1585 = vmatprep.subr.mxu0 0.0
        %1586 = vmatpush1.msra.mxu0 %v1474
        %1587 = vmatprep.subr.mxu0 0.0
        %1588 = vmatpush1.msra.mxu0 %v1475
        %1589 = vmatprep.subr.mxu0 0.0
        %1590 = vmatpush1.msra.mxu0 %v1476
        %1591 = vmatprep.subr.mxu0 0.0
        %1592 = vmatpush1.msra.mxu0 %v1477
        %1593 = vmatprep.subr.mxu0 0.0
        %1594 = vmatpush1.msra.mxu0 %v1478
        %1595 = vmatprep.subr.mxu0 0.0
        %1596 = vmatpush1.msra.mxu0 0.0
        %1597 = vmatprep.subr.mxu0 0.0
        %1598 = vmatpush1.msra.mxu0 0.0
        %1599 = vmatprep.subr.mxu0 0.0
        %1600 = vmatpush1.msra.mxu0 0.0
        %1601 = vmatprep.subr.mxu0 0.0
        %1602 = vmatpush1.msra.mxu0 0.0
        %1603 = vmatprep.subr.mxu0 0.0
        %1604 = vmatpush1.msra.mxu0 0.0
        %1605 = vmatprep.subr.mxu0 0.0
        %1606 = vmatpush1.msra.mxu0 0.0
        %1607 = vmatprep.subr.mxu0 0.0
        %1608 = vmatpush1.msra.mxu0 0.0
        %1609 = vmatprep.subr.mxu0 0.0
        %1610 = vmatpush1.msra.mxu0 0.0
        %1611 = vmatprep.subr.mxu0 0.0
        %1612 = vmatpush1.msra.mxu0 0.0
        %1613 = vmatprep.subr.mxu0 0.0
        %1614 = vmatpush1.msra.mxu0 0.0
        %1615 = vmatprep.subr.mxu0 0.0
        %1616 = vmatpush1.msra.mxu0 0.0
        %1617 = vmatprep.subr.mxu0 0.0
        %1618 = vmatpush1.msra.mxu0 0.0
        %1619 = vmatprep.subr.mxu0 0.0
        %1620 = vmatpush1.msra.mxu0 0.0
        %1621 = vmatprep.subr.mxu0 0.0
        %1622 = vmatpush1.msra.mxu0 0.0
        %1623 = vmatprep.subr.mxu0 0.0
        %1624 = vmatpush1.msra.mxu0 0.0
        %1625 = vmatprep.subr.mxu0 0.0
        %1626 = vmatpush1.msra.mxu0 0.0
        %1627 = vmatprep.subr.mxu0 0.0
        %1628 = vmatpush1.msra.mxu0 0.0
        %1629 = vmatprep.subr.mxu0 0.0
        %1630 = vmatpush1.msra.mxu0 0.0
        %1631 = vmatprep.subr.mxu0 0.0
        %1632 = vmatpush1.msra.mxu0 0.0
        %1633 = vmatprep.subr.mxu0 0.0
        %1634 = vmatpush1.msra.mxu0 0.0
        %1635 = vmatprep.subr.mxu0 0.0
        %1636 = vmatpush1.msra.mxu0 0.0
        %1637 = vmatprep.subr.mxu0 0.0
        %1638 = vmatpush1.msra.mxu0 0.0
        %1639 = vmatprep.subr.mxu0 0.0
        %1640 = vmatpush1.msra.mxu0 0.0
        %1641 = vmatprep.subr.mxu0 0.0
        %1642 = vmatpush1.msra.mxu0 0.0
        %1643 = vmatprep.subr.mxu0 0.0
        %1644 = vmatpush1.msra.mxu0 0.0
        %1645 = vmatprep.subr.mxu0 0.0
        %1646 = vmatpush1.msra.mxu0 0.0
        %1647 = vmatprep.mubr.f32.mxu0 0.0
        %1648 = vmatmul.mubr.f32.gmra.mrb[0].mxu0 %v1488
        %v1649 = vpop.f32.mrb[0].mxu0
        %v1650 = vadd.f32 %v1484, %v1649
        %v1651 = vpop.f32.mrb[0].mxu0
        %1652 = vmatprep.mubr.f32.mxu0 0.0
        %1653 = vmatmul.mubr.f32.gmra.mrb[0].mxu0 %v1491
        %v1654 = vpop.f32.mrb[0].mxu0
        %v1655 = vadd.f32 %v1484, %v1654
        %v1656 = vpop.f32.mrb[0].mxu0
        %1657 = vmatprep.mubr.f32.mxu0 0.0
        %1658 = vmatmul.mubr.f32.gmra.mrb[0].mxu0 %v1494
        %v1659 = vpop.f32.mrb[0].mxu0
        %v1660 = vadd.f32 %v1484, %v1659
        %v1661 = vpop.f32.mrb[0].mxu0
        %1662 = vmatprep.mubr.f32.mxu0 0.0
        %1663 = vmatmul.mubr.f32.gmra.mrb[0].mxu0 %v1497
        %v1664 = vpop.f32.mrb[0].mxu0
        %v1665 = vadd.f32 %v1484, %v1664
        %v1666 = vpop.f32.mrb[0].mxu0
        %1667 = vmatprep.mubr.f32.mxu0 0.0
        %1668 = vmatmul.mubr.f32.gmra.mrb[0].mxu0 %v1500
        %v1669 = vpop.f32.mrb[0].mxu0
        %v1670 = vadd.f32 %v1484, %v1669
        %v1671 = vpop.f32.mrb[0].mxu0
        %1672 = vmatprep.mubr.f32.mxu0 0.0
        %1673 = vmatmul.mubr.f32.gmra.mrb[0].mxu0 %v1503
        %v1674 = vpop.f32.mrb[0].mxu0
        %v1675 = vadd.f32 %v1484, %v1674
        %v1676 = vpop.f32.mrb[0].mxu0
        %1677 = vmatprep.mubr.f32.mxu0 0.0
        %1678 = vmatmul.mubr.f32.gmra.mrb[0].mxu0 %v1506
        %v1679 = vpop.f32.mrb[0].mxu0
        %v1680 = vadd.f32 %v1484, %v1679
        %v1681 = vpop.f32.mrb[0].mxu0
        %1682 = vmatprep.mubr.f32.mxu0 0.0
        %1683 = vmatmul.mubr.f32.gmra.mrb[0].mxu0 %v1509
        %v1684 = vpop.f32.mrb[0].mxu0
        %v1685 = vadd.f32 %v1484, %v1684
        %v1686 = vpop.f32.mrb[0].mxu0
        %1687 = vmatprep.mubr.f32.mxu0 0.0
        %1688 = vmatmul.mubr.f32.gmra.mrb[0].mxu0 %v1512
        %v1689 = vpop.f32.mrb[0].mxu0
        %v1690 = vadd.f32 %v1484, %v1689
        %v1691 = vpop.f32.mrb[0].mxu0
        %1692 = vmatprep.mubr.f32.mxu0 0.0
        %1693 = vmatmul.mubr.f32.gmra.mrb[0].mxu0 %v1515
        %v1694 = vpop.f32.mrb[0].mxu0
        %v1695 = vadd.f32 %v1484, %v1694
        %v1696 = vpop.f32.mrb[0].mxu0
        %1697 = vmatprep.mubr.f32.mxu0 0.0
        %1698 = vmatmul.mubr.f32.gmra.mrb[0].mxu0 %v1518
        %v1699 = vpop.f32.mrb[0].mxu0
        %v1700 = vadd.f32 %v1484, %v1699
        %v1701 = vpop.f32.mrb[0].mxu0
        %1702 = vmatprep.mubr.f32.mxu0 0.0
        %1703 = vmatmul.mubr.f32.gmra.mrb[0].mxu0 %v1521
        %v1704 = vpop.f32.mrb[0].mxu0
        %v1705 = vadd.f32 %v1484, %v1704
        %v1706 = vpop.f32.mrb[0].mxu0
        %1707 = vmatprep.mubr.f32.mxu0 0.0
        %1708 = vmatmul.mubr.f32.gmra.mrb[0].mxu0 %v1524
        %v1709 = vpop.f32.mrb[0].mxu0
        %v1710 = vadd.f32 %v1484, %v1709
        %v1711 = vpop.f32.mrb[0].mxu0
        %1712 = vmatprep.mubr.f32.mxu0 0.0
        %1713 = vmatmul.mubr.f32.gmra.mrb[0].mxu0 %v1527
        %v1714 = vpop.f32.mrb[0].mxu0
        %v1715 = vadd.f32 %v1484, %v1714
        %v1716 = vpop.f32.mrb[0].mxu0
        %1717 = vmatprep.mubr.f32.mxu0 0.0
        %1718 = vmatmul.mubr.f32.gmra.mrb[0].mxu0 %v1530
        %v1719 = vpop.f32.mrb[0].mxu0
        %v1720 = vadd.f32 %v1484, %v1719
        %v1721 = vpop.f32.mrb[0].mxu0
        %1722 = vmatprep.mubr.f32.mxu0 0.0
        %1723 = vmatmul.mubr.f32.gmra.mrb[0].mxu0 %v1533
        %v1724 = vpop.f32.mrb[0].mxu0
        %v1725 = vadd.f32 %v1484, %v1724
        %v1726 = vpop.f32.mrb[0].mxu0
        %1727 = vmatprep.mubr.f32.mxu0 0.0
        %1728 = vmatmul.mubr.f32.gmra.mrb[0].mxu0 %v1536
        %v1729 = vpop.f32.mrb[0].mxu0
        %v1730 = vadd.f32 %v1484, %v1729
        %v1731 = vpop.f32.mrb[0].mxu0
        %1732 = vmatprep.mubr.f32.mxu0 0.0
        %1733 = vmatmul.mubr.f32.gmra.mrb[0].mxu0 %v1539
        %v1734 = vpop.f32.mrb[0].mxu0
        %v1735 = vadd.f32 %v1484, %v1734
        %v1736 = vpop.f32.mrb[0].mxu0
        %1737 = vmatprep.mubr.f32.mxu0 0.0
        %1738 = vmatmul.mubr.f32.gmra.mrb[0].mxu0 %v1542
        %v1739 = vpop.f32.mrb[0].mxu0
        %v1740 = vadd.f32 %v1484, %v1739
        %v1741 = vpop.f32.mrb[0].mxu0
        %1742 = vmatprep.mubr.f32.mxu0 0.0
        %1743 = vmatmul.mubr.f32.gmra.mrb[0].mxu0 %v1545
        %v1744 = vpop.f32.mrb[0].mxu0
        %v1745 = vadd.f32 %v1484, %v1744
        %v1746 = vpop.f32.mrb[0].mxu0
        %1747 = vmatprep.mubr.f32.mxu0 0.0
        %1748 = vmatmul.mubr.f32.gmra.mrb[0].mxu0 %v1548
        %v1749 = vpop.f32.mrb[0].mxu0
        %v1750 = vadd.f32 %v1484, %v1749
        %v1751 = vpop.f32.mrb[0].mxu0
        %1752 = vmatprep.mubr.f32.mxu0 0.0
        %1753 = vmatmul.mubr.f32.gmra.mrb[0].mxu0 %v1551
        %v1754 = vpop.f32.mrb[0].mxu0
        %v1755 = vadd.f32 %v1484, %v1754
        %v1756 = vpop.f32.mrb[0].mxu0
        %1757 = vmatprep.mubr.f32.mxu0 0.0
        %1758 = vmatmul.mubr.f32.gmra.mrb[0].mxu0 %v1554
        %v1759 = vpop.f32.mrb[0].mxu0
        %v1760 = vadd.f32 %v1484, %v1759
        %v1761 = vpop.f32.mrb[0].mxu0
        %1762 = vmatprep.mubr.f32.mxu0 0.0
        %1763 = vmatmul.mubr.f32.gmra.mrb[0].mxu0 %v1557
        %v1764 = vpop.f32.mrb[0].mxu0
        %v1765 = vadd.f32 %v1484, %v1764
        %v1766 = vpop.f32.mrb[0].mxu0
        %1767 = vmatprep.mubr.f32.mxu0 0.0
        %1768 = vmatmul.mubr.f32.gmra.mrb[0].mxu0 %v1560
        %v1769 = vpop.f32.mrb[0].mxu0
        %v1770 = vadd.f32 %v1484, %v1769
        %v1771 = vpop.f32.mrb[0].mxu0
        %1772 = vmatprep.mubr.f32.mxu0 0.0
        %1773 = vmatmul.mubr.f32.gmra.mrb[0].mxu0 %v1563
        %v1774 = vpop.f32.mrb[0].mxu0
        %v1775 = vadd.f32 %v1484, %v1774
        %v1776 = vpop.f32.mrb[0].mxu0
        %1777 = vmatprep.mubr.f32.mxu0 0.0
        %1778 = vmatmul.mubr.f32.gmra.mrb[0].mxu0 %v1566
        %v1779 = vpop.f32.mrb[0].mxu0
        %v1780 = vadd.f32 %v1484, %v1779
        %v1781 = vpop.f32.mrb[0].mxu0
        %1782 = vmatprep.mubr.f32.mxu0 0.0
        %1783 = vmatmul.mubr.f32.gmra.mrb[0].mxu0 %v1569
        %v1784 = vpop.f32.mrb[0].mxu0
        %v1785 = vadd.f32 %v1484, %v1784
        %v1786 = vpop.f32.mrb[0].mxu0
        %1787 = vmatprep.mubr.f32.mxu0 0.0
        %1788 = vmatmul.mubr.f32.gmra.mrb[0].mxu0 %v1572
        %v1789 = vpop.f32.mrb[0].mxu0
        %v1790 = vadd.f32 %v1484, %v1789
        %v1791 = vpop.f32.mrb[0].mxu0
        %1792 = vmatprep.mubr.f32.mxu0 0.0
        %1793 = vmatmul.mubr.f32.gmra.mrb[0].mxu0 %v1575
        %v1794 = vpop.f32.mrb[0].mxu0
        %v1795 = vadd.f32 %v1484, %v1794
        %v1796 = vpop.f32.mrb[0].mxu0
        %1797 = vmatprep.mubr.f32.mxu0 0.0
        %1798 = vmatmul.mubr.f32.gmra.mrb[0].mxu0 %v1578
        %v1799 = vpop.f32.mrb[0].mxu0
        %v1800 = vadd.f32 %v1484, %v1799
        %v1801 = vpop.f32.mrb[0].mxu0
        %1802 = vmatprep.mubr.f32.mxu0 0.0
        %1803 = vmatmul.mubr.f32.gmra.mrb[0].mxu0 %v1581
        %v1804 = vpop.f32.mrb[0].mxu0
        %v1805 = vadd.f32 %v1484, %v1804
        %v1806 = vpop.f32.mrb[0].mxu0
        %1807 = vdwg.mxu0
        %v1808 = vmax.f32 %v1650, 0.0
        %v1809 = vmax.f32 %v1655, 0.0
        %v1810 = vmax.f32 %v1660, 0.0
        %v1811 = vmax.f32 %v1665, 0.0
        %v1812 = vmax.f32 %v1670, 0.0
        %v1813 = vmax.f32 %v1675, 0.0
        %v1814 = vmax.f32 %v1680, 0.0
        %v1815 = vmax.f32 %v1685, 0.0
        %v1816 = vmax.f32 %v1690, 0.0
        %v1817 = vmax.f32 %v1695, 0.0
        %v1818 = vmax.f32 %v1700, 0.0
        %v1819 = vmax.f32 %v1705, 0.0
        %v1820 = vmax.f32 %v1710, 0.0
        %v1821 = vmax.f32 %v1715, 0.0
        %v1822 = vmax.f32 %v1720, 0.0
        %v1823 = vmax.f32 %v1725, 0.0
        %v1824 = vmax.f32 %v1730, 0.0
        %v1825 = vmax.f32 %v1735, 0.0
        %v1826 = vmax.f32 %v1740, 0.0
        %v1827 = vmax.f32 %v1745, 0.0
        %v1828 = vmax.f32 %v1750, 0.0
        %v1829 = vmax.f32 %v1755, 0.0
        %v1830 = vmax.f32 %v1760, 0.0
        %v1831 = vmax.f32 %v1765, 0.0
        %v1832 = vmax.f32 %v1770, 0.0
        %v1833 = vmax.f32 %v1775, 0.0
        %v1834 = vmax.f32 %v1780, 0.0
        %v1835 = vmax.f32 %v1785, 0.0
        %v1836 = vmax.f32 %v1790, 0.0
        %v1837 = vmax.f32 %v1795, 0.0
        %v1838 = vmax.f32 %v1800, 0.0
        %v1839 = vmax.f32 %v1805, 0.0
        %v1840 = vrot.slane %v1808, 1
        %v1841 = vrot.slane %v1809, 1
        %v1842 = vrot.slane %v1810, 1
        %v1843 = vrot.slane %v1811, 1
        %v1844 = vrot.slane %v1812, 1
        %v1845 = vrot.slane %v1813, 1
        %v1846 = vrot.slane %v1814, 1
        %v1847 = vrot.slane %v1815, 1
        %v1848 = vrot.slane %v1816, 1
        %v1849 = vrot.slane %v1817, 1
        %v1850 = vrot.slane %v1818, 1
        %v1851 = vrot.slane %v1819, 1
        %v1852 = vrot.slane %v1820, 1
        %v1853 = vrot.slane %v1821, 1
        %v1854 = vrot.slane %v1822, 1
        %v1855 = vrot.slane %v1823, 1
        %v1856 = vrot.slane %v1824, 1
        %v1857 = vrot.slane %v1825, 1
        %v1858 = vrot.slane %v1826, 1
        %v1859 = vrot.slane %v1827, 1
        %v1860 = vrot.slane %v1828, 1
        %v1861 = vrot.slane %v1829, 1
        %v1862 = vrot.slane %v1830, 1
        %v1863 = vrot.slane %v1831, 1
        %v1864 = vrot.slane %v1832, 1
        %v1865 = vrot.slane %v1833, 1
        %v1866 = vrot.slane %v1834, 1
        %v1867 = vrot.slane %v1835, 1
        %v1868 = vrot.slane %v1836, 1
        %v1869 = vrot.slane %v1837, 1
        %v1870 = vrot.slane %v1838, 1
        %v1871 = vrot.slane %v1839, 1
        %v1872 = vsel %vm1086, %v1870, %v1871
        %v1873 = vsel %vm1086, %v1869, %v1870
        %v1874 = vsel %vm1086, %v1868, %v1869
        %v1875 = vsel %vm1086, %v1867, %v1868
        %v1876 = vsel %vm1086, %v1866, %v1867
        %v1877 = vsel %vm1086, %v1865, %v1866
        %v1878 = vsel %vm1086, %v1864, %v1865
        %v1879 = vsel %vm1086, %v1863, %v1864
        %v1880 = vsel %vm1086, %v1862, %v1863
        %v1881 = vsel %vm1086, %v1861, %v1862
        %v1882 = vsel %vm1086, %v1860, %v1861
        %v1883 = vsel %vm1086, %v1859, %v1860
        %v1884 = vsel %vm1086, %v1858, %v1859
        %v1885 = vsel %vm1086, %v1857, %v1858
        %v1886 = vsel %vm1086, %v1856, %v1857
        %v1887 = vsel %vm1086, %v1855, %v1856
        %v1888 = vsel %vm1086, %v1854, %v1855
        %v1889 = vsel %vm1086, %v1853, %v1854
        %v1890 = vsel %vm1086, %v1852, %v1853
        %v1891 = vsel %vm1086, %v1851, %v1852
        %v1892 = vsel %vm1086, %v1850, %v1851
        %v1893 = vsel %vm1086, %v1849, %v1850
        %v1894 = vsel %vm1086, %v1848, %v1849
        %v1895 = vsel %vm1086, %v1847, %v1848
        %v1896 = vsel %vm1086, %v1846, %v1847
        %v1897 = vsel %vm1086, %v1845, %v1846
        %v1898 = vsel %vm1086, %v1844, %v1845
        %v1899 = vsel %vm1086, %v1843, %v1844
        %v1900 = vsel %vm1086, %v1842, %v1843
        %v1901 = vsel %vm1086, %v1841, %v1842
        %v1902 = vsel %vm1086, %v1840, %v1841
        %v1903 = vsel %vm1086, %v1871, %v1840
        %v1904 = vmax.f32 %v1808, %v1902
        %v1905 = vmax.f32 %v1809, %v1901
        %v1906 = vmax.f32 %v1810, %v1900
        %v1907 = vmax.f32 %v1811, %v1899
        %v1908 = vmax.f32 %v1812, %v1898
        %v1909 = vmax.f32 %v1813, %v1897
        %v1910 = vmax.f32 %v1814, %v1896
        %v1911 = vmax.f32 %v1815, %v1895
        %v1912 = vmax.f32 %v1816, %v1894
        %v1913 = vmax.f32 %v1817, %v1893
        %v1914 = vmax.f32 %v1818, %v1892
        %v1915 = vmax.f32 %v1819, %v1891
        %v1916 = vmax.f32 %v1820, %v1890
        %v1917 = vmax.f32 %v1821, %v1889
        %v1918 = vmax.f32 %v1822, %v1888
        %v1919 = vmax.f32 %v1823, %v1887
        %v1920 = vmax.f32 %v1824, %v1886
        %v1921 = vmax.f32 %v1825, %v1885
        %v1922 = vmax.f32 %v1826, %v1884
        %v1923 = vmax.f32 %v1827, %v1883
        %v1924 = vmax.f32 %v1828, %v1882
        %v1925 = vmax.f32 %v1829, %v1881
        %v1926 = vmax.f32 %v1830, %v1880
        %v1927 = vmax.f32 %v1831, %v1879
        %v1928 = vmax.f32 %v1832, %v1878
        %v1929 = vmax.f32 %v1833, %v1877
        %v1930 = vmax.f32 %v1834, %v1876
        %v1931 = vmax.f32 %v1835, %v1875
        %v1932 = vmax.f32 %v1836, %v1874
        %v1933 = vmax.f32 %v1837, %v1873
        %v1934 = vmax.f32 %v1838, %v1872
        %v1935 = vmax.f32 %v1839, %v1903
        %v1936 = vld [vmem:[#allocation8] sm:$0xff]
        %v1937 = vld [vmem:[#allocation8 + $0x8] sm:$0xff]
        %v1938 = vld [vmem:[#allocation8 + $0x10] sm:$0xff]
        %v1939 = vld [vmem:[#allocation8 + $0x18] sm:$0xff]
        %v1940 = vld [vmem:[#allocation8 + $0x20] sm:$0xff]
        %v1941 = vld [vmem:[#allocation8 + $0x28] sm:$0xff]
        %v1942 = vld [vmem:[#allocation8 + $0x30] sm:$0xff]
        %v1943 = vld [vmem:[#allocation8 + $0x38] sm:$0xff]
        %v1944 = vld [vmem:[#allocation8 + $0x40] sm:$0xff]
        %v1945 = vld [vmem:[#allocation8 + $0x48] sm:$0xff]
        %v1946 = vld [vmem:[#allocation8 + $0x50] sm:$0xff]
        %v1947 = vld [vmem:[#allocation8 + $0x58] sm:$0xff]
        %v1948 = vld [vmem:[#allocation8 + $0x60] sm:$0xff]
        %v1949 = vld [vmem:[#allocation8 + $0x68] sm:$0xff]
        %v1950 = vld [vmem:[#allocation8 + $0x70] sm:$0xff]
        %v1951 = vld [vmem:[#allocation8 + $0x78] sm:$0xff]
        %v1952 = vld [vmem:[#allocation8 + $0x80] sm:$0xff]
        %v1953 = vld [vmem:[#allocation8 + $0x88] sm:$0xff]
        %v1954 = vld [vmem:[#allocation8 + $0x90] sm:$0xff]
        %v1955 = vld [vmem:[#allocation8 + $0x98] sm:$0xff]
        %v1956 = vld [vmem:[#allocation8 + $0xa0] sm:$0xff]
        %v1957 = vld [vmem:[#allocation8 + $0xa8] sm:$0xff]
        %v1958 = vld [vmem:[#allocation8 + $0xb0] sm:$0xff]
        %v1959 = vld [vmem:[#allocation8 + $0xb8] sm:$0xff]
        %v1960 = vld [vmem:[#allocation8 + $0xc0] sm:$0xff]
        %v1961 = vld [vmem:[#allocation8 + $0xc8] sm:$0xff]
        %v1962 = vld [vmem:[#allocation8 + $0xd0] sm:$0xff]
        %v1963 = vld [vmem:[#allocation8 + $0xd8] sm:$0xff]
        %v1964 = vld [vmem:[#allocation8 + $0xe0] sm:$0xff]
        %v1965 = vld [vmem:[#allocation8 + $0xe8] sm:$0xff]
        %v1966 = vld [vmem:[#allocation8 + $0xf0] sm:$0xff]
        %v1967 = vld [vmem:[#allocation8 + $0xf8] sm:$0xff]
        %1968 = vmatprep.subr.mxu0 0.0
        %1969 = vmatpush1.msra.mxu0 %v1904
        %1970 = vmatprep.subr.mxu0 0.0
        %1971 = vmatpush1.msra.mxu0 %v1905
        %1972 = vmatprep.subr.mxu0 0.0
        %1973 = vmatpush1.msra.mxu0 %v1906
        %1974 = vmatprep.subr.mxu0 0.0
        %1975 = vmatpush1.msra.mxu0 %v1907
        %1976 = vmatprep.subr.mxu0 0.0
        %1977 = vmatpush1.msra.mxu0 %v1908
        %1978 = vmatprep.subr.mxu0 0.0
        %1979 = vmatpush1.msra.mxu0 %v1909
        %1980 = vmatprep.subr.mxu0 0.0
        %1981 = vmatpush1.msra.mxu0 %v1910
        %1982 = vmatprep.subr.mxu0 0.0
        %1983 = vmatpush1.msra.mxu0 %v1911
        %1984 = vmatprep.subr.mxu0 0.0
        %1985 = vmatpush1.msra.mxu0 %v1912
        %1986 = vmatprep.subr.mxu0 0.0
        %1987 = vmatpush1.msra.mxu0 %v1913
        %1988 = vmatprep.subr.mxu0 0.0
        %1989 = vmatpush1.msra.mxu0 %v1914
        %1990 = vmatprep.subr.mxu0 0.0
        %1991 = vmatpush1.msra.mxu0 %v1915
        %1992 = vmatprep.subr.mxu0 0.0
        %1993 = vmatpush1.msra.mxu0 %v1916
        %1994 = vmatprep.subr.mxu0 0.0
        %1995 = vmatpush1.msra.mxu0 %v1917
        %1996 = vmatprep.subr.mxu0 0.0
        %1997 = vmatpush1.msra.mxu0 %v1918
        %1998 = vmatprep.subr.mxu0 0.0
        %1999 = vmatpush1.msra.mxu0 %v1919
        %2000 = vmatprep.subr.mxu0 0.0
        %2001 = vmatpush1.msra.mxu0 %v1920
        %2002 = vmatprep.subr.mxu0 0.0
        %2003 = vmatpush1.msra.mxu0 %v1921
        %2004 = vmatprep.subr.mxu0 0.0
        %2005 = vmatpush1.msra.mxu0 %v1922
        %2006 = vmatprep.subr.mxu0 0.0
        %2007 = vmatpush1.msra.mxu0 %v1923
        %2008 = vmatprep.subr.mxu0 0.0
        %2009 = vmatpush1.msra.mxu0 %v1924
        %2010 = vmatprep.subr.mxu0 0.0
        %2011 = vmatpush1.msra.mxu0 %v1925
        %2012 = vmatprep.subr.mxu0 0.0
        %2013 = vmatpush1.msra.mxu0 %v1926
        %2014 = vmatprep.subr.mxu0 0.0
        %2015 = vmatpush1.msra.mxu0 %v1927
        %2016 = vmatprep.subr.mxu0 0.0
        %2017 = vmatpush1.msra.mxu0 %v1928
        %2018 = vmatprep.subr.mxu0 0.0
        %2019 = vmatpush1.msra.mxu0 %v1929
        %2020 = vmatprep.subr.mxu0 0.0
        %2021 = vmatpush1.msra.mxu0 %v1930
        %2022 = vmatprep.subr.mxu0 0.0
        %2023 = vmatpush1.msra.mxu0 %v1931
        %2024 = vmatprep.subr.mxu0 0.0
        %2025 = vmatpush1.msra.mxu0 %v1932
        %2026 = vmatprep.subr.mxu0 0.0
        %2027 = vmatpush1.msra.mxu0 %v1933
        %2028 = vmatprep.subr.mxu0 0.0
        %2029 = vmatpush1.msra.mxu0 %v1934
        %2030 = vmatprep.subr.mxu0 0.0
        %2031 = vmatpush1.msra.mxu0 %v1935
        %2032 = vmatprep.mubr.f32.mxu0 %v1937
        %2033 = vmatmul.mubr.f32.gmra.mrb[0].mxu0 %v1936
        %v2034 = vpop.f32.mrb[0].mxu0
        %v2035 = vadd.f32 0.0, %v2034
        %v2036 = vpop.f32.mrb[0].mxu0
        %2037 = vmatprep.mubr.f32.mxu0 %v1939
        %2038 = vmatmul.mubr.f32.gmra.mrb[0].mxu0 %v1938
        %v2039 = vpop.f32.mrb[0].mxu0
        %v2040 = vadd.f32 0.0, %v2039
        %v2041 = vpop.f32.mrb[0].mxu0
        %2042 = vmatprep.mubr.f32.mxu0 %v1941
        %2043 = vmatmul.mubr.f32.gmra.mrb[0].mxu0 %v1940
        %v2044 = vpop.f32.mrb[0].mxu0
        %v2045 = vadd.f32 0.0, %v2044
        %v2046 = vpop.f32.mrb[0].mxu0
        %2047 = vmatprep.mubr.f32.mxu0 %v1943
        %2048 = vmatmul.mubr.f32.gmra.mrb[0].mxu0 %v1942
        %v2049 = vpop.f32.mrb[0].mxu0
        %v2050 = vadd.f32 0.0, %v2049
        %v2051 = vpop.f32.mrb[0].mxu0
        %2052 = vmatprep.mubr.f32.mxu0 %v1945
        %2053 = vmatmul.mubr.f32.gmra.mrb[0].mxu0 %v1944
        %v2054 = vpop.f32.mrb[0].mxu0
        %v2055 = vadd.f32 0.0, %v2054
        %v2056 = vpop.f32.mrb[0].mxu0
        %2057 = vmatprep.mubr.f32.mxu0 %v1947
        %2058 = vmatmul.mubr.f32.gmra.mrb[0].mxu0 %v1946
        %v2059 = vpop.f32.mrb[0].mxu0
        %v2060 = vadd.f32 0.0, %v2059
        %v2061 = vpop.f32.mrb[0].mxu0
        %2062 = vmatprep.mubr.f32.mxu0 %v1949
        %2063 = vmatmul.mubr.f32.gmra.mrb[0].mxu0 %v1948
        %v2064 = vpop.f32.mrb[0].mxu0
        %v2065 = vadd.f32 0.0, %v2064
        %v2066 = vpop.f32.mrb[0].mxu0
        %2067 = vmatprep.mubr.f32.mxu0 %v1951
        %2068 = vmatmul.mubr.f32.gmra.mrb[0].mxu0 %v1950
        %v2069 = vpop.f32.mrb[0].mxu0
        %v2070 = vadd.f32 0.0, %v2069
        %v2071 = vpop.f32.mrb[0].mxu0
        %2072 = vmatprep.mubr.f32.mxu0 %v1953
        %2073 = vmatmul.mubr.f32.gmra.mrb[0].mxu0 %v1952
        %v2074 = vpop.f32.mrb[0].mxu0
        %v2075 = vadd.f32 0.0, %v2074
        %v2076 = vpop.f32.mrb[0].mxu0
        %2077 = vmatprep.mubr.f32.mxu0 %v1955
        %2078 = vmatmul.mubr.f32.gmra.mrb[0].mxu0 %v1954
        %v2079 = vpop.f32.mrb[0].mxu0
        %v2080 = vadd.f32 0.0, %v2079
        %v2081 = vpop.f32.mrb[0].mxu0
        %2082 = vmatprep.mubr.f32.mxu0 %v1957
        %2083 = vmatmul.mubr.f32.gmra.mrb[0].mxu0 %v1956
        %v2084 = vpop.f32.mrb[0].mxu0
        %v2085 = vadd.f32 0.0, %v2084
        %v2086 = vpop.f32.mrb[0].mxu0
        %2087 = vmatprep.mubr.f32.mxu0 %v1959
        %2088 = vmatmul.mubr.f32.gmra.mrb[0].mxu0 %v1958
        %v2089 = vpop.f32.mrb[0].mxu0
        %v2090 = vadd.f32 0.0, %v2089
        %v2091 = vpop.f32.mrb[0].mxu0
        %2092 = vmatprep.mubr.f32.mxu0 %v1961
        %2093 = vmatmul.mubr.f32.gmra.mrb[0].mxu0 %v1960
        %v2094 = vpop.f32.mrb[0].mxu0
        %v2095 = vadd.f32 0.0, %v2094
        %v2096 = vpop.f32.mrb[0].mxu0
        %2097 = vmatprep.mubr.f32.mxu0 %v1963
        %2098 = vmatmul.mubr.f32.gmra.mrb[0].mxu0 %v1962
        %v2099 = vpop.f32.mrb[0].mxu0
        %v2100 = vadd.f32 0.0, %v2099
        %v2101 = vpop.f32.mrb[0].mxu0
        %2102 = vmatprep.mubr.f32.mxu0 %v1965
        %2103 = vmatmul.mubr.f32.gmra.mrb[0].mxu0 %v1964
        %v2104 = vpop.f32.mrb[0].mxu0
        %v2105 = vadd.f32 0.0, %v2104
        %v2106 = vpop.f32.mrb[0].mxu0
        %2107 = vmatprep.mubr.f32.mxu0 %v1967
        %2108 = vmatmul.mubr.f32.gmra.mrb[0].mxu0 %v1966
        %v2109 = vpop.f32.mrb[0].mxu0
        %v2110 = vadd.f32 0.0, %v2109
        %v2111 = vpop.f32.mrb[0].mxu0
        %2112 = vdwg.mxu0
        %v2113 = vrot.slane %v2035, 7
        %v2114 = vrot.slane %v2040, 7
        %v2115 = vrot.slane %v2045, 7
        %v2116 = vrot.slane %v2050, 7
        %v2117 = vrot.slane %v2055, 7
        %v2118 = vrot.slane %v2060, 7
        %v2119 = vrot.slane %v2065, 7
        %v2120 = vrot.slane %v2070, 7
        %v2121 = vrot.slane %v2075, 7
        %v2122 = vrot.slane %v2080, 7
        %v2123 = vrot.slane %v2085, 7
        %v2124 = vrot.slane %v2090, 7
        %v2125 = vrot.slane %v2095, 7
        %v2126 = vrot.slane %v2100, 7
        %v2127 = vrot.slane %v2105, 7
        %v2128 = vrot.slane %v2110, 7
        %v2129 = vsel %vm957, %v2127, %v2128
        %v2130 = vsel %vm957, %v2126, %v2127
        %v2131 = vsel %vm957, %v2125, %v2126
        %v2132 = vsel %vm957, %v2124, %v2125
        %v2133 = vsel %vm957, %v2123, %v2124
        %v2134 = vsel %vm957, %v2122, %v2123
        %v2135 = vsel %vm957, %v2121, %v2122
        %v2136 = vsel %vm957, %v2120, %v2121
        %v2137 = vsel %vm957, %v2119, %v2120
        %v2138 = vsel %vm957, %v2118, %v2119
        %v2139 = vsel %vm957, %v2117, %v2118
        %v2140 = vsel %vm957, %v2116, %v2117
        %v2141 = vsel %vm957, %v2115, %v2116
        %v2142 = vsel %vm957, %v2114, %v2115
        %v2143 = vsel %vm957, %v2113, %v2114
        %v2144 = vsel %vm957, %v2128, %v2113
        %v2145 = vsel %vm893, 0.0, %v2144
        %v2146 = vsel %vm894, 0.0, %v2143
        %v2147 = vsel %vm895, 0.0, %v2142
        %v2148 = vsel %vm896, 0.0, %v2141
        %v2149 = vsel %vm897, 0.0, %v2140
        %v2150 = vsel %vm898, 0.0, %v2139
        %v2151 = vsel %vm899, 0.0, %v2138
        %v2152 = vsel %vm900, 0.0, %v2137
        %v2153 = vsel %vm901, 0.0, %v2136
        %v2154 = vsel %vm902, 0.0, %v2135
        %v2155 = vsel %vm903, 0.0, %v2134
        %v2156 = vsel %vm904, 0.0, %v2133
        %v2157 = vsel %vm905, 0.0, %v2132
        %v2158 = vsel %vm906, 0.0, %v2131
        %v2159 = vsel %vm907, 0.0, %v2130
        %v2160 = vsel %vm908, 0.0, %v2129
        %vm2161 = vcmp.eq.s32.totalorder %v861, 127
        %vm2162 = vcmp.eq.s32.totalorder %v862, 127
        %vm2163 = vcmp.eq.s32.totalorder %v863, 127
        %vm2164 = vcmp.eq.s32.totalorder %v864, 127
        %vm2165 = vcmp.eq.s32.totalorder %v865, 127
        %vm2166 = vcmp.eq.s32.totalorder %v866, 127
        %vm2167 = vcmp.eq.s32.totalorder %v867, 127
        %vm2168 = vcmp.eq.s32.totalorder %v868, 127
        %vm2169 = vcmp.eq.s32.totalorder %v869, 127
        %vm2170 = vcmp.eq.s32.totalorder %v870, 127
        %vm2171 = vcmp.eq.s32.totalorder %v871, 127
        %vm2172 = vcmp.eq.s32.totalorder %v872, 127
        %vm2173 = vcmp.eq.s32.totalorder %v873, 127
        %vm2174 = vcmp.eq.s32.totalorder %v874, 127
        %vm2175 = vcmp.eq.s32.totalorder %v875, 127
        %vm2176 = vcmp.eq.s32.totalorder %v876, 127
        %v2177 = vrot.slane %v2035, 1
        %v2178 = vrot.slane %v2040, 1
        %v2179 = vrot.slane %v2045, 1
        %v2180 = vrot.slane %v2050, 1
        %v2181 = vrot.slane %v2055, 1
        %v2182 = vrot.slane %v2060, 1
        %v2183 = vrot.slane %v2065, 1
        %v2184 = vrot.slane %v2070, 1
        %v2185 = vrot.slane %v2075, 1
        %v2186 = vrot.slane %v2080, 1
        %v2187 = vrot.slane %v2085, 1
        %v2188 = vrot.slane %v2090, 1
        %v2189 = vrot.slane %v2095, 1
        %v2190 = vrot.slane %v2100, 1
        %v2191 = vrot.slane %v2105, 1
        %v2192 = vrot.slane %v2110, 1
        %v2193 = vsel %vm1086, %v2191, %v2192
        %v2194 = vsel %vm1086, %v2190, %v2191
        %v2195 = vsel %vm1086, %v2189, %v2190
        %v2196 = vsel %vm1086, %v2188, %v2189
        %v2197 = vsel %vm1086, %v2187, %v2188
        %v2198 = vsel %vm1086, %v2186, %v2187
        %v2199 = vsel %vm1086, %v2185, %v2186
        %v2200 = vsel %vm1086, %v2184, %v2185
        %v2201 = vsel %vm1086, %v2183, %v2184
        %v2202 = vsel %vm1086, %v2182, %v2183
        %v2203 = vsel %vm1086, %v2181, %v2182
        %v2204 = vsel %vm1086, %v2180, %v2181
        %v2205 = vsel %vm1086, %v2179, %v2180
        %v2206 = vsel %vm1086, %v2178, %v2179
        %v2207 = vsel %vm1086, %v2177, %v2178
        %v2208 = vsel %vm1086, %v2192, %v2177
        %v2209 = vsel %vm2161, 0.0, %v2207
        %v2210 = vsel %vm2162, 0.0, %v2206
        %v2211 = vsel %vm2163, 0.0, %v2205
        %v2212 = vsel %vm2164, 0.0, %v2204
        %v2213 = vsel %vm2165, 0.0, %v2203
        %v2214 = vsel %vm2166, 0.0, %v2202
        %v2215 = vsel %vm2167, 0.0, %v2201
        %v2216 = vsel %vm2168, 0.0, %v2200
        %v2217 = vsel %vm2169, 0.0, %v2199
        %v2218 = vsel %vm2170, 0.0, %v2198
        %v2219 = vsel %vm2171, 0.0, %v2197
        %v2220 = vsel %vm2172, 0.0, %v2196
        %v2221 = vsel %vm2173, 0.0, %v2195
        %v2222 = vsel %vm2174, 0.0, %v2194
        %v2223 = vsel %vm2175, 0.0, %v2193
        %v2224 = vsel %vm2176, 0.0, %v2208
        %v2225 = vld [vmem:[%s3] sm:$0xff]
        %v2226 = vld [vmem:[%s3 + $0x8] sm:$0xff]
        %v2227 = vld [vmem:[%s3 + $0x10] sm:$0xff]
        %v2228 = vld [vmem:[%s3 + $0x18] sm:$0xff]
        %v2229 = vld [vmem:[%s3 + $0x20] sm:$0xff]
        %v2230 = vld [vmem:[%s3 + $0x28] sm:$0xff]
        %v2231 = vld [vmem:[%s3 + $0x30] sm:$0xff]
        %v2232 = vld [vmem:[%s3 + $0x38] sm:$0xff]
        %v2233 = vld [vmem:[%s3 + $0x40] sm:$0xff]
        %v2234 = vld [vmem:[%s3 + $0x48] sm:$0xff]
        %v2235 = vld [vmem:[%s3 + $0x50] sm:$0xff]
        %v2236 = vld [vmem:[%s3 + $0x58] sm:$0xff]
        %v2237 = vld [vmem:[%s3 + $0x60] sm:$0xff]
        %v2238 = vld [vmem:[%s3 + $0x68] sm:$0xff]
        %v2239 = vld [vmem:[%s3 + $0x70] sm:$0xff]
        %v2240 = vld [vmem:[%s3 + $0x78] sm:$0xff]
        %v2241 = vld [vmem:[%s3 + $0x80] sm:$0xff]
        %v2242 = vld [vmem:[%s3 + $0x88] sm:$0xff]
        %v2243 = vld [vmem:[%s3 + $0x90] sm:$0xff]
        %v2244 = vld [vmem:[%s3 + $0x98] sm:$0xff]
        %v2245 = vld [vmem:[%s3 + $0xa0] sm:$0xff]
        %v2246 = vld [vmem:[%s3 + $0xa8] sm:$0xff]
        %v2247 = vld [vmem:[%s3 + $0xb0] sm:$0xff]
        %v2248 = vld [vmem:[%s3 + $0xb8] sm:$0xff]
        %v2249 = vld [vmem:[%s3 + $0xc0] sm:$0xff]
        %v2250 = vld [vmem:[%s3 + $0xc8] sm:$0xff]
        %v2251 = vld [vmem:[%s3 + $0xd0] sm:$0xff]
        %v2252 = vld [vmem:[%s3 + $0xd8] sm:$0xff]
        %v2253 = vld [vmem:[%s3 + $0xe0] sm:$0xff]
        %v2254 = vld [vmem:[%s3 + $0xe8] sm:$0xff]
        %v2255 = vld [vmem:[%s3 + $0xf0] sm:$0xff]
        %v2256 = vld [vmem:[%s3 + $0xf8] sm:$0xff]
        %v2257 = vld [vmem:[%s3 + $0x100] sm:$0xff]
        %v2258 = vld [vmem:[%s3 + $0x108] sm:$0xff]
        %v2259 = vld [vmem:[%s3 + $0x110] sm:$0xff]
        %v2260 = vld [vmem:[%s3 + $0x118] sm:$0xff]
        %v2261 = vld [vmem:[%s3 + $0x120] sm:$0xff]
        %v2262 = vld [vmem:[%s3 + $0x128] sm:$0xff]
        %v2263 = vld [vmem:[%s3 + $0x130] sm:$0xff]
        %v2264 = vld [vmem:[%s3 + $0x138] sm:$0xff]
        %v2265 = vld [vmem:[%s3 + $0x140] sm:$0xff]
        %v2266 = vld [vmem:[%s3 + $0x148] sm:$0xff]
        %v2267 = vld [vmem:[%s3 + $0x150] sm:$0xff]
        %v2268 = vld [vmem:[%s3 + $0x158] sm:$0xff]
        %v2269 = vld [vmem:[%s3 + $0x160] sm:$0xff]
        %v2270 = vld [vmem:[%s3 + $0x168] sm:$0xff]
        %v2271 = vld [vmem:[%s3 + $0x170] sm:$0xff]
        %v2272 = vld [vmem:[%s3 + $0x178] sm:$0xff]
        %v2273 = vld [vmem:[%s3 + $0x180] sm:$0xff]
        %v2274 = vld [vmem:[%s3 + $0x188] sm:$0xff]
        %v2275 = vld [vmem:[%s3 + $0x190] sm:$0xff]
        %v2276 = vld [vmem:[%s3 + $0x198] sm:$0xff]
        %v2277 = vld [vmem:[%s3 + $0x1a0] sm:$0xff]
        %v2278 = vld [vmem:[%s3 + $0x1a8] sm:$0xff]
        %v2279 = vld [vmem:[%s3 + $0x1b0] sm:$0xff]
        %v2280 = vld [vmem:[%s3 + $0x1b8] sm:$0xff]
        %v2281 = vld [vmem:[%s3 + $0x1c0] sm:$0xff]
        %v2282 = vld [vmem:[%s3 + $0x1c8] sm:$0xff]
        %v2283 = vld [vmem:[%s3 + $0x1d0] sm:$0xff]
        %v2284 = vld [vmem:[%s3 + $0x1d8] sm:$0xff]
        %v2285 = vld [vmem:[%s3 + $0x1e0] sm:$0xff]
        %v2286 = vld [vmem:[%s3 + $0x1e8] sm:$0xff]
        %v2287 = vld [vmem:[%s3 + $0x1f0] sm:$0xff]
        %v2288 = vld [vmem:[%s3 + $0x1f8] sm:$0xff]
        %v2289 = vld [vmem:[%s3 + $0x200] sm:$0xff]
        %v2290 = vld [vmem:[%s3 + $0x208] sm:$0xff]
        %v2291 = vld [vmem:[%s3 + $0x210] sm:$0xff]
        %v2292 = vld [vmem:[%s3 + $0x218] sm:$0xff]
        %v2293 = vld [vmem:[%s3 + $0x220] sm:$0xff]
        %v2294 = vld [vmem:[%s3 + $0x228] sm:$0xff]
        %v2295 = vld [vmem:[%s3 + $0x230] sm:$0xff]
        %v2296 = vld [vmem:[%s3 + $0x238] sm:$0xff]
        %v2297 = vld [vmem:[%s3 + $0x240] sm:$0xff]
        %v2298 = vld [vmem:[%s3 + $0x248] sm:$0xff]
        %v2299 = vld [vmem:[%s3 + $0x250] sm:$0xff]
        %v2300 = vld [vmem:[%s3 + $0x258] sm:$0xff]
        %v2301 = vld [vmem:[%s3 + $0x260] sm:$0xff]
        %v2302 = vld [vmem:[%s3 + $0x268] sm:$0xff]
        %v2303 = vld [vmem:[%s3 + $0x270] sm:$0xff]
        %v2304 = vld [vmem:[%s3 + $0x278] sm:$0xff]
        %v2305 = vld [vmem:[%s3 + $0x280] sm:$0xff]
        %v2306 = vld [vmem:[%s3 + $0x288] sm:$0xff]
        %v2307 = vld [vmem:[%s3 + $0x290] sm:$0xff]
        %v2308 = vld [vmem:[%s3 + $0x298] sm:$0xff]
        %v2309 = vld [vmem:[%s3 + $0x2a0] sm:$0xff]
        %v2310 = vld [vmem:[%s3 + $0x2a8] sm:$0xff]
        %v2311 = vld [vmem:[%s3 + $0x2b0] sm:$0xff]
        %v2312 = vld [vmem:[%s3 + $0x2b8] sm:$0xff]
        %v2313 = vld [vmem:[%s3 + $0x2c0] sm:$0xff]
        %v2314 = vld [vmem:[%s3 + $0x2c8] sm:$0xff]
        %v2315 = vld [vmem:[%s3 + $0x2d0] sm:$0xff]
        %v2316 = vld [vmem:[%s3 + $0x2d8] sm:$0xff]
        %v2317 = vld [vmem:[%s3 + $0x2e0] sm:$0xff]
        %v2318 = vld [vmem:[%s3 + $0x2e8] sm:$0xff]
        %v2319 = vld [vmem:[%s3 + $0x2f0] sm:$0xff]
        %v2320 = vld [vmem:[%s3 + $0x2f8] sm:$0xff]
        %v2321 = vld [vmem:[%s4] sm:$0x3]
        %v2323 = vlaneseq
        %v2324 = vshrl.u32 %v2323, 7
        %v2325 = vsub.s32 0, %v2324
        %v2326 = vrot.slane %v2321, %v2325
        %v2327 = vlaneseq
        %v2328 = vshrl.u32 %v2327, 7
        %v2329 = vsub.s32 1, %v2328
        %v2330 = vrot.slane %v2321, %v2329
        %2333 = vmatprep.subr.mxu0 %v2226
        %2334 = vmatpush1.msra.mxu0 %v2225
        %2335 = vmatprep.subr.mxu0 %v2228
        %2336 = vmatpush1.msra.mxu0 %v2227
        %2337 = vmatprep.subr.mxu0 %v2230
        %2338 = vmatpush1.msra.mxu0 %v2229
        %2339 = vmatprep.subr.mxu0 %v2232
        %2340 = vmatpush1.msra.mxu0 %v2231
        %2341 = vmatprep.subr.mxu0 %v2234
        %2342 = vmatpush1.msra.mxu0 %v2233
        %2343 = vmatprep.subr.mxu0 %v2236
        %2344 = vmatpush1.msra.mxu0 %v2235
        %2345 = vmatprep.subr.mxu0 %v2238
        %2346 = vmatpush1.msra.mxu0 %v2237
        %2347 = vmatprep.subr.mxu0 %v2240
        %2348 = vmatpush1.msra.mxu0 %v2239
        %2349 = vmatprep.subr.mxu0 %v2242
        %2350 = vmatpush1.msra.mxu0 %v2241
        %2351 = vmatprep.subr.mxu0 %v2244
        %2352 = vmatpush1.msra.mxu0 %v2243
        %2353 = vmatprep.subr.mxu0 %v2246
        %2354 = vmatpush1.msra.mxu0 %v2245
        %2355 = vmatprep.subr.mxu0 %v2248
        %2356 = vmatpush1.msra.mxu0 %v2247
        %2357 = vmatprep.subr.mxu0 %v2250
        %2358 = vmatpush1.msra.mxu0 %v2249
        %2359 = vmatprep.subr.mxu0 %v2252
        %2360 = vmatpush1.msra.mxu0 %v2251
        %2361 = vmatprep.subr.mxu0 %v2254
        %2362 = vmatpush1.msra.mxu0 %v2253
        %2363 = vmatprep.subr.mxu0 %v2256
        %2364 = vmatpush1.msra.mxu0 %v2255
        %2365 = vmatprep.subr.mxu0 %v2258
        %2366 = vmatpush1.msra.mxu0 %v2257
        %2367 = vmatprep.subr.mxu0 %v2260
        %2368 = vmatpush1.msra.mxu0 %v2259
        %2369 = vmatprep.subr.mxu0 %v2262
        %2370 = vmatpush1.msra.mxu0 %v2261
        %2371 = vmatprep.subr.mxu0 %v2264
        %2372 = vmatpush1.msra.mxu0 %v2263
        %2373 = vmatprep.subr.mxu0 %v2266
        %2374 = vmatpush1.msra.mxu0 %v2265
        %2375 = vmatprep.subr.mxu0 %v2268
        %2376 = vmatpush1.msra.mxu0 %v2267
        %2377 = vmatprep.subr.mxu0 %v2270
        %2378 = vmatpush1.msra.mxu0 %v2269
        %2379 = vmatprep.subr.mxu0 %v2272
        %2380 = vmatpush1.msra.mxu0 %v2271
        %2381 = vmatprep.subr.mxu0 %v2274
        %2382 = vmatpush1.msra.mxu0 %v2273
        %2383 = vmatprep.subr.mxu0 %v2276
        %2384 = vmatpush1.msra.mxu0 %v2275
        %2385 = vmatprep.subr.mxu0 %v2278
        %2386 = vmatpush1.msra.mxu0 %v2277
        %2387 = vmatprep.subr.mxu0 %v2280
        %2388 = vmatpush1.msra.mxu0 %v2279
        %2389 = vmatprep.subr.mxu0 %v2282
        %2390 = vmatpush1.msra.mxu0 %v2281
        %2391 = vmatprep.subr.mxu0 %v2284
        %2392 = vmatpush1.msra.mxu0 %v2283
        %2393 = vmatprep.subr.mxu0 %v2286
        %2394 = vmatpush1.msra.mxu0 %v2285
        %2395 = vmatprep.subr.mxu0 %v2288
        %2396 = vmatpush1.msra.mxu0 %v2287
        %2397 = vmatprep.mubr.f32.mxu0 %v2035
        %2398 = vmatmul.mubr.f32.gmra.mrb[0].mxu0 %v2145
        %v2399 = vpop.f32.mrb[0].mxu0
        %v2400 = vadd.f32 %v2326, %v2399
        %v2401 = vpop.f32.mrb[0].mxu0
        %v2402 = vadd.f32 %v2330, %v2401
        %2403 = vmatprep.mubr.f32.mxu0 %v2040
        %2404 = vmatmul.mubr.f32.gmra.mrb[0].mxu0 %v2146
        %v2405 = vpop.f32.mrb[0].mxu0
        %v2406 = vadd.f32 %v2326, %v2405
        %v2407 = vpop.f32.mrb[0].mxu0
        %v2408 = vadd.f32 %v2330, %v2407
        %2409 = vmatprep.mubr.f32.mxu0 %v2045
        %2410 = vmatmul.mubr.f32.gmra.mrb[0].mxu0 %v2147
        %v2411 = vpop.f32.mrb[0].mxu0
        %v2412 = vadd.f32 %v2326, %v2411
        %v2413 = vpop.f32.mrb[0].mxu0
        %v2414 = vadd.f32 %v2330, %v2413
        %2415 = vmatprep.mubr.f32.mxu0 %v2050
        %2416 = vmatmul.mubr.f32.gmra.mrb[0].mxu0 %v2148
        %v2417 = vpop.f32.mrb[0].mxu0
        %v2418 = vadd.f32 %v2326, %v2417
        %v2419 = vpop.f32.mrb[0].mxu0
        %v2420 = vadd.f32 %v2330, %v2419
        %2421 = vmatprep.mubr.f32.mxu0 %v2055
        %2422 = vmatmul.mubr.f32.gmra.mrb[0].mxu0 %v2149
        %v2423 = vpop.f32.mrb[0].mxu0
        %v2424 = vadd.f32 %v2326, %v2423
        %v2425 = vpop.f32.mrb[0].mxu0
        %v2426 = vadd.f32 %v2330, %v2425
        %2427 = vmatprep.mubr.f32.mxu0 %v2060
        %2428 = vmatmul.mubr.f32.gmra.mrb[0].mxu0 %v2150
        %v2429 = vpop.f32.mrb[0].mxu0
        %v2430 = vadd.f32 %v2326, %v2429
        %v2431 = vpop.f32.mrb[0].mxu0
        %v2432 = vadd.f32 %v2330, %v2431
        %2433 = vmatprep.mubr.f32.mxu0 %v2065
        %2434 = vmatmul.mubr.f32.gmra.mrb[0].mxu0 %v2151
        %v2435 = vpop.f32.mrb[0].mxu0
        %v2436 = vadd.f32 %v2326, %v2435
        %v2437 = vpop.f32.mrb[0].mxu0
        %v2438 = vadd.f32 %v2330, %v2437
        %2439 = vmatprep.mubr.f32.mxu0 %v2070
        %2440 = vmatmul.mubr.f32.gmra.mrb[0].mxu0 %v2152
        %v2441 = vpop.f32.mrb[0].mxu0
        %v2442 = vadd.f32 %v2326, %v2441
        %v2443 = vpop.f32.mrb[0].mxu0
        %v2444 = vadd.f32 %v2330, %v2443
        %2445 = vmatprep.mubr.f32.mxu0 %v2075
        %2446 = vmatmul.mubr.f32.gmra.mrb[0].mxu0 %v2153
        %v2447 = vpop.f32.mrb[0].mxu0
        %v2448 = vadd.f32 %v2326, %v2447
        %v2449 = vpop.f32.mrb[0].mxu0
        %v2450 = vadd.f32 %v2330, %v2449
        %2451 = vmatprep.mubr.f32.mxu0 %v2080
        %2452 = vmatmul.mubr.f32.gmra.mrb[0].mxu0 %v2154
        %v2453 = vpop.f32.mrb[0].mxu0
        %v2454 = vadd.f32 %v2326, %v2453
        %v2455 = vpop.f32.mrb[0].mxu0
        %v2456 = vadd.f32 %v2330, %v2455
        %2457 = vmatprep.mubr.f32.mxu0 %v2085
        %2458 = vmatmul.mubr.f32.gmra.mrb[0].mxu0 %v2155
        %v2459 = vpop.f32.mrb[0].mxu0
        %v2460 = vadd.f32 %v2326, %v2459
        %v2461 = vpop.f32.mrb[0].mxu0
        %v2462 = vadd.f32 %v2330, %v2461
        %2463 = vmatprep.mubr.f32.mxu0 %v2090
        %2464 = vmatmul.mubr.f32.gmra.mrb[0].mxu0 %v2156
        %v2465 = vpop.f32.mrb[0].mxu0
        %v2466 = vadd.f32 %v2326, %v2465
        %v2467 = vpop.f32.mrb[0].mxu0
        %v2468 = vadd.f32 %v2330, %v2467
        %2469 = vmatprep.mubr.f32.mxu0 %v2095
        %2470 = vmatmul.mubr.f32.gmra.mrb[0].mxu0 %v2157
        %v2471 = vpop.f32.mrb[0].mxu0
        %v2472 = vadd.f32 %v2326, %v2471
        %v2473 = vpop.f32.mrb[0].mxu0
        %v2474 = vadd.f32 %v2330, %v2473
        %2475 = vmatprep.mubr.f32.mxu0 %v2100
        %2476 = vmatmul.mubr.f32.gmra.mrb[0].mxu0 %v2158
        %v2477 = vpop.f32.mrb[0].mxu0
        %v2478 = vadd.f32 %v2326, %v2477
        %v2479 = vpop.f32.mrb[0].mxu0
        %v2480 = vadd.f32 %v2330, %v2479
        %2481 = vmatprep.mubr.f32.mxu0 %v2105
        %2482 = vmatmul.mubr.f32.gmra.mrb[0].mxu0 %v2159
        %v2483 = vpop.f32.mrb[0].mxu0
        %v2484 = vadd.f32 %v2326, %v2483
        %v2485 = vpop.f32.mrb[0].mxu0
        %v2486 = vadd.f32 %v2330, %v2485
        %2487 = vmatprep.mubr.f32.mxu0 %v2110
        %2488 = vmatmul.mubr.f32.gmra.mrb[0].mxu0 %v2160
        %v2489 = vpop.f32.mrb[0].mxu0
        %v2490 = vadd.f32 %v2326, %v2489
        %v2491 = vpop.f32.mrb[0].mxu0
        %v2492 = vadd.f32 %v2330, %v2491
        %2493 = vdwg.mxu0
        %2494 = vmatprep.subr.mxu0 %v2290
        %2495 = vmatpush1.msra.mxu0 %v2289
        %2496 = vmatprep.subr.mxu0 %v2292
        %2497 = vmatpush1.msra.mxu0 %v2291
        %2498 = vmatprep.subr.mxu0 %v2294
        %2499 = vmatpush1.msra.mxu0 %v2293
        %2500 = vmatprep.subr.mxu0 %v2296
        %2501 = vmatpush1.msra.mxu0 %v2295
        %2502 = vmatprep.subr.mxu0 %v2298
        %2503 = vmatpush1.msra.mxu0 %v2297
        %2504 = vmatprep.subr.mxu0 %v2300
        %2505 = vmatpush1.msra.mxu0 %v2299
        %2506 = vmatprep.subr.mxu0 %v2302
        %2507 = vmatpush1.msra.mxu0 %v2301
        %2508 = vmatprep.subr.mxu0 %v2304
        %2509 = vmatpush1.msra.mxu0 %v2303
        %2510 = vmatprep.subr.mxu0 %v2306
        %2511 = vmatpush1.msra.mxu0 %v2305
        %2512 = vmatprep.subr.mxu0 %v2308
        %2513 = vmatpush1.msra.mxu0 %v2307
        %2514 = vmatprep.subr.mxu0 %v2310
        %2515 = vmatpush1.msra.mxu0 %v2309
        %2516 = vmatprep.subr.mxu0 %v2312
        %2517 = vmatpush1.msra.mxu0 %v2311
        %2518 = vmatprep.subr.mxu0 %v2314
        %2519 = vmatpush1.msra.mxu0 %v2313
        %2520 = vmatprep.subr.mxu0 %v2316
        %2521 = vmatpush1.msra.mxu0 %v2315
        %2522 = vmatprep.subr.mxu0 %v2318
        %2523 = vmatpush1.msra.mxu0 %v2317
        %2524 = vmatprep.subr.mxu0 %v2320
        %2525 = vmatpush1.msra.mxu0 %v2319
        %2526 = vmatprep.subr.mxu0 0.0
        %2527 = vmatpush1.msra.mxu0 0.0
        %2528 = vmatprep.subr.mxu0 0.0
        %2529 = vmatpush1.msra.mxu0 0.0
        %2530 = vmatprep.subr.mxu0 0.0
        %2531 = vmatpush1.msra.mxu0 0.0
        %2532 = vmatprep.subr.mxu0 0.0
        %2533 = vmatpush1.msra.mxu0 0.0
        %2534 = vmatprep.subr.mxu0 0.0
        %2535 = vmatpush1.msra.mxu0 0.0
        %2536 = vmatprep.subr.mxu0 0.0
        %2537 = vmatpush1.msra.mxu0 0.0
        %2538 = vmatprep.subr.mxu0 0.0
        %2539 = vmatpush1.msra.mxu0 0.0
        %2540 = vmatprep.subr.mxu0 0.0
        %2541 = vmatpush1.msra.mxu0 0.0
        %2542 = vmatprep.subr.mxu0 0.0
        %2543 = vmatpush1.msra.mxu0 0.0
        %2544 = vmatprep.subr.mxu0 0.0
        %2545 = vmatpush1.msra.mxu0 0.0
        %2546 = vmatprep.subr.mxu0 0.0
        %2547 = vmatpush1.msra.mxu0 0.0
        %2548 = vmatprep.subr.mxu0 0.0
        %2549 = vmatpush1.msra.mxu0 0.0
        %2550 = vmatprep.subr.mxu0 0.0
        %2551 = vmatpush1.msra.mxu0 0.0
        %2552 = vmatprep.subr.mxu0 0.0
        %2553 = vmatpush1.msra.mxu0 0.0
        %2554 = vmatprep.subr.mxu0 0.0
        %2555 = vmatpush1.msra.mxu0 0.0
        %2556 = vmatprep.subr.mxu0 0.0
        %2557 = vmatpush1.msra.mxu0 0.0
        %2558 = vmatprep.mubr.f32.mxu0 0.0
        %2559 = vmatmul.mubr.f32.gmra.mrb[0].mxu0 %v2209
        %v2560 = vpop.f32.mrb[0].mxu0
        %v2561 = vadd.f32 %v2400, %v2560
        %v2562 = vpop.f32.mrb[0].mxu0
        %v2563 = vadd.f32 %v2402, %v2562
        %2564 = vmatprep.mubr.f32.mxu0 0.0
        %2565 = vmatmul.mubr.f32.gmra.mrb[0].mxu0 %v2210
        %v2566 = vpop.f32.mrb[0].mxu0
        %v2567 = vadd.f32 %v2406, %v2566
        %v2568 = vpop.f32.mrb[0].mxu0
        %v2569 = vadd.f32 %v2408, %v2568
        %2570 = vmatprep.mubr.f32.mxu0 0.0
        %2571 = vmatmul.mubr.f32.gmra.mrb[0].mxu0 %v2211
        %v2572 = vpop.f32.mrb[0].mxu0
        %v2573 = vadd.f32 %v2412, %v2572
        %v2574 = vpop.f32.mrb[0].mxu0
        %v2575 = vadd.f32 %v2414, %v2574
        %2576 = vmatprep.mubr.f32.mxu0 0.0
        %2577 = vmatmul.mubr.f32.gmra.mrb[0].mxu0 %v2212
        %v2578 = vpop.f32.mrb[0].mxu0
        %v2579 = vadd.f32 %v2418, %v2578
        %v2580 = vpop.f32.mrb[0].mxu0
        %v2581 = vadd.f32 %v2420, %v2580
        %2582 = vmatprep.mubr.f32.mxu0 0.0
        %2583 = vmatmul.mubr.f32.gmra.mrb[0].mxu0 %v2213
        %v2584 = vpop.f32.mrb[0].mxu0
        %v2585 = vadd.f32 %v2424, %v2584
        %v2586 = vpop.f32.mrb[0].mxu0
        %v2587 = vadd.f32 %v2426, %v2586
        %2588 = vmatprep.mubr.f32.mxu0 0.0
        %2589 = vmatmul.mubr.f32.gmra.mrb[0].mxu0 %v2214
        %v2590 = vpop.f32.mrb[0].mxu0
        %v2591 = vadd.f32 %v2430, %v2590
        %v2592 = vpop.f32.mrb[0].mxu0
        %v2593 = vadd.f32 %v2432, %v2592
        %2594 = vmatprep.mubr.f32.mxu0 0.0
        %2595 = vmatmul.mubr.f32.gmra.mrb[0].mxu0 %v2215
        %v2596 = vpop.f32.mrb[0].mxu0
        %v2597 = vadd.f32 %v2436, %v2596
        %v2598 = vpop.f32.mrb[0].mxu0
        %v2599 = vadd.f32 %v2438, %v2598
        %2600 = vmatprep.mubr.f32.mxu0 0.0
        %2601 = vmatmul.mubr.f32.gmra.mrb[0].mxu0 %v2216
        %v2602 = vpop.f32.mrb[0].mxu0
        %v2603 = vadd.f32 %v2442, %v2602
        %v2604 = vpop.f32.mrb[0].mxu0
        %v2605 = vadd.f32 %v2444, %v2604
        %2606 = vmatprep.mubr.f32.mxu0 0.0
        %2607 = vmatmul.mubr.f32.gmra.mrb[0].mxu0 %v2217
        %v2608 = vpop.f32.mrb[0].mxu0
        %v2609 = vadd.f32 %v2448, %v2608
        %v2610 = vpop.f32.mrb[0].mxu0
        %v2611 = vadd.f32 %v2450, %v2610
        %2612 = vmatprep.mubr.f32.mxu0 0.0
        %2613 = vmatmul.mubr.f32.gmra.mrb[0].mxu0 %v2218
        %v2614 = vpop.f32.mrb[0].mxu0
        %v2615 = vadd.f32 %v2454, %v2614
        %v2616 = vpop.f32.mrb[0].mxu0
        %v2617 = vadd.f32 %v2456, %v2616
        %2618 = vmatprep.mubr.f32.mxu0 0.0
        %2619 = vmatmul.mubr.f32.gmra.mrb[0].mxu0 %v2219
        %v2620 = vpop.f32.mrb[0].mxu0
        %v2621 = vadd.f32 %v2460, %v2620
        %v2622 = vpop.f32.mrb[0].mxu0
        %v2623 = vadd.f32 %v2462, %v2622
        %2624 = vmatprep.mubr.f32.mxu0 0.0
        %2625 = vmatmul.mubr.f32.gmra.mrb[0].mxu0 %v2220
        %v2626 = vpop.f32.mrb[0].mxu0
        %v2627 = vadd.f32 %v2466, %v2626
        %v2628 = vpop.f32.mrb[0].mxu0
        %v2629 = vadd.f32 %v2468, %v2628
        %2630 = vmatprep.mubr.f32.mxu0 0.0
        %2631 = vmatmul.mubr.f32.gmra.mrb[0].mxu0 %v2221
        %v2632 = vpop.f32.mrb[0].mxu0
        %v2633 = vadd.f32 %v2472, %v2632
        %v2634 = vpop.f32.mrb[0].mxu0
        %v2635 = vadd.f32 %v2474, %v2634
        %2636 = vmatprep.mubr.f32.mxu0 0.0
        %2637 = vmatmul.mubr.f32.gmra.mrb[0].mxu0 %v2222
        %v2638 = vpop.f32.mrb[0].mxu0
        %v2639 = vadd.f32 %v2478, %v2638
        %v2640 = vpop.f32.mrb[0].mxu0
        %v2641 = vadd.f32 %v2480, %v2640
        %2642 = vmatprep.mubr.f32.mxu0 0.0
        %2643 = vmatmul.mubr.f32.gmra.mrb[0].mxu0 %v2223
        %v2644 = vpop.f32.mrb[0].mxu0
        %v2645 = vadd.f32 %v2484, %v2644
        %v2646 = vpop.f32.mrb[0].mxu0
        %v2647 = vadd.f32 %v2486, %v2646
        %2648 = vmatprep.mubr.f32.mxu0 0.0
        %2649 = vmatmul.mubr.f32.gmra.mrb[0].mxu0 %v2224
        %v2650 = vpop.f32.mrb[0].mxu0
        %v2651 = vadd.f32 %v2490, %v2650
        %v2652 = vpop.f32.mrb[0].mxu0
        %v2653 = vadd.f32 %v2492, %v2652
        %2654 = vdwg.mxu0
        %v2655 = vmax.f32 %v2561, 0.0
        %v2656 = vmax.f32 %v2563, 0.0
        %v2657 = vmax.f32 %v2567, 0.0
        %v2658 = vmax.f32 %v2569, 0.0
        %v2659 = vmax.f32 %v2573, 0.0
        %v2660 = vmax.f32 %v2575, 0.0
        %v2661 = vmax.f32 %v2579, 0.0
        %v2662 = vmax.f32 %v2581, 0.0
        %v2663 = vmax.f32 %v2585, 0.0
        %v2664 = vmax.f32 %v2587, 0.0
        %v2665 = vmax.f32 %v2591, 0.0
        %v2666 = vmax.f32 %v2593, 0.0
        %v2667 = vmax.f32 %v2597, 0.0
        %v2668 = vmax.f32 %v2599, 0.0
        %v2669 = vmax.f32 %v2603, 0.0
        %v2670 = vmax.f32 %v2605, 0.0
        %v2671 = vmax.f32 %v2609, 0.0
        %v2672 = vmax.f32 %v2611, 0.0
        %v2673 = vmax.f32 %v2615, 0.0
        %v2674 = vmax.f32 %v2617, 0.0
        %v2675 = vmax.f32 %v2621, 0.0
        %v2676 = vmax.f32 %v2623, 0.0
        %v2677 = vmax.f32 %v2627, 0.0
        %v2678 = vmax.f32 %v2629, 0.0
        %v2679 = vmax.f32 %v2633, 0.0
        %v2680 = vmax.f32 %v2635, 0.0
        %v2681 = vmax.f32 %v2639, 0.0
        %v2682 = vmax.f32 %v2641, 0.0
        %v2683 = vmax.f32 %v2645, 0.0
        %v2684 = vmax.f32 %v2647, 0.0
        %v2685 = vmax.f32 %v2651, 0.0
        %v2686 = vmax.f32 %v2653, 0.0
        %v2687 = vrot.slane %v2655, 1
        %v2688 = vrot.slane %v2656, 1
        %v2689 = vrot.slane %v2657, 1
        %v2690 = vrot.slane %v2658, 1
        %v2691 = vrot.slane %v2659, 1
        %v2692 = vrot.slane %v2660, 1
        %v2693 = vrot.slane %v2661, 1
        %v2694 = vrot.slane %v2662, 1
        %v2695 = vrot.slane %v2663, 1
        %v2696 = vrot.slane %v2664, 1
        %v2697 = vrot.slane %v2665, 1
        %v2698 = vrot.slane %v2666, 1
        %v2699 = vrot.slane %v2667, 1
        %v2700 = vrot.slane %v2668, 1
        %v2701 = vrot.slane %v2669, 1
        %v2702 = vrot.slane %v2670, 1
        %v2703 = vrot.slane %v2671, 1
        %v2704 = vrot.slane %v2672, 1
        %v2705 = vrot.slane %v2673, 1
        %v2706 = vrot.slane %v2674, 1
        %v2707 = vrot.slane %v2675, 1
        %v2708 = vrot.slane %v2676, 1
        %v2709 = vrot.slane %v2677, 1
        %v2710 = vrot.slane %v2678, 1
        %v2711 = vrot.slane %v2679, 1
        %v2712 = vrot.slane %v2680, 1
        %v2713 = vrot.slane %v2681, 1
        %v2714 = vrot.slane %v2682, 1
        %v2715 = vrot.slane %v2683, 1
        %v2716 = vrot.slane %v2684, 1
        %v2717 = vrot.slane %v2685, 1
        %v2718 = vrot.slane %v2686, 1
        %v2719 = vsel %vm1086, %v2715, %v2717
        %v2720 = vsel %vm1086, %v2716, %v2718
        %v2721 = vsel %vm1086, %v2713, %v2715
        %v2722 = vsel %vm1086, %v2714, %v2716
        %v2723 = vsel %vm1086, %v2711, %v2713
        %v2724 = vsel %vm1086, %v2712, %v2714
        %v2725 = vsel %vm1086, %v2709, %v2711
        %v2726 = vsel %vm1086, %v2710, %v2712
        %v2727 = vsel %vm1086, %v2707, %v2709
        %v2728 = vsel %vm1086, %v2708, %v2710
        %v2729 = vsel %vm1086, %v2705, %v2707
        %v2730 = vsel %vm1086, %v2706, %v2708
        %v2731 = vsel %vm1086, %v2703, %v2705
        %v2732 = vsel %vm1086, %v2704, %v2706
        %v2733 = vsel %vm1086, %v2701, %v2703
        %v2734 = vsel %vm1086, %v2702, %v2704
        %v2735 = vsel %vm1086, %v2699, %v2701
        %v2736 = vsel %vm1086, %v2700, %v2702
        %v2737 = vsel %vm1086, %v2697, %v2699
        %v2738 = vsel %vm1086, %v2698, %v2700
        %v2739 = vsel %vm1086, %v2695, %v2697
        %v2740 = vsel %vm1086, %v2696, %v2698
        %v2741 = vsel %vm1086, %v2693, %v2695
        %v2742 = vsel %vm1086, %v2694, %v2696
        %v2743 = vsel %vm1086, %v2691, %v2693
        %v2744 = vsel %vm1086, %v2692, %v2694
        %v2745 = vsel %vm1086, %v2689, %v2691
        %v2746 = vsel %vm1086, %v2690, %v2692
        %v2747 = vsel %vm1086, %v2687, %v2689
        %v2748 = vsel %vm1086, %v2688, %v2690
        %v2749 = vsel %vm1086, %v2717, %v2687
        %v2750 = vsel %vm1086, %v2718, %v2688
        %v2751 = vmax.f32 %v2655, %v2747
        %v2752 = vmax.f32 %v2656, %v2748
        %v2753 = vmax.f32 %v2657, %v2745
        %v2754 = vmax.f32 %v2658, %v2746
        %v2755 = vmax.f32 %v2659, %v2743
        %v2756 = vmax.f32 %v2660, %v2744
        %v2757 = vmax.f32 %v2661, %v2741
        %v2758 = vmax.f32 %v2662, %v2742
        %v2759 = vmax.f32 %v2663, %v2739
        %v2760 = vmax.f32 %v2664, %v2740
        %v2761 = vmax.f32 %v2665, %v2737
        %v2762 = vmax.f32 %v2666, %v2738
        %v2763 = vmax.f32 %v2667, %v2735
        %v2764 = vmax.f32 %v2668, %v2736
        %v2765 = vmax.f32 %v2669, %v2733
        %v2766 = vmax.f32 %v2670, %v2734
        %v2767 = vmax.f32 %v2671, %v2731
        %v2768 = vmax.f32 %v2672, %v2732
        %v2769 = vmax.f32 %v2673, %v2729
        %v2770 = vmax.f32 %v2674, %v2730
        %v2771 = vmax.f32 %v2675, %v2727
        %v2772 = vmax.f32 %v2676, %v2728
        %v2773 = vmax.f32 %v2677, %v2725
        %v2774 = vmax.f32 %v2678, %v2726
        %v2775 = vmax.f32 %v2679, %v2723
        %v2776 = vmax.f32 %v2680, %v2724
        %v2777 = vmax.f32 %v2681, %v2721
        %v2778 = vmax.f32 %v2682, %v2722
        %v2779 = vmax.f32 %v2683, %v2719
        %v2780 = vmax.f32 %v2684, %v2720
        %v2781 = vmax.f32 %v2685, %v2749
        %v2782 = vmax.f32 %v2686, %v2750
        %v2783 = vld [vmem:[%s12] sm:$0xff]
        %v2784 = vld [vmem:[%s12 + $0x8] sm:$0xff]
        %v2785 = vld [vmem:[%s12 + $0x10] sm:$0xff]
        %v2786 = vld [vmem:[%s12 + $0x18] sm:$0xff]
        %v2787 = vld [vmem:[%s12 + $0x20] sm:$0xff]
        %v2788 = vld [vmem:[%s12 + $0x28] sm:$0xff]
        %v2789 = vld [vmem:[%s12 + $0x30] sm:$0xff]
        %v2790 = vld [vmem:[%s12 + $0x38] sm:$0xff]
        %2791 = vmatprep.subr.mxu0 %v2752
        %2792 = vmatpush1.msra.mxu0 %v2751
        %2793 = vmatprep.subr.mxu0 %v2754
        %2794 = vmatpush1.msra.mxu0 %v2753
        %2795 = vmatprep.subr.mxu0 %v2756
        %2796 = vmatpush1.msra.mxu0 %v2755
        %2797 = vmatprep.subr.mxu0 %v2758
        %2798 = vmatpush1.msra.mxu0 %v2757
        %2799 = vmatprep.subr.mxu0 %v2760
        %2800 = vmatpush1.msra.mxu0 %v2759
        %2801 = vmatprep.subr.mxu0 %v2762
        %2802 = vmatpush1.msra.mxu0 %v2761
        %2803 = vmatprep.subr.mxu0 %v2764
        %2804 = vmatpush1.msra.mxu0 %v2763
        %2805 = vmatprep.subr.mxu0 %v2766
        %2806 = vmatpush1.msra.mxu0 %v2765
        %2807 = vmatprep.subr.mxu0 %v2768
        %2808 = vmatpush1.msra.mxu0 %v2767
        %2809 = vmatprep.subr.mxu0 %v2770
        %2810 = vmatpush1.msra.mxu0 %v2769
        %2811 = vmatprep.subr.mxu0 %v2772
        %2812 = vmatpush1.msra.mxu0 %v2771
        %2813 = vmatprep.subr.mxu0 %v2774
        %2814 = vmatpush1.msra.mxu0 %v2773
        %2815 = vmatprep.subr.mxu0 %v2776
        %2816 = vmatpush1.msra.mxu0 %v2775
        %2817 = vmatprep.subr.mxu0 %v2778
        %2818 = vmatpush1.msra.mxu0 %v2777
        %2819 = vmatprep.subr.mxu0 %v2780
        %2820 = vmatpush1.msra.mxu0 %v2779
        %2821 = vmatprep.subr.mxu0 %v2782
        %2822 = vmatpush1.msra.mxu0 %v2781
        %2823 = vmatprep.subr.mxu0 0.0
        %2824 = vmatpush1.msra.mxu0 0.0
        %2825 = vmatprep.subr.mxu0 0.0
        %2826 = vmatpush1.msra.mxu0 0.0
        %2827 = vmatprep.subr.mxu0 0.0
        %2828 = vmatpush1.msra.mxu0 0.0
        %2829 = vmatprep.subr.mxu0 0.0
        %2830 = vmatpush1.msra.mxu0 0.0
        %2831 = vmatprep.subr.mxu0 0.0
        %2832 = vmatpush1.msra.mxu0 0.0
        %2833 = vmatprep.subr.mxu0 0.0
        %2834 = vmatpush1.msra.mxu0 0.0
        %2835 = vmatprep.subr.mxu0 0.0
        %2836 = vmatpush1.msra.mxu0 0.0
        %2837 = vmatprep.subr.mxu0 0.0
        %2838 = vmatpush1.msra.mxu0 0.0
        %2839 = vmatprep.subr.mxu0 0.0
        %2840 = vmatpush1.msra.mxu0 0.0
        %2841 = vmatprep.subr.mxu0 0.0
        %2842 = vmatpush1.msra.mxu0 0.0
        %2843 = vmatprep.subr.mxu0 0.0
        %2844 = vmatpush1.msra.mxu0 0.0
        %2845 = vmatprep.subr.mxu0 0.0
        %2846 = vmatpush1.msra.mxu0 0.0
        %2847 = vmatprep.subr.mxu0 0.0
        %2848 = vmatpush1.msra.mxu0 0.0
        %2849 = vmatprep.subr.mxu0 0.0
        %2850 = vmatpush1.msra.mxu0 0.0
        %2851 = vmatprep.subr.mxu0 0.0
        %2852 = vmatpush1.msra.mxu0 0.0
        %2853 = vmatprep.subr.mxu0 0.0
        %2854 = vmatpush1.msra.mxu0 0.0
        %2855 = vmatprep.mubr.f32.mxu0 0.0
        %2856 = vmatmul.mubr.f32.gmra.mrb[0].mxu0 %v2783
        %v2857 = vpop.f32.mrb[0].mxu0
        %v2858 = vadd.f32 0.0, %v2857
        %v2859 = vpop.f32.mrb[0].mxu0
        %v2860 = vadd.f32 0.0, %v2859
        %2861 = vmatprep.mubr.f32.mxu0 0.0
        %2862 = vmatmul.mubr.f32.gmra.mrb[0].mxu0 %v2784
        %v2863 = vpop.f32.mrb[0].mxu0
        %v2864 = vadd.f32 0.0, %v2863
        %v2865 = vpop.f32.mrb[0].mxu0
        %v2866 = vadd.f32 0.0, %v2865
        %2867 = vmatprep.mubr.f32.mxu0 0.0
        %2868 = vmatmul.mubr.f32.gmra.mrb[0].mxu0 %v2785
        %v2869 = vpop.f32.mrb[0].mxu0
        %v2870 = vadd.f32 0.0, %v2869
        %v2871 = vpop.f32.mrb[0].mxu0
        %v2872 = vadd.f32 0.0, %v2871
        %2873 = vmatprep.mubr.f32.mxu0 0.0
        %2874 = vmatmul.mubr.f32.gmra.mrb[0].mxu0 %v2786
        %v2875 = vpop.f32.mrb[0].mxu0
        %v2876 = vadd.f32 0.0, %v2875
        %v2877 = vpop.f32.mrb[0].mxu0
        %v2878 = vadd.f32 0.0, %v2877
        %2879 = vmatprep.mubr.f32.mxu0 0.0
        %2880 = vmatmul.mubr.f32.gmra.mrb[0].mxu0 %v2787
        %v2881 = vpop.f32.mrb[0].mxu0
        %v2882 = vadd.f32 0.0, %v2881
        %v2883 = vpop.f32.mrb[0].mxu0
        %v2884 = vadd.f32 0.0, %v2883
        %2885 = vmatprep.mubr.f32.mxu0 0.0
        %2886 = vmatmul.mubr.f32.gmra.mrb[0].mxu0 %v2788
        %v2887 = vpop.f32.mrb[0].mxu0
        %v2888 = vadd.f32 0.0, %v2887
        %v2889 = vpop.f32.mrb[0].mxu0
        %v2890 = vadd.f32 0.0, %v2889
        %2891 = vmatprep.mubr.f32.mxu0 0.0
        %2892 = vmatmul.mubr.f32.gmra.mrb[0].mxu0 %v2789
        %v2893 = vpop.f32.mrb[0].mxu0
        %v2894 = vadd.f32 0.0, %v2893
        %v2895 = vpop.f32.mrb[0].mxu0
        %v2896 = vadd.f32 0.0, %v2895
        %2897 = vmatprep.mubr.f32.mxu0 0.0
        %2898 = vmatmul.mubr.f32.gmra.mrb[0].mxu0 %v2790
        %v2899 = vpop.f32.mrb[0].mxu0
        %v2900 = vadd.f32 0.0, %v2899
        %v2901 = vpop.f32.mrb[0].mxu0
        %v2902 = vadd.f32 0.0, %v2901
        %2903 = vdwg.mxu0
        %v2904 = vrot.slane %v2858, 7
        %v2905 = vrot.slane %v2860, 7
        %v2906 = vrot.slane %v2864, 7
        %v2907 = vrot.slane %v2866, 7
        %v2908 = vrot.slane %v2870, 7
        %v2909 = vrot.slane %v2872, 7
        %v2910 = vrot.slane %v2876, 7
        %v2911 = vrot.slane %v2878, 7
        %v2912 = vrot.slane %v2882, 7
        %v2913 = vrot.slane %v2884, 7
        %v2914 = vrot.slane %v2888, 7
        %v2915 = vrot.slane %v2890, 7
        %v2916 = vrot.slane %v2894, 7
        %v2917 = vrot.slane %v2896, 7
        %v2918 = vrot.slane %v2900, 7
        %v2919 = vrot.slane %v2902, 7
        %v2920 = vsel %vm957, %v2916, %v2918
        %v2921 = vsel %vm957, %v2917, %v2919
        %v2922 = vsel %vm957, %v2914, %v2916
        %v2923 = vsel %vm957, %v2915, %v2917
        %v2924 = vsel %vm957, %v2912, %v2914
        %v2925 = vsel %vm957, %v2913, %v2915
        %v2926 = vsel %vm957, %v2910, %v2912
        %v2927 = vsel %vm957, %v2911, %v2913
        %v2928 = vsel %vm957, %v2908, %v2910
        %v2929 = vsel %vm957, %v2909, %v2911
        %v2930 = vsel %vm957, %v2906, %v2908
        %v2931 = vsel %vm957, %v2907, %v2909
        %v2932 = vsel %vm957, %v2904, %v2906
        %v2933 = vsel %vm957, %v2905, %v2907
        %v2934 = vsel %vm957, %v2918, %v2904
        %v2935 = vsel %vm957, %v2919, %v2905
        %v2936 = vsel %vm893, 0.0, %v2934
        %v2937 = vsel %vm893, 0.0, %v2935
        %v2938 = vsel %vm894, 0.0, %v2932
        %v2939 = vsel %vm894, 0.0, %v2933
        %v2940 = vsel %vm895, 0.0, %v2930
        %v2941 = vsel %vm895, 0.0, %v2931
        %v2942 = vsel %vm896, 0.0, %v2928
        %v2943 = vsel %vm896, 0.0, %v2929
        %v2944 = vsel %vm897, 0.0, %v2926
        %v2945 = vsel %vm897, 0.0, %v2927
        %v2946 = vsel %vm898, 0.0, %v2924
        %v2947 = vsel %vm898, 0.0, %v2925
        %v2948 = vsel %vm899, 0.0, %v2922
        %v2949 = vsel %vm899, 0.0, %v2923
        %v2950 = vsel %vm900, 0.0, %v2920
        %v2951 = vsel %vm900, 0.0, %v2921
        %vm2952 = vcmp.eq.s32.totalorder %v861, 63
        %vm2953 = vcmp.eq.s32.totalorder %v862, 63
        %vm2954 = vcmp.eq.s32.totalorder %v863, 63
        %vm2955 = vcmp.eq.s32.totalorder %v864, 63
        %vm2956 = vcmp.eq.s32.totalorder %v865, 63
        %vm2957 = vcmp.eq.s32.totalorder %v866, 63
        %vm2958 = vcmp.eq.s32.totalorder %v867, 63
        %vm2959 = vcmp.eq.s32.totalorder %v868, 63
        %v2960 = vrot.slane %v2858, 1
        %v2961 = vrot.slane %v2860, 1
        %v2962 = vrot.slane %v2864, 1
        %v2963 = vrot.slane %v2866, 1
        %v2964 = vrot.slane %v2870, 1
        %v2965 = vrot.slane %v2872, 1
        %v2966 = vrot.slane %v2876, 1
        %v2967 = vrot.slane %v2878, 1
        %v2968 = vrot.slane %v2882, 1
        %v2969 = vrot.slane %v2884, 1
        %v2970 = vrot.slane %v2888, 1
        %v2971 = vrot.slane %v2890, 1
        %v2972 = vrot.slane %v2894, 1
        %v2973 = vrot.slane %v2896, 1
        %v2974 = vrot.slane %v2900, 1
        %v2975 = vrot.slane %v2902, 1
        %v2976 = vsel %vm1086, %v2972, %v2974
        %v2977 = vsel %vm1086, %v2973, %v2975
        %v2978 = vsel %vm1086, %v2970, %v2972
        %v2979 = vsel %vm1086, %v2971, %v2973
        %v2980 = vsel %vm1086, %v2968, %v2970
        %v2981 = vsel %vm1086, %v2969, %v2971
        %v2982 = vsel %vm1086, %v2966, %v2968
        %v2983 = vsel %vm1086, %v2967, %v2969
        %v2984 = vsel %vm1086, %v2964, %v2966
        %v2985 = vsel %vm1086, %v2965, %v2967
        %v2986 = vsel %vm1086, %v2962, %v2964
        %v2987 = vsel %vm1086, %v2963, %v2965
        %v2988 = vsel %vm1086, %v2960, %v2962
        %v2989 = vsel %vm1086, %v2961, %v2963
        %v2990 = vsel %vm1086, %v2974, %v2960
        %v2991 = vsel %vm1086, %v2975, %v2961
        %v2992 = vsel %vm2952, 0.0, %v2988
        %v2993 = vsel %vm2952, 0.0, %v2989
        %v2994 = vsel %vm2953, 0.0, %v2986
        %v2995 = vsel %vm2953, 0.0, %v2987
        %v2996 = vsel %vm2954, 0.0, %v2984
        %v2997 = vsel %vm2954, 0.0, %v2985
        %v2998 = vsel %vm2955, 0.0, %v2982
        %v2999 = vsel %vm2955, 0.0, %v2983
        %v3000 = vsel %vm2956, 0.0, %v2980
        %v3001 = vsel %vm2956, 0.0, %v2981
        %v3002 = vsel %vm2957, 0.0, %v2978
        %v3003 = vsel %vm2957, 0.0, %v2979
        %v3004 = vsel %vm2958, 0.0, %v2976
        %v3005 = vsel %vm2958, 0.0, %v2977
        %v3006 = vsel %vm2959, 0.0, %v2990
        %v3007 = vsel %vm2959, 0.0, %v2991
        %v3008 = vld [vmem:[#allocation2] sm:$0xff]
        %v3009 = vld [vmem:[#allocation2 + $0x8] sm:$0xff]
        %v3010 = vld [vmem:[#allocation2 + $0x10] sm:$0xff]
        %v3011 = vld [vmem:[#allocation2 + $0x18] sm:$0xff]
        %v3012 = vld [vmem:[#allocation2 + $0x20] sm:$0xff]
        %v3013 = vld [vmem:[#allocation2 + $0x28] sm:$0xff]
        %v3014 = vld [vmem:[#allocation2 + $0x30] sm:$0xff]
        %v3015 = vld [vmem:[#allocation2 + $0x38] sm:$0xff]
        %v3016 = vld [vmem:[#allocation2 + $0x40] sm:$0xff]
        %v3017 = vld [vmem:[#allocation2 + $0x48] sm:$0xff]
        %v3018 = vld [vmem:[#allocation2 + $0x50] sm:$0xff]
        %v3019 = vld [vmem:[#allocation2 + $0x58] sm:$0xff]
        %v3020 = vld [vmem:[#allocation2 + $0x60] sm:$0xff]
        %v3021 = vld [vmem:[#allocation2 + $0x68] sm:$0xff]
        %v3022 = vld [vmem:[#allocation2 + $0x70] sm:$0xff]
        %v3023 = vld [vmem:[#allocation2 + $0x78] sm:$0xff]
        %v3024 = vld [vmem:[#allocation2 + $0x80] sm:$0xff]
        %v3025 = vld [vmem:[#allocation2 + $0x88] sm:$0xff]
        %v3026 = vld [vmem:[#allocation2 + $0x90] sm:$0xff]
        %v3027 = vld [vmem:[#allocation2 + $0x98] sm:$0xff]
        %v3028 = vld [vmem:[#allocation2 + $0xa0] sm:$0xff]
        %v3029 = vld [vmem:[#allocation2 + $0xa8] sm:$0xff]
        %v3030 = vld [vmem:[#allocation2 + $0xb0] sm:$0xff]
        %v3031 = vld [vmem:[#allocation2 + $0xb8] sm:$0xff]
        %v3032 = vld [vmem:[#allocation2 + $0xc0] sm:$0xff]
        %v3033 = vld [vmem:[#allocation2 + $0xc8] sm:$0xff]
        %v3034 = vld [vmem:[#allocation2 + $0xd0] sm:$0xff]
        %v3035 = vld [vmem:[#allocation2 + $0xd8] sm:$0xff]
        %v3036 = vld [vmem:[#allocation2 + $0xe0] sm:$0xff]
        %v3037 = vld [vmem:[#allocation2 + $0xe8] sm:$0xff]
        %v3038 = vld [vmem:[#allocation2 + $0xf0] sm:$0xff]
        %v3039 = vld [vmem:[#allocation2 + $0xf8] sm:$0xff]
        %v3040 = vld [vmem:[#allocation2 + $0x100] sm:$0xff]
        %v3041 = vld [vmem:[#allocation2 + $0x108] sm:$0xff]
        %v3042 = vld [vmem:[#allocation2 + $0x110] sm:$0xff]
        %v3043 = vld [vmem:[#allocation2 + $0x118] sm:$0xff]
        %v3044 = vld [vmem:[#allocation2 + $0x120] sm:$0xff]
        %v3045 = vld [vmem:[#allocation2 + $0x128] sm:$0xff]
        %v3046 = vld [vmem:[#allocation2 + $0x130] sm:$0xff]
        %v3047 = vld [vmem:[#allocation2 + $0x138] sm:$0xff]
        %v3048 = vld [vmem:[#allocation2 + $0x140] sm:$0xff]
        %v3049 = vld [vmem:[#allocation2 + $0x148] sm:$0xff]
        %v3050 = vld [vmem:[#allocation2 + $0x150] sm:$0xff]
        %v3051 = vld [vmem:[#allocation2 + $0x158] sm:$0xff]
        %v3052 = vld [vmem:[#allocation2 + $0x160] sm:$0xff]
        %v3053 = vld [vmem:[#allocation2 + $0x168] sm:$0xff]
        %v3054 = vld [vmem:[#allocation2 + $0x170] sm:$0xff]
        %v3055 = vld [vmem:[#allocation2 + $0x178] sm:$0xff]
        %v3056 = vld [vmem:[#allocation2 + $0x180] sm:$0xff]
        %v3057 = vld [vmem:[#allocation2 + $0x188] sm:$0xff]
        %v3058 = vld [vmem:[#allocation2 + $0x190] sm:$0xff]
        %v3059 = vld [vmem:[#allocation2 + $0x198] sm:$0xff]
        %v3060 = vld [vmem:[#allocation2 + $0x1a0] sm:$0xff]
        %v3061 = vld [vmem:[#allocation2 + $0x1a8] sm:$0xff]
        %v3062 = vld [vmem:[#allocation2 + $0x1b0] sm:$0xff]
        %v3063 = vld [vmem:[#allocation2 + $0x1b8] sm:$0xff]
        %v3064 = vld [vmem:[#allocation2 + $0x1c0] sm:$0xff]
        %v3065 = vld [vmem:[#allocation2 + $0x1c8] sm:$0xff]
        %v3066 = vld [vmem:[#allocation2 + $0x1d0] sm:$0xff]
        %v3067 = vld [vmem:[#allocation2 + $0x1d8] sm:$0xff]
        %v3068 = vld [vmem:[#allocation2 + $0x1e0] sm:$0xff]
        %v3069 = vld [vmem:[#allocation2 + $0x1e8] sm:$0xff]
        %v3070 = vld [vmem:[#allocation2 + $0x1f0] sm:$0xff]
        %v3071 = vld [vmem:[#allocation2 + $0x1f8] sm:$0xff]
        %v3072 = vld [vmem:[#allocation2 + $0x200] sm:$0xff]
        %v3073 = vld [vmem:[#allocation2 + $0x208] sm:$0xff]
        %v3074 = vld [vmem:[#allocation2 + $0x210] sm:$0xff]
        %v3075 = vld [vmem:[#allocation2 + $0x218] sm:$0xff]
        %v3076 = vld [vmem:[#allocation2 + $0x220] sm:$0xff]
        %v3077 = vld [vmem:[#allocation2 + $0x228] sm:$0xff]
        %v3078 = vld [vmem:[#allocation2 + $0x230] sm:$0xff]
        %v3079 = vld [vmem:[#allocation2 + $0x238] sm:$0xff]
        %v3080 = vld [vmem:[#allocation2 + $0x240] sm:$0xff]
        %v3081 = vld [vmem:[#allocation2 + $0x248] sm:$0xff]
        %v3082 = vld [vmem:[#allocation2 + $0x250] sm:$0xff]
        %v3083 = vld [vmem:[#allocation2 + $0x258] sm:$0xff]
        %v3084 = vld [vmem:[#allocation2 + $0x260] sm:$0xff]
        %v3085 = vld [vmem:[#allocation2 + $0x268] sm:$0xff]
        %v3086 = vld [vmem:[#allocation2 + $0x270] sm:$0xff]
        %v3087 = vld [vmem:[#allocation2 + $0x278] sm:$0xff]
        %v3088 = vld [vmem:[#allocation2 + $0x280] sm:$0xff]
        %v3089 = vld [vmem:[#allocation2 + $0x288] sm:$0xff]
        %v3090 = vld [vmem:[#allocation2 + $0x290] sm:$0xff]
        %v3091 = vld [vmem:[#allocation2 + $0x298] sm:$0xff]
        %v3092 = vld [vmem:[#allocation2 + $0x2a0] sm:$0xff]
        %v3093 = vld [vmem:[#allocation2 + $0x2a8] sm:$0xff]
        %v3094 = vld [vmem:[#allocation2 + $0x2b0] sm:$0xff]
        %v3095 = vld [vmem:[#allocation2 + $0x2b8] sm:$0xff]
        %v3096 = vld [vmem:[#allocation2 + $0x2c0] sm:$0xff]
        %v3097 = vld [vmem:[#allocation2 + $0x2c8] sm:$0xff]
        %v3098 = vld [vmem:[#allocation2 + $0x2d0] sm:$0xff]
        %v3099 = vld [vmem:[#allocation2 + $0x2d8] sm:$0xff]
        %v3100 = vld [vmem:[#allocation2 + $0x2e0] sm:$0xff]
        %v3101 = vld [vmem:[#allocation2 + $0x2e8] sm:$0xff]
        %v3102 = vld [vmem:[#allocation2 + $0x2f0] sm:$0xff]
        %v3103 = vld [vmem:[#allocation2 + $0x2f8] sm:$0xff]
        %v3104 = vld [vmem:[#allocation2 + $0x300] sm:$0xff]
        %v3105 = vld [vmem:[#allocation2 + $0x308] sm:$0xff]
        %v3106 = vld [vmem:[#allocation2 + $0x310] sm:$0xff]
        %v3107 = vld [vmem:[#allocation2 + $0x318] sm:$0xff]
        %v3108 = vld [vmem:[#allocation2 + $0x320] sm:$0xff]
        %v3109 = vld [vmem:[#allocation2 + $0x328] sm:$0xff]
        %v3110 = vld [vmem:[#allocation2 + $0x330] sm:$0xff]
        %v3111 = vld [vmem:[#allocation2 + $0x338] sm:$0xff]
        %v3112 = vld [vmem:[#allocation2 + $0x340] sm:$0xff]
        %v3113 = vld [vmem:[#allocation2 + $0x348] sm:$0xff]
        %v3114 = vld [vmem:[#allocation2 + $0x350] sm:$0xff]
        %v3115 = vld [vmem:[#allocation2 + $0x358] sm:$0xff]
        %v3116 = vld [vmem:[#allocation2 + $0x360] sm:$0xff]
        %v3117 = vld [vmem:[#allocation2 + $0x368] sm:$0xff]
        %v3118 = vld [vmem:[#allocation2 + $0x370] sm:$0xff]
        %v3119 = vld [vmem:[#allocation2 + $0x378] sm:$0xff]
        %v3120 = vld [vmem:[#allocation2 + $0x380] sm:$0xff]
        %v3121 = vld [vmem:[#allocation2 + $0x388] sm:$0xff]
        %v3122 = vld [vmem:[#allocation2 + $0x390] sm:$0xff]
        %v3123 = vld [vmem:[#allocation2 + $0x398] sm:$0xff]
        %v3124 = vld [vmem:[#allocation2 + $0x3a0] sm:$0xff]
        %v3125 = vld [vmem:[#allocation2 + $0x3a8] sm:$0xff]
        %v3126 = vld [vmem:[#allocation2 + $0x3b0] sm:$0xff]
        %v3127 = vld [vmem:[#allocation2 + $0x3b8] sm:$0xff]
        %v3128 = vld [vmem:[#allocation2 + $0x3c0] sm:$0xff]
        %v3129 = vld [vmem:[#allocation2 + $0x3c8] sm:$0xff]
        %v3130 = vld [vmem:[#allocation2 + $0x3d0] sm:$0xff]
        %v3131 = vld [vmem:[#allocation2 + $0x3d8] sm:$0xff]
        %v3132 = vld [vmem:[#allocation2 + $0x3e0] sm:$0xff]
        %v3133 = vld [vmem:[#allocation2 + $0x3e8] sm:$0xff]
        %v3134 = vld [vmem:[#allocation2 + $0x3f0] sm:$0xff]
        %v3135 = vld [vmem:[#allocation2 + $0x3f8] sm:$0xff]
        %v3136 = vld [vmem:[#allocation2 + $0x400] sm:$0xff]
        %v3137 = vld [vmem:[#allocation2 + $0x408] sm:$0xff]
        %v3138 = vld [vmem:[#allocation2 + $0x410] sm:$0xff]
        %v3139 = vld [vmem:[#allocation2 + $0x418] sm:$0xff]
        %v3140 = vld [vmem:[#allocation2 + $0x420] sm:$0xff]
        %v3141 = vld [vmem:[#allocation2 + $0x428] sm:$0xff]
        %v3142 = vld [vmem:[#allocation2 + $0x430] sm:$0xff]
        %v3143 = vld [vmem:[#allocation2 + $0x438] sm:$0xff]
        %v3144 = vld [vmem:[#allocation2 + $0x440] sm:$0xff]
        %v3145 = vld [vmem:[#allocation2 + $0x448] sm:$0xff]
        %v3146 = vld [vmem:[#allocation2 + $0x450] sm:$0xff]
        %v3147 = vld [vmem:[#allocation2 + $0x458] sm:$0xff]
        %v3148 = vld [vmem:[#allocation2 + $0x460] sm:$0xff]
        %v3149 = vld [vmem:[#allocation2 + $0x468] sm:$0xff]
        %v3150 = vld [vmem:[#allocation2 + $0x470] sm:$0xff]
        %v3151 = vld [vmem:[#allocation2 + $0x478] sm:$0xff]
        %v3152 = vld [vmem:[#allocation2 + $0x480] sm:$0xff]
        %v3153 = vld [vmem:[#allocation2 + $0x488] sm:$0xff]
        %v3154 = vld [vmem:[#allocation2 + $0x490] sm:$0xff]
        %v3155 = vld [vmem:[#allocation2 + $0x498] sm:$0xff]
        %v3156 = vld [vmem:[#allocation2 + $0x4a0] sm:$0xff]
        %v3157 = vld [vmem:[#allocation2 + $0x4a8] sm:$0xff]
        %v3158 = vld [vmem:[#allocation2 + $0x4b0] sm:$0xff]
        %v3159 = vld [vmem:[#allocation2 + $0x4b8] sm:$0xff]
        %v3160 = vld [vmem:[#allocation2 + $0x4c0] sm:$0xff]
        %v3161 = vld [vmem:[#allocation2 + $0x4c8] sm:$0xff]
        %v3162 = vld [vmem:[#allocation2 + $0x4d0] sm:$0xff]
        %v3163 = vld [vmem:[#allocation2 + $0x4d8] sm:$0xff]
        %v3164 = vld [vmem:[#allocation2 + $0x4e0] sm:$0xff]
        %v3165 = vld [vmem:[#allocation2 + $0x4e8] sm:$0xff]
        %v3166 = vld [vmem:[#allocation2 + $0x4f0] sm:$0xff]
        %v3167 = vld [vmem:[#allocation2 + $0x4f8] sm:$0xff]
        %v3168 = vld [vmem:[#allocation2 + $0x500] sm:$0xff]
        %v3169 = vld [vmem:[#allocation2 + $0x508] sm:$0xff]
        %v3170 = vld [vmem:[#allocation2 + $0x510] sm:$0xff]
        %v3171 = vld [vmem:[#allocation2 + $0x518] sm:$0xff]
        %v3172 = vld [vmem:[#allocation2 + $0x520] sm:$0xff]
        %v3173 = vld [vmem:[#allocation2 + $0x528] sm:$0xff]
        %v3174 = vld [vmem:[#allocation2 + $0x530] sm:$0xff]
        %v3175 = vld [vmem:[#allocation2 + $0x538] sm:$0xff]
        %v3176 = vld [vmem:[#allocation2 + $0x540] sm:$0xff]
        %v3177 = vld [vmem:[#allocation2 + $0x548] sm:$0xff]
        %v3178 = vld [vmem:[#allocation2 + $0x550] sm:$0xff]
        %v3179 = vld [vmem:[#allocation2 + $0x558] sm:$0xff]
        %v3180 = vld [vmem:[#allocation2 + $0x560] sm:$0xff]
        %v3181 = vld [vmem:[#allocation2 + $0x568] sm:$0xff]
        %v3182 = vld [vmem:[#allocation2 + $0x570] sm:$0xff]
        %v3183 = vld [vmem:[#allocation2 + $0x578] sm:$0xff]
        %v3184 = vld [vmem:[#allocation2 + $0x580] sm:$0xff]
        %v3185 = vld [vmem:[#allocation2 + $0x588] sm:$0xff]
        %v3186 = vld [vmem:[#allocation2 + $0x590] sm:$0xff]
        %v3187 = vld [vmem:[#allocation2 + $0x598] sm:$0xff]
        %v3188 = vld [vmem:[#allocation2 + $0x5a0] sm:$0xff]
        %v3189 = vld [vmem:[#allocation2 + $0x5a8] sm:$0xff]
        %v3190 = vld [vmem:[#allocation2 + $0x5b0] sm:$0xff]
        %v3191 = vld [vmem:[#allocation2 + $0x5b8] sm:$0xff]
        %v3192 = vld [vmem:[#allocation2 + $0x5c0] sm:$0xff]
        %v3193 = vld [vmem:[#allocation2 + $0x5c8] sm:$0xff]
        %v3194 = vld [vmem:[#allocation2 + $0x5d0] sm:$0xff]
        %v3195 = vld [vmem:[#allocation2 + $0x5d8] sm:$0xff]
        %v3196 = vld [vmem:[#allocation2 + $0x5e0] sm:$0xff]
        %v3197 = vld [vmem:[#allocation2 + $0x5e8] sm:$0xff]
        %v3198 = vld [vmem:[#allocation2 + $0x5f0] sm:$0xff]
        %v3199 = vld [vmem:[#allocation2 + $0x5f8] sm:$0xff]
        %v3200 = vld [vmem:[%s6] sm:$0x3]
        %v3202 = vlaneseq
        %v3203 = vshrl.u32 %v3202, 7
        %v3204 = vsub.s32 0, %v3203
        %v3205 = vrot.slane %v3200, %v3204
        %v3206 = vlaneseq
        %v3207 = vshrl.u32 %v3206, 7
        %v3208 = vsub.s32 1, %v3207
        %v3209 = vrot.slane %v3200, %v3208
        %3212 = vmatprep.subr.mxu0 %v3009
        %3213 = vmatpush1.msra.mxu0 %v3008
        %3214 = vmatprep.subr.mxu0 %v3011
        %3215 = vmatpush1.msra.mxu0 %v3010
        %3216 = vmatprep.subr.mxu0 %v3013
        %3217 = vmatpush1.msra.mxu0 %v3012
        %3218 = vmatprep.subr.mxu0 %v3015
        %3219 = vmatpush1.msra.mxu0 %v3014
        %3220 = vmatprep.subr.mxu0 %v3017
        %3221 = vmatpush1.msra.mxu0 %v3016
        %3222 = vmatprep.subr.mxu0 %v3019
        %3223 = vmatpush1.msra.mxu0 %v3018
        %3224 = vmatprep.subr.mxu0 %v3021
        %3225 = vmatpush1.msra.mxu0 %v3020
        %3226 = vmatprep.subr.mxu0 %v3023
        %3227 = vmatpush1.msra.mxu0 %v3022
        %3228 = vmatprep.subr.mxu0 %v3025
        %3229 = vmatpush1.msra.mxu0 %v3024
        %3230 = vmatprep.subr.mxu0 %v3027
        %3231 = vmatpush1.msra.mxu0 %v3026
        %3232 = vmatprep.subr.mxu0 %v3029
        %3233 = vmatpush1.msra.mxu0 %v3028
        %3234 = vmatprep.subr.mxu0 %v3031
        %3235 = vmatpush1.msra.mxu0 %v3030
        %3236 = vmatprep.subr.mxu0 %v3033
        %3237 = vmatpush1.msra.mxu0 %v3032
        %3238 = vmatprep.subr.mxu0 %v3035
        %3239 = vmatpush1.msra.mxu0 %v3034
        %3240 = vmatprep.subr.mxu0 %v3037
        %3241 = vmatpush1.msra.mxu0 %v3036
        %3242 = vmatprep.subr.mxu0 %v3039
        %3243 = vmatpush1.msra.mxu0 %v3038
        %3244 = vmatprep.subr.mxu0 %v3041
        %3245 = vmatpush1.msra.mxu0 %v3040
        %3246 = vmatprep.subr.mxu0 %v3043
        %3247 = vmatpush1.msra.mxu0 %v3042
        %3248 = vmatprep.subr.mxu0 %v3045
        %3249 = vmatpush1.msra.mxu0 %v3044
        %3250 = vmatprep.subr.mxu0 %v3047
        %3251 = vmatpush1.msra.mxu0 %v3046
        %3252 = vmatprep.subr.mxu0 %v3049
        %3253 = vmatpush1.msra.mxu0 %v3048
        %3254 = vmatprep.subr.mxu0 %v3051
        %3255 = vmatpush1.msra.mxu0 %v3050
        %3256 = vmatprep.subr.mxu0 %v3053
        %3257 = vmatpush1.msra.mxu0 %v3052
        %3258 = vmatprep.subr.mxu0 %v3055
        %3259 = vmatpush1.msra.mxu0 %v3054
        %3260 = vmatprep.subr.mxu0 %v3057
        %3261 = vmatpush1.msra.mxu0 %v3056
        %3262 = vmatprep.subr.mxu0 %v3059
        %3263 = vmatpush1.msra.mxu0 %v3058
        %3264 = vmatprep.subr.mxu0 %v3061
        %3265 = vmatpush1.msra.mxu0 %v3060
        %3266 = vmatprep.subr.mxu0 %v3063
        %3267 = vmatpush1.msra.mxu0 %v3062
        %3268 = vmatprep.subr.mxu0 %v3065
        %3269 = vmatpush1.msra.mxu0 %v3064
        %3270 = vmatprep.subr.mxu0 %v3067
        %3271 = vmatpush1.msra.mxu0 %v3066
        %3272 = vmatprep.subr.mxu0 %v3069
        %3273 = vmatpush1.msra.mxu0 %v3068
        %3274 = vmatprep.subr.mxu0 %v3071
        %3275 = vmatpush1.msra.mxu0 %v3070
        %3276 = vmatprep.mubr.f32.mxu0 %v2937
        %3277 = vmatmul.mubr.f32.gmra.mrb[0].mxu0 %v2936
        %v3278 = vpop.f32.mrb[0].mxu0
        %v3279 = vadd.f32 %v3205, %v3278
        %v3280 = vpop.f32.mrb[0].mxu0
        %v3281 = vadd.f32 %v3209, %v3280
        %3282 = vmatprep.mubr.f32.mxu0 %v2939
        %3283 = vmatmul.mubr.f32.gmra.mrb[0].mxu0 %v2938
        %v3284 = vpop.f32.mrb[0].mxu0
        %v3285 = vadd.f32 %v3205, %v3284
        %v3286 = vpop.f32.mrb[0].mxu0
        %v3287 = vadd.f32 %v3209, %v3286
        %3288 = vmatprep.mubr.f32.mxu0 %v2941
        %3289 = vmatmul.mubr.f32.gmra.mrb[0].mxu0 %v2940
        %v3290 = vpop.f32.mrb[0].mxu0
        %v3291 = vadd.f32 %v3205, %v3290
        %v3292 = vpop.f32.mrb[0].mxu0
        %v3293 = vadd.f32 %v3209, %v3292
        %3294 = vmatprep.mubr.f32.mxu0 %v2943
        %3295 = vmatmul.mubr.f32.gmra.mrb[0].mxu0 %v2942
        %v3296 = vpop.f32.mrb[0].mxu0
        %v3297 = vadd.f32 %v3205, %v3296
        %v3298 = vpop.f32.mrb[0].mxu0
        %v3299 = vadd.f32 %v3209, %v3298
        %3300 = vmatprep.mubr.f32.mxu0 %v2945
        %3301 = vmatmul.mubr.f32.gmra.mrb[0].mxu0 %v2944
        %v3302 = vpop.f32.mrb[0].mxu0
        %v3303 = vadd.f32 %v3205, %v3302
        %v3304 = vpop.f32.mrb[0].mxu0
        %v3305 = vadd.f32 %v3209, %v3304
        %3306 = vmatprep.mubr.f32.mxu0 %v2947
        %3307 = vmatmul.mubr.f32.gmra.mrb[0].mxu0 %v2946
        %v3308 = vpop.f32.mrb[0].mxu0
        %v3309 = vadd.f32 %v3205, %v3308
        %v3310 = vpop.f32.mrb[0].mxu0
        %v3311 = vadd.f32 %v3209, %v3310
        %3312 = vmatprep.mubr.f32.mxu0 %v2949
        %3313 = vmatmul.mubr.f32.gmra.mrb[0].mxu0 %v2948
        %v3314 = vpop.f32.mrb[0].mxu0
        %v3315 = vadd.f32 %v3205, %v3314
        %v3316 = vpop.f32.mrb[0].mxu0
        %v3317 = vadd.f32 %v3209, %v3316
        %3318 = vmatprep.mubr.f32.mxu0 %v2951
        %3319 = vmatmul.mubr.f32.gmra.mrb[0].mxu0 %v2950
        %v3320 = vpop.f32.mrb[0].mxu0
        %v3321 = vadd.f32 %v3205, %v3320
        %v3322 = vpop.f32.mrb[0].mxu0
        %v3323 = vadd.f32 %v3209, %v3322
        %3324 = vdwg.mxu0
        %3325 = vmatprep.subr.mxu0 %v3073
        %3326 = vmatpush1.msra.mxu0 %v3072
        %3327 = vmatprep.subr.mxu0 %v3075
        %3328 = vmatpush1.msra.mxu0 %v3074
        %3329 = vmatprep.subr.mxu0 %v3077
        %3330 = vmatpush1.msra.mxu0 %v3076
        %3331 = vmatprep.subr.mxu0 %v3079
        %3332 = vmatpush1.msra.mxu0 %v3078
        %3333 = vmatprep.subr.mxu0 %v3081
        %3334 = vmatpush1.msra.mxu0 %v3080
        %3335 = vmatprep.subr.mxu0 %v3083
        %3336 = vmatpush1.msra.mxu0 %v3082
        %3337 = vmatprep.subr.mxu0 %v3085
        %3338 = vmatpush1.msra.mxu0 %v3084
        %3339 = vmatprep.subr.mxu0 %v3087
        %3340 = vmatpush1.msra.mxu0 %v3086
        %3341 = vmatprep.subr.mxu0 %v3089
        %3342 = vmatpush1.msra.mxu0 %v3088
        %3343 = vmatprep.subr.mxu0 %v3091
        %3344 = vmatpush1.msra.mxu0 %v3090
        %3345 = vmatprep.subr.mxu0 %v3093
        %3346 = vmatpush1.msra.mxu0 %v3092
        %3347 = vmatprep.subr.mxu0 %v3095
        %3348 = vmatpush1.msra.mxu0 %v3094
        %3349 = vmatprep.subr.mxu0 %v3097
        %3350 = vmatpush1.msra.mxu0 %v3096
        %3351 = vmatprep.subr.mxu0 %v3099
        %3352 = vmatpush1.msra.mxu0 %v3098
        %3353 = vmatprep.subr.mxu0 %v3101
        %3354 = vmatpush1.msra.mxu0 %v3100
        %3355 = vmatprep.subr.mxu0 %v3103
        %3356 = vmatpush1.msra.mxu0 %v3102
        %3357 = vmatprep.subr.mxu0 %v3105
        %3358 = vmatpush1.msra.mxu0 %v3104
        %3359 = vmatprep.subr.mxu0 %v3107
        %3360 = vmatpush1.msra.mxu0 %v3106
        %3361 = vmatprep.subr.mxu0 %v3109
        %3362 = vmatpush1.msra.mxu0 %v3108
        %3363 = vmatprep.subr.mxu0 %v3111
        %3364 = vmatpush1.msra.mxu0 %v3110
        %3365 = vmatprep.subr.mxu0 %v3113
        %3366 = vmatpush1.msra.mxu0 %v3112
        %3367 = vmatprep.subr.mxu0 %v3115
        %3368 = vmatpush1.msra.mxu0 %v3114
        %3369 = vmatprep.subr.mxu0 %v3117
        %3370 = vmatpush1.msra.mxu0 %v3116
        %3371 = vmatprep.subr.mxu0 %v3119
        %3372 = vmatpush1.msra.mxu0 %v3118
        %3373 = vmatprep.subr.mxu0 %v3121
        %3374 = vmatpush1.msra.mxu0 %v3120
        %3375 = vmatprep.subr.mxu0 %v3123
        %3376 = vmatpush1.msra.mxu0 %v3122
        %3377 = vmatprep.subr.mxu0 %v3125
        %3378 = vmatpush1.msra.mxu0 %v3124
        %3379 = vmatprep.subr.mxu0 %v3127
        %3380 = vmatpush1.msra.mxu0 %v3126
        %3381 = vmatprep.subr.mxu0 %v3129
        %3382 = vmatpush1.msra.mxu0 %v3128
        %3383 = vmatprep.subr.mxu0 %v3131
        %3384 = vmatpush1.msra.mxu0 %v3130
        %3385 = vmatprep.subr.mxu0 %v3133
        %3386 = vmatpush1.msra.mxu0 %v3132
        %3387 = vmatprep.subr.mxu0 %v3135
        %3388 = vmatpush1.msra.mxu0 %v3134
        %3389 = vmatprep.mubr.f32.mxu0 %v2860
        %3390 = vmatmul.mubr.f32.gmra.mrb[0].mxu0 %v2858
        %v3391 = vpop.f32.mrb[0].mxu0
        %v3392 = vadd.f32 %v3279, %v3391
        %v3393 = vpop.f32.mrb[0].mxu0
        %v3394 = vadd.f32 %v3281, %v3393
        %3395 = vmatprep.mubr.f32.mxu0 %v2866
        %3396 = vmatmul.mubr.f32.gmra.mrb[0].mxu0 %v2864
        %v3397 = vpop.f32.mrb[0].mxu0
        %v3398 = vadd.f32 %v3285, %v3397
        %v3399 = vpop.f32.mrb[0].mxu0
        %v3400 = vadd.f32 %v3287, %v3399
        %3401 = vmatprep.mubr.f32.mxu0 %v2872
        %3402 = vmatmul.mubr.f32.gmra.mrb[0].mxu0 %v2870
        %v3403 = vpop.f32.mrb[0].mxu0
        %v3404 = vadd.f32 %v3291, %v3403
        %v3405 = vpop.f32.mrb[0].mxu0
        %v3406 = vadd.f32 %v3293, %v3405
        %3407 = vmatprep.mubr.f32.mxu0 %v2878
        %3408 = vmatmul.mubr.f32.gmra.mrb[0].mxu0 %v2876
        %v3409 = vpop.f32.mrb[0].mxu0
        %v3410 = vadd.f32 %v3297, %v3409
        %v3411 = vpop.f32.mrb[0].mxu0
        %v3412 = vadd.f32 %v3299, %v3411
        %3413 = vmatprep.mubr.f32.mxu0 %v2884
        %3414 = vmatmul.mubr.f32.gmra.mrb[0].mxu0 %v2882
        %v3415 = vpop.f32.mrb[0].mxu0
        %v3416 = vadd.f32 %v3303, %v3415
        %v3417 = vpop.f32.mrb[0].mxu0
        %v3418 = vadd.f32 %v3305, %v3417
        %3419 = vmatprep.mubr.f32.mxu0 %v2890
        %3420 = vmatmul.mubr.f32.gmra.mrb[0].mxu0 %v2888
        %v3421 = vpop.f32.mrb[0].mxu0
        %v3422 = vadd.f32 %v3309, %v3421
        %v3423 = vpop.f32.mrb[0].mxu0
        %v3424 = vadd.f32 %v3311, %v3423
        %3425 = vmatprep.mubr.f32.mxu0 %v2896
        %3426 = vmatmul.mubr.f32.gmra.mrb[0].mxu0 %v2894
        %v3427 = vpop.f32.mrb[0].mxu0
        %v3428 = vadd.f32 %v3315, %v3427
        %v3429 = vpop.f32.mrb[0].mxu0
        %v3430 = vadd.f32 %v3317, %v3429
        %3431 = vmatprep.mubr.f32.mxu0 %v2902
        %3432 = vmatmul.mubr.f32.gmra.mrb[0].mxu0 %v2900
        %v3433 = vpop.f32.mrb[0].mxu0
        %v3434 = vadd.f32 %v3321, %v3433
        %v3435 = vpop.f32.mrb[0].mxu0
        %v3436 = vadd.f32 %v3323, %v3435
        %3437 = vdwg.mxu0
        %3438 = vmatprep.subr.mxu0 %v3137
        %3439 = vmatpush1.msra.mxu0 %v3136
        %3440 = vmatprep.subr.mxu0 %v3139
        %3441 = vmatpush1.msra.mxu0 %v3138
        %3442 = vmatprep.subr.mxu0 %v3141
        %3443 = vmatpush1.msra.mxu0 %v3140
        %3444 = vmatprep.subr.mxu0 %v3143
        %3445 = vmatpush1.msra.mxu0 %v3142
        %3446 = vmatprep.subr.mxu0 %v3145
        %3447 = vmatpush1.msra.mxu0 %v3144
        %3448 = vmatprep.subr.mxu0 %v3147
        %3449 = vmatpush1.msra.mxu0 %v3146
        %3450 = vmatprep.subr.mxu0 %v3149
        %3451 = vmatpush1.msra.mxu0 %v3148
        %3452 = vmatprep.subr.mxu0 %v3151
        %3453 = vmatpush1.msra.mxu0 %v3150
        %3454 = vmatprep.subr.mxu0 %v3153
        %3455 = vmatpush1.msra.mxu0 %v3152
        %3456 = vmatprep.subr.mxu0 %v3155
        %3457 = vmatpush1.msra.mxu0 %v3154
        %3458 = vmatprep.subr.mxu0 %v3157
        %3459 = vmatpush1.msra.mxu0 %v3156
        %3460 = vmatprep.subr.mxu0 %v3159
        %3461 = vmatpush1.msra.mxu0 %v3158
        %3462 = vmatprep.subr.mxu0 %v3161
        %3463 = vmatpush1.msra.mxu0 %v3160
        %3464 = vmatprep.subr.mxu0 %v3163
        %3465 = vmatpush1.msra.mxu0 %v3162
        %3466 = vmatprep.subr.mxu0 %v3165
        %3467 = vmatpush1.msra.mxu0 %v3164
        %3468 = vmatprep.subr.mxu0 %v3167
        %3469 = vmatpush1.msra.mxu0 %v3166
        %3470 = vmatprep.subr.mxu0 %v3169
        %3471 = vmatpush1.msra.mxu0 %v3168
        %3472 = vmatprep.subr.mxu0 %v3171
        %3473 = vmatpush1.msra.mxu0 %v3170
        %3474 = vmatprep.subr.mxu0 %v3173
        %3475 = vmatpush1.msra.mxu0 %v3172
        %3476 = vmatprep.subr.mxu0 %v3175
        %3477 = vmatpush1.msra.mxu0 %v3174
        %3478 = vmatprep.subr.mxu0 %v3177
        %3479 = vmatpush1.msra.mxu0 %v3176
        %3480 = vmatprep.subr.mxu0 %v3179
        %3481 = vmatpush1.msra.mxu0 %v3178
        %3482 = vmatprep.subr.mxu0 %v3181
        %3483 = vmatpush1.msra.mxu0 %v3180
        %3484 = vmatprep.subr.mxu0 %v3183
        %3485 = vmatpush1.msra.mxu0 %v3182
        %3486 = vmatprep.subr.mxu0 %v3185
        %3487 = vmatpush1.msra.mxu0 %v3184
        %3488 = vmatprep.subr.mxu0 %v3187
        %3489 = vmatpush1.msra.mxu0 %v3186
        %3490 = vmatprep.subr.mxu0 %v3189
        %3491 = vmatpush1.msra.mxu0 %v3188
        %3492 = vmatprep.subr.mxu0 %v3191
        %3493 = vmatpush1.msra.mxu0 %v3190
        %3494 = vmatprep.subr.mxu0 %v3193
        %3495 = vmatpush1.msra.mxu0 %v3192
        %3496 = vmatprep.subr.mxu0 %v3195
        %3497 = vmatpush1.msra.mxu0 %v3194
        %3498 = vmatprep.subr.mxu0 %v3197
        %3499 = vmatpush1.msra.mxu0 %v3196
        %3500 = vmatprep.subr.mxu0 %v3199
        %3501 = vmatpush1.msra.mxu0 %v3198
        %3502 = vmatprep.mubr.f32.mxu0 %v2993
        %3503 = vmatmul.mubr.f32.gmra.mrb[0].mxu0 %v2992
        %v3504 = vpop.f32.mrb[0].mxu0
        %v3505 = vadd.f32 %v3392, %v3504
        %v3506 = vpop.f32.mrb[0].mxu0
        %v3507 = vadd.f32 %v3394, %v3506
        %3508 = vmatprep.mubr.f32.mxu0 %v2995
        %3509 = vmatmul.mubr.f32.gmra.mrb[0].mxu0 %v2994
        %v3510 = vpop.f32.mrb[0].mxu0
        %v3511 = vadd.f32 %v3398, %v3510
        %v3512 = vpop.f32.mrb[0].mxu0
        %v3513 = vadd.f32 %v3400, %v3512
        %3514 = vmatprep.mubr.f32.mxu0 %v2997
        %3515 = vmatmul.mubr.f32.gmra.mrb[0].mxu0 %v2996
        %v3516 = vpop.f32.mrb[0].mxu0
        %v3517 = vadd.f32 %v3404, %v3516
        %v3518 = vpop.f32.mrb[0].mxu0
        %v3519 = vadd.f32 %v3406, %v3518
        %3520 = vmatprep.mubr.f32.mxu0 %v2999
        %3521 = vmatmul.mubr.f32.gmra.mrb[0].mxu0 %v2998
        %v3522 = vpop.f32.mrb[0].mxu0
        %v3523 = vadd.f32 %v3410, %v3522
        %v3524 = vpop.f32.mrb[0].mxu0
        %v3525 = vadd.f32 %v3412, %v3524
        %3526 = vmatprep.mubr.f32.mxu0 %v3001
        %3527 = vmatmul.mubr.f32.gmra.mrb[0].mxu0 %v3000
        %v3528 = vpop.f32.mrb[0].mxu0
        %v3529 = vadd.f32 %v3416, %v3528
        %v3530 = vpop.f32.mrb[0].mxu0
        %v3531 = vadd.f32 %v3418, %v3530
        %3532 = vmatprep.mubr.f32.mxu0 %v3003
        %3533 = vmatmul.mubr.f32.gmra.mrb[0].mxu0 %v3002
        %v3534 = vpop.f32.mrb[0].mxu0
        %v3535 = vadd.f32 %v3422, %v3534
        %v3536 = vpop.f32.mrb[0].mxu0
        %v3537 = vadd.f32 %v3424, %v3536
        %3538 = vmatprep.mubr.f32.mxu0 %v3005
        %3539 = vmatmul.mubr.f32.gmra.mrb[0].mxu0 %v3004
        %v3540 = vpop.f32.mrb[0].mxu0
        %v3541 = vadd.f32 %v3428, %v3540
        %v3542 = vpop.f32.mrb[0].mxu0
        %v3543 = vadd.f32 %v3430, %v3542
        %3544 = vmatprep.mubr.f32.mxu0 %v3007
        %3545 = vmatmul.mubr.f32.gmra.mrb[0].mxu0 %v3006
        %v3546 = vpop.f32.mrb[0].mxu0
        %v3547 = vadd.f32 %v3434, %v3546
        %v3548 = vpop.f32.mrb[0].mxu0
        %v3549 = vadd.f32 %v3436, %v3548
        %3550 = vdwg.mxu0
        %v3551 = vmax.f32 %v3505, 0.0
        %v3552 = vmax.f32 %v3507, 0.0
        %v3553 = vmax.f32 %v3511, 0.0
        %v3554 = vmax.f32 %v3513, 0.0
        %v3555 = vmax.f32 %v3517, 0.0
        %v3556 = vmax.f32 %v3519, 0.0
        %v3557 = vmax.f32 %v3523, 0.0
        %v3558 = vmax.f32 %v3525, 0.0
        %v3559 = vmax.f32 %v3529, 0.0
        %v3560 = vmax.f32 %v3531, 0.0
        %v3561 = vmax.f32 %v3535, 0.0
        %v3562 = vmax.f32 %v3537, 0.0
        %v3563 = vmax.f32 %v3541, 0.0
        %v3564 = vmax.f32 %v3543, 0.0
        %v3565 = vmax.f32 %v3547, 0.0
        %v3566 = vmax.f32 %v3549, 0.0
        %v3567 = vrot.slane %v3551, 1
        %v3568 = vrot.slane %v3552, 1
        %v3569 = vrot.slane %v3553, 1
        %v3570 = vrot.slane %v3554, 1
        %v3571 = vrot.slane %v3555, 1
        %v3572 = vrot.slane %v3556, 1
        %v3573 = vrot.slane %v3557, 1
        %v3574 = vrot.slane %v3558, 1
        %v3575 = vrot.slane %v3559, 1
        %v3576 = vrot.slane %v3560, 1
        %v3577 = vrot.slane %v3561, 1
        %v3578 = vrot.slane %v3562, 1
        %v3579 = vrot.slane %v3563, 1
        %v3580 = vrot.slane %v3564, 1
        %v3581 = vrot.slane %v3565, 1
        %v3582 = vrot.slane %v3566, 1
        %v3583 = vsel %vm1086, %v3579, %v3581
        %v3584 = vsel %vm1086, %v3580, %v3582
        %v3585 = vsel %vm1086, %v3577, %v3579
        %v3586 = vsel %vm1086, %v3578, %v3580
        %v3587 = vsel %vm1086, %v3575, %v3577
        %v3588 = vsel %vm1086, %v3576, %v3578
        %v3589 = vsel %vm1086, %v3573, %v3575
        %v3590 = vsel %vm1086, %v3574, %v3576
        %v3591 = vsel %vm1086, %v3571, %v3573
        %v3592 = vsel %vm1086, %v3572, %v3574
        %v3593 = vsel %vm1086, %v3569, %v3571
        %v3594 = vsel %vm1086, %v3570, %v3572
        %v3595 = vsel %vm1086, %v3567, %v3569
        %v3596 = vsel %vm1086, %v3568, %v3570
        %v3597 = vsel %vm1086, %v3581, %v3567
        %v3598 = vsel %vm1086, %v3582, %v3568
        %v3599 = vmax.f32 %v3551, %v3595
        %v3600 = vmax.f32 %v3552, %v3596
        %v3601 = vmax.f32 %v3553, %v3593
        %v3602 = vmax.f32 %v3554, %v3594
        %v3603 = vmax.f32 %v3555, %v3591
        %v3604 = vmax.f32 %v3556, %v3592
        %v3605 = vmax.f32 %v3557, %v3589
        %v3606 = vmax.f32 %v3558, %v3590
        %v3607 = vmax.f32 %v3559, %v3587
        %v3608 = vmax.f32 %v3560, %v3588
        %v3609 = vmax.f32 %v3561, %v3585
        %v3610 = vmax.f32 %v3562, %v3586
        %v3611 = vmax.f32 %v3563, %v3583
        %v3612 = vmax.f32 %v3564, %v3584
        %v3613 = vmax.f32 %v3565, %v3597
        %v3614 = vmax.f32 %v3566, %v3598
        %v3615 = vld [vmem:[#allocation10] sm:$0xff]
        %v3616 = vld [vmem:[#allocation10 + $0x8] sm:$0xff]
        %v3617 = vld [vmem:[#allocation10 + $0x10] sm:$0xff]
        %v3618 = vld [vmem:[#allocation10 + $0x18] sm:$0xff]
        %vm3619 = vcmask 523264
        %v3621 = vsel %vm3619, %v3615, 0
        %v3624 = vsel %vm3619, %v3616, 0
        %v3627 = vsel %vm3619, %v3617, 0
        %v3630 = vsel %vm3619, %v3618, 0
        %3632 = vmatprep.subr.mxu0 %v3600
        %3633 = vmatpush1.msra.mxu0 %v3599
        %3634 = vmatprep.subr.mxu0 %v3602
        %3635 = vmatpush1.msra.mxu0 %v3601
        %3636 = vmatprep.subr.mxu0 %v3604
        %3637 = vmatpush1.msra.mxu0 %v3603
        %3638 = vmatprep.subr.mxu0 %v3606
        %3639 = vmatpush1.msra.mxu0 %v3605
        %3640 = vmatprep.subr.mxu0 %v3608
        %3641 = vmatpush1.msra.mxu0 %v3607
        %3642 = vmatprep.subr.mxu0 %v3610
        %3643 = vmatpush1.msra.mxu0 %v3609
        %3644 = vmatprep.subr.mxu0 %v3612
        %3645 = vmatpush1.msra.mxu0 %v3611
        %3646 = vmatprep.subr.mxu0 %v3614
        %3647 = vmatpush1.msra.mxu0 %v3613
        %3648 = vmatprep.subr.mxu0 0.0
        %3649 = vmatpush1.msra.mxu0 0.0
        %3650 = vmatprep.subr.mxu0 0.0
        %3651 = vmatpush1.msra.mxu0 0.0
        %3652 = vmatprep.subr.mxu0 0.0
        %3653 = vmatpush1.msra.mxu0 0.0
        %3654 = vmatprep.subr.mxu0 0.0
        %3655 = vmatpush1.msra.mxu0 0.0
        %3656 = vmatprep.subr.mxu0 0.0
        %3657 = vmatpush1.msra.mxu0 0.0
        %3658 = vmatprep.subr.mxu0 0.0
        %3659 = vmatpush1.msra.mxu0 0.0
        %3660 = vmatprep.subr.mxu0 0.0
        %3661 = vmatpush1.msra.mxu0 0.0
        %3662 = vmatprep.subr.mxu0 0.0
        %3663 = vmatpush1.msra.mxu0 0.0
        %3664 = vmatprep.subr.mxu0 0.0
        %3665 = vmatpush1.msra.mxu0 0.0
        %3666 = vmatprep.subr.mxu0 0.0
        %3667 = vmatpush1.msra.mxu0 0.0
        %3668 = vmatprep.subr.mxu0 0.0
        %3669 = vmatpush1.msra.mxu0 0.0
        %3670 = vmatprep.subr.mxu0 0.0
        %3671 = vmatpush1.msra.mxu0 0.0
        %3672 = vmatprep.subr.mxu0 0.0
        %3673 = vmatpush1.msra.mxu0 0.0
        %3674 = vmatprep.subr.mxu0 0.0
        %3675 = vmatpush1.msra.mxu0 0.0
        %3676 = vmatprep.subr.mxu0 0.0
        %3677 = vmatpush1.msra.mxu0 0.0
        %3678 = vmatprep.subr.mxu0 0.0
        %3679 = vmatpush1.msra.mxu0 0.0
        %3680 = vmatprep.subr.mxu0 0.0
        %3681 = vmatpush1.msra.mxu0 0.0
        %3682 = vmatprep.subr.mxu0 0.0
        %3683 = vmatpush1.msra.mxu0 0.0
        %3684 = vmatprep.subr.mxu0 0.0
        %3685 = vmatpush1.msra.mxu0 0.0
        %3686 = vmatprep.subr.mxu0 0.0
        %3687 = vmatpush1.msra.mxu0 0.0
        %3688 = vmatprep.subr.mxu0 0.0
        %3689 = vmatpush1.msra.mxu0 0.0
        %3690 = vmatprep.subr.mxu0 0.0
        %3691 = vmatpush1.msra.mxu0 0.0
        %3692 = vmatprep.subr.mxu0 0.0
        %3693 = vmatpush1.msra.mxu0 0.0
        %3694 = vmatprep.subr.mxu0 0.0
        %3695 = vmatpush1.msra.mxu0 0.0
        %3696 = vmatprep.mubr.f32.mxu0 0.0
        %3697 = vmatmul.mubr.f32.gmra.mrb[0].mxu0 %v3621
        %v3698 = vpop.f32.mrb[0].mxu0
        %v3699 = vadd.f32 0.0, %v3698
        %v3700 = vpop.f32.mrb[0].mxu0
        %v3701 = vadd.f32 0.0, %v3700
        %3702 = vmatprep.mubr.f32.mxu0 0.0
        %3703 = vmatmul.mubr.f32.gmra.mrb[0].mxu0 %v3624
        %v3704 = vpop.f32.mrb[0].mxu0
        %v3705 = vadd.f32 0.0, %v3704
        %v3706 = vpop.f32.mrb[0].mxu0
        %v3707 = vadd.f32 0.0, %v3706
        %3708 = vmatprep.mubr.f32.mxu0 0.0
        %3709 = vmatmul.mubr.f32.gmra.mrb[0].mxu0 %v3627
        %v3710 = vpop.f32.mrb[0].mxu0
        %v3711 = vadd.f32 0.0, %v3710
        %v3712 = vpop.f32.mrb[0].mxu0
        %v3713 = vadd.f32 0.0, %v3712
        %3714 = vmatprep.mubr.f32.mxu0 0.0
        %3715 = vmatmul.mubr.f32.gmra.mrb[0].mxu0 %v3630
        %v3716 = vpop.f32.mrb[0].mxu0
        %v3717 = vadd.f32 0.0, %v3716
        %v3718 = vpop.f32.mrb[0].mxu0
        %v3719 = vadd.f32 0.0, %v3718
        %3720 = vdwg.mxu0
        %3721 = vrot.lane.b32.xlu0 %v3699, 112
        %v3722 = vpop.permute.xlu0 %3721
        %3723 = vrot.lane.b32.xlu0 %v3705, 112
        %v3724 = vpop.permute.xlu0 %3723
        %3725 = vrot.lane.b32.xlu0 %v3711, 112
        %v3726 = vpop.permute.xlu0 %3725
        %3727 = vrot.lane.b32.xlu0 %v3717, 112
        %v3728 = vpop.permute.xlu0 %3727
        %3729 = vrot.lane.b32.xlu0 %v3701, 112
        %v3730 = vpop.permute.xlu0 %3729
        %3731 = vrot.lane.b32.xlu0 %v3707, 112
        %v3732 = vpop.permute.xlu0 %3731
        %3733 = vrot.lane.b32.xlu0 %v3713, 112
        %v3734 = vpop.permute.xlu0 %3733
        %3735 = vrot.lane.b32.xlu0 %v3719, 112
        %v3736 = vpop.permute.xlu0 %3735
        %v3737 = vlaneseq
        %v3738 = vand.u32 %v3737, 127
        %vm3739 = vcmp.lt.s32.totalorder %v3738, 112
        %v3740 = vsel %vm3739, %v3722, %v3730
        %v3741 = vsel %vm3739, %v3724, %v3732
        %v3742 = vsel %vm3739, %v3726, %v3734
        %v3743 = vsel %vm3739, %v3728, %v3736
        %v3744 = vsel %vm3739, %v3730, %v3722
        %v3745 = vsel %vm3739, %v3732, %v3724
        %v3746 = vsel %vm3739, %v3734, %v3726
        %v3747 = vsel %vm3739, %v3736, %v3728
        %v3748 = vmax.f32 %v3699, %v3740
        %v3749 = vmax.f32 %v3701, %v3744
        %v3750 = vmax.f32 %v3705, %v3741
        %v3751 = vmax.f32 %v3707, %v3745
        %v3752 = vmax.f32 %v3711, %v3742
        %v3753 = vmax.f32 %v3713, %v3746
        %v3754 = vmax.f32 %v3717, %v3743
        %v3755 = vmax.f32 %v3719, %v3747
        %v3756 = vrot.slane %v3748, 7
        %v3757 = vrot.slane %v3749, 7
        %v3758 = vrot.slane %v3750, 7
        %v3759 = vrot.slane %v3751, 7
        %v3760 = vrot.slane %v3752, 7
        %v3761 = vrot.slane %v3753, 7
        %v3762 = vrot.slane %v3754, 7
        %v3763 = vrot.slane %v3755, 7
        %v3764 = vsel %vm957, %v3760, %v3762
        %v3765 = vsel %vm957, %v3761, %v3763
        %v3766 = vsel %vm957, %v3758, %v3760
        %v3767 = vsel %vm957, %v3759, %v3761
        %v3768 = vsel %vm957, %v3756, %v3758
        %v3769 = vsel %vm957, %v3757, %v3759
        %v3770 = vsel %vm957, %v3762, %v3756
        %v3771 = vsel %vm957, %v3763, %v3757
        %v3772 = vsel %vm893, 0.0, %v3770
        %v3773 = vsel %vm893, 0.0, %v3771
        %v3774 = vsel %vm894, 0.0, %v3768
        %v3775 = vsel %vm894, 0.0, %v3769
        %v3776 = vsel %vm895, 0.0, %v3766
        %v3777 = vsel %vm895, 0.0, %v3767
        %v3778 = vsel %vm896, 0.0, %v3764
        %v3779 = vsel %vm896, 0.0, %v3765
        %vm3780 = vcmp.eq.s32.totalorder %v861, 31
        %vm3781 = vcmp.eq.s32.totalorder %v862, 31
        %vm3782 = vcmp.eq.s32.totalorder %v863, 31
        %vm3783 = vcmp.eq.s32.totalorder %v864, 31
        %v3784 = vrot.slane %v3748, 1
        %v3785 = vrot.slane %v3749, 1
        %v3786 = vrot.slane %v3750, 1
        %v3787 = vrot.slane %v3751, 1
        %v3788 = vrot.slane %v3752, 1
        %v3789 = vrot.slane %v3753, 1
        %v3790 = vrot.slane %v3754, 1
        %v3791 = vrot.slane %v3755, 1
        %v3792 = vsel %vm1086, %v3788, %v3790
        %v3793 = vsel %vm1086, %v3789, %v3791
        %v3794 = vsel %vm1086, %v3786, %v3788
        %v3795 = vsel %vm1086, %v3787, %v3789
        %v3796 = vsel %vm1086, %v3784, %v3786
        %v3797 = vsel %vm1086, %v3785, %v3787
        %v3798 = vsel %vm1086, %v3790, %v3784
        %v3799 = vsel %vm1086, %v3791, %v3785
        %v3800 = vsel %vm3780, 0.0, %v3796
        %v3801 = vsel %vm3780, 0.0, %v3797
        %v3802 = vsel %vm3781, 0.0, %v3794
        %v3803 = vsel %vm3781, 0.0, %v3795
        %v3804 = vsel %vm3782, 0.0, %v3792
        %v3805 = vsel %vm3782, 0.0, %v3793
        %v3806 = vsel %vm3783, 0.0, %v3798
        %v3807 = vsel %vm3783, 0.0, %v3799
        %v3808 = vld [vmem:[#allocation5] sm:$0xff]
        %v3809 = vld [vmem:[#allocation5 + $0x8] sm:$0xff]
        %v3810 = vld [vmem:[#allocation5 + $0x10] sm:$0xff]
        %v3811 = vld [vmem:[#allocation5 + $0x18] sm:$0xff]
        %v3812 = vld [vmem:[#allocation5 + $0x20] sm:$0xff]
        %v3813 = vld [vmem:[#allocation5 + $0x28] sm:$0xff]
        %v3814 = vld [vmem:[#allocation5 + $0x30] sm:$0xff]
        %v3815 = vld [vmem:[#allocation5 + $0x38] sm:$0xff]
        %v3816 = vld [vmem:[#allocation5 + $0x40] sm:$0xff]
        %v3817 = vld [vmem:[#allocation5 + $0x48] sm:$0xff]
        %v3818 = vld [vmem:[#allocation5 + $0x50] sm:$0xff]
        %v3819 = vld [vmem:[#allocation5 + $0x58] sm:$0xff]
        %v3820 = vld [vmem:[#allocation5 + $0x60] sm:$0xff]
        %v3821 = vld [vmem:[#allocation5 + $0x68] sm:$0xff]
        %v3822 = vld [vmem:[#allocation5 + $0x70] sm:$0xff]
        %v3823 = vld [vmem:[#allocation5 + $0x78] sm:$0xff]
        %v3824 = vld [vmem:[#allocation5 + $0x80] sm:$0xff]
        %v3825 = vld [vmem:[#allocation5 + $0x88] sm:$0xff]
        %v3826 = vld [vmem:[#allocation5 + $0x90] sm:$0xff]
        %v3827 = vld [vmem:[#allocation5 + $0x98] sm:$0xff]
        %v3828 = vld [vmem:[#allocation5 + $0xa0] sm:$0xff]
        %v3829 = vld [vmem:[#allocation5 + $0xa8] sm:$0xff]
        %v3830 = vld [vmem:[#allocation5 + $0xb0] sm:$0xff]
        %v3831 = vld [vmem:[#allocation5 + $0xb8] sm:$0xff]
        %v3832 = vld [vmem:[#allocation5 + $0xc0] sm:$0xff]
        %v3833 = vld [vmem:[#allocation5 + $0xc8] sm:$0xff]
        %v3834 = vld [vmem:[#allocation5 + $0xd0] sm:$0xff]
        %v3835 = vld [vmem:[#allocation5 + $0xd8] sm:$0xff]
        %v3836 = vld [vmem:[#allocation5 + $0xe0] sm:$0xff]
        %v3837 = vld [vmem:[#allocation5 + $0xe8] sm:$0xff]
        %v3838 = vld [vmem:[#allocation5 + $0xf0] sm:$0xff]
        %v3839 = vld [vmem:[#allocation5 + $0xf8] sm:$0xff]
        %v3840 = vld [vmem:[#allocation5 + $0x100] sm:$0xff]
        %v3841 = vld [vmem:[#allocation5 + $0x108] sm:$0xff]
        %v3842 = vld [vmem:[#allocation5 + $0x110] sm:$0xff]
        %v3843 = vld [vmem:[#allocation5 + $0x118] sm:$0xff]
        %v3844 = vld [vmem:[#allocation5 + $0x120] sm:$0xff]
        %v3845 = vld [vmem:[#allocation5 + $0x128] sm:$0xff]
        %v3846 = vld [vmem:[#allocation5 + $0x130] sm:$0xff]
        %v3847 = vld [vmem:[#allocation5 + $0x138] sm:$0xff]
        %v3848 = vld [vmem:[#allocation5 + $0x140] sm:$0xff]
        %v3849 = vld [vmem:[#allocation5 + $0x148] sm:$0xff]
        %v3850 = vld [vmem:[#allocation5 + $0x150] sm:$0xff]
        %v3851 = vld [vmem:[#allocation5 + $0x158] sm:$0xff]
        %v3852 = vld [vmem:[#allocation5 + $0x160] sm:$0xff]
        %v3853 = vld [vmem:[#allocation5 + $0x168] sm:$0xff]
        %v3854 = vld [vmem:[#allocation5 + $0x170] sm:$0xff]
        %v3855 = vld [vmem:[#allocation5 + $0x178] sm:$0xff]
        %v3856 = vld [vmem:[#allocation5 + $0x180] sm:$0xff]
        %v3857 = vld [vmem:[#allocation5 + $0x188] sm:$0xff]
        %v3858 = vld [vmem:[#allocation5 + $0x190] sm:$0xff]
        %v3859 = vld [vmem:[#allocation5 + $0x198] sm:$0xff]
        %v3860 = vld [vmem:[#allocation5 + $0x1a0] sm:$0xff]
        %v3861 = vld [vmem:[#allocation5 + $0x1a8] sm:$0xff]
        %v3862 = vld [vmem:[#allocation5 + $0x1b0] sm:$0xff]
        %v3863 = vld [vmem:[#allocation5 + $0x1b8] sm:$0xff]
        %v3864 = vld [vmem:[#allocation5 + $0x1c0] sm:$0xff]
        %v3865 = vld [vmem:[#allocation5 + $0x1c8] sm:$0xff]
        %v3866 = vld [vmem:[#allocation5 + $0x1d0] sm:$0xff]
        %v3867 = vld [vmem:[#allocation5 + $0x1d8] sm:$0xff]
        %v3868 = vld [vmem:[#allocation5 + $0x1e0] sm:$0xff]
        %v3869 = vld [vmem:[#allocation5 + $0x1e8] sm:$0xff]
        %v3870 = vld [vmem:[#allocation5 + $0x1f0] sm:$0xff]
        %v3871 = vld [vmem:[#allocation5 + $0x1f8] sm:$0xff]
        %v3872 = vld [vmem:[#allocation5 + $0x200] sm:$0xff]
        %v3873 = vld [vmem:[#allocation5 + $0x208] sm:$0xff]
        %v3874 = vld [vmem:[#allocation5 + $0x210] sm:$0xff]
        %v3875 = vld [vmem:[#allocation5 + $0x218] sm:$0xff]
        %v3876 = vld [vmem:[#allocation5 + $0x220] sm:$0xff]
        %v3877 = vld [vmem:[#allocation5 + $0x228] sm:$0xff]
        %v3878 = vld [vmem:[#allocation5 + $0x230] sm:$0xff]
        %v3879 = vld [vmem:[#allocation5 + $0x238] sm:$0xff]
        %v3880 = vld [vmem:[#allocation5 + $0x240] sm:$0xff]
        %v3881 = vld [vmem:[#allocation5 + $0x248] sm:$0xff]
        %v3882 = vld [vmem:[#allocation5 + $0x250] sm:$0xff]
        %v3883 = vld [vmem:[#allocation5 + $0x258] sm:$0xff]
        %v3884 = vld [vmem:[#allocation5 + $0x260] sm:$0xff]
        %v3885 = vld [vmem:[#allocation5 + $0x268] sm:$0xff]
        %v3886 = vld [vmem:[#allocation5 + $0x270] sm:$0xff]
        %v3887 = vld [vmem:[#allocation5 + $0x278] sm:$0xff]
        %v3888 = vld [vmem:[#allocation5 + $0x280] sm:$0xff]
        %v3889 = vld [vmem:[#allocation5 + $0x288] sm:$0xff]
        %v3890 = vld [vmem:[#allocation5 + $0x290] sm:$0xff]
        %v3891 = vld [vmem:[#allocation5 + $0x298] sm:$0xff]
        %v3892 = vld [vmem:[#allocation5 + $0x2a0] sm:$0xff]
        %v3893 = vld [vmem:[#allocation5 + $0x2a8] sm:$0xff]
        %v3894 = vld [vmem:[#allocation5 + $0x2b0] sm:$0xff]
        %v3895 = vld [vmem:[#allocation5 + $0x2b8] sm:$0xff]
        %v3896 = vld [vmem:[#allocation5 + $0x2c0] sm:$0xff]
        %v3897 = vld [vmem:[#allocation5 + $0x2c8] sm:$0xff]
        %v3898 = vld [vmem:[#allocation5 + $0x2d0] sm:$0xff]
        %v3899 = vld [vmem:[#allocation5 + $0x2d8] sm:$0xff]
        %v3900 = vld [vmem:[#allocation5 + $0x2e0] sm:$0xff]
        %v3901 = vld [vmem:[#allocation5 + $0x2e8] sm:$0xff]
        %v3902 = vld [vmem:[#allocation5 + $0x2f0] sm:$0xff]
        %v3903 = vld [vmem:[#allocation5 + $0x2f8] sm:$0xff]
        %v3904 = vld [vmem:[#allocation5 + $0x300] sm:$0xff]
        %v3905 = vld [vmem:[#allocation5 + $0x308] sm:$0xff]
        %v3906 = vld [vmem:[#allocation5 + $0x310] sm:$0xff]
        %v3907 = vld [vmem:[#allocation5 + $0x318] sm:$0xff]
        %v3908 = vld [vmem:[#allocation5 + $0x320] sm:$0xff]
        %v3909 = vld [vmem:[#allocation5 + $0x328] sm:$0xff]
        %v3910 = vld [vmem:[#allocation5 + $0x330] sm:$0xff]
        %v3911 = vld [vmem:[#allocation5 + $0x338] sm:$0xff]
        %v3912 = vld [vmem:[#allocation5 + $0x340] sm:$0xff]
        %v3913 = vld [vmem:[#allocation5 + $0x348] sm:$0xff]
        %v3914 = vld [vmem:[#allocation5 + $0x350] sm:$0xff]
        %v3915 = vld [vmem:[#allocation5 + $0x358] sm:$0xff]
        %v3916 = vld [vmem:[#allocation5 + $0x360] sm:$0xff]
        %v3917 = vld [vmem:[#allocation5 + $0x368] sm:$0xff]
        %v3918 = vld [vmem:[#allocation5 + $0x370] sm:$0xff]
        %v3919 = vld [vmem:[#allocation5 + $0x378] sm:$0xff]
        %v3920 = vld [vmem:[#allocation5 + $0x380] sm:$0xff]
        %v3921 = vld [vmem:[#allocation5 + $0x388] sm:$0xff]
        %v3922 = vld [vmem:[#allocation5 + $0x390] sm:$0xff]
        %v3923 = vld [vmem:[#allocation5 + $0x398] sm:$0xff]
        %v3924 = vld [vmem:[#allocation5 + $0x3a0] sm:$0xff]
        %v3925 = vld [vmem:[#allocation5 + $0x3a8] sm:$0xff]
        %v3926 = vld [vmem:[#allocation5 + $0x3b0] sm:$0xff]
        %v3927 = vld [vmem:[#allocation5 + $0x3b8] sm:$0xff]
        %v3928 = vld [vmem:[#allocation5 + $0x3c0] sm:$0xff]
        %v3929 = vld [vmem:[#allocation5 + $0x3c8] sm:$0xff]
        %v3930 = vld [vmem:[#allocation5 + $0x3d0] sm:$0xff]
        %v3931 = vld [vmem:[#allocation5 + $0x3d8] sm:$0xff]
        %v3932 = vld [vmem:[#allocation5 + $0x3e0] sm:$0xff]
        %v3933 = vld [vmem:[#allocation5 + $0x3e8] sm:$0xff]
        %v3934 = vld [vmem:[#allocation5 + $0x3f0] sm:$0xff]
        %v3935 = vld [vmem:[#allocation5 + $0x3f8] sm:$0xff]
        %v3936 = vld [vmem:[#allocation5 + $0x400] sm:$0xff]
        %v3937 = vld [vmem:[#allocation5 + $0x408] sm:$0xff]
        %v3938 = vld [vmem:[#allocation5 + $0x410] sm:$0xff]
        %v3939 = vld [vmem:[#allocation5 + $0x418] sm:$0xff]
        %v3940 = vld [vmem:[#allocation5 + $0x420] sm:$0xff]
        %v3941 = vld [vmem:[#allocation5 + $0x428] sm:$0xff]
        %v3942 = vld [vmem:[#allocation5 + $0x430] sm:$0xff]
        %v3943 = vld [vmem:[#allocation5 + $0x438] sm:$0xff]
        %v3944 = vld [vmem:[#allocation5 + $0x440] sm:$0xff]
        %v3945 = vld [vmem:[#allocation5 + $0x448] sm:$0xff]
        %v3946 = vld [vmem:[#allocation5 + $0x450] sm:$0xff]
        %v3947 = vld [vmem:[#allocation5 + $0x458] sm:$0xff]
        %v3948 = vld [vmem:[#allocation5 + $0x460] sm:$0xff]
        %v3949 = vld [vmem:[#allocation5 + $0x468] sm:$0xff]
        %v3950 = vld [vmem:[#allocation5 + $0x470] sm:$0xff]
        %v3951 = vld [vmem:[#allocation5 + $0x478] sm:$0xff]
        %v3952 = vld [vmem:[#allocation5 + $0x480] sm:$0xff]
        %v3953 = vld [vmem:[#allocation5 + $0x488] sm:$0xff]
        %v3954 = vld [vmem:[#allocation5 + $0x490] sm:$0xff]
        %v3955 = vld [vmem:[#allocation5 + $0x498] sm:$0xff]
        %v3956 = vld [vmem:[#allocation5 + $0x4a0] sm:$0xff]
        %v3957 = vld [vmem:[#allocation5 + $0x4a8] sm:$0xff]
        %v3958 = vld [vmem:[#allocation5 + $0x4b0] sm:$0xff]
        %v3959 = vld [vmem:[#allocation5 + $0x4b8] sm:$0xff]
        %v3960 = vld [vmem:[#allocation5 + $0x4c0] sm:$0xff]
        %v3961 = vld [vmem:[#allocation5 + $0x4c8] sm:$0xff]
        %v3962 = vld [vmem:[#allocation5 + $0x4d0] sm:$0xff]
        %v3963 = vld [vmem:[#allocation5 + $0x4d8] sm:$0xff]
        %v3964 = vld [vmem:[#allocation5 + $0x4e0] sm:$0xff]
        %v3965 = vld [vmem:[#allocation5 + $0x4e8] sm:$0xff]
        %v3966 = vld [vmem:[#allocation5 + $0x4f0] sm:$0xff]
        %v3967 = vld [vmem:[#allocation5 + $0x4f8] sm:$0xff]
        %v3968 = vld [vmem:[#allocation5 + $0x500] sm:$0xff]
        %v3969 = vld [vmem:[#allocation5 + $0x508] sm:$0xff]
        %v3970 = vld [vmem:[#allocation5 + $0x510] sm:$0xff]
        %v3971 = vld [vmem:[#allocation5 + $0x518] sm:$0xff]
        %v3972 = vld [vmem:[#allocation5 + $0x520] sm:$0xff]
        %v3973 = vld [vmem:[#allocation5 + $0x528] sm:$0xff]
        %v3974 = vld [vmem:[#allocation5 + $0x530] sm:$0xff]
        %v3975 = vld [vmem:[#allocation5 + $0x538] sm:$0xff]
        %v3976 = vld [vmem:[#allocation5 + $0x540] sm:$0xff]
        %v3977 = vld [vmem:[#allocation5 + $0x548] sm:$0xff]
        %v3978 = vld [vmem:[#allocation5 + $0x550] sm:$0xff]
        %v3979 = vld [vmem:[#allocation5 + $0x558] sm:$0xff]
        %v3980 = vld [vmem:[#allocation5 + $0x560] sm:$0xff]
        %v3981 = vld [vmem:[#allocation5 + $0x568] sm:$0xff]
        %v3982 = vld [vmem:[#allocation5 + $0x570] sm:$0xff]
        %v3983 = vld [vmem:[#allocation5 + $0x578] sm:$0xff]
        %v3984 = vld [vmem:[#allocation5 + $0x580] sm:$0xff]
        %v3985 = vld [vmem:[#allocation5 + $0x588] sm:$0xff]
        %v3986 = vld [vmem:[#allocation5 + $0x590] sm:$0xff]
        %v3987 = vld [vmem:[#allocation5 + $0x598] sm:$0xff]
        %v3988 = vld [vmem:[#allocation5 + $0x5a0] sm:$0xff]
        %v3989 = vld [vmem:[#allocation5 + $0x5a8] sm:$0xff]
        %v3990 = vld [vmem:[#allocation5 + $0x5b0] sm:$0xff]
        %v3991 = vld [vmem:[#allocation5 + $0x5b8] sm:$0xff]
        %v3992 = vld [vmem:[#allocation5 + $0x5c0] sm:$0xff]
        %v3993 = vld [vmem:[#allocation5 + $0x5c8] sm:$0xff]
        %v3994 = vld [vmem:[#allocation5 + $0x5d0] sm:$0xff]
        %v3995 = vld [vmem:[#allocation5 + $0x5d8] sm:$0xff]
        %v3996 = vld [vmem:[#allocation5 + $0x5e0] sm:$0xff]
        %v3997 = vld [vmem:[#allocation5 + $0x5e8] sm:$0xff]
        %v3998 = vld [vmem:[#allocation5 + $0x5f0] sm:$0xff]
        %v3999 = vld [vmem:[#allocation5 + $0x5f8] sm:$0xff]
        %v4000 = vld [vmem:[%s8] sm:$0x3]
        %v4002 = vlaneseq
        %v4003 = vshrl.u32 %v4002, 7
        %v4004 = vsub.s32 0, %v4003
        %v4005 = vrot.slane %v4000, %v4004
        %v4006 = vlaneseq
        %v4007 = vshrl.u32 %v4006, 7
        %v4008 = vsub.s32 1, %v4007
        %v4009 = vrot.slane %v4000, %v4008
        %4012 = vmatprep.subr.mxu0 %v3809
        %4013 = vmatpush1.msra.mxu0 %v3808
        %4014 = vmatprep.subr.mxu0 %v3811
        %4015 = vmatpush1.msra.mxu0 %v3810
        %4016 = vmatprep.subr.mxu0 %v3813
        %4017 = vmatpush1.msra.mxu0 %v3812
        %4018 = vmatprep.subr.mxu0 %v3815
        %4019 = vmatpush1.msra.mxu0 %v3814
        %4020 = vmatprep.subr.mxu0 %v3817
        %4021 = vmatpush1.msra.mxu0 %v3816
        %4022 = vmatprep.subr.mxu0 %v3819
        %4023 = vmatpush1.msra.mxu0 %v3818
        %4024 = vmatprep.subr.mxu0 %v3821
        %4025 = vmatpush1.msra.mxu0 %v3820
        %4026 = vmatprep.subr.mxu0 %v3823
        %4027 = vmatpush1.msra.mxu0 %v3822
        %4028 = vmatprep.subr.mxu0 %v3825
        %4029 = vmatpush1.msra.mxu0 %v3824
        %4030 = vmatprep.subr.mxu0 %v3827
        %4031 = vmatpush1.msra.mxu0 %v3826
        %4032 = vmatprep.subr.mxu0 %v3829
        %4033 = vmatpush1.msra.mxu0 %v3828
        %4034 = vmatprep.subr.mxu0 %v3831
        %4035 = vmatpush1.msra.mxu0 %v3830
        %4036 = vmatprep.subr.mxu0 %v3833
        %4037 = vmatpush1.msra.mxu0 %v3832
        %4038 = vmatprep.subr.mxu0 %v3835
        %4039 = vmatpush1.msra.mxu0 %v3834
        %4040 = vmatprep.subr.mxu0 %v3837
        %4041 = vmatpush1.msra.mxu0 %v3836
        %4042 = vmatprep.subr.mxu0 %v3839
        %4043 = vmatpush1.msra.mxu0 %v3838
        %4044 = vmatprep.subr.mxu0 %v3841
        %4045 = vmatpush1.msra.mxu0 %v3840
        %4046 = vmatprep.subr.mxu0 %v3843
        %4047 = vmatpush1.msra.mxu0 %v3842
        %4048 = vmatprep.subr.mxu0 %v3845
        %4049 = vmatpush1.msra.mxu0 %v3844
        %4050 = vmatprep.subr.mxu0 %v3847
        %4051 = vmatpush1.msra.mxu0 %v3846
        %4052 = vmatprep.subr.mxu0 %v3849
        %4053 = vmatpush1.msra.mxu0 %v3848
        %4054 = vmatprep.subr.mxu0 %v3851
        %4055 = vmatpush1.msra.mxu0 %v3850
        %4056 = vmatprep.subr.mxu0 %v3853
        %4057 = vmatpush1.msra.mxu0 %v3852
        %4058 = vmatprep.subr.mxu0 %v3855
        %4059 = vmatpush1.msra.mxu0 %v3854
        %4060 = vmatprep.subr.mxu0 %v3857
        %4061 = vmatpush1.msra.mxu0 %v3856
        %4062 = vmatprep.subr.mxu0 %v3859
        %4063 = vmatpush1.msra.mxu0 %v3858
        %4064 = vmatprep.subr.mxu0 %v3861
        %4065 = vmatpush1.msra.mxu0 %v3860
        %4066 = vmatprep.subr.mxu0 %v3863
        %4067 = vmatpush1.msra.mxu0 %v3862
        %4068 = vmatprep.subr.mxu0 %v3865
        %4069 = vmatpush1.msra.mxu0 %v3864
        %4070 = vmatprep.subr.mxu0 %v3867
        %4071 = vmatpush1.msra.mxu0 %v3866
        %4072 = vmatprep.subr.mxu0 %v3869
        %4073 = vmatpush1.msra.mxu0 %v3868
        %4074 = vmatprep.subr.mxu0 %v3871
        %4075 = vmatpush1.msra.mxu0 %v3870
        %4076 = vmatprep.mubr.f32.mxu0 %v3773
        %4077 = vmatmul.mubr.f32.gmra.mrb[0].mxu0 %v3772
        %v4078 = vpop.f32.mrb[0].mxu0
        %v4079 = vadd.f32 %v4005, %v4078
        %v4080 = vpop.f32.mrb[0].mxu0
        %v4081 = vadd.f32 %v4009, %v4080
        %4082 = vmatprep.mubr.f32.mxu0 %v3775
        %4083 = vmatmul.mubr.f32.gmra.mrb[0].mxu0 %v3774
        %v4084 = vpop.f32.mrb[0].mxu0
        %v4085 = vadd.f32 %v4005, %v4084
        %v4086 = vpop.f32.mrb[0].mxu0
        %v4087 = vadd.f32 %v4009, %v4086
        %4088 = vmatprep.mubr.f32.mxu0 %v3777
        %4089 = vmatmul.mubr.f32.gmra.mrb[0].mxu0 %v3776
        %v4090 = vpop.f32.mrb[0].mxu0
        %v4091 = vadd.f32 %v4005, %v4090
        %v4092 = vpop.f32.mrb[0].mxu0
        %v4093 = vadd.f32 %v4009, %v4092
        %4094 = vmatprep.mubr.f32.mxu0 %v3779
        %4095 = vmatmul.mubr.f32.gmra.mrb[0].mxu0 %v3778
        %v4096 = vpop.f32.mrb[0].mxu0
        %v4097 = vadd.f32 %v4005, %v4096
        %v4098 = vpop.f32.mrb[0].mxu0
        %v4099 = vadd.f32 %v4009, %v4098
        %4100 = vdwg.mxu0
        %4101 = vmatprep.subr.mxu0 %v3873
        %4102 = vmatpush1.msra.mxu0 %v3872
        %4103 = vmatprep.subr.mxu0 %v3875
        %4104 = vmatpush1.msra.mxu0 %v3874
        %4105 = vmatprep.subr.mxu0 %v3877
        %4106 = vmatpush1.msra.mxu0 %v3876
        %4107 = vmatprep.subr.mxu0 %v3879
        %4108 = vmatpush1.msra.mxu0 %v3878
        %4109 = vmatprep.subr.mxu0 %v3881
        %4110 = vmatpush1.msra.mxu0 %v3880
        %4111 = vmatprep.subr.mxu0 %v3883
        %4112 = vmatpush1.msra.mxu0 %v3882
        %4113 = vmatprep.subr.mxu0 %v3885
        %4114 = vmatpush1.msra.mxu0 %v3884
        %4115 = vmatprep.subr.mxu0 %v3887
        %4116 = vmatpush1.msra.mxu0 %v3886
        %4117 = vmatprep.subr.mxu0 %v3889
        %4118 = vmatpush1.msra.mxu0 %v3888
        %4119 = vmatprep.subr.mxu0 %v3891
        %4120 = vmatpush1.msra.mxu0 %v3890
        %4121 = vmatprep.subr.mxu0 %v3893
        %4122 = vmatpush1.msra.mxu0 %v3892
        %4123 = vmatprep.subr.mxu0 %v3895
        %4124 = vmatpush1.msra.mxu0 %v3894
        %4125 = vmatprep.subr.mxu0 %v3897
        %4126 = vmatpush1.msra.mxu0 %v3896
        %4127 = vmatprep.subr.mxu0 %v3899
        %4128 = vmatpush1.msra.mxu0 %v3898
        %4129 = vmatprep.subr.mxu0 %v3901
        %4130 = vmatpush1.msra.mxu0 %v3900
        %4131 = vmatprep.subr.mxu0 %v3903
        %4132 = vmatpush1.msra.mxu0 %v3902
        %4133 = vmatprep.subr.mxu0 %v3905
        %4134 = vmatpush1.msra.mxu0 %v3904
        %4135 = vmatprep.subr.mxu0 %v3907
        %4136 = vmatpush1.msra.mxu0 %v3906
        %4137 = vmatprep.subr.mxu0 %v3909
        %4138 = vmatpush1.msra.mxu0 %v3908
        %4139 = vmatprep.subr.mxu0 %v3911
        %4140 = vmatpush1.msra.mxu0 %v3910
        %4141 = vmatprep.subr.mxu0 %v3913
        %4142 = vmatpush1.msra.mxu0 %v3912
        %4143 = vmatprep.subr.mxu0 %v3915
        %4144 = vmatpush1.msra.mxu0 %v3914
        %4145 = vmatprep.subr.mxu0 %v3917
        %4146 = vmatpush1.msra.mxu0 %v3916
        %4147 = vmatprep.subr.mxu0 %v3919
        %4148 = vmatpush1.msra.mxu0 %v3918
        %4149 = vmatprep.subr.mxu0 %v3921
        %4150 = vmatpush1.msra.mxu0 %v3920
        %4151 = vmatprep.subr.mxu0 %v3923
        %4152 = vmatpush1.msra.mxu0 %v3922
        %4153 = vmatprep.subr.mxu0 %v3925
        %4154 = vmatpush1.msra.mxu0 %v3924
        %4155 = vmatprep.subr.mxu0 %v3927
        %4156 = vmatpush1.msra.mxu0 %v3926
        %4157 = vmatprep.subr.mxu0 %v3929
        %4158 = vmatpush1.msra.mxu0 %v3928
        %4159 = vmatprep.subr.mxu0 %v3931
        %4160 = vmatpush1.msra.mxu0 %v3930
        %4161 = vmatprep.subr.mxu0 %v3933
        %4162 = vmatpush1.msra.mxu0 %v3932
        %4163 = vmatprep.subr.mxu0 %v3935
        %4164 = vmatpush1.msra.mxu0 %v3934
        %4165 = vmatprep.mubr.f32.mxu0 %v3749
        %4166 = vmatmul.mubr.f32.gmra.mrb[0].mxu0 %v3748
        %v4167 = vpop.f32.mrb[0].mxu0
        %v4168 = vadd.f32 %v4079, %v4167
        %v4169 = vpop.f32.mrb[0].mxu0
        %v4170 = vadd.f32 %v4081, %v4169
        %4171 = vmatprep.mubr.f32.mxu0 %v3751
        %4172 = vmatmul.mubr.f32.gmra.mrb[0].mxu0 %v3750
        %v4173 = vpop.f32.mrb[0].mxu0
        %v4174 = vadd.f32 %v4085, %v4173
        %v4175 = vpop.f32.mrb[0].mxu0
        %v4176 = vadd.f32 %v4087, %v4175
        %4177 = vmatprep.mubr.f32.mxu0 %v3753
        %4178 = vmatmul.mubr.f32.gmra.mrb[0].mxu0 %v3752
        %v4179 = vpop.f32.mrb[0].mxu0
        %v4180 = vadd.f32 %v4091, %v4179
        %v4181 = vpop.f32.mrb[0].mxu0
        %v4182 = vadd.f32 %v4093, %v4181
        %4183 = vmatprep.mubr.f32.mxu0 %v3755
        %4184 = vmatmul.mubr.f32.gmra.mrb[0].mxu0 %v3754
        %v4185 = vpop.f32.mrb[0].mxu0
        %v4186 = vadd.f32 %v4097, %v4185
        %v4187 = vpop.f32.mrb[0].mxu0
        %v4188 = vadd.f32 %v4099, %v4187
        %4189 = vdwg.mxu0
        %4190 = vmatprep.subr.mxu0 %v3937
        %4191 = vmatpush1.msra.mxu0 %v3936
        %4192 = vmatprep.subr.mxu0 %v3939
        %4193 = vmatpush1.msra.mxu0 %v3938
        %4194 = vmatprep.subr.mxu0 %v3941
        %4195 = vmatpush1.msra.mxu0 %v3940
        %4196 = vmatprep.subr.mxu0 %v3943
        %4197 = vmatpush1.msra.mxu0 %v3942
        %4198 = vmatprep.subr.mxu0 %v3945
        %4199 = vmatpush1.msra.mxu0 %v3944
        %4200 = vmatprep.subr.mxu0 %v3947
        %4201 = vmatpush1.msra.mxu0 %v3946
        %4202 = vmatprep.subr.mxu0 %v3949
        %4203 = vmatpush1.msra.mxu0 %v3948
        %4204 = vmatprep.subr.mxu0 %v3951
        %4205 = vmatpush1.msra.mxu0 %v3950
        %4206 = vmatprep.subr.mxu0 %v3953
        %4207 = vmatpush1.msra.mxu0 %v3952
        %4208 = vmatprep.subr.mxu0 %v3955
        %4209 = vmatpush1.msra.mxu0 %v3954
        %4210 = vmatprep.subr.mxu0 %v3957
        %4211 = vmatpush1.msra.mxu0 %v3956
        %4212 = vmatprep.subr.mxu0 %v3959
        %4213 = vmatpush1.msra.mxu0 %v3958
        %4214 = vmatprep.subr.mxu0 %v3961
        %4215 = vmatpush1.msra.mxu0 %v3960
        %4216 = vmatprep.subr.mxu0 %v3963
        %4217 = vmatpush1.msra.mxu0 %v3962
        %4218 = vmatprep.subr.mxu0 %v3965
        %4219 = vmatpush1.msra.mxu0 %v3964
        %4220 = vmatprep.subr.mxu0 %v3967
        %4221 = vmatpush1.msra.mxu0 %v3966
        %4222 = vmatprep.subr.mxu0 %v3969
        %4223 = vmatpush1.msra.mxu0 %v3968
        %4224 = vmatprep.subr.mxu0 %v3971
        %4225 = vmatpush1.msra.mxu0 %v3970
        %4226 = vmatprep.subr.mxu0 %v3973
        %4227 = vmatpush1.msra.mxu0 %v3972
        %4228 = vmatprep.subr.mxu0 %v3975
        %4229 = vmatpush1.msra.mxu0 %v3974
        %4230 = vmatprep.subr.mxu0 %v3977
        %4231 = vmatpush1.msra.mxu0 %v3976
        %4232 = vmatprep.subr.mxu0 %v3979
        %4233 = vmatpush1.msra.mxu0 %v3978
        %4234 = vmatprep.subr.mxu0 %v3981
        %4235 = vmatpush1.msra.mxu0 %v3980
        %4236 = vmatprep.subr.mxu0 %v3983
        %4237 = vmatpush1.msra.mxu0 %v3982
        %4238 = vmatprep.subr.mxu0 %v3985
        %4239 = vmatpush1.msra.mxu0 %v3984
        %4240 = vmatprep.subr.mxu0 %v3987
        %4241 = vmatpush1.msra.mxu0 %v3986
        %4242 = vmatprep.subr.mxu0 %v3989
        %4243 = vmatpush1.msra.mxu0 %v3988
        %4244 = vmatprep.subr.mxu0 %v3991
        %4245 = vmatpush1.msra.mxu0 %v3990
        %4246 = vmatprep.subr.mxu0 %v3993
        %4247 = vmatpush1.msra.mxu0 %v3992
        %4248 = vmatprep.subr.mxu0 %v3995
        %4249 = vmatpush1.msra.mxu0 %v3994
        %4250 = vmatprep.subr.mxu0 %v3997
        %4251 = vmatpush1.msra.mxu0 %v3996
        %4252 = vmatprep.subr.mxu0 %v3999
        %4253 = vmatpush1.msra.mxu0 %v3998
        %4254 = vmatprep.mubr.f32.mxu0 %v3801
        %4255 = vmatmul.mubr.f32.gmra.mrb[0].mxu0 %v3800
        %v4256 = vpop.f32.mrb[0].mxu0
        %v4257 = vadd.f32 %v4168, %v4256
        %v4258 = vpop.f32.mrb[0].mxu0
        %v4259 = vadd.f32 %v4170, %v4258
        %4260 = vmatprep.mubr.f32.mxu0 %v3803
        %4261 = vmatmul.mubr.f32.gmra.mrb[0].mxu0 %v3802
        %v4262 = vpop.f32.mrb[0].mxu0
        %v4263 = vadd.f32 %v4174, %v4262
        %v4264 = vpop.f32.mrb[0].mxu0
        %v4265 = vadd.f32 %v4176, %v4264
        %4266 = vmatprep.mubr.f32.mxu0 %v3805
        %4267 = vmatmul.mubr.f32.gmra.mrb[0].mxu0 %v3804
        %v4268 = vpop.f32.mrb[0].mxu0
        %v4269 = vadd.f32 %v4180, %v4268
        %v4270 = vpop.f32.mrb[0].mxu0
        %v4271 = vadd.f32 %v4182, %v4270
        %4272 = vmatprep.mubr.f32.mxu0 %v3807
        %4273 = vmatmul.mubr.f32.gmra.mrb[0].mxu0 %v3806
        %v4274 = vpop.f32.mrb[0].mxu0
        %v4275 = vadd.f32 %v4186, %v4274
        %v4276 = vpop.f32.mrb[0].mxu0
        %v4277 = vadd.f32 %v4188, %v4276
        %4278 = vdwg.mxu0
        %v4279 = vmax.f32 %v4257, 0.0
        %v4280 = vmax.f32 %v4259, 0.0
        %v4281 = vmax.f32 %v4263, 0.0
        %v4282 = vmax.f32 %v4265, 0.0
        %v4283 = vmax.f32 %v4269, 0.0
        %v4284 = vmax.f32 %v4271, 0.0
        %v4285 = vmax.f32 %v4275, 0.0
        %v4286 = vmax.f32 %v4277, 0.0
        %v4287 = vrot.slane %v4279, 1
        %v4288 = vrot.slane %v4280, 1
        %v4289 = vrot.slane %v4281, 1
        %v4290 = vrot.slane %v4282, 1
        %v4291 = vrot.slane %v4283, 1
        %v4292 = vrot.slane %v4284, 1
        %v4293 = vrot.slane %v4285, 1
        %v4294 = vrot.slane %v4286, 1
        %v4295 = vsel %vm1086, %v4291, %v4293
        %v4296 = vsel %vm1086, %v4292, %v4294
        %v4297 = vsel %vm1086, %v4289, %v4291
        %v4298 = vsel %vm1086, %v4290, %v4292
        %v4299 = vsel %vm1086, %v4287, %v4289
        %v4300 = vsel %vm1086, %v4288, %v4290
        %v4301 = vsel %vm1086, %v4293, %v4287
        %v4302 = vsel %vm1086, %v4294, %v4288
        %v4303 = vmax.f32 %v4279, %v4299
        %v4304 = vmax.f32 %v4280, %v4300
        %v4305 = vmax.f32 %v4281, %v4297
        %v4306 = vmax.f32 %v4282, %v4298
        %v4307 = vmax.f32 %v4283, %v4295
        %v4308 = vmax.f32 %v4284, %v4296
        %v4309 = vmax.f32 %v4285, %v4301
        %v4310 = vmax.f32 %v4286, %v4302
        %v4311 = vld [vmem:[#allocation11] sm:$0xff]
        %v4312 = vld [vmem:[#allocation11 + $0x8] sm:$0xff]
        %v4314 = vsel %vm1440, %v4311, 0
        %v4317 = vsel %vm1440, %v4312, 0
        %4319 = vmatprep.subr.mxu0 %v4304
        %4320 = vmatpush1.msra.mxu0 %v4303
        %4321 = vmatprep.subr.mxu0 %v4306
        %4322 = vmatpush1.msra.mxu0 %v4305
        %4323 = vmatprep.subr.mxu0 %v4308
        %4324 = vmatpush1.msra.mxu0 %v4307
        %4325 = vmatprep.subr.mxu0 %v4310
        %4326 = vmatpush1.msra.mxu0 %v4309
        %4327 = vmatprep.subr.mxu0 0.0
        %4328 = vmatpush1.msra.mxu0 0.0
        %4329 = vmatprep.subr.mxu0 0.0
        %4330 = vmatpush1.msra.mxu0 0.0
        %4331 = vmatprep.subr.mxu0 0.0
        %4332 = vmatpush1.msra.mxu0 0.0
        %4333 = vmatprep.subr.mxu0 0.0
        %4334 = vmatpush1.msra.mxu0 0.0
        %4335 = vmatprep.subr.mxu0 0.0
        %4336 = vmatpush1.msra.mxu0 0.0
        %4337 = vmatprep.subr.mxu0 0.0
        %4338 = vmatpush1.msra.mxu0 0.0
        %4339 = vmatprep.subr.mxu0 0.0
        %4340 = vmatpush1.msra.mxu0 0.0
        %4341 = vmatprep.subr.mxu0 0.0
        %4342 = vmatpush1.msra.mxu0 0.0
        %4343 = vmatprep.subr.mxu0 0.0
        %4344 = vmatpush1.msra.mxu0 0.0
        %4345 = vmatprep.subr.mxu0 0.0
        %4346 = vmatpush1.msra.mxu0 0.0
        %4347 = vmatprep.subr.mxu0 0.0
        %4348 = vmatpush1.msra.mxu0 0.0
        %4349 = vmatprep.subr.mxu0 0.0
        %4350 = vmatpush1.msra.mxu0 0.0
        %4351 = vmatprep.subr.mxu0 0.0
        %4352 = vmatpush1.msra.mxu0 0.0
        %4353 = vmatprep.subr.mxu0 0.0
        %4354 = vmatpush1.msra.mxu0 0.0
        %4355 = vmatprep.subr.mxu0 0.0
        %4356 = vmatpush1.msra.mxu0 0.0
        %4357 = vmatprep.subr.mxu0 0.0
        %4358 = vmatpush1.msra.mxu0 0.0
        %4359 = vmatprep.subr.mxu0 0.0
        %4360 = vmatpush1.msra.mxu0 0.0
        %4361 = vmatprep.subr.mxu0 0.0
        %4362 = vmatpush1.msra.mxu0 0.0
        %4363 = vmatprep.subr.mxu0 0.0
        %4364 = vmatpush1.msra.mxu0 0.0
        %4365 = vmatprep.subr.mxu0 0.0
        %4366 = vmatpush1.msra.mxu0 0.0
        %4367 = vmatprep.subr.mxu0 0.0
        %4368 = vmatpush1.msra.mxu0 0.0
        %4369 = vmatprep.subr.mxu0 0.0
        %4370 = vmatpush1.msra.mxu0 0.0
        %4371 = vmatprep.subr.mxu0 0.0
        %4372 = vmatpush1.msra.mxu0 0.0
        %4373 = vmatprep.subr.mxu0 0.0
        %4374 = vmatpush1.msra.mxu0 0.0
        %4375 = vmatprep.subr.mxu0 0.0
        %4376 = vmatpush1.msra.mxu0 0.0
        %4377 = vmatprep.subr.mxu0 0.0
        %4378 = vmatpush1.msra.mxu0 0.0
        %4379 = vmatprep.subr.mxu0 0.0
        %4380 = vmatpush1.msra.mxu0 0.0
        %4381 = vmatprep.subr.mxu0 0.0
        %4382 = vmatpush1.msra.mxu0 0.0
        %4383 = vmatprep.mubr.f32.mxu0 0.0
        %4384 = vmatmul.mubr.f32.gmra.mrb[0].mxu0 %v4314
        %v4385 = vpop.f32.mrb[0].mxu0
        %v4386 = vadd.f32 0.0, %v4385
        %v4387 = vpop.f32.mrb[0].mxu0
        %v4388 = vadd.f32 0.0, %v4387
        %4389 = vmatprep.mubr.f32.mxu0 0.0
        %4390 = vmatmul.mubr.f32.gmra.mrb[0].mxu0 %v4317
        %v4391 = vpop.f32.mrb[0].mxu0
        %v4392 = vadd.f32 0.0, %v4391
        %v4393 = vpop.f32.mrb[0].mxu0
        %v4394 = vadd.f32 0.0, %v4393
        %4395 = vdwg.mxu0
        %v4396 = vrot.slane %v4386, 7
        %v4397 = vrot.slane %v4388, 7
        %v4398 = vrot.slane %v4392, 7
        %v4399 = vrot.slane %v4394, 7
        %v4400 = vsel %vm957, %v4396, %v4398
        %v4401 = vsel %vm957, %v4397, %v4399
        %v4402 = vsel %vm957, %v4398, %v4396
        %v4403 = vsel %vm957, %v4399, %v4397
        %v4404 = vsel %vm893, 0.0, %v4402
        %v4405 = vsel %vm893, 0.0, %v4403
        %v4406 = vsel %vm894, 0.0, %v4400
        %v4407 = vsel %vm894, 0.0, %v4401
        %vm4408 = vcmp.eq.s32.totalorder %v861, 15
        %vm4409 = vcmp.eq.s32.totalorder %v862, 15
        %v4410 = vrot.slane %v4386, 1
        %v4411 = vrot.slane %v4388, 1
        %v4412 = vrot.slane %v4392, 1
        %v4413 = vrot.slane %v4394, 1
        %v4414 = vsel %vm1086, %v4410, %v4412
        %v4415 = vsel %vm1086, %v4411, %v4413
        %v4416 = vsel %vm1086, %v4412, %v4410
        %v4417 = vsel %vm1086, %v4413, %v4411
        %v4418 = vsel %vm4408, 0.0, %v4414
        %v4419 = vsel %vm4408, 0.0, %v4415
        %v4420 = vsel %vm4409, 0.0, %v4416
        %v4421 = vsel %vm4409, 0.0, %v4417
        %v4422 = vld [vmem:[#allocation7] sm:$0xff]
        %v4423 = vld [vmem:[#allocation7 + $0x8] sm:$0xff]
        %v4424 = vld [vmem:[#allocation7 + $0x10] sm:$0xff]
        %v4425 = vld [vmem:[#allocation7 + $0x18] sm:$0xff]
        %v4426 = vld [vmem:[#allocation7 + $0x20] sm:$0xff]
        %v4427 = vld [vmem:[#allocation7 + $0x28] sm:$0xff]
        %v4428 = vld [vmem:[#allocation7 + $0x30] sm:$0xff]
        %v4429 = vld [vmem:[#allocation7 + $0x38] sm:$0xff]
        %v4430 = vld [vmem:[#allocation7 + $0x40] sm:$0xff]
        %v4431 = vld [vmem:[#allocation7 + $0x48] sm:$0xff]
        %v4432 = vld [vmem:[#allocation7 + $0x50] sm:$0xff]
        %v4433 = vld [vmem:[#allocation7 + $0x58] sm:$0xff]
        %v4434 = vld [vmem:[#allocation7 + $0x60] sm:$0xff]
        %v4435 = vld [vmem:[#allocation7 + $0x68] sm:$0xff]
        %v4436 = vld [vmem:[#allocation7 + $0x70] sm:$0xff]
        %v4437 = vld [vmem:[#allocation7 + $0x78] sm:$0xff]
        %v4438 = vld [vmem:[#allocation7 + $0x80] sm:$0xff]
        %v4439 = vld [vmem:[#allocation7 + $0x88] sm:$0xff]
        %v4440 = vld [vmem:[#allocation7 + $0x90] sm:$0xff]
        %v4441 = vld [vmem:[#allocation7 + $0x98] sm:$0xff]
        %v4442 = vld [vmem:[#allocation7 + $0xa0] sm:$0xff]
        %v4443 = vld [vmem:[#allocation7 + $0xa8] sm:$0xff]
        %v4444 = vld [vmem:[#allocation7 + $0xb0] sm:$0xff]
        %v4445 = vld [vmem:[#allocation7 + $0xb8] sm:$0xff]
        %v4446 = vld [vmem:[#allocation7 + $0xc0] sm:$0xff]
        %v4447 = vld [vmem:[#allocation7 + $0xc8] sm:$0xff]
        %v4448 = vld [vmem:[#allocation7 + $0xd0] sm:$0xff]
        %v4449 = vld [vmem:[#allocation7 + $0xd8] sm:$0xff]
        %v4450 = vld [vmem:[#allocation7 + $0xe0] sm:$0xff]
        %v4451 = vld [vmem:[#allocation7 + $0xe8] sm:$0xff]
        %v4452 = vld [vmem:[#allocation7 + $0xf0] sm:$0xff]
        %v4453 = vld [vmem:[#allocation7 + $0xf8] sm:$0xff]
        %v4454 = vld [vmem:[#allocation7 + $0x100] sm:$0xff]
        %v4455 = vld [vmem:[#allocation7 + $0x108] sm:$0xff]
        %v4456 = vld [vmem:[#allocation7 + $0x110] sm:$0xff]
        %v4457 = vld [vmem:[#allocation7 + $0x118] sm:$0xff]
        %v4458 = vld [vmem:[#allocation7 + $0x120] sm:$0xff]
        %v4459 = vld [vmem:[#allocation7 + $0x128] sm:$0xff]
        %v4460 = vld [vmem:[#allocation7 + $0x130] sm:$0xff]
        %v4461 = vld [vmem:[#allocation7 + $0x138] sm:$0xff]
        %v4462 = vld [vmem:[#allocation7 + $0x140] sm:$0xff]
        %v4463 = vld [vmem:[#allocation7 + $0x148] sm:$0xff]
        %v4464 = vld [vmem:[#allocation7 + $0x150] sm:$0xff]
        %v4465 = vld [vmem:[#allocation7 + $0x158] sm:$0xff]
        %v4466 = vld [vmem:[#allocation7 + $0x160] sm:$0xff]
        %v4467 = vld [vmem:[#allocation7 + $0x168] sm:$0xff]
        %v4468 = vld [vmem:[#allocation7 + $0x170] sm:$0xff]
        %v4469 = vld [vmem:[#allocation7 + $0x178] sm:$0xff]
        %v4470 = vld [vmem:[#allocation7 + $0x180] sm:$0xff]
        %v4471 = vld [vmem:[#allocation7 + $0x188] sm:$0xff]
        %v4472 = vld [vmem:[#allocation7 + $0x190] sm:$0xff]
        %v4473 = vld [vmem:[#allocation7 + $0x198] sm:$0xff]
        %v4474 = vld [vmem:[#allocation7 + $0x1a0] sm:$0xff]
        %v4475 = vld [vmem:[#allocation7 + $0x1a8] sm:$0xff]
        %v4476 = vld [vmem:[#allocation7 + $0x1b0] sm:$0xff]
        %v4477 = vld [vmem:[#allocation7 + $0x1b8] sm:$0xff]
        %v4478 = vld [vmem:[#allocation7 + $0x1c0] sm:$0xff]
        %v4479 = vld [vmem:[#allocation7 + $0x1c8] sm:$0xff]
        %v4480 = vld [vmem:[#allocation7 + $0x1d0] sm:$0xff]
        %v4481 = vld [vmem:[#allocation7 + $0x1d8] sm:$0xff]
        %v4482 = vld [vmem:[#allocation7 + $0x1e0] sm:$0xff]
        %v4483 = vld [vmem:[#allocation7 + $0x1e8] sm:$0xff]
        %v4484 = vld [vmem:[#allocation7 + $0x1f0] sm:$0xff]
        %v4485 = vld [vmem:[#allocation7 + $0x1f8] sm:$0xff]
        %v4486 = vld [vmem:[#allocation7 + $0x200] sm:$0xff]
        %v4487 = vld [vmem:[#allocation7 + $0x208] sm:$0xff]
        %v4488 = vld [vmem:[#allocation7 + $0x210] sm:$0xff]
        %v4489 = vld [vmem:[#allocation7 + $0x218] sm:$0xff]
        %v4490 = vld [vmem:[#allocation7 + $0x220] sm:$0xff]
        %v4491 = vld [vmem:[#allocation7 + $0x228] sm:$0xff]
        %v4492 = vld [vmem:[#allocation7 + $0x230] sm:$0xff]
        %v4493 = vld [vmem:[#allocation7 + $0x238] sm:$0xff]
        %v4494 = vld [vmem:[#allocation7 + $0x240] sm:$0xff]
        %v4495 = vld [vmem:[#allocation7 + $0x248] sm:$0xff]
        %v4496 = vld [vmem:[#allocation7 + $0x250] sm:$0xff]
        %v4497 = vld [vmem:[#allocation7 + $0x258] sm:$0xff]
        %v4498 = vld [vmem:[#allocation7 + $0x260] sm:$0xff]
        %v4499 = vld [vmem:[#allocation7 + $0x268] sm:$0xff]
        %v4500 = vld [vmem:[#allocation7 + $0x270] sm:$0xff]
        %v4501 = vld [vmem:[#allocation7 + $0x278] sm:$0xff]
        %v4502 = vld [vmem:[#allocation7 + $0x280] sm:$0xff]
        %v4503 = vld [vmem:[#allocation7 + $0x288] sm:$0xff]
        %v4504 = vld [vmem:[#allocation7 + $0x290] sm:$0xff]
        %v4505 = vld [vmem:[#allocation7 + $0x298] sm:$0xff]
        %v4506 = vld [vmem:[#allocation7 + $0x2a0] sm:$0xff]
        %v4507 = vld [vmem:[#allocation7 + $0x2a8] sm:$0xff]
        %v4508 = vld [vmem:[#allocation7 + $0x2b0] sm:$0xff]
        %v4509 = vld [vmem:[#allocation7 + $0x2b8] sm:$0xff]
        %v4510 = vld [vmem:[#allocation7 + $0x2c0] sm:$0xff]
        %v4511 = vld [vmem:[#allocation7 + $0x2c8] sm:$0xff]
        %v4512 = vld [vmem:[#allocation7 + $0x2d0] sm:$0xff]
        %v4513 = vld [vmem:[#allocation7 + $0x2d8] sm:$0xff]
        %v4514 = vld [vmem:[#allocation7 + $0x2e0] sm:$0xff]
        %v4515 = vld [vmem:[#allocation7 + $0x2e8] sm:$0xff]
        %v4516 = vld [vmem:[#allocation7 + $0x2f0] sm:$0xff]
        %v4517 = vld [vmem:[#allocation7 + $0x2f8] sm:$0xff]
        %v4518 = vld [vmem:[%s10] sm:$0x1]
        %v4520 = vlaneseq
        %v4521 = vshrl.u32 %v4520, 7
        %v4522 = vsub.s32 0, %v4521
        %v4523 = vrot.slane %v4518, %v4522
        %4525 = vmatprep.subr.mxu0 0.0
        %4526 = vmatpush1.msra.mxu0 %v4422
        %4527 = vmatprep.subr.mxu0 0.0
        %4528 = vmatpush1.msra.mxu0 %v4423
        %4529 = vmatprep.subr.mxu0 0.0
        %4530 = vmatpush1.msra.mxu0 %v4424
        %4531 = vmatprep.subr.mxu0 0.0
        %4532 = vmatpush1.msra.mxu0 %v4425
        %4533 = vmatprep.subr.mxu0 0.0
        %4534 = vmatpush1.msra.mxu0 %v4426
        %4535 = vmatprep.subr.mxu0 0.0
        %4536 = vmatpush1.msra.mxu0 %v4427
        %4537 = vmatprep.subr.mxu0 0.0
        %4538 = vmatpush1.msra.mxu0 %v4428
        %4539 = vmatprep.subr.mxu0 0.0
        %4540 = vmatpush1.msra.mxu0 %v4429
        %4541 = vmatprep.subr.mxu0 0.0
        %4542 = vmatpush1.msra.mxu0 %v4430
        %4543 = vmatprep.subr.mxu0 0.0
        %4544 = vmatpush1.msra.mxu0 %v4431
        %4545 = vmatprep.subr.mxu0 0.0
        %4546 = vmatpush1.msra.mxu0 %v4432
        %4547 = vmatprep.subr.mxu0 0.0
        %4548 = vmatpush1.msra.mxu0 %v4433
        %4549 = vmatprep.subr.mxu0 0.0
        %4550 = vmatpush1.msra.mxu0 %v4434
        %4551 = vmatprep.subr.mxu0 0.0
        %4552 = vmatpush1.msra.mxu0 %v4435
        %4553 = vmatprep.subr.mxu0 0.0
        %4554 = vmatpush1.msra.mxu0 %v4436
        %4555 = vmatprep.subr.mxu0 0.0
        %4556 = vmatpush1.msra.mxu0 %v4437
        %4557 = vmatprep.subr.mxu0 0.0
        %4558 = vmatpush1.msra.mxu0 %v4438
        %4559 = vmatprep.subr.mxu0 0.0
        %4560 = vmatpush1.msra.mxu0 %v4439
        %4561 = vmatprep.subr.mxu0 0.0
        %4562 = vmatpush1.msra.mxu0 %v4440
        %4563 = vmatprep.subr.mxu0 0.0
        %4564 = vmatpush1.msra.mxu0 %v4441
        %4565 = vmatprep.subr.mxu0 0.0
        %4566 = vmatpush1.msra.mxu0 %v4442
        %4567 = vmatprep.subr.mxu0 0.0
        %4568 = vmatpush1.msra.mxu0 %v4443
        %4569 = vmatprep.subr.mxu0 0.0
        %4570 = vmatpush1.msra.mxu0 %v4444
        %4571 = vmatprep.subr.mxu0 0.0
        %4572 = vmatpush1.msra.mxu0 %v4445
        %4573 = vmatprep.subr.mxu0 0.0
        %4574 = vmatpush1.msra.mxu0 %v4446
        %4575 = vmatprep.subr.mxu0 0.0
        %4576 = vmatpush1.msra.mxu0 %v4447
        %4577 = vmatprep.subr.mxu0 0.0
        %4578 = vmatpush1.msra.mxu0 %v4448
        %4579 = vmatprep.subr.mxu0 0.0
        %4580 = vmatpush1.msra.mxu0 %v4449
        %4581 = vmatprep.subr.mxu0 0.0
        %4582 = vmatpush1.msra.mxu0 %v4450
        %4583 = vmatprep.subr.mxu0 0.0
        %4584 = vmatpush1.msra.mxu0 %v4451
        %4585 = vmatprep.subr.mxu0 0.0
        %4586 = vmatpush1.msra.mxu0 %v4452
        %4587 = vmatprep.subr.mxu0 0.0
        %4588 = vmatpush1.msra.mxu0 %v4453
        %4589 = vmatprep.mubr.f32.mxu0 %v4405
        %4590 = vmatmul.mubr.f32.gmra.mrb[0].mxu0 %v4404
        %v4591 = vpop.f32.mrb[0].mxu0
        %v4592 = vadd.f32 %v4523, %v4591
        %v4593 = vpop.f32.mrb[0].mxu0
        %4594 = vmatprep.mubr.f32.mxu0 %v4407
        %4595 = vmatmul.mubr.f32.gmra.mrb[0].mxu0 %v4406
        %v4596 = vpop.f32.mrb[0].mxu0
        %v4597 = vadd.f32 %v4523, %v4596
        %v4598 = vpop.f32.mrb[0].mxu0
        %4599 = vdwg.mxu0
        %4600 = vmatprep.subr.mxu0 0.0
        %4601 = vmatpush1.msra.mxu0 %v4454
        %4602 = vmatprep.subr.mxu0 0.0
        %4603 = vmatpush1.msra.mxu0 %v4455
        %4604 = vmatprep.subr.mxu0 0.0
        %4605 = vmatpush1.msra.mxu0 %v4456
        %4606 = vmatprep.subr.mxu0 0.0
        %4607 = vmatpush1.msra.mxu0 %v4457
        %4608 = vmatprep.subr.mxu0 0.0
        %4609 = vmatpush1.msra.mxu0 %v4458
        %4610 = vmatprep.subr.mxu0 0.0
        %4611 = vmatpush1.msra.mxu0 %v4459
        %4612 = vmatprep.subr.mxu0 0.0
        %4613 = vmatpush1.msra.mxu0 %v4460
        %4614 = vmatprep.subr.mxu0 0.0
        %4615 = vmatpush1.msra.mxu0 %v4461
        %4616 = vmatprep.subr.mxu0 0.0
        %4617 = vmatpush1.msra.mxu0 %v4462
        %4618 = vmatprep.subr.mxu0 0.0
        %4619 = vmatpush1.msra.mxu0 %v4463
        %4620 = vmatprep.subr.mxu0 0.0
        %4621 = vmatpush1.msra.mxu0 %v4464
        %4622 = vmatprep.subr.mxu0 0.0
        %4623 = vmatpush1.msra.mxu0 %v4465
        %4624 = vmatprep.subr.mxu0 0.0
        %4625 = vmatpush1.msra.mxu0 %v4466
        %4626 = vmatprep.subr.mxu0 0.0
        %4627 = vmatpush1.msra.mxu0 %v4467
        %4628 = vmatprep.subr.mxu0 0.0
        %4629 = vmatpush1.msra.mxu0 %v4468
        %4630 = vmatprep.subr.mxu0 0.0
        %4631 = vmatpush1.msra.mxu0 %v4469
        %4632 = vmatprep.subr.mxu0 0.0
        %4633 = vmatpush1.msra.mxu0 %v4470
        %4634 = vmatprep.subr.mxu0 0.0
        %4635 = vmatpush1.msra.mxu0 %v4471
        %4636 = vmatprep.subr.mxu0 0.0
        %4637 = vmatpush1.msra.mxu0 %v4472
        %4638 = vmatprep.subr.mxu0 0.0
        %4639 = vmatpush1.msra.mxu0 %v4473
        %4640 = vmatprep.subr.mxu0 0.0
        %4641 = vmatpush1.msra.mxu0 %v4474
        %4642 = vmatprep.subr.mxu0 0.0
        %4643 = vmatpush1.msra.mxu0 %v4475
        %4644 = vmatprep.subr.mxu0 0.0
        %4645 = vmatpush1.msra.mxu0 %v4476
        %4646 = vmatprep.subr.mxu0 0.0
        %4647 = vmatpush1.msra.mxu0 %v4477
        %4648 = vmatprep.subr.mxu0 0.0
        %4649 = vmatpush1.msra.mxu0 %v4478
        %4650 = vmatprep.subr.mxu0 0.0
        %4651 = vmatpush1.msra.mxu0 %v4479
        %4652 = vmatprep.subr.mxu0 0.0
        %4653 = vmatpush1.msra.mxu0 %v4480
        %4654 = vmatprep.subr.mxu0 0.0
        %4655 = vmatpush1.msra.mxu0 %v4481
        %4656 = vmatprep.subr.mxu0 0.0
        %4657 = vmatpush1.msra.mxu0 %v4482
        %4658 = vmatprep.subr.mxu0 0.0
        %4659 = vmatpush1.msra.mxu0 %v4483
        %4660 = vmatprep.subr.mxu0 0.0
        %4661 = vmatpush1.msra.mxu0 %v4484
        %4662 = vmatprep.subr.mxu0 0.0
        %4663 = vmatpush1.msra.mxu0 %v4485
        %4664 = vmatprep.mubr.f32.mxu0 %v4388
        %4665 = vmatmul.mubr.f32.gmra.mrb[0].mxu0 %v4386
        %v4666 = vpop.f32.mrb[0].mxu0
        %v4667 = vadd.f32 %v4592, %v4666
        %v4668 = vpop.f32.mrb[0].mxu0
        %4669 = vmatprep.mubr.f32.mxu0 %v4394
        %4670 = vmatmul.mubr.f32.gmra.mrb[0].mxu0 %v4392
        %v4671 = vpop.f32.mrb[0].mxu0
        %v4672 = vadd.f32 %v4597, %v4671
        %v4673 = vpop.f32.mrb[0].mxu0
        %4674 = vdwg.mxu0
        %4675 = vmatprep.subr.mxu0 0.0
        %4676 = vmatpush1.msra.mxu0 %v4486
        %4677 = vmatprep.subr.mxu0 0.0
        %4678 = vmatpush1.msra.mxu0 %v4487
        %4679 = vmatprep.subr.mxu0 0.0
        %4680 = vmatpush1.msra.mxu0 %v4488
        %4681 = vmatprep.subr.mxu0 0.0
        %4682 = vmatpush1.msra.mxu0 %v4489
        %4683 = vmatprep.subr.mxu0 0.0
        %4684 = vmatpush1.msra.mxu0 %v4490
        %4685 = vmatprep.subr.mxu0 0.0
        %4686 = vmatpush1.msra.mxu0 %v4491
        %4687 = vmatprep.subr.mxu0 0.0
        %4688 = vmatpush1.msra.mxu0 %v4492
        %4689 = vmatprep.subr.mxu0 0.0
        %4690 = vmatpush1.msra.mxu0 %v4493
        %4691 = vmatprep.subr.mxu0 0.0
        %4692 = vmatpush1.msra.mxu0 %v4494
        %4693 = vmatprep.subr.mxu0 0.0
        %4694 = vmatpush1.msra.mxu0 %v4495
        %4695 = vmatprep.subr.mxu0 0.0
        %4696 = vmatpush1.msra.mxu0 %v4496
        %4697 = vmatprep.subr.mxu0 0.0
        %4698 = vmatpush1.msra.mxu0 %v4497
        %4699 = vmatprep.subr.mxu0 0.0
        %4700 = vmatpush1.msra.mxu0 %v4498
        %4701 = vmatprep.subr.mxu0 0.0
        %4702 = vmatpush1.msra.mxu0 %v4499
        %4703 = vmatprep.subr.mxu0 0.0
        %4704 = vmatpush1.msra.mxu0 %v4500
        %4705 = vmatprep.subr.mxu0 0.0
        %4706 = vmatpush1.msra.mxu0 %v4501
        %4707 = vmatprep.subr.mxu0 0.0
        %4708 = vmatpush1.msra.mxu0 %v4502
        %4709 = vmatprep.subr.mxu0 0.0
        %4710 = vmatpush1.msra.mxu0 %v4503
        %4711 = vmatprep.subr.mxu0 0.0
        %4712 = vmatpush1.msra.mxu0 %v4504
        %4713 = vmatprep.subr.mxu0 0.0
        %4714 = vmatpush1.msra.mxu0 %v4505
        %4715 = vmatprep.subr.mxu0 0.0
        %4716 = vmatpush1.msra.mxu0 %v4506
        %4717 = vmatprep.subr.mxu0 0.0
        %4718 = vmatpush1.msra.mxu0 %v4507
        %4719 = vmatprep.subr.mxu0 0.0
        %4720 = vmatpush1.msra.mxu0 %v4508
        %4721 = vmatprep.subr.mxu0 0.0
        %4722 = vmatpush1.msra.mxu0 %v4509
        %4723 = vmatprep.subr.mxu0 0.0
        %4724 = vmatpush1.msra.mxu0 %v4510
        %4725 = vmatprep.subr.mxu0 0.0
        %4726 = vmatpush1.msra.mxu0 %v4511
        %4727 = vmatprep.subr.mxu0 0.0
        %4728 = vmatpush1.msra.mxu0 %v4512
        %4729 = vmatprep.subr.mxu0 0.0
        %4730 = vmatpush1.msra.mxu0 %v4513
        %4731 = vmatprep.subr.mxu0 0.0
        %4732 = vmatpush1.msra.mxu0 %v4514
        %4733 = vmatprep.subr.mxu0 0.0
        %4734 = vmatpush1.msra.mxu0 %v4515
        %4735 = vmatprep.subr.mxu0 0.0
        %4736 = vmatpush1.msra.mxu0 %v4516
        %4737 = vmatprep.subr.mxu0 0.0
        %4738 = vmatpush1.msra.mxu0 %v4517
        %4739 = vmatprep.mubr.f32.mxu0 %v4419
        %4740 = vmatmul.mubr.f32.gmra.mrb[0].mxu0 %v4418
        %v4741 = vpop.f32.mrb[0].mxu0
        %v4742 = vadd.f32 %v4667, %v4741
        %v4743 = vpop.f32.mrb[0].mxu0
        %4744 = vmatprep.mubr.f32.mxu0 %v4421
        %4745 = vmatmul.mubr.f32.gmra.mrb[0].mxu0 %v4420
        %v4746 = vpop.f32.mrb[0].mxu0
        %v4747 = vadd.f32 %v4672, %v4746
        %v4748 = vpop.f32.mrb[0].mxu0
        %4749 = vdwg.mxu0
        %v4750 = vld [vmem:[#allocation13] sm:$0xff]
        %4751 = vmatprep.subr.mxu0 0.0
        %4752 = vmatpush1.xpose.msra.mxu0 %v4742
        %4753 = vmatprep.subr.mxu0 0.0
        %4754 = vmatpush1.xpose.msra.mxu0 %v4747
        %4755 = vmatprep.subr.mxu0 0.0
        %4756 = vmatpush1.xpose.msra.mxu0 0.0
        %4757 = vmatprep.subr.mxu0 0.0
        %4758 = vmatpush1.xpose.msra.mxu0 0.0
        %4759 = vmatprep.subr.mxu0 0.0
        %4760 = vmatpush1.xpose.msra.mxu0 0.0
        %4761 = vmatprep.subr.mxu0 0.0
        %4762 = vmatpush1.xpose.msra.mxu0 0.0
        %4763 = vmatprep.subr.mxu0 0.0
        %4764 = vmatpush1.xpose.msra.mxu0 0.0
        %4765 = vmatprep.subr.mxu0 0.0
        %4766 = vmatpush1.xpose.msra.mxu0 0.0
        %4767 = vmatprep.subr.mxu0 0.0
        %4768 = vmatpush1.xpose.msra.mxu0 0.0
        %4769 = vmatprep.subr.mxu0 0.0
        %4770 = vmatpush1.xpose.msra.mxu0 0.0
        %4771 = vmatprep.subr.mxu0 0.0
        %4772 = vmatpush1.xpose.msra.mxu0 0.0
        %4773 = vmatprep.subr.mxu0 0.0
        %4774 = vmatpush1.xpose.msra.mxu0 0.0
        %4775 = vmatprep.subr.mxu0 0.0
        %4776 = vmatpush1.xpose.msra.mxu0 0.0
        %4777 = vmatprep.subr.mxu0 0.0
        %4778 = vmatpush1.xpose.msra.mxu0 0.0
        %4779 = vmatprep.subr.mxu0 0.0
        %4780 = vmatpush1.xpose.msra.mxu0 0.0
        %4781 = vmatprep.subr.mxu0 0.0
        %4782 = vmatpush1.xpose.msra.mxu0 0.0
        %4783 = vmatprep.subr.mxu0 0.0
        %4784 = vmatpush1.xpose.msra.mxu0 0.0
        %4785 = vmatprep.subr.mxu0 0.0
        %4786 = vmatpush1.xpose.msra.mxu0 0.0
        %4787 = vmatprep.subr.mxu0 0.0
        %4788 = vmatpush1.xpose.msra.mxu0 0.0
        %4789 = vmatprep.subr.mxu0 0.0
        %4790 = vmatpush1.xpose.msra.mxu0 0.0
        %4791 = vmatprep.subr.mxu0 0.0
        %4792 = vmatpush1.xpose.msra.mxu0 0.0
        %4793 = vmatprep.subr.mxu0 0.0
        %4794 = vmatpush1.xpose.msra.mxu0 0.0
        %4795 = vmatprep.subr.mxu0 0.0
        %4796 = vmatpush1.xpose.msra.mxu0 0.0
        %4797 = vmatprep.subr.mxu0 0.0
        %4798 = vmatpush1.xpose.msra.mxu0 0.0
        %4799 = vmatprep.subr.mxu0 0.0
        %4800 = vmatpush1.xpose.msra.mxu0 0.0
        %4801 = vmatprep.subr.mxu0 0.0
        %4802 = vmatpush1.xpose.msra.mxu0 0.0
        %4803 = vmatprep.subr.mxu0 0.0
        %4804 = vmatpush1.xpose.msra.mxu0 0.0
        %4805 = vmatprep.subr.mxu0 0.0
        %4806 = vmatpush1.xpose.msra.mxu0 0.0
        %4807 = vmatprep.subr.mxu0 0.0
        %4808 = vmatpush1.xpose.msra.mxu0 0.0
        %4809 = vmatprep.subr.mxu0 0.0
        %4810 = vmatpush1.xpose.msra.mxu0 0.0
        %4811 = vmatprep.subr.mxu0 0.0
        %4812 = vmatpush1.xpose.msra.mxu0 0.0
        %4813 = vmatprep.subr.mxu0 0.0
        %4814 = vmatpush1.xpose.msra.mxu0 0.0
        %4815 = vmatprep.mubr.f32.mxu0 0.0
        %4816 = vmatmul.mubr.f32.gmra.mrb[0].mxu0 %v4750
        %v4817 = vpop.f32.mrb[0].mxu0
        %v4818 = vadd.f32 0.0, %v4817
        %v4819 = vpop.f32.mrb[0].mxu0
        %4820 = vdwg.mxu0
        %s4821 = scalar_lea.vmem [#allocation13], 8
        %v4822 = vld [vmem:[%s4821] sm:$0xff]
        %4823 = vmatprep.subr.mxu0 0.0
        %4824 = vmatpush1.xpose.msra.mxu0 %v4742
        %4825 = vmatprep.subr.mxu0 0.0
        %4826 = vmatpush1.xpose.msra.mxu0 %v4747
        %4827 = vmatprep.subr.mxu0 0.0
        %4828 = vmatpush1.xpose.msra.mxu0 0.0
        %4829 = vmatprep.subr.mxu0 0.0
        %4830 = vmatpush1.xpose.msra.mxu0 0.0
        %4831 = vmatprep.subr.mxu0 0.0
        %4832 = vmatpush1.xpose.msra.mxu0 0.0
        %4833 = vmatprep.subr.mxu0 0.0
        %4834 = vmatpush1.xpose.msra.mxu0 0.0
        %4835 = vmatprep.subr.mxu0 0.0
        %4836 = vmatpush1.xpose.msra.mxu0 0.0
        %4837 = vmatprep.subr.mxu0 0.0
        %4838 = vmatpush1.xpose.msra.mxu0 0.0
        %4839 = vmatprep.subr.mxu0 0.0
        %4840 = vmatpush1.xpose.msra.mxu0 0.0
        %4841 = vmatprep.subr.mxu0 0.0
        %4842 = vmatpush1.xpose.msra.mxu0 0.0
        %4843 = vmatprep.subr.mxu0 0.0
        %4844 = vmatpush1.xpose.msra.mxu0 0.0
        %4845 = vmatprep.subr.mxu0 0.0
        %4846 = vmatpush1.xpose.msra.mxu0 0.0
        %4847 = vmatprep.subr.mxu0 0.0
        %4848 = vmatpush1.xpose.msra.mxu0 0.0
        %4849 = vmatprep.subr.mxu0 0.0
        %4850 = vmatpush1.xpose.msra.mxu0 0.0
        %4851 = vmatprep.subr.mxu0 0.0
        %4852 = vmatpush1.xpose.msra.mxu0 0.0
        %4853 = vmatprep.subr.mxu0 0.0
        %4854 = vmatpush1.xpose.msra.mxu0 0.0
        %4855 = vmatprep.subr.mxu0 0.0
        %4856 = vmatpush1.xpose.msra.mxu0 0.0
        %4857 = vmatprep.subr.mxu0 0.0
        %4858 = vmatpush1.xpose.msra.mxu0 0.0
        %4859 = vmatprep.subr.mxu0 0.0
        %4860 = vmatpush1.xpose.msra.mxu0 0.0
        %4861 = vmatprep.subr.mxu0 0.0
        %4862 = vmatpush1.xpose.msra.mxu0 0.0
        %4863 = vmatprep.subr.mxu0 0.0
        %4864 = vmatpush1.xpose.msra.mxu0 0.0
        %4865 = vmatprep.subr.mxu0 0.0
        %4866 = vmatpush1.xpose.msra.mxu0 0.0
        %4867 = vmatprep.subr.mxu0 0.0
        %4868 = vmatpush1.xpose.msra.mxu0 0.0
        %4869 = vmatprep.subr.mxu0 0.0
        %4870 = vmatpush1.xpose.msra.mxu0 0.0
        %4871 = vmatprep.subr.mxu0 0.0
        %4872 = vmatpush1.xpose.msra.mxu0 0.0
        %4873 = vmatprep.subr.mxu0 0.0
        %4874 = vmatpush1.xpose.msra.mxu0 0.0
        %4875 = vmatprep.subr.mxu0 0.0
        %4876 = vmatpush1.xpose.msra.mxu0 0.0
        %4877 = vmatprep.subr.mxu0 0.0
        %4878 = vmatpush1.xpose.msra.mxu0 0.0
        %4879 = vmatprep.subr.mxu0 0.0
        %4880 = vmatpush1.xpose.msra.mxu0 0.0
        %4881 = vmatprep.subr.mxu0 0.0
        %4882 = vmatpush1.xpose.msra.mxu0 0.0
        %4883 = vmatprep.subr.mxu0 0.0
        %4884 = vmatpush1.xpose.msra.mxu0 0.0
        %4885 = vmatprep.subr.mxu0 0.0
        %4886 = vmatpush1.xpose.msra.mxu0 0.0
        %4887 = vmatprep.mubr.f32.mxu0 0.0
        %4888 = vmatmul.mubr.f32.gmra.mrb[0].mxu0 %v4822
        %v4889 = vpop.f32.mrb[0].mxu0
        %v4890 = vadd.f32 0.0, %v4889
        %v4891 = vpop.f32.mrb[0].mxu0
        %4892 = vdwg.mxu0
        %s4893 = scalar_lea.vmem [#allocation13], 16
        %v4894 = vld [vmem:[%s4893] sm:$0xff]
        %4895 = vmatprep.subr.mxu0 0.0
        %4896 = vmatpush1.xpose.msra.mxu0 %v4742
        %4897 = vmatprep.subr.mxu0 0.0
        %4898 = vmatpush1.xpose.msra.mxu0 %v4747
        %4899 = vmatprep.subr.mxu0 0.0
        %4900 = vmatpush1.xpose.msra.mxu0 0.0
        %4901 = vmatprep.subr.mxu0 0.0
        %4902 = vmatpush1.xpose.msra.mxu0 0.0
        %4903 = vmatprep.subr.mxu0 0.0
        %4904 = vmatpush1.xpose.msra.mxu0 0.0
        %4905 = vmatprep.subr.mxu0 0.0
        %4906 = vmatpush1.xpose.msra.mxu0 0.0
        %4907 = vmatprep.subr.mxu0 0.0
        %4908 = vmatpush1.xpose.msra.mxu0 0.0
        %4909 = vmatprep.subr.mxu0 0.0
        %4910 = vmatpush1.xpose.msra.mxu0 0.0
        %4911 = vmatprep.subr.mxu0 0.0
        %4912 = vmatpush1.xpose.msra.mxu0 0.0
        %4913 = vmatprep.subr.mxu0 0.0
        %4914 = vmatpush1.xpose.msra.mxu0 0.0
        %4915 = vmatprep.subr.mxu0 0.0
        %4916 = vmatpush1.xpose.msra.mxu0 0.0
        %4917 = vmatprep.subr.mxu0 0.0
        %4918 = vmatpush1.xpose.msra.mxu0 0.0
        %4919 = vmatprep.subr.mxu0 0.0
        %4920 = vmatpush1.xpose.msra.mxu0 0.0
        %4921 = vmatprep.subr.mxu0 0.0
        %4922 = vmatpush1.xpose.msra.mxu0 0.0
        %4923 = vmatprep.subr.mxu0 0.0
        %4924 = vmatpush1.xpose.msra.mxu0 0.0
        %4925 = vmatprep.subr.mxu0 0.0
        %4926 = vmatpush1.xpose.msra.mxu0 0.0
        %4927 = vmatprep.subr.mxu0 0.0
        %4928 = vmatpush1.xpose.msra.mxu0 0.0
        %4929 = vmatprep.subr.mxu0 0.0
        %4930 = vmatpush1.xpose.msra.mxu0 0.0
        %4931 = vmatprep.subr.mxu0 0.0
        %4932 = vmatpush1.xpose.msra.mxu0 0.0
        %4933 = vmatprep.subr.mxu0 0.0
        %4934 = vmatpush1.xpose.msra.mxu0 0.0
        %4935 = vmatprep.subr.mxu0 0.0
        %4936 = vmatpush1.xpose.msra.mxu0 0.0
        %4937 = vmatprep.subr.mxu0 0.0
        %4938 = vmatpush1.xpose.msra.mxu0 0.0
        %4939 = vmatprep.subr.mxu0 0.0
        %4940 = vmatpush1.xpose.msra.mxu0 0.0
        %4941 = vmatprep.subr.mxu0 0.0
        %4942 = vmatpush1.xpose.msra.mxu0 0.0
        %4943 = vmatprep.subr.mxu0 0.0
        %4944 = vmatpush1.xpose.msra.mxu0 0.0
        %4945 = vmatprep.subr.mxu0 0.0
        %4946 = vmatpush1.xpose.msra.mxu0 0.0
        %4947 = vmatprep.subr.mxu0 0.0
        %4948 = vmatpush1.xpose.msra.mxu0 0.0
        %4949 = vmatprep.subr.mxu0 0.0
        %4950 = vmatpush1.xpose.msra.mxu0 0.0
        %4951 = vmatprep.subr.mxu0 0.0
        %4952 = vmatpush1.xpose.msra.mxu0 0.0
        %4953 = vmatprep.subr.mxu0 0.0
        %4954 = vmatpush1.xpose.msra.mxu0 0.0
        %4955 = vmatprep.subr.mxu0 0.0
        %4956 = vmatpush1.xpose.msra.mxu0 0.0
        %4957 = vmatprep.subr.mxu0 0.0
        %4958 = vmatpush1.xpose.msra.mxu0 0.0
        %4959 = vmatprep.mubr.f32.mxu0 0.0
        %4960 = vmatmul.mubr.f32.gmra.mrb[0].mxu0 %v4894
        %v4961 = vpop.f32.mrb[0].mxu0
        %v4962 = vadd.f32 0.0, %v4961
        %v4963 = vpop.f32.mrb[0].mxu0
        %4964 = vdwg.mxu0
        %s4965 = scalar_lea.vmem [#allocation13], 24
        %v4966 = vld [vmem:[%s4965] sm:$0xff]
        %4967 = vmatprep.subr.mxu0 0.0
        %4968 = vmatpush1.xpose.msra.mxu0 %v4742
        %4969 = vmatprep.subr.mxu0 0.0
        %4970 = vmatpush1.xpose.msra.mxu0 %v4747
        %4971 = vmatprep.subr.mxu0 0.0
        %4972 = vmatpush1.xpose.msra.mxu0 0.0
        %4973 = vmatprep.subr.mxu0 0.0
        %4974 = vmatpush1.xpose.msra.mxu0 0.0
        %4975 = vmatprep.subr.mxu0 0.0
        %4976 = vmatpush1.xpose.msra.mxu0 0.0
        %4977 = vmatprep.subr.mxu0 0.0
        %4978 = vmatpush1.xpose.msra.mxu0 0.0
        %4979 = vmatprep.subr.mxu0 0.0
        %4980 = vmatpush1.xpose.msra.mxu0 0.0
        %4981 = vmatprep.subr.mxu0 0.0
        %4982 = vmatpush1.xpose.msra.mxu0 0.0
        %4983 = vmatprep.subr.mxu0 0.0
        %4984 = vmatpush1.xpose.msra.mxu0 0.0
        %4985 = vmatprep.subr.mxu0 0.0
        %4986 = vmatpush1.xpose.msra.mxu0 0.0
        %4987 = vmatprep.subr.mxu0 0.0
        %4988 = vmatpush1.xpose.msra.mxu0 0.0
        %4989 = vmatprep.subr.mxu0 0.0
        %4990 = vmatpush1.xpose.msra.mxu0 0.0
        %4991 = vmatprep.subr.mxu0 0.0
        %4992 = vmatpush1.xpose.msra.mxu0 0.0
        %4993 = vmatprep.subr.mxu0 0.0
        %4994 = vmatpush1.xpose.msra.mxu0 0.0
        %4995 = vmatprep.subr.mxu0 0.0
        %4996 = vmatpush1.xpose.msra.mxu0 0.0
        %4997 = vmatprep.subr.mxu0 0.0
        %4998 = vmatpush1.xpose.msra.mxu0 0.0
        %4999 = vmatprep.subr.mxu0 0.0
        %5000 = vmatpush1.xpose.msra.mxu0 0.0
        %5001 = vmatprep.subr.mxu0 0.0
        %5002 = vmatpush1.xpose.msra.mxu0 0.0
        %5003 = vmatprep.subr.mxu0 0.0
        %5004 = vmatpush1.xpose.msra.mxu0 0.0
        %5005 = vmatprep.subr.mxu0 0.0
        %5006 = vmatpush1.xpose.msra.mxu0 0.0
        %5007 = vmatprep.subr.mxu0 0.0
        %5008 = vmatpush1.xpose.msra.mxu0 0.0
        %5009 = vmatprep.subr.mxu0 0.0
        %5010 = vmatpush1.xpose.msra.mxu0 0.0
        %5011 = vmatprep.subr.mxu0 0.0
        %5012 = vmatpush1.xpose.msra.mxu0 0.0
        %5013 = vmatprep.subr.mxu0 0.0
        %5014 = vmatpush1.xpose.msra.mxu0 0.0
        %5015 = vmatprep.subr.mxu0 0.0
        %5016 = vmatpush1.xpose.msra.mxu0 0.0
        %5017 = vmatprep.subr.mxu0 0.0
        %5018 = vmatpush1.xpose.msra.mxu0 0.0
        %5019 = vmatprep.subr.mxu0 0.0
        %5020 = vmatpush1.xpose.msra.mxu0 0.0
        %5021 = vmatprep.subr.mxu0 0.0
        %5022 = vmatpush1.xpose.msra.mxu0 0.0
        %5023 = vmatprep.subr.mxu0 0.0
        %5024 = vmatpush1.xpose.msra.mxu0 0.0
        %5025 = vmatprep.subr.mxu0 0.0
        %5026 = vmatpush1.xpose.msra.mxu0 0.0
        %5027 = vmatprep.subr.mxu0 0.0
        %5028 = vmatpush1.xpose.msra.mxu0 0.0
        %5029 = vmatprep.subr.mxu0 0.0
        %5030 = vmatpush1.xpose.msra.mxu0 0.0
        %5031 = vmatprep.mubr.f32.mxu0 0.0
        %5032 = vmatmul.mubr.f32.gmra.mrb[0].mxu0 %v4966
        %v5033 = vpop.f32.mrb[0].mxu0
        %v5034 = vadd.f32 0.0, %v5033
        %v5035 = vpop.f32.mrb[0].mxu0
        %5036 = vdwg.mxu0
        %s5037 = scalar_lea.vmem [#allocation13], 32
        %v5038 = vld [vmem:[%s5037] sm:$0xff]
        %5039 = vmatprep.subr.mxu0 0.0
        %5040 = vmatpush1.xpose.msra.mxu0 %v4742
        %5041 = vmatprep.subr.mxu0 0.0
        %5042 = vmatpush1.xpose.msra.mxu0 %v4747
        %5043 = vmatprep.subr.mxu0 0.0
        %5044 = vmatpush1.xpose.msra.mxu0 0.0
        %5045 = vmatprep.subr.mxu0 0.0
        %5046 = vmatpush1.xpose.msra.mxu0 0.0
        %5047 = vmatprep.subr.mxu0 0.0
        %5048 = vmatpush1.xpose.msra.mxu0 0.0
        %5049 = vmatprep.subr.mxu0 0.0
        %5050 = vmatpush1.xpose.msra.mxu0 0.0
        %5051 = vmatprep.subr.mxu0 0.0
        %5052 = vmatpush1.xpose.msra.mxu0 0.0
        %5053 = vmatprep.subr.mxu0 0.0
        %5054 = vmatpush1.xpose.msra.mxu0 0.0
        %5055 = vmatprep.subr.mxu0 0.0
        %5056 = vmatpush1.xpose.msra.mxu0 0.0
        %5057 = vmatprep.subr.mxu0 0.0
        %5058 = vmatpush1.xpose.msra.mxu0 0.0
        %5059 = vmatprep.subr.mxu0 0.0
        %5060 = vmatpush1.xpose.msra.mxu0 0.0
        %5061 = vmatprep.subr.mxu0 0.0
        %5062 = vmatpush1.xpose.msra.mxu0 0.0
        %5063 = vmatprep.subr.mxu0 0.0
        %5064 = vmatpush1.xpose.msra.mxu0 0.0
        %5065 = vmatprep.subr.mxu0 0.0
        %5066 = vmatpush1.xpose.msra.mxu0 0.0
        %5067 = vmatprep.subr.mxu0 0.0
        %5068 = vmatpush1.xpose.msra.mxu0 0.0
        %5069 = vmatprep.subr.mxu0 0.0
        %5070 = vmatpush1.xpose.msra.mxu0 0.0
        %5071 = vmatprep.subr.mxu0 0.0
        %5072 = vmatpush1.xpose.msra.mxu0 0.0
        %5073 = vmatprep.subr.mxu0 0.0
        %5074 = vmatpush1.xpose.msra.mxu0 0.0
        %5075 = vmatprep.subr.mxu0 0.0
        %5076 = vmatpush1.xpose.msra.mxu0 0.0
        %5077 = vmatprep.subr.mxu0 0.0
        %5078 = vmatpush1.xpose.msra.mxu0 0.0
        %5079 = vmatprep.subr.mxu0 0.0
        %5080 = vmatpush1.xpose.msra.mxu0 0.0
        %5081 = vmatprep.subr.mxu0 0.0
        %5082 = vmatpush1.xpose.msra.mxu0 0.0
        %5083 = vmatprep.subr.mxu0 0.0
        %5084 = vmatpush1.xpose.msra.mxu0 0.0
        %5085 = vmatprep.subr.mxu0 0.0
        %5086 = vmatpush1.xpose.msra.mxu0 0.0
        %5087 = vmatprep.subr.mxu0 0.0
        %5088 = vmatpush1.xpose.msra.mxu0 0.0
        %5089 = vmatprep.subr.mxu0 0.0
        %5090 = vmatpush1.xpose.msra.mxu0 0.0
        %5091 = vmatprep.subr.mxu0 0.0
        %5092 = vmatpush1.xpose.msra.mxu0 0.0
        %5093 = vmatprep.subr.mxu0 0.0
        %5094 = vmatpush1.xpose.msra.mxu0 0.0
        %5095 = vmatprep.subr.mxu0 0.0
        %5096 = vmatpush1.xpose.msra.mxu0 0.0
        %5097 = vmatprep.subr.mxu0 0.0
        %5098 = vmatpush1.xpose.msra.mxu0 0.0
        %5099 = vmatprep.subr.mxu0 0.0
        %5100 = vmatpush1.xpose.msra.mxu0 0.0
        %5101 = vmatprep.subr.mxu0 0.0
        %5102 = vmatpush1.xpose.msra.mxu0 0.0
        %5103 = vmatprep.mubr.f32.mxu0 0.0
        %5104 = vmatmul.mubr.f32.gmra.mrb[0].mxu0 %v5038
        %v5105 = vpop.f32.mrb[0].mxu0
        %v5106 = vadd.f32 0.0, %v5105
        %v5107 = vpop.f32.mrb[0].mxu0
        %5108 = vdwg.mxu0
        %s5109 = scalar_lea.vmem [#allocation13], 40
        %v5110 = vld [vmem:[%s5109] sm:$0xff]
        %5111 = vmatprep.subr.mxu0 0.0
        %5112 = vmatpush1.xpose.msra.mxu0 %v4742
        %5113 = vmatprep.subr.mxu0 0.0
        %5114 = vmatpush1.xpose.msra.mxu0 %v4747
        %5115 = vmatprep.subr.mxu0 0.0
        %5116 = vmatpush1.xpose.msra.mxu0 0.0
        %5117 = vmatprep.subr.mxu0 0.0
        %5118 = vmatpush1.xpose.msra.mxu0 0.0
        %5119 = vmatprep.subr.mxu0 0.0
        %5120 = vmatpush1.xpose.msra.mxu0 0.0
        %5121 = vmatprep.subr.mxu0 0.0
        %5122 = vmatpush1.xpose.msra.mxu0 0.0
        %5123 = vmatprep.subr.mxu0 0.0
        %5124 = vmatpush1.xpose.msra.mxu0 0.0
        %5125 = vmatprep.subr.mxu0 0.0
        %5126 = vmatpush1.xpose.msra.mxu0 0.0
        %5127 = vmatprep.subr.mxu0 0.0
        %5128 = vmatpush1.xpose.msra.mxu0 0.0
        %5129 = vmatprep.subr.mxu0 0.0
        %5130 = vmatpush1.xpose.msra.mxu0 0.0
        %5131 = vmatprep.subr.mxu0 0.0
        %5132 = vmatpush1.xpose.msra.mxu0 0.0
        %5133 = vmatprep.subr.mxu0 0.0
        %5134 = vmatpush1.xpose.msra.mxu0 0.0
        %5135 = vmatprep.subr.mxu0 0.0
        %5136 = vmatpush1.xpose.msra.mxu0 0.0
        %5137 = vmatprep.subr.mxu0 0.0
        %5138 = vmatpush1.xpose.msra.mxu0 0.0
        %5139 = vmatprep.subr.mxu0 0.0
        %5140 = vmatpush1.xpose.msra.mxu0 0.0
        %5141 = vmatprep.subr.mxu0 0.0
        %5142 = vmatpush1.xpose.msra.mxu0 0.0
        %5143 = vmatprep.subr.mxu0 0.0
        %5144 = vmatpush1.xpose.msra.mxu0 0.0
        %5145 = vmatprep.subr.mxu0 0.0
        %5146 = vmatpush1.xpose.msra.mxu0 0.0
        %5147 = vmatprep.subr.mxu0 0.0
        %5148 = vmatpush1.xpose.msra.mxu0 0.0
        %5149 = vmatprep.subr.mxu0 0.0
        %5150 = vmatpush1.xpose.msra.mxu0 0.0
        %5151 = vmatprep.subr.mxu0 0.0
        %5152 = vmatpush1.xpose.msra.mxu0 0.0
        %5153 = vmatprep.subr.mxu0 0.0
        %5154 = vmatpush1.xpose.msra.mxu0 0.0
        %5155 = vmatprep.subr.mxu0 0.0
        %5156 = vmatpush1.xpose.msra.mxu0 0.0
        %5157 = vmatprep.subr.mxu0 0.0
        %5158 = vmatpush1.xpose.msra.mxu0 0.0
        %5159 = vmatprep.subr.mxu0 0.0
        %5160 = vmatpush1.xpose.msra.mxu0 0.0
        %5161 = vmatprep.subr.mxu0 0.0
        %5162 = vmatpush1.xpose.msra.mxu0 0.0
        %5163 = vmatprep.subr.mxu0 0.0
        %5164 = vmatpush1.xpose.msra.mxu0 0.0
        %5165 = vmatprep.subr.mxu0 0.0
        %5166 = vmatpush1.xpose.msra.mxu0 0.0
        %5167 = vmatprep.subr.mxu0 0.0
        %5168 = vmatpush1.xpose.msra.mxu0 0.0
        %5169 = vmatprep.subr.mxu0 0.0
        %5170 = vmatpush1.xpose.msra.mxu0 0.0
        %5171 = vmatprep.subr.mxu0 0.0
        %5172 = vmatpush1.xpose.msra.mxu0 0.0
        %5173 = vmatprep.subr.mxu0 0.0
        %5174 = vmatpush1.xpose.msra.mxu0 0.0
        %5175 = vmatprep.mubr.f32.mxu0 0.0
        %5176 = vmatmul.mubr.f32.gmra.mrb[0].mxu0 %v5110
        %v5177 = vpop.f32.mrb[0].mxu0
        %v5178 = vadd.f32 0.0, %v5177
        %v5179 = vpop.f32.mrb[0].mxu0
        %5180 = vdwg.mxu0
        %s5181 = scalar_lea.vmem [#allocation13], 48
        %v5182 = vld [vmem:[%s5181] sm:$0xff]
        %5183 = vmatprep.subr.mxu0 0.0
        %5184 = vmatpush1.xpose.msra.mxu0 %v4742
        %5185 = vmatprep.subr.mxu0 0.0
        %5186 = vmatpush1.xpose.msra.mxu0 %v4747
        %5187 = vmatprep.subr.mxu0 0.0
        %5188 = vmatpush1.xpose.msra.mxu0 0.0
        %5189 = vmatprep.subr.mxu0 0.0
        %5190 = vmatpush1.xpose.msra.mxu0 0.0
        %5191 = vmatprep.subr.mxu0 0.0
        %5192 = vmatpush1.xpose.msra.mxu0 0.0
        %5193 = vmatprep.subr.mxu0 0.0
        %5194 = vmatpush1.xpose.msra.mxu0 0.0
        %5195 = vmatprep.subr.mxu0 0.0
        %5196 = vmatpush1.xpose.msra.mxu0 0.0
        %5197 = vmatprep.subr.mxu0 0.0
        %5198 = vmatpush1.xpose.msra.mxu0 0.0
        %5199 = vmatprep.subr.mxu0 0.0
        %5200 = vmatpush1.xpose.msra.mxu0 0.0
        %5201 = vmatprep.subr.mxu0 0.0
        %5202 = vmatpush1.xpose.msra.mxu0 0.0
        %5203 = vmatprep.subr.mxu0 0.0
        %5204 = vmatpush1.xpose.msra.mxu0 0.0
        %5205 = vmatprep.subr.mxu0 0.0
        %5206 = vmatpush1.xpose.msra.mxu0 0.0
        %5207 = vmatprep.subr.mxu0 0.0
        %5208 = vmatpush1.xpose.msra.mxu0 0.0
        %5209 = vmatprep.subr.mxu0 0.0
        %5210 = vmatpush1.xpose.msra.mxu0 0.0
        %5211 = vmatprep.subr.mxu0 0.0
        %5212 = vmatpush1.xpose.msra.mxu0 0.0
        %5213 = vmatprep.subr.mxu0 0.0
        %5214 = vmatpush1.xpose.msra.mxu0 0.0
        %5215 = vmatprep.subr.mxu0 0.0
        %5216 = vmatpush1.xpose.msra.mxu0 0.0
        %5217 = vmatprep.subr.mxu0 0.0
        %5218 = vmatpush1.xpose.msra.mxu0 0.0
        %5219 = vmatprep.subr.mxu0 0.0
        %5220 = vmatpush1.xpose.msra.mxu0 0.0
        %5221 = vmatprep.subr.mxu0 0.0
        %5222 = vmatpush1.xpose.msra.mxu0 0.0
        %5223 = vmatprep.subr.mxu0 0.0
        %5224 = vmatpush1.xpose.msra.mxu0 0.0
        %5225 = vmatprep.subr.mxu0 0.0
        %5226 = vmatpush1.xpose.msra.mxu0 0.0
        %5227 = vmatprep.subr.mxu0 0.0
        %5228 = vmatpush1.xpose.msra.mxu0 0.0
        %5229 = vmatprep.subr.mxu0 0.0
        %5230 = vmatpush1.xpose.msra.mxu0 0.0
        %5231 = vmatprep.subr.mxu0 0.0
        %5232 = vmatpush1.xpose.msra.mxu0 0.0
        %5233 = vmatprep.subr.mxu0 0.0
        %5234 = vmatpush1.xpose.msra.mxu0 0.0
        %5235 = vmatprep.subr.mxu0 0.0
        %5236 = vmatpush1.xpose.msra.mxu0 0.0
        %5237 = vmatprep.subr.mxu0 0.0
        %5238 = vmatpush1.xpose.msra.mxu0 0.0
        %5239 = vmatprep.subr.mxu0 0.0
        %5240 = vmatpush1.xpose.msra.mxu0 0.0
        %5241 = vmatprep.subr.mxu0 0.0
        %5242 = vmatpush1.xpose.msra.mxu0 0.0
        %5243 = vmatprep.subr.mxu0 0.0
        %5244 = vmatpush1.xpose.msra.mxu0 0.0
        %5245 = vmatprep.subr.mxu0 0.0
        %5246 = vmatpush1.xpose.msra.mxu0 0.0
        %5247 = vmatprep.mubr.f32.mxu0 0.0
        %5248 = vmatmul.mubr.f32.gmra.mrb[0].mxu0 %v5182
        %v5249 = vpop.f32.mrb[0].mxu0
        %v5250 = vadd.f32 0.0, %v5249
        %v5251 = vpop.f32.mrb[0].mxu0
        %5252 = vdwg.mxu0
        %s5253 = scalar_lea.vmem [#allocation13], 56
        %v5254 = vld [vmem:[%s5253] sm:$0xff]
        %5255 = vmatprep.subr.mxu0 0.0
        %5256 = vmatpush1.xpose.msra.mxu0 %v4742
        %5257 = vmatprep.subr.mxu0 0.0
        %5258 = vmatpush1.xpose.msra.mxu0 %v4747
        %5259 = vmatprep.subr.mxu0 0.0
        %5260 = vmatpush1.xpose.msra.mxu0 0.0
        %5261 = vmatprep.subr.mxu0 0.0
        %5262 = vmatpush1.xpose.msra.mxu0 0.0
        %5263 = vmatprep.subr.mxu0 0.0
        %5264 = vmatpush1.xpose.msra.mxu0 0.0
        %5265 = vmatprep.subr.mxu0 0.0
        %5266 = vmatpush1.xpose.msra.mxu0 0.0
        %5267 = vmatprep.subr.mxu0 0.0
        %5268 = vmatpush1.xpose.msra.mxu0 0.0
        %5269 = vmatprep.subr.mxu0 0.0
        %5270 = vmatpush1.xpose.msra.mxu0 0.0
        %5271 = vmatprep.subr.mxu0 0.0
        %5272 = vmatpush1.xpose.msra.mxu0 0.0
        %5273 = vmatprep.subr.mxu0 0.0
        %5274 = vmatpush1.xpose.msra.mxu0 0.0
        %5275 = vmatprep.subr.mxu0 0.0
        %5276 = vmatpush1.xpose.msra.mxu0 0.0
        %5277 = vmatprep.subr.mxu0 0.0
        %5278 = vmatpush1.xpose.msra.mxu0 0.0
        %5279 = vmatprep.subr.mxu0 0.0
        %5280 = vmatpush1.xpose.msra.mxu0 0.0
        %5281 = vmatprep.subr.mxu0 0.0
        %5282 = vmatpush1.xpose.msra.mxu0 0.0
        %5283 = vmatprep.subr.mxu0 0.0
        %5284 = vmatpush1.xpose.msra.mxu0 0.0
        %5285 = vmatprep.subr.mxu0 0.0
        %5286 = vmatpush1.xpose.msra.mxu0 0.0
        %5287 = vmatprep.subr.mxu0 0.0
        %5288 = vmatpush1.xpose.msra.mxu0 0.0
        %5289 = vmatprep.subr.mxu0 0.0
        %5290 = vmatpush1.xpose.msra.mxu0 0.0
        %5291 = vmatprep.subr.mxu0 0.0
        %5292 = vmatpush1.xpose.msra.mxu0 0.0
        %5293 = vmatprep.subr.mxu0 0.0
        %5294 = vmatpush1.xpose.msra.mxu0 0.0
        %5295 = vmatprep.subr.mxu0 0.0
        %5296 = vmatpush1.xpose.msra.mxu0 0.0
        %5297 = vmatprep.subr.mxu0 0.0
        %5298 = vmatpush1.xpose.msra.mxu0 0.0
        %5299 = vmatprep.subr.mxu0 0.0
        %5300 = vmatpush1.xpose.msra.mxu0 0.0
        %5301 = vmatprep.subr.mxu0 0.0
        %5302 = vmatpush1.xpose.msra.mxu0 0.0
        %5303 = vmatprep.subr.mxu0 0.0
        %5304 = vmatpush1.xpose.msra.mxu0 0.0
        %5305 = vmatprep.subr.mxu0 0.0
        %5306 = vmatpush1.xpose.msra.mxu0 0.0
        %5307 = vmatprep.subr.mxu0 0.0
        %5308 = vmatpush1.xpose.msra.mxu0 0.0
        %5309 = vmatprep.subr.mxu0 0.0
        %5310 = vmatpush1.xpose.msra.mxu0 0.0
        %5311 = vmatprep.subr.mxu0 0.0
        %5312 = vmatpush1.xpose.msra.mxu0 0.0
        %5313 = vmatprep.subr.mxu0 0.0
        %5314 = vmatpush1.xpose.msra.mxu0 0.0
        %5315 = vmatprep.subr.mxu0 0.0
        %5316 = vmatpush1.xpose.msra.mxu0 0.0
        %5317 = vmatprep.subr.mxu0 0.0
        %5318 = vmatpush1.xpose.msra.mxu0 0.0
        %5319 = vmatprep.mubr.f32.mxu0 0.0
        %5320 = vmatmul.mubr.f32.gmra.mrb[0].mxu0 %v5254
        %v5321 = vpop.f32.mrb[0].mxu0
        %v5322 = vadd.f32 0.0, %v5321
        %v5323 = vpop.f32.mrb[0].mxu0
        %5324 = vdwg.mxu0
        %s5325 = scalar_lea.vmem [#allocation13], 64
        %v5326 = vld [vmem:[%s5325] sm:$0xff]
        %5327 = vmatprep.subr.mxu0 0.0
        %5328 = vmatpush1.xpose.msra.mxu0 %v4742
        %5329 = vmatprep.subr.mxu0 0.0
        %5330 = vmatpush1.xpose.msra.mxu0 %v4747
        %5331 = vmatprep.subr.mxu0 0.0
        %5332 = vmatpush1.xpose.msra.mxu0 0.0
        %5333 = vmatprep.subr.mxu0 0.0
        %5334 = vmatpush1.xpose.msra.mxu0 0.0
        %5335 = vmatprep.subr.mxu0 0.0
        %5336 = vmatpush1.xpose.msra.mxu0 0.0
        %5337 = vmatprep.subr.mxu0 0.0
        %5338 = vmatpush1.xpose.msra.mxu0 0.0
        %5339 = vmatprep.subr.mxu0 0.0
        %5340 = vmatpush1.xpose.msra.mxu0 0.0
        %5341 = vmatprep.subr.mxu0 0.0
        %5342 = vmatpush1.xpose.msra.mxu0 0.0
        %5343 = vmatprep.subr.mxu0 0.0
        %5344 = vmatpush1.xpose.msra.mxu0 0.0
        %5345 = vmatprep.subr.mxu0 0.0
        %5346 = vmatpush1.xpose.msra.mxu0 0.0
        %5347 = vmatprep.subr.mxu0 0.0
        %5348 = vmatpush1.xpose.msra.mxu0 0.0
        %5349 = vmatprep.subr.mxu0 0.0
        %5350 = vmatpush1.xpose.msra.mxu0 0.0
        %5351 = vmatprep.subr.mxu0 0.0
        %5352 = vmatpush1.xpose.msra.mxu0 0.0
        %5353 = vmatprep.subr.mxu0 0.0
        %5354 = vmatpush1.xpose.msra.mxu0 0.0
        %5355 = vmatprep.subr.mxu0 0.0
        %5356 = vmatpush1.xpose.msra.mxu0 0.0
        %5357 = vmatprep.subr.mxu0 0.0
        %5358 = vmatpush1.xpose.msra.mxu0 0.0
        %5359 = vmatprep.subr.mxu0 0.0
        %5360 = vmatpush1.xpose.msra.mxu0 0.0
        %5361 = vmatprep.subr.mxu0 0.0
        %5362 = vmatpush1.xpose.msra.mxu0 0.0
        %5363 = vmatprep.subr.mxu0 0.0
        %5364 = vmatpush1.xpose.msra.mxu0 0.0
        %5365 = vmatprep.subr.mxu0 0.0
        %5366 = vmatpush1.xpose.msra.mxu0 0.0
        %5367 = vmatprep.subr.mxu0 0.0
        %5368 = vmatpush1.xpose.msra.mxu0 0.0
        %5369 = vmatprep.subr.mxu0 0.0
        %5370 = vmatpush1.xpose.msra.mxu0 0.0
        %5371 = vmatprep.subr.mxu0 0.0
        %5372 = vmatpush1.xpose.msra.mxu0 0.0
        %5373 = vmatprep.subr.mxu0 0.0
        %5374 = vmatpush1.xpose.msra.mxu0 0.0
        %5375 = vmatprep.subr.mxu0 0.0
        %5376 = vmatpush1.xpose.msra.mxu0 0.0
        %5377 = vmatprep.subr.mxu0 0.0
        %5378 = vmatpush1.xpose.msra.mxu0 0.0
        %5379 = vmatprep.subr.mxu0 0.0
        %5380 = vmatpush1.xpose.msra.mxu0 0.0
        %5381 = vmatprep.subr.mxu0 0.0
        %5382 = vmatpush1.xpose.msra.mxu0 0.0
        %5383 = vmatprep.subr.mxu0 0.0
        %5384 = vmatpush1.xpose.msra.mxu0 0.0
        %5385 = vmatprep.subr.mxu0 0.0
        %5386 = vmatpush1.xpose.msra.mxu0 0.0
        %5387 = vmatprep.subr.mxu0 0.0
        %5388 = vmatpush1.xpose.msra.mxu0 0.0
        %5389 = vmatprep.subr.mxu0 0.0
        %5390 = vmatpush1.xpose.msra.mxu0 0.0
        %5391 = vmatprep.mubr.f32.mxu0 0.0
        %5392 = vmatmul.mubr.f32.gmra.mrb[0].mxu0 %v5326
        %v5393 = vpop.f32.mrb[0].mxu0
        %v5394 = vadd.f32 0.0, %v5393
        %v5395 = vpop.f32.mrb[0].mxu0
        %5396 = vdwg.mxu0
        %s5397 = scalar_lea.vmem [#allocation13], 72
        %v5398 = vld [vmem:[%s5397] sm:$0xff]
        %5399 = vmatprep.subr.mxu0 0.0
        %5400 = vmatpush1.xpose.msra.mxu0 %v4742
        %5401 = vmatprep.subr.mxu0 0.0
        %5402 = vmatpush1.xpose.msra.mxu0 %v4747
        %5403 = vmatprep.subr.mxu0 0.0
        %5404 = vmatpush1.xpose.msra.mxu0 0.0
        %5405 = vmatprep.subr.mxu0 0.0
        %5406 = vmatpush1.xpose.msra.mxu0 0.0
        %5407 = vmatprep.subr.mxu0 0.0
        %5408 = vmatpush1.xpose.msra.mxu0 0.0
        %5409 = vmatprep.subr.mxu0 0.0
        %5410 = vmatpush1.xpose.msra.mxu0 0.0
        %5411 = vmatprep.subr.mxu0 0.0
        %5412 = vmatpush1.xpose.msra.mxu0 0.0
        %5413 = vmatprep.subr.mxu0 0.0
        %5414 = vmatpush1.xpose.msra.mxu0 0.0
        %5415 = vmatprep.subr.mxu0 0.0
        %5416 = vmatpush1.xpose.msra.mxu0 0.0
        %5417 = vmatprep.subr.mxu0 0.0
        %5418 = vmatpush1.xpose.msra.mxu0 0.0
        %5419 = vmatprep.subr.mxu0 0.0
        %5420 = vmatpush1.xpose.msra.mxu0 0.0
        %5421 = vmatprep.subr.mxu0 0.0
        %5422 = vmatpush1.xpose.msra.mxu0 0.0
        %5423 = vmatprep.subr.mxu0 0.0
        %5424 = vmatpush1.xpose.msra.mxu0 0.0
        %5425 = vmatprep.subr.mxu0 0.0
        %5426 = vmatpush1.xpose.msra.mxu0 0.0
        %5427 = vmatprep.subr.mxu0 0.0
        %5428 = vmatpush1.xpose.msra.mxu0 0.0
        %5429 = vmatprep.subr.mxu0 0.0
        %5430 = vmatpush1.xpose.msra.mxu0 0.0
        %5431 = vmatprep.subr.mxu0 0.0
        %5432 = vmatpush1.xpose.msra.mxu0 0.0
        %5433 = vmatprep.subr.mxu0 0.0
        %5434 = vmatpush1.xpose.msra.mxu0 0.0
        %5435 = vmatprep.subr.mxu0 0.0
        %5436 = vmatpush1.xpose.msra.mxu0 0.0
        %5437 = vmatprep.subr.mxu0 0.0
        %5438 = vmatpush1.xpose.msra.mxu0 0.0
        %5439 = vmatprep.subr.mxu0 0.0
        %5440 = vmatpush1.xpose.msra.mxu0 0.0
        %5441 = vmatprep.subr.mxu0 0.0
        %5442 = vmatpush1.xpose.msra.mxu0 0.0
        %5443 = vmatprep.subr.mxu0 0.0
        %5444 = vmatpush1.xpose.msra.mxu0 0.0
        %5445 = vmatprep.subr.mxu0 0.0
        %5446 = vmatpush1.xpose.msra.mxu0 0.0
        %5447 = vmatprep.subr.mxu0 0.0
        %5448 = vmatpush1.xpose.msra.mxu0 0.0
        %5449 = vmatprep.subr.mxu0 0.0
        %5450 = vmatpush1.xpose.msra.mxu0 0.0
        %5451 = vmatprep.subr.mxu0 0.0
        %5452 = vmatpush1.xpose.msra.mxu0 0.0
        %5453 = vmatprep.subr.mxu0 0.0
        %5454 = vmatpush1.xpose.msra.mxu0 0.0
        %5455 = vmatprep.subr.mxu0 0.0
        %5456 = vmatpush1.xpose.msra.mxu0 0.0
        %5457 = vmatprep.subr.mxu0 0.0
        %5458 = vmatpush1.xpose.msra.mxu0 0.0
        %5459 = vmatprep.subr.mxu0 0.0
        %5460 = vmatpush1.xpose.msra.mxu0 0.0
        %5461 = vmatprep.subr.mxu0 0.0
        %5462 = vmatpush1.xpose.msra.mxu0 0.0
        %5463 = vmatprep.mubr.f32.mxu0 0.0
        %5464 = vmatmul.mubr.f32.gmra.mrb[0].mxu0 %v5398
        %v5465 = vpop.f32.mrb[0].mxu0
        %v5466 = vadd.f32 0.0, %v5465
        %v5467 = vpop.f32.mrb[0].mxu0
        %5468 = vdwg.mxu0
        %s5469 = scalar_lea.vmem [#allocation13], 80
        %v5470 = vld [vmem:[%s5469] sm:$0xff]
        %5471 = vmatprep.subr.mxu0 0.0
        %5472 = vmatpush1.xpose.msra.mxu0 %v4742
        %5473 = vmatprep.subr.mxu0 0.0
        %5474 = vmatpush1.xpose.msra.mxu0 %v4747
        %5475 = vmatprep.subr.mxu0 0.0
        %5476 = vmatpush1.xpose.msra.mxu0 0.0
        %5477 = vmatprep.subr.mxu0 0.0
        %5478 = vmatpush1.xpose.msra.mxu0 0.0
        %5479 = vmatprep.subr.mxu0 0.0
        %5480 = vmatpush1.xpose.msra.mxu0 0.0
        %5481 = vmatprep.subr.mxu0 0.0
        %5482 = vmatpush1.xpose.msra.mxu0 0.0
        %5483 = vmatprep.subr.mxu0 0.0
        %5484 = vmatpush1.xpose.msra.mxu0 0.0
        %5485 = vmatprep.subr.mxu0 0.0
        %5486 = vmatpush1.xpose.msra.mxu0 0.0
        %5487 = vmatprep.subr.mxu0 0.0
        %5488 = vmatpush1.xpose.msra.mxu0 0.0
        %5489 = vmatprep.subr.mxu0 0.0
        %5490 = vmatpush1.xpose.msra.mxu0 0.0
        %5491 = vmatprep.subr.mxu0 0.0
        %5492 = vmatpush1.xpose.msra.mxu0 0.0
        %5493 = vmatprep.subr.mxu0 0.0
        %5494 = vmatpush1.xpose.msra.mxu0 0.0
        %5495 = vmatprep.subr.mxu0 0.0
        %5496 = vmatpush1.xpose.msra.mxu0 0.0
        %5497 = vmatprep.subr.mxu0 0.0
        %5498 = vmatpush1.xpose.msra.mxu0 0.0
        %5499 = vmatprep.subr.mxu0 0.0
        %5500 = vmatpush1.xpose.msra.mxu0 0.0
        %5501 = vmatprep.subr.mxu0 0.0
        %5502 = vmatpush1.xpose.msra.mxu0 0.0
        %5503 = vmatprep.subr.mxu0 0.0
        %5504 = vmatpush1.xpose.msra.mxu0 0.0
        %5505 = vmatprep.subr.mxu0 0.0
        %5506 = vmatpush1.xpose.msra.mxu0 0.0
        %5507 = vmatprep.subr.mxu0 0.0
        %5508 = vmatpush1.xpose.msra.mxu0 0.0
        %5509 = vmatprep.subr.mxu0 0.0
        %5510 = vmatpush1.xpose.msra.mxu0 0.0
        %5511 = vmatprep.subr.mxu0 0.0
        %5512 = vmatpush1.xpose.msra.mxu0 0.0
        %5513 = vmatprep.subr.mxu0 0.0
        %5514 = vmatpush1.xpose.msra.mxu0 0.0
        %5515 = vmatprep.subr.mxu0 0.0
        %5516 = vmatpush1.xpose.msra.mxu0 0.0
        %5517 = vmatprep.subr.mxu0 0.0
        %5518 = vmatpush1.xpose.msra.mxu0 0.0
        %5519 = vmatprep.subr.mxu0 0.0
        %5520 = vmatpush1.xpose.msra.mxu0 0.0
        %5521 = vmatprep.subr.mxu0 0.0
        %5522 = vmatpush1.xpose.msra.mxu0 0.0
        %5523 = vmatprep.subr.mxu0 0.0
        %5524 = vmatpush1.xpose.msra.mxu0 0.0
        %5525 = vmatprep.subr.mxu0 0.0
        %5526 = vmatpush1.xpose.msra.mxu0 0.0
        %5527 = vmatprep.subr.mxu0 0.0
        %5528 = vmatpush1.xpose.msra.mxu0 0.0
        %5529 = vmatprep.subr.mxu0 0.0
        %5530 = vmatpush1.xpose.msra.mxu0 0.0
        %5531 = vmatprep.subr.mxu0 0.0
        %5532 = vmatpush1.xpose.msra.mxu0 0.0
        %5533 = vmatprep.subr.mxu0 0.0
        %5534 = vmatpush1.xpose.msra.mxu0 0.0
        %5535 = vmatprep.mubr.f32.mxu0 0.0
        %5536 = vmatmul.mubr.f32.gmra.mrb[0].mxu0 %v5470
        %v5537 = vpop.f32.mrb[0].mxu0
        %v5538 = vadd.f32 0.0, %v5537
        %v5539 = vpop.f32.mrb[0].mxu0
        %5540 = vdwg.mxu0
        %s5541 = scalar_lea.vmem [#allocation13], 88
        %v5542 = vld [vmem:[%s5541] sm:$0xff]
        %5543 = vmatprep.subr.mxu0 0.0
        %5544 = vmatpush1.xpose.msra.mxu0 %v4742
        %5545 = vmatprep.subr.mxu0 0.0
        %5546 = vmatpush1.xpose.msra.mxu0 %v4747
        %5547 = vmatprep.subr.mxu0 0.0
        %5548 = vmatpush1.xpose.msra.mxu0 0.0
        %5549 = vmatprep.subr.mxu0 0.0
        %5550 = vmatpush1.xpose.msra.mxu0 0.0
        %5551 = vmatprep.subr.mxu0 0.0
        %5552 = vmatpush1.xpose.msra.mxu0 0.0
        %5553 = vmatprep.subr.mxu0 0.0
        %5554 = vmatpush1.xpose.msra.mxu0 0.0
        %5555 = vmatprep.subr.mxu0 0.0
        %5556 = vmatpush1.xpose.msra.mxu0 0.0
        %5557 = vmatprep.subr.mxu0 0.0
        %5558 = vmatpush1.xpose.msra.mxu0 0.0
        %5559 = vmatprep.subr.mxu0 0.0
        %5560 = vmatpush1.xpose.msra.mxu0 0.0
        %5561 = vmatprep.subr.mxu0 0.0
        %5562 = vmatpush1.xpose.msra.mxu0 0.0
        %5563 = vmatprep.subr.mxu0 0.0
        %5564 = vmatpush1.xpose.msra.mxu0 0.0
        %5565 = vmatprep.subr.mxu0 0.0
        %5566 = vmatpush1.xpose.msra.mxu0 0.0
        %5567 = vmatprep.subr.mxu0 0.0
        %5568 = vmatpush1.xpose.msra.mxu0 0.0
        %5569 = vmatprep.subr.mxu0 0.0
        %5570 = vmatpush1.xpose.msra.mxu0 0.0
        %5571 = vmatprep.subr.mxu0 0.0
        %5572 = vmatpush1.xpose.msra.mxu0 0.0
        %5573 = vmatprep.subr.mxu0 0.0
        %5574 = vmatpush1.xpose.msra.mxu0 0.0
        %5575 = vmatprep.subr.mxu0 0.0
        %5576 = vmatpush1.xpose.msra.mxu0 0.0
        %5577 = vmatprep.subr.mxu0 0.0
        %5578 = vmatpush1.xpose.msra.mxu0 0.0
        %5579 = vmatprep.subr.mxu0 0.0
        %5580 = vmatpush1.xpose.msra.mxu0 0.0
        %5581 = vmatprep.subr.mxu0 0.0
        %5582 = vmatpush1.xpose.msra.mxu0 0.0
        %5583 = vmatprep.subr.mxu0 0.0
        %5584 = vmatpush1.xpose.msra.mxu0 0.0
        %5585 = vmatprep.subr.mxu0 0.0
        %5586 = vmatpush1.xpose.msra.mxu0 0.0
        %5587 = vmatprep.subr.mxu0 0.0
        %5588 = vmatpush1.xpose.msra.mxu0 0.0
        %5589 = vmatprep.subr.mxu0 0.0
        %5590 = vmatpush1.xpose.msra.mxu0 0.0
        %5591 = vmatprep.subr.mxu0 0.0
        %5592 = vmatpush1.xpose.msra.mxu0 0.0
        %5593 = vmatprep.subr.mxu0 0.0
        %5594 = vmatpush1.xpose.msra.mxu0 0.0
        %5595 = vmatprep.subr.mxu0 0.0
        %5596 = vmatpush1.xpose.msra.mxu0 0.0
        %5597 = vmatprep.subr.mxu0 0.0
        %5598 = vmatpush1.xpose.msra.mxu0 0.0
        %5599 = vmatprep.subr.mxu0 0.0
        %5600 = vmatpush1.xpose.msra.mxu0 0.0
        %5601 = vmatprep.subr.mxu0 0.0
        %5602 = vmatpush1.xpose.msra.mxu0 0.0
        %5603 = vmatprep.subr.mxu0 0.0
        %5604 = vmatpush1.xpose.msra.mxu0 0.0
        %5605 = vmatprep.subr.mxu0 0.0
        %5606 = vmatpush1.xpose.msra.mxu0 0.0
        %5607 = vmatprep.mubr.f32.mxu0 0.0
        %5608 = vmatmul.mubr.f32.gmra.mrb[0].mxu0 %v5542
        %v5609 = vpop.f32.mrb[0].mxu0
        %v5610 = vadd.f32 0.0, %v5609
        %v5611 = vpop.f32.mrb[0].mxu0
        %5612 = vdwg.mxu0
        %s5613 = scalar_lea.vmem [#allocation13], 96
        %v5614 = vld [vmem:[%s5613] sm:$0xff]
        %5615 = vmatprep.subr.mxu0 0.0
        %5616 = vmatpush1.xpose.msra.mxu0 %v4742
        %5617 = vmatprep.subr.mxu0 0.0
        %5618 = vmatpush1.xpose.msra.mxu0 %v4747
        %5619 = vmatprep.subr.mxu0 0.0
        %5620 = vmatpush1.xpose.msra.mxu0 0.0
        %5621 = vmatprep.subr.mxu0 0.0
        %5622 = vmatpush1.xpose.msra.mxu0 0.0
        %5623 = vmatprep.subr.mxu0 0.0
        %5624 = vmatpush1.xpose.msra.mxu0 0.0
        %5625 = vmatprep.subr.mxu0 0.0
        %5626 = vmatpush1.xpose.msra.mxu0 0.0
        %5627 = vmatprep.subr.mxu0 0.0
        %5628 = vmatpush1.xpose.msra.mxu0 0.0
        %5629 = vmatprep.subr.mxu0 0.0
        %5630 = vmatpush1.xpose.msra.mxu0 0.0
        %5631 = vmatprep.subr.mxu0 0.0
        %5632 = vmatpush1.xpose.msra.mxu0 0.0
        %5633 = vmatprep.subr.mxu0 0.0
        %5634 = vmatpush1.xpose.msra.mxu0 0.0
        %5635 = vmatprep.subr.mxu0 0.0
        %5636 = vmatpush1.xpose.msra.mxu0 0.0
        %5637 = vmatprep.subr.mxu0 0.0
        %5638 = vmatpush1.xpose.msra.mxu0 0.0
        %5639 = vmatprep.subr.mxu0 0.0
        %5640 = vmatpush1.xpose.msra.mxu0 0.0
        %5641 = vmatprep.subr.mxu0 0.0
        %5642 = vmatpush1.xpose.msra.mxu0 0.0
        %5643 = vmatprep.subr.mxu0 0.0
        %5644 = vmatpush1.xpose.msra.mxu0 0.0
        %5645 = vmatprep.subr.mxu0 0.0
        %5646 = vmatpush1.xpose.msra.mxu0 0.0
        %5647 = vmatprep.subr.mxu0 0.0
        %5648 = vmatpush1.xpose.msra.mxu0 0.0
        %5649 = vmatprep.subr.mxu0 0.0
        %5650 = vmatpush1.xpose.msra.mxu0 0.0
        %5651 = vmatprep.subr.mxu0 0.0
        %5652 = vmatpush1.xpose.msra.mxu0 0.0
        %5653 = vmatprep.subr.mxu0 0.0
        %5654 = vmatpush1.xpose.msra.mxu0 0.0
        %5655 = vmatprep.subr.mxu0 0.0
        %5656 = vmatpush1.xpose.msra.mxu0 0.0
        %5657 = vmatprep.subr.mxu0 0.0
        %5658 = vmatpush1.xpose.msra.mxu0 0.0
        %5659 = vmatprep.subr.mxu0 0.0
        %5660 = vmatpush1.xpose.msra.mxu0 0.0
        %5661 = vmatprep.subr.mxu0 0.0
        %5662 = vmatpush1.xpose.msra.mxu0 0.0
        %5663 = vmatprep.subr.mxu0 0.0
        %5664 = vmatpush1.xpose.msra.mxu0 0.0
        %5665 = vmatprep.subr.mxu0 0.0
        %5666 = vmatpush1.xpose.msra.mxu0 0.0
        %5667 = vmatprep.subr.mxu0 0.0
        %5668 = vmatpush1.xpose.msra.mxu0 0.0
        %5669 = vmatprep.subr.mxu0 0.0
        %5670 = vmatpush1.xpose.msra.mxu0 0.0
        %5671 = vmatprep.subr.mxu0 0.0
        %5672 = vmatpush1.xpose.msra.mxu0 0.0
        %5673 = vmatprep.subr.mxu0 0.0
        %5674 = vmatpush1.xpose.msra.mxu0 0.0
        %5675 = vmatprep.subr.mxu0 0.0
        %5676 = vmatpush1.xpose.msra.mxu0 0.0
        %5677 = vmatprep.subr.mxu0 0.0
        %5678 = vmatpush1.xpose.msra.mxu0 0.0
        %5679 = vmatprep.mubr.f32.mxu0 0.0
        %5680 = vmatmul.mubr.f32.gmra.mrb[0].mxu0 %v5614
        %v5681 = vpop.f32.mrb[0].mxu0
        %v5682 = vadd.f32 0.0, %v5681
        %v5683 = vpop.f32.mrb[0].mxu0
        %5684 = vdwg.mxu0
        %s5685 = scalar_lea.vmem [#allocation13], 104
        %v5686 = vld [vmem:[%s5685] sm:$0xff]
        %5687 = vmatprep.subr.mxu0 0.0
        %5688 = vmatpush1.xpose.msra.mxu0 %v4742
        %5689 = vmatprep.subr.mxu0 0.0
        %5690 = vmatpush1.xpose.msra.mxu0 %v4747
        %5691 = vmatprep.subr.mxu0 0.0
        %5692 = vmatpush1.xpose.msra.mxu0 0.0
        %5693 = vmatprep.subr.mxu0 0.0
        %5694 = vmatpush1.xpose.msra.mxu0 0.0
        %5695 = vmatprep.subr.mxu0 0.0
        %5696 = vmatpush1.xpose.msra.mxu0 0.0
        %5697 = vmatprep.subr.mxu0 0.0
        %5698 = vmatpush1.xpose.msra.mxu0 0.0
        %5699 = vmatprep.subr.mxu0 0.0
        %5700 = vmatpush1.xpose.msra.mxu0 0.0
        %5701 = vmatprep.subr.mxu0 0.0
        %5702 = vmatpush1.xpose.msra.mxu0 0.0
        %5703 = vmatprep.subr.mxu0 0.0
        %5704 = vmatpush1.xpose.msra.mxu0 0.0
        %5705 = vmatprep.subr.mxu0 0.0
        %5706 = vmatpush1.xpose.msra.mxu0 0.0
        %5707 = vmatprep.subr.mxu0 0.0
        %5708 = vmatpush1.xpose.msra.mxu0 0.0
        %5709 = vmatprep.subr.mxu0 0.0
        %5710 = vmatpush1.xpose.msra.mxu0 0.0
        %5711 = vmatprep.subr.mxu0 0.0
        %5712 = vmatpush1.xpose.msra.mxu0 0.0
        %5713 = vmatprep.subr.mxu0 0.0
        %5714 = vmatpush1.xpose.msra.mxu0 0.0
        %5715 = vmatprep.subr.mxu0 0.0
        %5716 = vmatpush1.xpose.msra.mxu0 0.0
        %5717 = vmatprep.subr.mxu0 0.0
        %5718 = vmatpush1.xpose.msra.mxu0 0.0
        %5719 = vmatprep.subr.mxu0 0.0
        %5720 = vmatpush1.xpose.msra.mxu0 0.0
        %5721 = vmatprep.subr.mxu0 0.0
        %5722 = vmatpush1.xpose.msra.mxu0 0.0
        %5723 = vmatprep.subr.mxu0 0.0
        %5724 = vmatpush1.xpose.msra.mxu0 0.0
        %5725 = vmatprep.subr.mxu0 0.0
        %5726 = vmatpush1.xpose.msra.mxu0 0.0
        %5727 = vmatprep.subr.mxu0 0.0
        %5728 = vmatpush1.xpose.msra.mxu0 0.0
        %5729 = vmatprep.subr.mxu0 0.0
        %5730 = vmatpush1.xpose.msra.mxu0 0.0
        %5731 = vmatprep.subr.mxu0 0.0
        %5732 = vmatpush1.xpose.msra.mxu0 0.0
        %5733 = vmatprep.subr.mxu0 0.0
        %5734 = vmatpush1.xpose.msra.mxu0 0.0
        %5735 = vmatprep.subr.mxu0 0.0
        %5736 = vmatpush1.xpose.msra.mxu0 0.0
        %5737 = vmatprep.subr.mxu0 0.0
        %5738 = vmatpush1.xpose.msra.mxu0 0.0
        %5739 = vmatprep.subr.mxu0 0.0
        %5740 = vmatpush1.xpose.msra.mxu0 0.0
        %5741 = vmatprep.subr.mxu0 0.0
        %5742 = vmatpush1.xpose.msra.mxu0 0.0
        %5743 = vmatprep.subr.mxu0 0.0
        %5744 = vmatpush1.xpose.msra.mxu0 0.0
        %5745 = vmatprep.subr.mxu0 0.0
        %5746 = vmatpush1.xpose.msra.mxu0 0.0
        %5747 = vmatprep.subr.mxu0 0.0
        %5748 = vmatpush1.xpose.msra.mxu0 0.0
        %5749 = vmatprep.subr.mxu0 0.0
        %5750 = vmatpush1.xpose.msra.mxu0 0.0
        %5751 = vmatprep.mubr.f32.mxu0 0.0
        %5752 = vmatmul.mubr.f32.gmra.mrb[0].mxu0 %v5686
        %v5753 = vpop.f32.mrb[0].mxu0
        %v5754 = vadd.f32 0.0, %v5753
        %v5755 = vpop.f32.mrb[0].mxu0
        %5756 = vdwg.mxu0
        %s5757 = scalar_lea.vmem [#allocation13], 112
        %v5758 = vld [vmem:[%s5757] sm:$0xff]
        %5759 = vmatprep.subr.mxu0 0.0
        %5760 = vmatpush1.xpose.msra.mxu0 %v4742
        %5761 = vmatprep.subr.mxu0 0.0
        %5762 = vmatpush1.xpose.msra.mxu0 %v4747
        %5763 = vmatprep.subr.mxu0 0.0
        %5764 = vmatpush1.xpose.msra.mxu0 0.0
        %5765 = vmatprep.subr.mxu0 0.0
        %5766 = vmatpush1.xpose.msra.mxu0 0.0
        %5767 = vmatprep.subr.mxu0 0.0
        %5768 = vmatpush1.xpose.msra.mxu0 0.0
        %5769 = vmatprep.subr.mxu0 0.0
        %5770 = vmatpush1.xpose.msra.mxu0 0.0
        %5771 = vmatprep.subr.mxu0 0.0
        %5772 = vmatpush1.xpose.msra.mxu0 0.0
        %5773 = vmatprep.subr.mxu0 0.0
        %5774 = vmatpush1.xpose.msra.mxu0 0.0
        %5775 = vmatprep.subr.mxu0 0.0
        %5776 = vmatpush1.xpose.msra.mxu0 0.0
        %5777 = vmatprep.subr.mxu0 0.0
        %5778 = vmatpush1.xpose.msra.mxu0 0.0
        %5779 = vmatprep.subr.mxu0 0.0
        %5780 = vmatpush1.xpose.msra.mxu0 0.0
        %5781 = vmatprep.subr.mxu0 0.0
        %5782 = vmatpush1.xpose.msra.mxu0 0.0
        %5783 = vmatprep.subr.mxu0 0.0
        %5784 = vmatpush1.xpose.msra.mxu0 0.0
        %5785 = vmatprep.subr.mxu0 0.0
        %5786 = vmatpush1.xpose.msra.mxu0 0.0
        %5787 = vmatprep.subr.mxu0 0.0
        %5788 = vmatpush1.xpose.msra.mxu0 0.0
        %5789 = vmatprep.subr.mxu0 0.0
        %5790 = vmatpush1.xpose.msra.mxu0 0.0
        %5791 = vmatprep.subr.mxu0 0.0
        %5792 = vmatpush1.xpose.msra.mxu0 0.0
        %5793 = vmatprep.subr.mxu0 0.0
        %5794 = vmatpush1.xpose.msra.mxu0 0.0
        %5795 = vmatprep.subr.mxu0 0.0
        %5796 = vmatpush1.xpose.msra.mxu0 0.0
        %5797 = vmatprep.subr.mxu0 0.0
        %5798 = vmatpush1.xpose.msra.mxu0 0.0
        %5799 = vmatprep.subr.mxu0 0.0
        %5800 = vmatpush1.xpose.msra.mxu0 0.0
        %5801 = vmatprep.subr.mxu0 0.0
        %5802 = vmatpush1.xpose.msra.mxu0 0.0
        %5803 = vmatprep.subr.mxu0 0.0
        %5804 = vmatpush1.xpose.msra.mxu0 0.0
        %5805 = vmatprep.subr.mxu0 0.0
        %5806 = vmatpush1.xpose.msra.mxu0 0.0
        %5807 = vmatprep.subr.mxu0 0.0
        %5808 = vmatpush1.xpose.msra.mxu0 0.0
        %5809 = vmatprep.subr.mxu0 0.0
        %5810 = vmatpush1.xpose.msra.mxu0 0.0
        %5811 = vmatprep.subr.mxu0 0.0
        %5812 = vmatpush1.xpose.msra.mxu0 0.0
        %5813 = vmatprep.subr.mxu0 0.0
        %5814 = vmatpush1.xpose.msra.mxu0 0.0
        %5815 = vmatprep.subr.mxu0 0.0
        %5816 = vmatpush1.xpose.msra.mxu0 0.0
        %5817 = vmatprep.subr.mxu0 0.0
        %5818 = vmatpush1.xpose.msra.mxu0 0.0
        %5819 = vmatprep.subr.mxu0 0.0
        %5820 = vmatpush1.xpose.msra.mxu0 0.0
        %5821 = vmatprep.subr.mxu0 0.0
        %5822 = vmatpush1.xpose.msra.mxu0 0.0
        %5823 = vmatprep.mubr.f32.mxu0 0.0
        %5824 = vmatmul.mubr.f32.gmra.mrb[0].mxu0 %v5758
        %v5825 = vpop.f32.mrb[0].mxu0
        %v5826 = vadd.f32 0.0, %v5825
        %v5827 = vpop.f32.mrb[0].mxu0
        %5828 = vdwg.mxu0
        %s5829 = scalar_lea.vmem [#allocation13], 120
        %v5830 = vld [vmem:[%s5829] sm:$0xff]
        %5831 = vmatprep.subr.mxu0 0.0
        %5832 = vmatpush1.xpose.msra.mxu0 %v4742
        %5833 = vmatprep.subr.mxu0 0.0
        %5834 = vmatpush1.xpose.msra.mxu0 %v4747
        %5835 = vmatprep.subr.mxu0 0.0
        %5836 = vmatpush1.xpose.msra.mxu0 0.0
        %5837 = vmatprep.subr.mxu0 0.0
        %5838 = vmatpush1.xpose.msra.mxu0 0.0
        %5839 = vmatprep.subr.mxu0 0.0
        %5840 = vmatpush1.xpose.msra.mxu0 0.0
        %5841 = vmatprep.subr.mxu0 0.0
        %5842 = vmatpush1.xpose.msra.mxu0 0.0
        %5843 = vmatprep.subr.mxu0 0.0
        %5844 = vmatpush1.xpose.msra.mxu0 0.0
        %5845 = vmatprep.subr.mxu0 0.0
        %5846 = vmatpush1.xpose.msra.mxu0 0.0
        %5847 = vmatprep.subr.mxu0 0.0
        %5848 = vmatpush1.xpose.msra.mxu0 0.0
        %5849 = vmatprep.subr.mxu0 0.0
        %5850 = vmatpush1.xpose.msra.mxu0 0.0
        %5851 = vmatprep.subr.mxu0 0.0
        %5852 = vmatpush1.xpose.msra.mxu0 0.0
        %5853 = vmatprep.subr.mxu0 0.0
        %5854 = vmatpush1.xpose.msra.mxu0 0.0
        %5855 = vmatprep.subr.mxu0 0.0
        %5856 = vmatpush1.xpose.msra.mxu0 0.0
        %5857 = vmatprep.subr.mxu0 0.0
        %5858 = vmatpush1.xpose.msra.mxu0 0.0
        %5859 = vmatprep.subr.mxu0 0.0
        %5860 = vmatpush1.xpose.msra.mxu0 0.0
        %5861 = vmatprep.subr.mxu0 0.0
        %5862 = vmatpush1.xpose.msra.mxu0 0.0
        %5863 = vmatprep.subr.mxu0 0.0
        %5864 = vmatpush1.xpose.msra.mxu0 0.0
        %5865 = vmatprep.subr.mxu0 0.0
        %5866 = vmatpush1.xpose.msra.mxu0 0.0
        %5867 = vmatprep.subr.mxu0 0.0
        %5868 = vmatpush1.xpose.msra.mxu0 0.0
        %5869 = vmatprep.subr.mxu0 0.0
        %5870 = vmatpush1.xpose.msra.mxu0 0.0
        %5871 = vmatprep.subr.mxu0 0.0
        %5872 = vmatpush1.xpose.msra.mxu0 0.0
        %5873 = vmatprep.subr.mxu0 0.0
        %5874 = vmatpush1.xpose.msra.mxu0 0.0
        %5875 = vmatprep.subr.mxu0 0.0
        %5876 = vmatpush1.xpose.msra.mxu0 0.0
        %5877 = vmatprep.subr.mxu0 0.0
        %5878 = vmatpush1.xpose.msra.mxu0 0.0
        %5879 = vmatprep.subr.mxu0 0.0
        %5880 = vmatpush1.xpose.msra.mxu0 0.0
        %5881 = vmatprep.subr.mxu0 0.0
        %5882 = vmatpush1.xpose.msra.mxu0 0.0
        %5883 = vmatprep.subr.mxu0 0.0
        %5884 = vmatpush1.xpose.msra.mxu0 0.0
        %5885 = vmatprep.subr.mxu0 0.0
        %5886 = vmatpush1.xpose.msra.mxu0 0.0
        %5887 = vmatprep.subr.mxu0 0.0
        %5888 = vmatpush1.xpose.msra.mxu0 0.0
        %5889 = vmatprep.subr.mxu0 0.0
        %5890 = vmatpush1.xpose.msra.mxu0 0.0
        %5891 = vmatprep.subr.mxu0 0.0
        %5892 = vmatpush1.xpose.msra.mxu0 0.0
        %5893 = vmatprep.subr.mxu0 0.0
        %5894 = vmatpush1.xpose.msra.mxu0 0.0
        %5895 = vmatprep.mubr.f32.mxu0 0.0
        %5896 = vmatmul.mubr.f32.gmra.mrb[0].mxu0 %v5830
        %v5897 = vpop.f32.mrb[0].mxu0
        %v5898 = vadd.f32 0.0, %v5897
        %v5899 = vpop.f32.mrb[0].mxu0
        %5900 = vdwg.mxu0
        %5902 = vrot.lane.b32.xlu0 %v4890, 16
        %v5903 = vpop.permute.xlu0 %5902
        %5906 = vrot.lane.b32.xlu0 %v4962, 32
        %v5907 = vpop.permute.xlu0 %5906
        %5910 = vrot.lane.b32.xlu0 %v5034, 48
        %v5911 = vpop.permute.xlu0 %5910
        %5914 = vrot.lane.b32.xlu0 %v5106, 64
        %v5915 = vpop.permute.xlu0 %5914
        %5918 = vrot.lane.b32.xlu0 %v5178, 80
        %v5919 = vpop.permute.xlu0 %5918
        %5922 = vrot.lane.b32.xlu0 %v5250, 96
        %v5923 = vpop.permute.xlu0 %5922
        %5926 = vrot.lane.b32.xlu0 %v5322, 112
        %v5927 = vpop.permute.xlu0 %5926
        %5930 = vrot.lane.b32.xlu0 %v5466, 16
        %v5931 = vpop.permute.xlu0 %5930
        %5934 = vrot.lane.b32.xlu0 %v5538, 32
        %v5935 = vpop.permute.xlu0 %5934
        %5938 = vrot.lane.b32.xlu0 %v5610, 48
        %v5939 = vpop.permute.xlu0 %5938
        %5942 = vrot.lane.b32.xlu0 %v5682, 64
        %v5943 = vpop.permute.xlu0 %5942
        %5946 = vrot.lane.b32.xlu0 %v5754, 80
        %v5947 = vpop.permute.xlu0 %5946
        %5950 = vrot.lane.b32.xlu0 %v5826, 96
        %v5951 = vpop.permute.xlu0 %5950
        %5954 = vrot.lane.b32.xlu0 %v5898, 112
        %v5955 = vpop.permute.xlu0 %5954
        %v5957 = vsel %vm1407, %v4818, %v5903
        %v5958 = vsel %vm1440, %v5957, %v5907
        %v5959 = vsel %vm1486, %v5958, %v5911
        %v5960 = vsel %vm3619, %v5959, %v5915
        %vm5961 = vcmask 654336
        %v5962 = vsel %vm5961, %v5960, %v5919
        %vm5963 = vcmask 785408
        %v5964 = vsel %vm5963, %v5962, %v5923
        %vm5965 = vcmask 916480
        %v5966 = vsel %vm5965, %v5964, %v5927
        %v5967 = vsel %vm1407, %v5394, %v5931
        %v5968 = vsel %vm1440, %v5967, %v5935
        %v5969 = vsel %vm1486, %v5968, %v5939
        %v5970 = vsel %vm3619, %v5969, %v5943
        %v5971 = vsel %vm5961, %v5970, %v5947
        %v5972 = vsel %vm5963, %v5971, %v5951
        %v5973 = vsel %vm5965, %v5972, %v5955
        %v5974 = vld [vmem:[#allocation14] sm:$0xff]
        %v5975 = vld [vmem:[#allocation14 + $0x8] sm:$0xff]
        %v5976 = vld [vmem:[#allocation14 + $0x10] sm:$0xff]
        %v5977 = vld [vmem:[#allocation14 + $0x18] sm:$0xff]
        %v5978 = vld [vmem:[#allocation14 + $0x20] sm:$0xff]
        %v5979 = vld [vmem:[#allocation14 + $0x28] sm:$0xff]
        %v5980 = vld [vmem:[#allocation14 + $0x30] sm:$0xff]
        %v5981 = vld [vmem:[#allocation14 + $0x38] sm:$0xff]
        %v5982 = vld [vmem:[#allocation14 + $0x40] sm:$0xff]
        %v5983 = vld [vmem:[#allocation14 + $0x48] sm:$0xff]
        %v5984 = vld [vmem:[#allocation14 + $0x50] sm:$0xff]
        %v5985 = vld [vmem:[#allocation14 + $0x58] sm:$0xff]
        %v5986 = vld [vmem:[#allocation14 + $0x60] sm:$0xff]
        %v5987 = vld [vmem:[#allocation14 + $0x68] sm:$0xff]
        %v5988 = vld [vmem:[#allocation14 + $0x70] sm:$0xff]
        %v5989 = vld [vmem:[#allocation14 + $0x78] sm:$0xff]
        %v5990 = vld [vmem:[#allocation14 + $0x80] sm:$0xff]
        %v5991 = vld [vmem:[#allocation14 + $0x88] sm:$0xff]
        %v5992 = vld [vmem:[#allocation14 + $0x90] sm:$0xff]
        %v5993 = vld [vmem:[#allocation14 + $0x98] sm:$0xff]
        %v5994 = vld [vmem:[#allocation14 + $0xa0] sm:$0xff]
        %v5995 = vld [vmem:[#allocation14 + $0xa8] sm:$0xff]
        %v5996 = vld [vmem:[#allocation14 + $0xb0] sm:$0xff]
        %v5997 = vld [vmem:[#allocation14 + $0xb8] sm:$0xff]
        %v5998 = vld [vmem:[#allocation14 + $0xc0] sm:$0xff]
        %v5999 = vld [vmem:[#allocation14 + $0xc8] sm:$0xff]
        %v6000 = vld [vmem:[#allocation14 + $0xd0] sm:$0xff]
        %v6001 = vld [vmem:[#allocation14 + $0xd8] sm:$0xff]
        %v6002 = vld [vmem:[#allocation14 + $0xe0] sm:$0xff]
        %v6003 = vld [vmem:[#allocation14 + $0xe8] sm:$0xff]
        %v6004 = vld [vmem:[#allocation14 + $0xf0] sm:$0xff]
        %v6005 = vld [vmem:[#allocation14 + $0xf8] sm:$0xff]
        %v6006 = vld [vmem:[%s17] sm:$0x1]
        %v6008 = vlaneseq
        %v6009 = vshrl.u32 %v6008, 7
        %v6010 = vsub.s32 0, %v6009
        %v6011 = vrot.slane %v6006, %v6010
        %6013 = vmatprep.subr.mxu0 0.0
        %6014 = vmatpush1.msra.mxu0 %v5974
        %6015 = vmatprep.subr.mxu0 0.0
        %6016 = vmatpush1.msra.mxu0 %v5975
        %6017 = vmatprep.subr.mxu0 0.0
        %6018 = vmatpush1.msra.mxu0 %v5976
        %6019 = vmatprep.subr.mxu0 0.0
        %6020 = vmatpush1.msra.mxu0 %v5977
        %6021 = vmatprep.subr.mxu0 0.0
        %6022 = vmatpush1.msra.mxu0 %v5978
        %6023 = vmatprep.subr.mxu0 0.0
        %6024 = vmatpush1.msra.mxu0 %v5979
        %6025 = vmatprep.subr.mxu0 0.0
        %6026 = vmatpush1.msra.mxu0 %v5980
        %6027 = vmatprep.subr.mxu0 0.0
        %6028 = vmatpush1.msra.mxu0 %v5981
        %6029 = vmatprep.subr.mxu0 0.0
        %6030 = vmatpush1.msra.mxu0 %v5982
        %6031 = vmatprep.subr.mxu0 0.0
        %6032 = vmatpush1.msra.mxu0 %v5983
        %6033 = vmatprep.subr.mxu0 0.0
        %6034 = vmatpush1.msra.mxu0 %v5984
        %6035 = vmatprep.subr.mxu0 0.0
        %6036 = vmatpush1.msra.mxu0 %v5985
        %6037 = vmatprep.subr.mxu0 0.0
        %6038 = vmatpush1.msra.mxu0 %v5986
        %6039 = vmatprep.subr.mxu0 0.0
        %6040 = vmatpush1.msra.mxu0 %v5987
        %6041 = vmatprep.subr.mxu0 0.0
        %6042 = vmatpush1.msra.mxu0 %v5988
        %6043 = vmatprep.subr.mxu0 0.0
        %6044 = vmatpush1.msra.mxu0 %v5989
        %6045 = vmatprep.subr.mxu0 0.0
        %6046 = vmatpush1.msra.mxu0 %v5990
        %6047 = vmatprep.subr.mxu0 0.0
        %6048 = vmatpush1.msra.mxu0 %v5991
        %6049 = vmatprep.subr.mxu0 0.0
        %6050 = vmatpush1.msra.mxu0 %v5992
        %6051 = vmatprep.subr.mxu0 0.0
        %6052 = vmatpush1.msra.mxu0 %v5993
        %6053 = vmatprep.subr.mxu0 0.0
        %6054 = vmatpush1.msra.mxu0 %v5994
        %6055 = vmatprep.subr.mxu0 0.0
        %6056 = vmatpush1.msra.mxu0 %v5995
        %6057 = vmatprep.subr.mxu0 0.0
        %6058 = vmatpush1.msra.mxu0 %v5996
        %6059 = vmatprep.subr.mxu0 0.0
        %6060 = vmatpush1.msra.mxu0 %v5997
        %6061 = vmatprep.subr.mxu0 0.0
        %6062 = vmatpush1.msra.mxu0 %v5998
        %6063 = vmatprep.subr.mxu0 0.0
        %6064 = vmatpush1.msra.mxu0 %v5999
        %6065 = vmatprep.subr.mxu0 0.0
        %6066 = vmatpush1.msra.mxu0 %v6000
        %6067 = vmatprep.subr.mxu0 0.0
        %6068 = vmatpush1.msra.mxu0 %v6001
        %6069 = vmatprep.subr.mxu0 0.0
        %6070 = vmatpush1.msra.mxu0 %v6002
        %6071 = vmatprep.subr.mxu0 0.0
        %6072 = vmatpush1.msra.mxu0 %v6003
        %6073 = vmatprep.subr.mxu0 0.0
        %6074 = vmatpush1.msra.mxu0 %v6004
        %6075 = vmatprep.subr.mxu0 0.0
        %6076 = vmatpush1.msra.mxu0 %v6005
        %6077 = vmatprep.mubr.f32.mxu0 %v5973
        %6078 = vmatmul.mubr.f32.gmra.mrb[0].mxu0 %v5966
        %v6079 = vpop.f32.mrb[0].mxu0
        %v6080 = vadd.f32 %v6011, %v6079
        %v6081 = vpop.f32.mrb[0].mxu0
        %6082 = vdwg.mxu0
        %v6083 = vmax.f32 %v6080, 0.0
        %v6084 = vld [vmem:[#allocation16] sm:$0xff]
        %v6085 = vld [vmem:[#allocation16 + $0x8] sm:$0xff]
        %v6086 = vld [vmem:[#allocation16 + $0x10] sm:$0xff]
        %v6087 = vld [vmem:[#allocation16 + $0x18] sm:$0xff]
        %v6088 = vld [vmem:[#allocation16 + $0x20] sm:$0xff]
        %v6089 = vld [vmem:[#allocation16 + $0x28] sm:$0xff]
        %v6090 = vld [vmem:[#allocation16 + $0x30] sm:$0xff]
        %v6091 = vld [vmem:[#allocation16 + $0x38] sm:$0xff]
        %v6092 = vld [vmem:[#allocation16 + $0x40] sm:$0xff]
        %v6093 = vld [vmem:[#allocation16 + $0x48] sm:$0xff]
        %v6094 = vld [vmem:[#allocation16 + $0x50] sm:$0xff]
        %v6095 = vld [vmem:[#allocation16 + $0x58] sm:$0xff]
        %v6096 = vld [vmem:[#allocation16 + $0x60] sm:$0xff]
        %v6097 = vld [vmem:[#allocation16 + $0x68] sm:$0xff]
        %v6098 = vld [vmem:[#allocation16 + $0x70] sm:$0xff]
        %v6099 = vld [vmem:[#allocation16 + $0x78] sm:$0xff]
        %v6100 = vld [vmem:[%s19] sm:$0x1]
        %v6102 = vlaneseq
        %v6103 = vshrl.u32 %v6102, 7
        %v6104 = vsub.s32 0, %v6103
        %v6105 = vrot.slane %v6100, %v6104
        %6107 = vmatprep.subr.mxu0 0.0
        %6108 = vmatpush1.msra.mxu0 %v6084
        %6109 = vmatprep.subr.mxu0 0.0
        %6110 = vmatpush1.msra.mxu0 %v6085
        %6111 = vmatprep.subr.mxu0 0.0
        %6112 = vmatpush1.msra.mxu0 %v6086
        %6113 = vmatprep.subr.mxu0 0.0
        %6114 = vmatpush1.msra.mxu0 %v6087
        %6115 = vmatprep.subr.mxu0 0.0
        %6116 = vmatpush1.msra.mxu0 %v6088
        %6117 = vmatprep.subr.mxu0 0.0
        %6118 = vmatpush1.msra.mxu0 %v6089
        %6119 = vmatprep.subr.mxu0 0.0
        %6120 = vmatpush1.msra.mxu0 %v6090
        %6121 = vmatprep.subr.mxu0 0.0
        %6122 = vmatpush1.msra.mxu0 %v6091
        %6123 = vmatprep.subr.mxu0 0.0
        %6124 = vmatpush1.msra.mxu0 %v6092
        %6125 = vmatprep.subr.mxu0 0.0
        %6126 = vmatpush1.msra.mxu0 %v6093
        %6127 = vmatprep.subr.mxu0 0.0
        %6128 = vmatpush1.msra.mxu0 %v6094
        %6129 = vmatprep.subr.mxu0 0.0
        %6130 = vmatpush1.msra.mxu0 %v6095
        %6131 = vmatprep.subr.mxu0 0.0
        %6132 = vmatpush1.msra.mxu0 %v6096
        %6133 = vmatprep.subr.mxu0 0.0
        %6134 = vmatpush1.msra.mxu0 %v6097
        %6135 = vmatprep.subr.mxu0 0.0
        %6136 = vmatpush1.msra.mxu0 %v6098
        %6137 = vmatprep.subr.mxu0 0.0
        %6138 = vmatpush1.msra.mxu0 %v6099
        %6139 = vmatprep.subr.mxu0 0.0
        %6140 = vmatpush1.msra.mxu0 0.0
        %6141 = vmatprep.subr.mxu0 0.0
        %6142 = vmatpush1.msra.mxu0 0.0
        %6143 = vmatprep.subr.mxu0 0.0
        %6144 = vmatpush1.msra.mxu0 0.0
        %6145 = vmatprep.subr.mxu0 0.0
        %6146 = vmatpush1.msra.mxu0 0.0
        %6147 = vmatprep.subr.mxu0 0.0
        %6148 = vmatpush1.msra.mxu0 0.0
        %6149 = vmatprep.subr.mxu0 0.0
        %6150 = vmatpush1.msra.mxu0 0.0
        %6151 = vmatprep.subr.mxu0 0.0
        %6152 = vmatpush1.msra.mxu0 0.0
        %6153 = vmatprep.subr.mxu0 0.0
        %6154 = vmatpush1.msra.mxu0 0.0
        %6155 = vmatprep.subr.mxu0 0.0
        %6156 = vmatpush1.msra.mxu0 0.0
        %6157 = vmatprep.subr.mxu0 0.0
        %6158 = vmatpush1.msra.mxu0 0.0
        %6159 = vmatprep.subr.mxu0 0.0
        %6160 = vmatpush1.msra.mxu0 0.0
        %6161 = vmatprep.subr.mxu0 0.0
        %6162 = vmatpush1.msra.mxu0 0.0
        %6163 = vmatprep.subr.mxu0 0.0
        %6164 = vmatpush1.msra.mxu0 0.0
        %6165 = vmatprep.subr.mxu0 0.0
        %6166 = vmatpush1.msra.mxu0 0.0
        %6167 = vmatprep.subr.mxu0 0.0
        %6168 = vmatpush1.msra.mxu0 0.0
        %6169 = vmatprep.subr.mxu0 0.0
        %6170 = vmatpush1.msra.mxu0 0.0
        %6171 = vmatprep.mubr.f32.mxu0 0.0
        %6172 = vmatmul.mubr.f32.gmra.mrb[0].mxu0 %v6083
        %v6173 = vpop.f32.mrb[0].mxu0
        %v6174 = vadd.f32 %v6105, %v6173
        %v6175 = vpop.f32.mrb[0].mxu0
        %6176 = vdwg.mxu0
        %v6177 = vmax.f32 %v6174, 0.0
        %v6178 = vld [vmem:[#allocation17] sm:$0xff]
        %v6179 = vld [vmem:[#allocation17 + $0x8] sm:$0xff]
        %v6180 = vld [vmem:[#allocation17 + $0x10] sm:$0xff]
        %v6181 = vld [vmem:[#allocation17 + $0x18] sm:$0xff]
        %v6182 = vld [vmem:[#allocation17 + $0x20] sm:$0xff]
        %v6183 = vld [vmem:[#allocation17 + $0x28] sm:$0xff]
        %v6184 = vld [vmem:[#allocation17 + $0x30] sm:$0xff]
        %v6185 = vld [vmem:[#allocation17 + $0x38] sm:$0xff]
        %v6186 = vld [vmem:[#allocation17 + $0x40] sm:$0xff]
        %v6187 = vld [vmem:[#allocation17 + $0x48] sm:$0xff]
        %v6188 = vld [vmem:[#allocation17 + $0x50] sm:$0xff]
        %v6189 = vld [vmem:[#allocation17 + $0x58] sm:$0xff]
        %v6190 = vld [vmem:[#allocation17 + $0x60] sm:$0xff]
        %v6191 = vld [vmem:[#allocation17 + $0x68] sm:$0xff]
        %v6192 = vld [vmem:[#allocation17 + $0x70] sm:$0xff]
        %v6193 = vld [vmem:[#allocation17 + $0x78] sm:$0xff]
        %v6194 = vld [vmem:[#allocation17 + $0x80] sm:$0xff]
        %v6195 = vld [vmem:[#allocation17 + $0x88] sm:$0xff]
        %v6196 = vld [vmem:[#allocation17 + $0x90] sm:$0xff]
        %v6197 = vld [vmem:[#allocation17 + $0x98] sm:$0xff]
        %v6198 = vld [vmem:[#allocation17 + $0xa0] sm:$0xff]
        %v6199 = vld [vmem:[#allocation17 + $0xa8] sm:$0xff]
        %v6200 = vld [vmem:[#allocation17 + $0xb0] sm:$0xff]
        %v6201 = vld [vmem:[#allocation17 + $0xb8] sm:$0xff]
        %v6202 = vld [vmem:[#allocation17 + $0xc0] sm:$0xff]
        %v6203 = vld [vmem:[#allocation17 + $0xc8] sm:$0xff]
        %v6204 = vld [vmem:[#allocation17 + $0xd0] sm:$0xff]
        %v6205 = vld [vmem:[#allocation17 + $0xd8] sm:$0xff]
        %v6206 = vld [vmem:[#allocation17 + $0xe0] sm:$0xff]
        %v6207 = vld [vmem:[#allocation17 + $0xe8] sm:$0xff]
        %v6208 = vld [vmem:[#allocation17 + $0xf0] sm:$0xff]
        %v6209 = vld [vmem:[#allocation17 + $0xf8] sm:$0xff]
        %v6210 = vld [vmem:[%s21] sm:$0x3]
        %v6212 = vlaneseq
        %v6213 = vshrl.u32 %v6212, 7
        %v6214 = vsub.s32 0, %v6213
        %v6215 = vrot.slane %v6210, %v6214
        %v6216 = vlaneseq
        %v6217 = vshrl.u32 %v6216, 7
        %v6218 = vsub.s32 1, %v6217
        %v6219 = vrot.slane %v6210, %v6218
        %6222 = vmatprep.subr.mxu0 %v6179
        %6223 = vmatpush1.msra.mxu0 %v6178
        %6224 = vmatprep.subr.mxu0 %v6181
        %6225 = vmatpush1.msra.mxu0 %v6180
        %6226 = vmatprep.subr.mxu0 %v6183
        %6227 = vmatpush1.msra.mxu0 %v6182
        %6228 = vmatprep.subr.mxu0 %v6185
        %6229 = vmatpush1.msra.mxu0 %v6184
        %6230 = vmatprep.subr.mxu0 %v6187
        %6231 = vmatpush1.msra.mxu0 %v6186
        %6232 = vmatprep.subr.mxu0 %v6189
        %6233 = vmatpush1.msra.mxu0 %v6188
        %6234 = vmatprep.subr.mxu0 %v6191
        %6235 = vmatpush1.msra.mxu0 %v6190
        %6236 = vmatprep.subr.mxu0 %v6193
        %6237 = vmatpush1.msra.mxu0 %v6192
        %6238 = vmatprep.subr.mxu0 %v6195
        %6239 = vmatpush1.msra.mxu0 %v6194
        %6240 = vmatprep.subr.mxu0 %v6197
        %6241 = vmatpush1.msra.mxu0 %v6196
        %6242 = vmatprep.subr.mxu0 %v6199
        %6243 = vmatpush1.msra.mxu0 %v6198
        %6244 = vmatprep.subr.mxu0 %v6201
        %6245 = vmatpush1.msra.mxu0 %v6200
        %6246 = vmatprep.subr.mxu0 %v6203
        %6247 = vmatpush1.msra.mxu0 %v6202
        %6248 = vmatprep.subr.mxu0 %v6205
        %6249 = vmatpush1.msra.mxu0 %v6204
        %6250 = vmatprep.subr.mxu0 %v6207
        %6251 = vmatpush1.msra.mxu0 %v6206
        %6252 = vmatprep.subr.mxu0 %v6209
        %6253 = vmatpush1.msra.mxu0 %v6208
        %6254 = vmatprep.subr.mxu0 0.0
        %6255 = vmatpush1.msra.mxu0 0.0
        %6256 = vmatprep.subr.mxu0 0.0
        %6257 = vmatpush1.msra.mxu0 0.0
        %6258 = vmatprep.subr.mxu0 0.0
        %6259 = vmatpush1.msra.mxu0 0.0
        %6260 = vmatprep.subr.mxu0 0.0
        %6261 = vmatpush1.msra.mxu0 0.0
        %6262 = vmatprep.subr.mxu0 0.0
        %6263 = vmatpush1.msra.mxu0 0.0
        %6264 = vmatprep.subr.mxu0 0.0
        %6265 = vmatpush1.msra.mxu0 0.0
        %6266 = vmatprep.subr.mxu0 0.0
        %6267 = vmatpush1.msra.mxu0 0.0
        %6268 = vmatprep.subr.mxu0 0.0
        %6269 = vmatpush1.msra.mxu0 0.0
        %6270 = vmatprep.subr.mxu0 0.0
        %6271 = vmatpush1.msra.mxu0 0.0
        %6272 = vmatprep.subr.mxu0 0.0
        %6273 = vmatpush1.msra.mxu0 0.0
        %6274 = vmatprep.subr.mxu0 0.0
        %6275 = vmatpush1.msra.mxu0 0.0
        %6276 = vmatprep.subr.mxu0 0.0
        %6277 = vmatpush1.msra.mxu0 0.0
        %6278 = vmatprep.subr.mxu0 0.0
        %6279 = vmatpush1.msra.mxu0 0.0
        %6280 = vmatprep.subr.mxu0 0.0
        %6281 = vmatpush1.msra.mxu0 0.0
        %6282 = vmatprep.subr.mxu0 0.0
        %6283 = vmatpush1.msra.mxu0 0.0
        %6284 = vmatprep.subr.mxu0 0.0
        %6285 = vmatpush1.msra.mxu0 0.0
        %6286 = vmatprep.mubr.f32.mxu0 0.0
        %6287 = vmatmul.mubr.f32.gmra.mrb[0].mxu0 %v6177
        %v6288 = vpop.f32.mrb[0].mxu0
        %v6289 = vadd.f32 %v6215, %v6288
        %v6290 = vpop.f32.mrb[0].mxu0
        %v6291 = vadd.f32 %v6219, %v6290
        %6292 = vdwg.mxu0
        %6293 = vst [vmem:[%s822] sm:$0xff] %v6289
        %6294 = vst [vmem:[%s822 + $0x8] sm:$0xff] %v6291
        %s6295 = sand.u32 %s517, 1
        %s6296 = scalar_lea.sflag [#allocation4], %s6295
        %s6297 = sand.u32 %s517, 1
        %s6298 = smul.addr %s6297, 16
        %s6299 = scalar_lea.vmem [#allocation19], %s6298
        // Predicated region
        $region149: #{wisig_forward.1} parent=107 // pred_check
          %p6300 = pneg %p527
        $region150: #{wisig_forward.1} parent=107 // pred_check_branch
          %6302 = sbr.rel (%p6300) target = $region152
        $region151: #{wisig_forward.1} parent=107 // pred_region
          %s6304 = ssub.s32 256, 256
          %6305 = vsyncadd %s6296, %s6304
          %s6306 = smul.addr %s42, 2
          %s6307 = smul.addr %s6306, 128
          %s6308 = scalar_lea.hbm %s22, %s6307
          %s6310 = sshll.u32 %s6299, 4
          %s6311 = int_to_ptr.vmem [resolvable:$true] %s6310
          %6313 = dma.vmem_to_hbm [thread:$0]  %s6311, 256, %s6308, %s6296
        $region152: #{wisig_forward.1} parent=107 // pred_fallthru
          _
      $region108: #{wisig_forward.1} parent=5 // pred_fallthru
        _
      %p6314 = scmp.le.s32.totalorder 2, %s37
      // Predicated region
      $region153: #{wisig_forward.1} parent=5 // pred_check
        %p6315 = pneg %p6314
      $region154: #{wisig_forward.1} parent=5 // pred_check_branch
        %6317 = sbr.rel (%p6315) target = $region156
      $region155: #{wisig_forward.1} parent=5 // pred_region
        %s6318 = ssub.s32 %s37, 2
        // Predicated region
        $region157: #{wisig_forward.1} parent=155 // pred_check
          %p6319 = pneg %p533
        $region158: #{wisig_forward.1} parent=155 // pred_check_branch
          %6321 = sbr.rel (%p6319) target = $region160
        $region159: #{wisig_forward.1} parent=155 // pred_region
          %s6322 = sand.u32 %s518, 1
          %s6323 = scalar_lea.sflag [#allocation4], %s6322
          %s6324 = sand.u32 %s518, 1
          %s6325 = smul.addr %s6324, 16
          %s6326 = scalar_lea.vmem [#allocation19], %s6325
          %6327 = dma.done %s6323, 256
        $region160: #{wisig_forward.1} parent=155 // pred_fallthru
          _
      $region156: #{wisig_forward.1} parent=5 // pred_fallthru
        _
    $region6: #{wisig_forward.1} parent=1 // loop_footer
      %s41 = sadd.s32 1, %s37
    $region7: #{wisig_forward.1} parent=1 // loop_footer_branch
      %36 = sbr.rel target = $region3
    $region8: #{wisig_forward.1} parent=1 // loop_exit
      _
    %6328 = vsyncpa [#allocation3], 1
    %s6329 = scalar_lea.sflag [#allocation3], 1
    %6330 = vsyncpa %s6329, 1
    %6331 = vsyncpa [#allocation6], 1
    %6332 = vsyncpa [#allocation9], 1
    %6333 = vsyncpa [#allocation12], 1
    %6334 = vsyncpa [#allocation15], 1
    %6335 = vsyncpa [#allocation18], 1
    %6336 = vsyncpa [#allocation4], 1
    %s6337 = scalar_lea.sflag [#allocation4], 1
    %6338 = vsyncpa %s6337, 1

</llo_original>
